<compile_context>
chip_gen: v7x
topology: tpu7x:2x2x1
jax: 0.10.0
libtpu: 0.0.40
codegen_flags: <defaults>
</compile_context>

<pallas_src>
import jax
import jax.numpy as jnp
from jax.experimental import pallas as pl
from jax.experimental.pallas import tpu as pltpu


# ---------------------------------------------------------------------------
# One-time parameter preparation (hoisted out of the per-call forward).
# ---------------------------------------------------------------------------
def prepare_params(w1, w2):
    # w1 : (512, 32, 3, 3, 8) = (o, a, p, i, k)
    #   -> (512, 2304) bf16 with K ordered (p, i, a, k):
    #      K = (p*3 + i)*256 + a*8 + k   (matches the B^T scratch layout).
    w1f = jnp.transpose(w1, (0, 2, 3, 1, 4)).reshape(512, 2304)
    w1f = w1f.astype(jnp.bfloat16)

    # w2 : (256, 3, 8) = (c, i, k)
    #   -> block-diagonal (3, 256, 256) bf16:
    #      w2e[i, a*8 + k, c] = w2[c, i, k] iff c // 8 == a, else 0
    #      so that the b-contraction T_i = w2e[i] @ x runs on the MXU.
    r = jnp.arange(256)
    c = jnp.arange(256)
    blockmask = (r[:, None] // 8) == (c[None, :] // 8)           # (256, 256)
    w2_ick = jnp.transpose(w2, (1, 2, 0))                         # (3, 8, 256)
    vals = w2_ick[:, r % 8, :]                                    # (3, 256, 256) [i, r, c]
    w2e = jnp.where(blockmask[None, :, :], vals, 0.0).astype(jnp.bfloat16)
    return w1f, w2e


# ---------------------------------------------------------------------------
# Fused Pallas kernel: build B^T in VMEM, then one big MXU dot.
# ---------------------------------------------------------------------------
def _fused_kernel(x_ref, w2e_ref, w1f_ref, o_ref, t_ref, bp_ref):
    # x_ref  : (256, 256) bf16  columns 0..80 hold the zero-padded 9x9 image
    #                           flattened with row stride 9; columns >=81 are 0.
    # w2e_ref: (3, 256, 256) bf16
    # w1f_ref: (512, 2304) bf16
    # o_ref  : (512, 128) f32   columns m = h*9 + w (h,w in 0..6) are the result
    # t_ref  : (256, 256) bf16  scratch: T_i[(a,k), m'] = sum_b w2*x
    # bp_ref : (2304, 128) bf16 scratch: B^T with K order (p, i, a, k)
    x = x_ref[...]
    for i in range(3):
        t_ref[...] = jnp.dot(
            w2e_ref[i], x, preferred_element_type=jnp.float32
        ).astype(jnp.bfloat16)
        for p in range(3):
            # B[a,p,i,k,h,w] = T_i[a*8+k, (p*9+i) + (h*9+w)]
            bp_ref[pl.ds((p * 3 + i) * 256, 256), :] = (
                t_ref[:, pl.ds(p * 9 + i, 128)])
    o_ref[...] = jnp.dot(w1f_ref[...], bp_ref[...],
                         preferred_element_type=jnp.float32)


def _conv_pallas(x256, w2e, w1f):
    return pl.pallas_call(
        _fused_kernel,
        out_shape=jax.ShapeDtypeStruct((512, 128), jnp.float32),
        grid_spec=pltpu.PrefetchScalarGridSpec(
            num_scalar_prefetch=0,
            grid=(1,),
            in_specs=[
                pl.BlockSpec((256, 256), lambda n: (0, 0)),
                pl.BlockSpec((3, 256, 256), lambda n: (0, 0, 0)),
                pl.BlockSpec((512, 2304), lambda n: (0, 0)),
            ],
            out_specs=pl.BlockSpec((512, 128), lambda n: (0, 0)),
            scratch_shapes=[
                pltpu.VMEM((256, 256), jnp.bfloat16),     # T_i
                pltpu.VMEM((2304, 128), jnp.bfloat16),    # B^T
            ],
        ),
        compiler_params=pltpu.CompilerParams(
            dimension_semantics=("arbitrary",)),
        cost_estimate=pl.CostEstimate(
            flops=2 * (3 * 256 * 256 * 128 + 512 * 2304 * 128),
            transcendentals=0,
            bytes_accessed=(256 * 256 * 2 + 3 * 256 * 256 * 2
                            + 512 * 2304 * 2 + 512 * 128 * 4)),
    )(x256, w2e, w1f)


# ---------------------------------------------------------------------------
# Per-call forward: tiny x prep + fused kernel + tiny output extraction.
# ---------------------------------------------------------------------------
def kernel_manual_5_forward(x, w1f, w2e):
    # x : (1, 256, 7, 7) f32
    xs = x.reshape(256, 7, 7)
    x81 = jnp.pad(xs, ((0, 0), (1, 1), (1, 1))).reshape(256, 81)   # 9x9 padded, flat
    x256 = jnp.pad(x81, ((0, 0), (0, 256 - 81))).astype(jnp.bfloat16)
    y128 = _conv_pallas(x256, w2e, w1f)                            # (512, 128) f32
    # keep columns m = h*9 + w with h, w in 0..6
    y = y128[:, :63].reshape(512, 7, 9)[:, :, :7]
    return y.reshape(1, 512, 7, 7)


# ---------------------------------------------------------------------------
# Pure-JAX literal translation of the torch forward (reference check).
# ---------------------------------------------------------------------------
def torch_style_reference(x, w1, w2):
    t3 = x.reshape(1, 1792, 7, 1)
    # unfold (3,1), pad (1,0): out[:, c*3+i, h] = in[:, c, h+i-1]
    t3p = jnp.pad(t3[0, :, :, 0], ((0, 0), (1, 1)))                # (1792, 9)
    cols = jnp.stack([t3p[:, i:i + 7] for i in range(3)], axis=1)  # (1792, 3, 7)
    t3u = cols.reshape(1, 1792 * 3, 7)
    t3r = t3u.reshape(1, 256, 7, 3, 7)
    t4 = jnp.einsum('mjlin,jik->mjlink', t3r, w2)
    t5 = t4.reshape(1, 32, 8, 7, 3, 7, 8).sum(axis=2)
    t6 = t5.reshape(1, 32, 7, 168)
    # unfold (3,1), pad (1,0) on (1, 32, 7, 168)
    t6p = jnp.pad(t6[0], ((0, 0), (1, 1), (0, 0)))                 # (32, 9, 168)
    cols2 = jnp.stack([t6p[:, p:p + 7, :] for p in range(3)], axis=1)  # (32, 3, 7, 168)
    t6u = cols2.reshape(1, 32 * 3, 7 * 168)
    t6r = t6u.reshape(1, 32, 3, 7, 3, 7, 8)
    t7 = jnp.einsum('nljpkom,iljkm->nipo', t6r, w1)
    return t7


if __name__ == "__main__":
    key = jax.random.PRNGKey(0)
    kx, k1, k2 = jax.random.split(key, 3)

    # Deterministic "randn"-like parameters (shapes from the module __init__).
    w1 = jax.random.normal(k1, (512, 32, 3, 3, 8), dtype=jnp.float32)
    w2 = jax.random.normal(k2, (256, 3, 8), dtype=jnp.float32)

    # Input: forward implies 12544 elements; NCHW (1, 256, 7, 7).
    x = jax.random.normal(kx, (1, 256, 7, 7), dtype=jnp.float32)

    # One-time weight prep (hoisted out of the per-call forward).
    w1f, w2e = prepare_params(w1, w2)
    w1f, w2e = jax.block_until_ready((w1f, w2e))

    fwd = jax.jit(kernel_manual_5_forward)
    y = jax.block_until_ready(fwd(x, w1f, w2e))
    assert y.shape == (1, 512, 7, 7)

    # Correctness check against a literal translation of the torch graph
    # (f32 reference; bf16 operands + f32 accumulation keep rel err ~1e-2).
    y_ref = torch_style_reference(x, w1, w2)
    rel_err = jnp.max(jnp.abs(y - y_ref)) / (jnp.max(jnp.abs(y_ref)) + 1e-6)
    assert float(rel_err) < 5e-2, f"mismatch: rel_err={float(rel_err)}"

    print("KERNEL_OK")
</pallas_src>

<mosaic_0001>
module attributes {stable_mosaic.version = 11 : i64} {
  func.func @_fused_kernel(%arg0: i32, %arg1: memref<256x256xbf16, #tpu.memory_space<vmem>>, %arg2: memref<3x256x256xbf16, #tpu.memory_space<vmem>>, %arg3: memref<512x2304xbf16, #tpu.memory_space<vmem>>, %arg4: memref<512x128xf32, #tpu.memory_space<vmem>>, %arg5: memref<256x256xbf16, #tpu.memory_space<vmem>>, %arg6: memref<2304x128xbf16, #tpu.memory_space<vmem>>) attributes {dimension_semantics = [#tpu.dimension_semantics<arbitrary>], iteration_bounds = array<i64: 1>, scalar_prefetch = 0 : i64, scratch_operands = 2 : i64, tpu.core_type = #tpu.core_type<tc>, window_params = [{pipeline_mode = #tpu.pipeline_mode<synchronous>, transform_indices = @transform_0, window_bounds = array<i64: 256, 256>}, {pipeline_mode = #tpu.pipeline_mode<synchronous>, transform_indices = @transform_1, window_bounds = array<i64: 3, 256, 256>}, {pipeline_mode = #tpu.pipeline_mode<synchronous>, transform_indices = @transform_2, window_bounds = array<i64: 512, 2304>}, {pipeline_mode = #tpu.pipeline_mode<synchronous>, transform_indices = @transform_3, window_bounds = array<i64: 512, 128>}]} {
    %c0 = arith.constant 0 : index
    %c0_0 = arith.constant 0 : index
    %0 = vector.load %arg1[%c0, %c0_0] : memref<256x256xbf16, #tpu.memory_space<vmem>>, vector<256x256xbf16>
    %c0_1 = arith.constant 0 : index
    %c0_2 = arith.constant 0 : index
    %c0_3 = arith.constant 0 : index
    %1 = vector.load %arg2[%c0_1, %c0_2, %c0_3] : memref<3x256x256xbf16, #tpu.memory_space<vmem>>, vector<1x256x256xbf16>
    %2 = vector.shape_cast %1 : vector<1x256x256xbf16> to vector<256x256xbf16>
    %cst = arith.constant dense<0.000000e+00> : vector<256x256xf32>
    %3 = tpu.matmul %2, %0, %cst {dimension_numbers = #tpu.dot_dimension_numbers<[1], [0], [0], [1], [0, 0, 1, 1], [], []>} : vector<256x256xbf16>, vector<256x256xbf16>, vector<256x256xf32> -> vector<256x256xf32>
    %4 = arith.truncf %3 : vector<256x256xf32> to vector<256x256xbf16>
    %c0_4 = arith.constant 0 : index
    %c0_5 = arith.constant 0 : index
    %5 = vector.load %arg5[%c0_4, %c0_5] : memref<256x256xbf16, #tpu.memory_space<vmem>>, vector<256x256xbf16>
    tpu.vector_store %arg5[%c0_4, %c0_5], %4 {strides = array<i32>} : memref<256x256xbf16, #tpu.memory_space<vmem>>, vector<256x256xbf16>,
    %c0_6 = arith.constant 0 : index
    %c0_7 = arith.constant 0 : index
    %6 = vector.load %arg5[%c0_6, %c0_7] : memref<256x256xbf16, #tpu.memory_space<vmem>>, vector<256x128xbf16>
    %c0_8 = arith.constant 0 : index
    %c0_9 = arith.constant 0 : index
    %7 = vector.load %arg6[%c0_8, %c0_9] : memref<2304x128xbf16, #tpu.memory_space<vmem>>, vector<256x128xbf16>
    tpu.vector_store %arg6[%c0_8, %c0_9], %6 {strides = array<i32>} : memref<2304x128xbf16, #tpu.memory_space<vmem>>, vector<256x128xbf16>,
    %c0_10 = arith.constant 0 : index
    %c9 = arith.constant 9 : index
    %8 = vector.load %arg5[%c0_10, %c9] : memref<256x256xbf16, #tpu.memory_space<vmem>>, vector<256x128xbf16>
    %c768 = arith.constant 768 : index
    %c0_11 = arith.constant 0 : index
    %9 = vector.load %arg6[%c768, %c0_11] : memref<2304x128xbf16, #tpu.memory_space<vmem>>, vector<256x128xbf16>
    tpu.vector_store %arg6[%c768, %c0_11], %8 {strides = array<i32>} : memref<2304x128xbf16, #tpu.memory_space<vmem>>, vector<256x128xbf16>,
    %c0_12 = arith.constant 0 : index
    %c18 = arith.constant 18 : index
    %10 = vector.load %arg5[%c0_12, %c18] : memref<256x256xbf16, #tpu.memory_space<vmem>>, vector<256x128xbf16>
    %c1536 = arith.constant 1536 : index
    %c0_13 = arith.constant 0 : index
    %11 = vector.load %arg6[%c1536, %c0_13] : memref<2304x128xbf16, #tpu.memory_space<vmem>>, vector<256x128xbf16>
    tpu.vector_store %arg6[%c1536, %c0_13], %10 {strides = array<i32>} : memref<2304x128xbf16, #tpu.memory_space<vmem>>, vector<256x128xbf16>,
    %c1 = arith.constant 1 : index
    %c0_14 = arith.constant 0 : index
    %c0_15 = arith.constant 0 : index
    %12 = vector.load %arg2[%c1, %c0_14, %c0_15] : memref<3x256x256xbf16, #tpu.memory_space<vmem>>, vector<1x256x256xbf16>
    %13 = vector.shape_cast %12 : vector<1x256x256xbf16> to vector<256x256xbf16>
    %cst_16 = arith.constant dense<0.000000e+00> : vector<256x256xf32>
    %14 = tpu.matmul %13, %0, %cst_16 {dimension_numbers = #tpu.dot_dimension_numbers<[1], [0], [0], [1], [0, 0, 1, 1], [], []>} : vector<256x256xbf16>, vector<256x256xbf16>, vector<256x256xf32> -> vector<256x256xf32>
    %15 = arith.truncf %14 : vector<256x256xf32> to vector<256x256xbf16>
    %c0_17 = arith.constant 0 : index
    %c0_18 = arith.constant 0 : index
    %16 = vector.load %arg5[%c0_17, %c0_18] : memref<256x256xbf16, #tpu.memory_space<vmem>>, vector<256x256xbf16>
    tpu.vector_store %arg5[%c0_17, %c0_18], %15 {strides = array<i32>} : memref<256x256xbf16, #tpu.memory_space<vmem>>, vector<256x256xbf16>,
    %c0_19 = arith.constant 0 : index
    %c1_20 = arith.constant 1 : index
    %17 = vector.load %arg5[%c0_19, %c1_20] : memref<256x256xbf16, #tpu.memory_space<vmem>>, vector<256x128xbf16>
    %c256 = arith.constant 256 : index
    %c0_21 = arith.constant 0 : index
    %18 = vector.load %arg6[%c256, %c0_21] : memref<2304x128xbf16, #tpu.memory_space<vmem>>, vector<256x128xbf16>
    tpu.vector_store %arg6[%c256, %c0_21], %17 {strides = array<i32>} : memref<2304x128xbf16, #tpu.memory_space<vmem>>, vector<256x128xbf16>,
    %c0_22 = arith.constant 0 : index
    %c10 = arith.constant 10 : index
    %19 = vector.load %arg5[%c0_22, %c10] : memref<256x256xbf16, #tpu.memory_space<vmem>>, vector<256x128xbf16>
    %c1024 = arith.constant 1024 : index
    %c0_23 = arith.constant 0 : index
    %20 = vector.load %arg6[%c1024, %c0_23] : memref<2304x128xbf16, #tpu.memory_space<vmem>>, vector<256x128xbf16>
    tpu.vector_store %arg6[%c1024, %c0_23], %19 {strides = array<i32>} : memref<2304x128xbf16, #tpu.memory_space<vmem>>, vector<256x128xbf16>,
    %c0_24 = arith.constant 0 : index
    %c19 = arith.constant 19 : index
    %21 = vector.load %arg5[%c0_24, %c19] : memref<256x256xbf16, #tpu.memory_space<vmem>>, vector<256x128xbf16>
    %c1792 = arith.constant 1792 : index
    %c0_25 = arith.constant 0 : index
    %22 = vector.load %arg6[%c1792, %c0_25] : memref<2304x128xbf16, #tpu.memory_space<vmem>>, vector<256x128xbf16>
    tpu.vector_store %arg6[%c1792, %c0_25], %21 {strides = array<i32>} : memref<2304x128xbf16, #tpu.memory_space<vmem>>, vector<256x128xbf16>,
    %c2 = arith.constant 2 : index
    %c0_26 = arith.constant 0 : index
    %c0_27 = arith.constant 0 : index
    %23 = vector.load %arg2[%c2, %c0_26, %c0_27] : memref<3x256x256xbf16, #tpu.memory_space<vmem>>, vector<1x256x256xbf16>
    %24 = vector.shape_cast %23 : vector<1x256x256xbf16> to vector<256x256xbf16>
    %cst_28 = arith.constant dense<0.000000e+00> : vector<256x256xf32>
    %25 = tpu.matmul %24, %0, %cst_28 {dimension_numbers = #tpu.dot_dimension_numbers<[1], [0], [0], [1], [0, 0, 1, 1], [], []>} : vector<256x256xbf16>, vector<256x256xbf16>, vector<256x256xf32> -> vector<256x256xf32>
    %26 = arith.truncf %25 : vector<256x256xf32> to vector<256x256xbf16>
    %c0_29 = arith.constant 0 : index
    %c0_30 = arith.constant 0 : index
    %27 = vector.load %arg5[%c0_29, %c0_30] : memref<256x256xbf16, #tpu.memory_space<vmem>>, vector<256x256xbf16>
    tpu.vector_store %arg5[%c0_29, %c0_30], %26 {strides = array<i32>} : memref<256x256xbf16, #tpu.memory_space<vmem>>, vector<256x256xbf16>,
    %c0_31 = arith.constant 0 : index
    %c2_32 = arith.constant 2 : index
    %28 = vector.load %arg5[%c0_31, %c2_32] : memref<256x256xbf16, #tpu.memory_space<vmem>>, vector<256x128xbf16>
    %c512 = arith.constant 512 : index
    %c0_33 = arith.constant 0 : index
    %29 = vector.load %arg6[%c512, %c0_33] : memref<2304x128xbf16, #tpu.memory_space<vmem>>, vector<256x128xbf16>
    tpu.vector_store %arg6[%c512, %c0_33], %28 {strides = array<i32>} : memref<2304x128xbf16, #tpu.memory_space<vmem>>, vector<256x128xbf16>,
    %c0_34 = arith.constant 0 : index
    %c11 = arith.constant 11 : index
    %30 = vector.load %arg5[%c0_34, %c11] : memref<256x256xbf16, #tpu.memory_space<vmem>>, vector<256x128xbf16>
    %c1280 = arith.constant 1280 : index
    %c0_35 = arith.constant 0 : index
    %31 = vector.load %arg6[%c1280, %c0_35] : memref<2304x128xbf16, #tpu.memory_space<vmem>>, vector<256x128xbf16>
    tpu.vector_store %arg6[%c1280, %c0_35], %30 {strides = array<i32>} : memref<2304x128xbf16, #tpu.memory_space<vmem>>, vector<256x128xbf16>,
    %c0_36 = arith.constant 0 : index
    %c20 = arith.constant 20 : index
    %32 = vector.load %arg5[%c0_36, %c20] : memref<256x256xbf16, #tpu.memory_space<vmem>>, vector<256x128xbf16>
    %c2048 = arith.constant 2048 : index
    %c0_37 = arith.constant 0 : index
    %33 = vector.load %arg6[%c2048, %c0_37] : memref<2304x128xbf16, #tpu.memory_space<vmem>>, vector<256x128xbf16>
    tpu.vector_store %arg6[%c2048, %c0_37], %32 {strides = array<i32>} : memref<2304x128xbf16, #tpu.memory_space<vmem>>, vector<256x128xbf16>,
    %c0_38 = arith.constant 0 : index
    %c0_39 = arith.constant 0 : index
    %34 = vector.load %arg3[%c0_38, %c0_39] : memref<512x2304xbf16, #tpu.memory_space<vmem>>, vector<512x2304xbf16>
    %c0_40 = arith.constant 0 : index
    %c0_41 = arith.constant 0 : index
    %35 = vector.load %arg6[%c0_40, %c0_41] : memref<2304x128xbf16, #tpu.memory_space<vmem>>, vector<2304x128xbf16>
    %cst_42 = arith.constant dense<0.000000e+00> : vector<512x128xf32>
    %36 = tpu.matmul %34, %35, %cst_42 {dimension_numbers = #tpu.dot_dimension_numbers<[1], [0], [0], [1], [0, 0, 1, 1], [], []>} : vector<512x2304xbf16>, vector<2304x128xbf16>, vector<512x128xf32> -> vector<512x128xf32>
    %c0_43 = arith.constant 0 : index
    %c0_44 = arith.constant 0 : index
    %37 = vector.load %arg4[%c0_43, %c0_44] : memref<512x128xf32, #tpu.memory_space<vmem>>, vector<512x128xf32>
    tpu.vector_store %arg4[%c0_43, %c0_44], %36 {strides = array<i32>} : memref<512x128xf32, #tpu.memory_space<vmem>>, vector<512x128xf32>,
    return
  }
  func.func @transform_0(%arg0: i32) -> (i32, i32) {
    %c0_i32 = arith.constant 0 : i32
    %c0_i32_0 = arith.constant 0 : i32
    %c0_i32_1 = arith.constant 0 : i32
    return %c0_i32, %c0_i32_0 : i32, i32
  }
  func.func @transform_1(%arg0: i32) -> (i32, i32, i32) {
    %c0_i32 = arith.constant 0 : i32
    %c0_i32_0 = arith.constant 0 : i32
    %c0_i32_1 = arith.constant 0 : i32
    %c0_i32_2 = arith.constant 0 : i32
    return %c0_i32, %c0_i32_0, %c0_i32_1 : i32, i32, i32
  }
  func.func @transform_2(%arg0: i32) -> (i32, i32) {
    %c0_i32 = arith.constant 0 : i32
    %c0_i32_0 = arith.constant 0 : i32
    %c0_i32_1 = arith.constant 0 : i32
    return %c0_i32, %c0_i32_0 : i32, i32
  }
  func.func @transform_3(%arg0: i32) -> (i32, i32) {
    %c0_i32 = arith.constant 0 : i32
    %c0_i32_0 = arith.constant 0 : i32
    %c0_i32_1 = arith.constant 0 : i32
    return %c0_i32, %c0_i32_0 : i32, i32
  }
}

</mosaic_0001>

<llo_original>
// kernel: kernel_manual_5_forward.1
$region0: #{kernel_manual_5_forward.1}
  #allocation0 [shape = 'u32[]', space=smem, size = 0x4, offset = 0x4, fixed_abs, tag = 'smem constant byte address 0x4 - core index']
  #allocation1 [shape = 'u32[144,128]{1,0:T(1,128)}', space=vmem, size = 0x12000, scoped, tag = 'internal scratch']
  #allocation2 [shape = 'bf16[256,256]{1,0:T(16,128)(2,1)}', space=vmem, size = 0x20000, scoped, tag = 'scratch operand']
  #allocation3 [shape = 'bf16[2304,128]{1,0:T(16,128)(2,1)}', space=vmem, size = 0x90000, scoped, tag = 'scratch operand']
  %s0 = inlined_call_operand.vmem [shape: bf16[256,256], index: 0, kind: input, shape index: {}]
  %s1 = inlined_call_operand.hbm [shape: bf16[3,256,256], index: 1, kind: input, shape index: {}]
  %s2 = inlined_call_operand.hbm [shape: bf16[512,2304], index: 2, kind: input, shape index: {}]
  %s3 = inlined_call_operand.vmem [shape: f32[512,128], index: 3, kind: output, shape index: {}]
  %s4 = sld [smem:[#allocation0]]
  $region30: #{kernel_manual_5_forward.1} parent=0
    _
  %s6 = ssub.s32 1, %s4
  %s7 = scalar_select 0, %s6, %s4
  $region1: #{kernel_manual_5_forward.1} parent=0
    #allocation4 [shape = 'u8[393216]{0}', space=vmem, size = 0x60000, scoped, tag = 'input window, operand 1, single buffered']
    #allocation5 [shape = 's32[1]{0}', space=sflag, size = 0x4, scoped, tag = 'scoped memory for kernel_manual_5_forward.1']
    #allocation6 [shape = 'u8[2359296]{0}', space=vmem, size = 0x240000, scoped, tag = 'input window, operand 2, single buffered']
    #allocation7 [shape = 's32[1]{0}', space=sflag, size = 0x4, scoped, tag = 'scoped memory for kernel_manual_5_forward.1']
    %8 = vsyncpa [#allocation5], 0
    %9 = vsyncpa [#allocation7], 0
    // Predicated region
    $region2: #{kernel_manual_5_forward.1} parent=1 // pred_check
      _
    $region3: #{kernel_manual_5_forward.1} parent=1 // pred_check_branch
      %11 = sbr.rel (0) target = $region5
    $region4: #{kernel_manual_5_forward.1} parent=1 // pred_region
      _
    $region5: #{kernel_manual_5_forward.1} parent=1 // pred_fallthru
      _
    // Predicated region
    $region6: #{kernel_manual_5_forward.1} parent=1 // pred_check
      _
    $region7: #{kernel_manual_5_forward.1} parent=1 // pred_check_branch
      %13 = sbr.rel (0) target = $region9
    $region8: #{kernel_manual_5_forward.1} parent=1 // pred_region
      %s15 = ssub.s32 12288, 12288
      %16 = vsyncadd [#allocation5], %s15
      %s17 = sshll.u32 [#allocation4], 4
      %s18 = int_to_ptr.vmem [resolvable:$true] %s17
      %23 = dma.hbm_to_vmem [thread:$0]  %s1, 12288, %s18, [#allocation5], 128, 128, 8
    $region9: #{kernel_manual_5_forward.1} parent=1 // pred_fallthru
      _
    // Predicated region
    $region10: #{kernel_manual_5_forward.1} parent=1 // pred_check
      _
    $region11: #{kernel_manual_5_forward.1} parent=1 // pred_check_branch
      %25 = sbr.rel (0) target = $region13
    $region12: #{kernel_manual_5_forward.1} parent=1 // pred_region
      %s27 = ssub.s32 73728, 73728
      %28 = vsyncadd [#allocation7], %s27
      %s29 = sshll.u32 [#allocation6], 4
      %s30 = int_to_ptr.vmem [resolvable:$true] %s29
      %35 = dma.hbm_to_vmem [thread:$0]  %s2, 73728, %s30, [#allocation7], 1152, 1152, 72
    $region13: #{kernel_manual_5_forward.1} parent=1 // pred_fallthru
      _
    // Predicated region
    $region14: #{kernel_manual_5_forward.1} parent=1 // pred_check
      _
    $region15: #{kernel_manual_5_forward.1} parent=1 // pred_check_branch
      %37 = sbr.rel (0) target = $region17
    $region16: #{kernel_manual_5_forward.1} parent=1 // pred_region
      %38 = dma.done [#allocation5], 12288
    $region17: #{kernel_manual_5_forward.1} parent=1 // pred_fallthru
      _
    // Predicated region
    $region18: #{kernel_manual_5_forward.1} parent=1 // pred_check
      _
    $region19: #{kernel_manual_5_forward.1} parent=1 // pred_check_branch
      %40 = sbr.rel (0) target = $region21
    $region20: #{kernel_manual_5_forward.1} parent=1 // pred_region
      %41 = dma.done [#allocation7], 73728
    $region21: #{kernel_manual_5_forward.1} parent=1 // pred_fallthru
      _
    %v43 = vld [vmem:[%s0] sm:$0xff]
    %v44 = vld [vmem:[%s0 + $0x8] sm:$0xff]
    %v45 = vld [vmem:[%s0 + $0x10] sm:$0xff]
    %v46 = vld [vmem:[%s0 + $0x18] sm:$0xff]
    %v47 = vld [vmem:[%s0 + $0x20] sm:$0xff]
    %v48 = vld [vmem:[%s0 + $0x28] sm:$0xff]
    %v49 = vld [vmem:[%s0 + $0x30] sm:$0xff]
    %v50 = vld [vmem:[%s0 + $0x38] sm:$0xff]
    %v51 = vld [vmem:[%s0 + $0x40] sm:$0xff]
    %v52 = vld [vmem:[%s0 + $0x48] sm:$0xff]
    %v53 = vld [vmem:[%s0 + $0x50] sm:$0xff]
    %v54 = vld [vmem:[%s0 + $0x58] sm:$0xff]
    %v55 = vld [vmem:[%s0 + $0x60] sm:$0xff]
    %v56 = vld [vmem:[%s0 + $0x68] sm:$0xff]
    %v57 = vld [vmem:[%s0 + $0x70] sm:$0xff]
    %v58 = vld [vmem:[%s0 + $0x78] sm:$0xff]
    %v59 = vld [vmem:[%s0 + $0x80] sm:$0xff]
    %v60 = vld [vmem:[%s0 + $0x88] sm:$0xff]
    %v61 = vld [vmem:[%s0 + $0x90] sm:$0xff]
    %v62 = vld [vmem:[%s0 + $0x98] sm:$0xff]
    %v63 = vld [vmem:[%s0 + $0xa0] sm:$0xff]
    %v64 = vld [vmem:[%s0 + $0xa8] sm:$0xff]
    %v65 = vld [vmem:[%s0 + $0xb0] sm:$0xff]
    %v66 = vld [vmem:[%s0 + $0xb8] sm:$0xff]
    %v67 = vld [vmem:[%s0 + $0xc0] sm:$0xff]
    %v68 = vld [vmem:[%s0 + $0xc8] sm:$0xff]
    %v69 = vld [vmem:[%s0 + $0xd0] sm:$0xff]
    %v70 = vld [vmem:[%s0 + $0xd8] sm:$0xff]
    %v71 = vld [vmem:[%s0 + $0xe0] sm:$0xff]
    %v72 = vld [vmem:[%s0 + $0xe8] sm:$0xff]
    %v73 = vld [vmem:[%s0 + $0xf0] sm:$0xff]
    %v74 = vld [vmem:[%s0 + $0xf8] sm:$0xff]
    %v75 = vld [vmem:[#allocation4] sm:$0xff]
    %v76 = vld [vmem:[#allocation4 + $0x8] sm:$0xff]
    %v77 = vld [vmem:[#allocation4 + $0x10] sm:$0xff]
    %v78 = vld [vmem:[#allocation4 + $0x18] sm:$0xff]
    %v79 = vld [vmem:[#allocation4 + $0x20] sm:$0xff]
    %v80 = vld [vmem:[#allocation4 + $0x28] sm:$0xff]
    %v81 = vld [vmem:[#allocation4 + $0x30] sm:$0xff]
    %v82 = vld [vmem:[#allocation4 + $0x38] sm:$0xff]
    %v83 = vld [vmem:[#allocation4 + $0x40] sm:$0xff]
    %v84 = vld [vmem:[#allocation4 + $0x48] sm:$0xff]
    %v85 = vld [vmem:[#allocation4 + $0x50] sm:$0xff]
    %v86 = vld [vmem:[#allocation4 + $0x58] sm:$0xff]
    %v87 = vld [vmem:[#allocation4 + $0x60] sm:$0xff]
    %v88 = vld [vmem:[#allocation4 + $0x68] sm:$0xff]
    %v89 = vld [vmem:[#allocation4 + $0x70] sm:$0xff]
    %v90 = vld [vmem:[#allocation4 + $0x78] sm:$0xff]
    %v91 = vld [vmem:[#allocation4 + $0x80] sm:$0xff]
    %v92 = vld [vmem:[#allocation4 + $0x88] sm:$0xff]
    %v93 = vld [vmem:[#allocation4 + $0x90] sm:$0xff]
    %v94 = vld [vmem:[#allocation4 + $0x98] sm:$0xff]
    %v95 = vld [vmem:[#allocation4 + $0xa0] sm:$0xff]
    %v96 = vld [vmem:[#allocation4 + $0xa8] sm:$0xff]
    %v97 = vld [vmem:[#allocation4 + $0xb0] sm:$0xff]
    %v98 = vld [vmem:[#allocation4 + $0xb8] sm:$0xff]
    %v99 = vld [vmem:[#allocation4 + $0xc0] sm:$0xff]
    %v100 = vld [vmem:[#allocation4 + $0xc8] sm:$0xff]
    %v101 = vld [vmem:[#allocation4 + $0xd0] sm:$0xff]
    %v102 = vld [vmem:[#allocation4 + $0xd8] sm:$0xff]
    %v103 = vld [vmem:[#allocation4 + $0xe0] sm:$0xff]
    %v104 = vld [vmem:[#allocation4 + $0xe8] sm:$0xff]
    %v105 = vld [vmem:[#allocation4 + $0xf0] sm:$0xff]
    %v106 = vld [vmem:[#allocation4 + $0xf8] sm:$0xff]
    %v139 = vunpack.c.l.b16 %v75
    %v140 = vunpack.c.h.b16 %v75
    %v141 = vunpack.c.l.b16 %v76
    %v142 = vunpack.c.h.b16 %v76
    %v143 = vunpack.c.l.b16 %v77
    %v144 = vunpack.c.h.b16 %v77
    %v145 = vunpack.c.l.b16 %v78
    %v146 = vunpack.c.h.b16 %v78
    %v147 = vunpack.c.l.b16 %v79
    %v148 = vunpack.c.h.b16 %v79
    %v149 = vunpack.c.l.b16 %v80
    %v150 = vunpack.c.h.b16 %v80
    %v151 = vunpack.c.l.b16 %v81
    %v152 = vunpack.c.h.b16 %v81
    %v153 = vunpack.c.l.b16 %v82
    %v154 = vunpack.c.h.b16 %v82
    %v155 = vunpack.c.l.b16 %v83
    %v156 = vunpack.c.h.b16 %v83
    %v157 = vunpack.c.l.b16 %v84
    %v158 = vunpack.c.h.b16 %v84
    %v159 = vunpack.c.l.b16 %v85
    %v160 = vunpack.c.h.b16 %v85
    %v161 = vunpack.c.l.b16 %v86
    %v162 = vunpack.c.h.b16 %v86
    %v163 = vunpack.c.l.b16 %v87
    %v164 = vunpack.c.h.b16 %v87
    %v165 = vunpack.c.l.b16 %v88
    %v166 = vunpack.c.h.b16 %v88
    %v167 = vunpack.c.l.b16 %v89
    %v168 = vunpack.c.h.b16 %v89
    %v169 = vunpack.c.l.b16 %v90
    %v170 = vunpack.c.h.b16 %v90
    %v171 = vunpack.c.l.b16 %v91
    %v172 = vunpack.c.h.b16 %v91
    %v173 = vunpack.c.l.b16 %v92
    %v174 = vunpack.c.h.b16 %v92
    %v175 = vunpack.c.l.b16 %v93
    %v176 = vunpack.c.h.b16 %v93
    %v177 = vunpack.c.l.b16 %v94
    %v178 = vunpack.c.h.b16 %v94
    %v179 = vunpack.c.l.b16 %v95
    %v180 = vunpack.c.h.b16 %v95
    %v181 = vunpack.c.l.b16 %v96
    %v182 = vunpack.c.h.b16 %v96
    %v183 = vunpack.c.l.b16 %v97
    %v184 = vunpack.c.h.b16 %v97
    %v185 = vunpack.c.l.b16 %v98
    %v186 = vunpack.c.h.b16 %v98
    %v187 = vunpack.c.l.b16 %v99
    %v188 = vunpack.c.h.b16 %v99
    %v189 = vunpack.c.l.b16 %v100
    %v190 = vunpack.c.h.b16 %v100
    %v191 = vunpack.c.l.b16 %v101
    %v192 = vunpack.c.h.b16 %v101
    %v193 = vunpack.c.l.b16 %v102
    %v194 = vunpack.c.h.b16 %v102
    %v195 = vunpack.c.l.b16 %v103
    %v196 = vunpack.c.h.b16 %v103
    %v197 = vunpack.c.l.b16 %v104
    %v198 = vunpack.c.h.b16 %v104
    %v199 = vunpack.c.l.b16 %v105
    %v200 = vunpack.c.h.b16 %v105
    %v201 = vunpack.c.l.b16 %v106
    %v202 = vunpack.c.h.b16 %v106
    %v203 = vpack.c.b16 %v141, %v139
    %v204 = vpack.c.b16 %v142, %v140
    %v205 = vpack.c.b16 %v145, %v143
    %v206 = vpack.c.b16 %v146, %v144
    %v207 = vpack.c.b16 %v149, %v147
    %v208 = vpack.c.b16 %v150, %v148
    %v209 = vpack.c.b16 %v153, %v151
    %v210 = vpack.c.b16 %v154, %v152
    %v211 = vpack.c.b16 %v157, %v155
    %v212 = vpack.c.b16 %v158, %v156
    %v213 = vpack.c.b16 %v161, %v159
    %v214 = vpack.c.b16 %v162, %v160
    %v215 = vpack.c.b16 %v165, %v163
    %v216 = vpack.c.b16 %v166, %v164
    %v217 = vpack.c.b16 %v169, %v167
    %v218 = vpack.c.b16 %v170, %v168
    %v219 = vpack.c.b16 %v173, %v171
    %v220 = vpack.c.b16 %v174, %v172
    %v221 = vpack.c.b16 %v177, %v175
    %v222 = vpack.c.b16 %v178, %v176
    %v223 = vpack.c.b16 %v181, %v179
    %v224 = vpack.c.b16 %v182, %v180
    %v225 = vpack.c.b16 %v185, %v183
    %v226 = vpack.c.b16 %v186, %v184
    %v227 = vpack.c.b16 %v189, %v187
    %v228 = vpack.c.b16 %v190, %v188
    %v229 = vpack.c.b16 %v193, %v191
    %v230 = vpack.c.b16 %v194, %v192
    %v231 = vpack.c.b16 %v197, %v195
    %v232 = vpack.c.b16 %v198, %v196
    %v233 = vpack.c.b16 %v201, %v199
    %v234 = vpack.c.b16 %v202, %v200
    %v299 = vunpack.c.l.b16 %v43
    %v300 = vunpack.c.h.b16 %v43
    %v301 = vunpack.c.l.b16 %v44
    %v302 = vunpack.c.h.b16 %v44
    %v303 = vunpack.c.l.b16 %v45
    %v304 = vunpack.c.h.b16 %v45
    %v305 = vunpack.c.l.b16 %v46
    %v306 = vunpack.c.h.b16 %v46
    %v307 = vunpack.c.l.b16 %v47
    %v308 = vunpack.c.h.b16 %v47
    %v309 = vunpack.c.l.b16 %v48
    %v310 = vunpack.c.h.b16 %v48
    %v311 = vunpack.c.l.b16 %v49
    %v312 = vunpack.c.h.b16 %v49
    %v313 = vunpack.c.l.b16 %v50
    %v314 = vunpack.c.h.b16 %v50
    %v315 = vunpack.c.l.b16 %v51
    %v316 = vunpack.c.h.b16 %v51
    %v317 = vunpack.c.l.b16 %v52
    %v318 = vunpack.c.h.b16 %v52
    %v319 = vunpack.c.l.b16 %v53
    %v320 = vunpack.c.h.b16 %v53
    %v321 = vunpack.c.l.b16 %v54
    %v322 = vunpack.c.h.b16 %v54
    %v323 = vunpack.c.l.b16 %v55
    %v324 = vunpack.c.h.b16 %v55
    %v325 = vunpack.c.l.b16 %v56
    %v326 = vunpack.c.h.b16 %v56
    %v327 = vunpack.c.l.b16 %v57
    %v328 = vunpack.c.h.b16 %v57
    %v329 = vunpack.c.l.b16 %v58
    %v330 = vunpack.c.h.b16 %v58
    %v331 = vunpack.c.l.b16 %v59
    %v332 = vunpack.c.h.b16 %v59
    %v333 = vunpack.c.l.b16 %v60
    %v334 = vunpack.c.h.b16 %v60
    %v335 = vunpack.c.l.b16 %v61
    %v336 = vunpack.c.h.b16 %v61
    %v337 = vunpack.c.l.b16 %v62
    %v338 = vunpack.c.h.b16 %v62
    %v339 = vunpack.c.l.b16 %v63
    %v340 = vunpack.c.h.b16 %v63
    %v341 = vunpack.c.l.b16 %v64
    %v342 = vunpack.c.h.b16 %v64
    %v343 = vunpack.c.l.b16 %v65
    %v344 = vunpack.c.h.b16 %v65
    %v345 = vunpack.c.l.b16 %v66
    %v346 = vunpack.c.h.b16 %v66
    %v347 = vunpack.c.l.b16 %v67
    %v348 = vunpack.c.h.b16 %v67
    %v349 = vunpack.c.l.b16 %v68
    %v350 = vunpack.c.h.b16 %v68
    %v351 = vunpack.c.l.b16 %v69
    %v352 = vunpack.c.h.b16 %v69
    %v353 = vunpack.c.l.b16 %v70
    %v354 = vunpack.c.h.b16 %v70
    %v355 = vunpack.c.l.b16 %v71
    %v356 = vunpack.c.h.b16 %v71
    %v357 = vunpack.c.l.b16 %v72
    %v358 = vunpack.c.h.b16 %v72
    %v359 = vunpack.c.l.b16 %v73
    %v360 = vunpack.c.h.b16 %v73
    %v361 = vunpack.c.l.b16 %v74
    %v362 = vunpack.c.h.b16 %v74
    %v363 = vpack.c.b16 %v301, %v299
    %v364 = vpack.c.b16 %v302, %v300
    %v365 = vpack.c.b16 %v305, %v303
    %v366 = vpack.c.b16 %v306, %v304
    %v367 = vpack.c.b16 %v309, %v307
    %v368 = vpack.c.b16 %v310, %v308
    %v369 = vpack.c.b16 %v313, %v311
    %v370 = vpack.c.b16 %v314, %v312
    %v371 = vpack.c.b16 %v317, %v315
    %v372 = vpack.c.b16 %v318, %v316
    %v373 = vpack.c.b16 %v321, %v319
    %v374 = vpack.c.b16 %v322, %v320
    %v375 = vpack.c.b16 %v325, %v323
    %v376 = vpack.c.b16 %v326, %v324
    %v377 = vpack.c.b16 %v329, %v327
    %v378 = vpack.c.b16 %v330, %v328
    %v379 = vpack.c.b16 %v333, %v331
    %v380 = vpack.c.b16 %v334, %v332
    %v381 = vpack.c.b16 %v337, %v335
    %v382 = vpack.c.b16 %v338, %v336
    %v383 = vpack.c.b16 %v341, %v339
    %v384 = vpack.c.b16 %v342, %v340
    %v385 = vpack.c.b16 %v345, %v343
    %v386 = vpack.c.b16 %v346, %v344
    %v387 = vpack.c.b16 %v349, %v347
    %v388 = vpack.c.b16 %v350, %v348
    %v389 = vpack.c.b16 %v353, %v351
    %v390 = vpack.c.b16 %v354, %v352
    %v391 = vpack.c.b16 %v357, %v355
    %v392 = vpack.c.b16 %v358, %v356
    %v393 = vpack.c.b16 %v361, %v359
    %v394 = vpack.c.b16 %v362, %v360
    %427 = vmatprep.subr.bf16.mxu0 %v364
    %428 = vmatpush1.bf16.msra.mxu0 %v363
    %429 = vmatprep.subr.bf16.mxu0 %v366
    %430 = vmatpush1.bf16.msra.mxu0 %v365
    %431 = vmatprep.subr.bf16.mxu0 %v368
    %432 = vmatpush1.bf16.msra.mxu0 %v367
    %433 = vmatprep.subr.bf16.mxu0 %v370
    %434 = vmatpush1.bf16.msra.mxu0 %v369
    %435 = vmatprep.subr.bf16.mxu0 %v372
    %436 = vmatpush1.bf16.msra.mxu0 %v371
    %437 = vmatprep.subr.bf16.mxu0 %v374
    %438 = vmatpush1.bf16.msra.mxu0 %v373
    %439 = vmatprep.subr.bf16.mxu0 %v376
    %440 = vmatpush1.bf16.msra.mxu0 %v375
    %441 = vmatprep.subr.bf16.mxu0 %v378
    %442 = vmatpush1.bf16.msra.mxu0 %v377
    %443 = vmatprep.subr.bf16.mxu0 %v380
    %444 = vmatpush1.bf16.msra.mxu0 %v379
    %445 = vmatprep.subr.bf16.mxu0 %v382
    %446 = vmatpush1.bf16.msra.mxu0 %v381
    %447 = vmatprep.subr.bf16.mxu0 %v384
    %448 = vmatpush1.bf16.msra.mxu0 %v383
    %449 = vmatprep.subr.bf16.mxu0 %v386
    %450 = vmatpush1.bf16.msra.mxu0 %v385
    %451 = vmatprep.subr.bf16.mxu0 %v388
    %452 = vmatpush1.bf16.msra.mxu0 %v387
    %453 = vmatprep.subr.bf16.mxu0 %v390
    %454 = vmatpush1.bf16.msra.mxu0 %v389
    %455 = vmatprep.subr.bf16.mxu0 %v392
    %456 = vmatpush1.bf16.msra.mxu0 %v391
    %457 = vmatprep.subr.bf16.mxu0 %v394
    %458 = vmatpush1.bf16.msra.mxu0 %v393
    %459 = vmatprep.mubr.bf16.mxu0 %v204
    %460 = vmatmul.mubr.bf16.gmra.mrb[0].mxu0 %v203
    %v461 = vpop.f32.mrb[0].mxu0
    %v462 = vadd.f32 0.0, %v461
    %v463 = vpop.f32.mrb[0].mxu0
    %v464 = vadd.f32 0.0, %v463
    %v465 = vpop.f32.mrb[0].mxu0
    %v466 = vadd.f32 0.0, %v465
    %v467 = vpop.f32.mrb[0].mxu0
    %v468 = vadd.f32 0.0, %v467
    %469 = vmatprep.mubr.bf16.mxu0 %v206
    %470 = vmatmul.mubr.bf16.gmra.mrb[0].mxu0 %v205
    %v471 = vpop.f32.mrb[0].mxu0
    %v472 = vadd.f32 0.0, %v471
    %v473 = vpop.f32.mrb[0].mxu0
    %v474 = vadd.f32 0.0, %v473
    %v475 = vpop.f32.mrb[0].mxu0
    %v476 = vadd.f32 0.0, %v475
    %v477 = vpop.f32.mrb[0].mxu0
    %v478 = vadd.f32 0.0, %v477
    %479 = vmatprep.mubr.bf16.mxu0 %v208
    %480 = vmatmul.mubr.bf16.gmra.mrb[0].mxu0 %v207
    %v481 = vpop.f32.mrb[0].mxu0
    %v482 = vadd.f32 0.0, %v481
    %v483 = vpop.f32.mrb[0].mxu0
    %v484 = vadd.f32 0.0, %v483
    %v485 = vpop.f32.mrb[0].mxu0
    %v486 = vadd.f32 0.0, %v485
    %v487 = vpop.f32.mrb[0].mxu0
    %v488 = vadd.f32 0.0, %v487
    %489 = vmatprep.mubr.bf16.mxu0 %v210
    %490 = vmatmul.mubr.bf16.gmra.mrb[0].mxu0 %v209
    %v491 = vpop.f32.mrb[0].mxu0
    %v492 = vadd.f32 0.0, %v491
    %v493 = vpop.f32.mrb[0].mxu0
    %v494 = vadd.f32 0.0, %v493
    %v495 = vpop.f32.mrb[0].mxu0
    %v496 = vadd.f32 0.0, %v495
    %v497 = vpop.f32.mrb[0].mxu0
    %v498 = vadd.f32 0.0, %v497
    %499 = vmatprep.mubr.bf16.mxu0 %v212
    %500 = vmatmul.mubr.bf16.gmra.mrb[0].mxu0 %v211
    %v501 = vpop.f32.mrb[0].mxu0
    %v502 = vadd.f32 0.0, %v501
    %v503 = vpop.f32.mrb[0].mxu0
    %v504 = vadd.f32 0.0, %v503
    %v505 = vpop.f32.mrb[0].mxu0
    %v506 = vadd.f32 0.0, %v505
    %v507 = vpop.f32.mrb[0].mxu0
    %v508 = vadd.f32 0.0, %v507
    %509 = vmatprep.mubr.bf16.mxu0 %v214
    %510 = vmatmul.mubr.bf16.gmra.mrb[0].mxu0 %v213
    %v511 = vpop.f32.mrb[0].mxu0
    %v512 = vadd.f32 0.0, %v511
    %v513 = vpop.f32.mrb[0].mxu0
    %v514 = vadd.f32 0.0, %v513
    %v515 = vpop.f32.mrb[0].mxu0
    %v516 = vadd.f32 0.0, %v515
    %v517 = vpop.f32.mrb[0].mxu0
    %v518 = vadd.f32 0.0, %v517
    %519 = vmatprep.mubr.bf16.mxu0 %v216
    %520 = vmatmul.mubr.bf16.gmra.mrb[0].mxu0 %v215
    %v521 = vpop.f32.mrb[0].mxu0
    %v522 = vadd.f32 0.0, %v521
    %v523 = vpop.f32.mrb[0].mxu0
    %v524 = vadd.f32 0.0, %v523
    %v525 = vpop.f32.mrb[0].mxu0
    %v526 = vadd.f32 0.0, %v525
    %v527 = vpop.f32.mrb[0].mxu0
    %v528 = vadd.f32 0.0, %v527
    %529 = vmatprep.mubr.bf16.mxu0 %v218
    %530 = vmatmul.mubr.bf16.gmra.mrb[0].mxu0 %v217
    %v531 = vpop.f32.mrb[0].mxu0
    %v532 = vadd.f32 0.0, %v531
    %v533 = vpop.f32.mrb[0].mxu0
    %v534 = vadd.f32 0.0, %v533
    %v535 = vpop.f32.mrb[0].mxu0
    %v536 = vadd.f32 0.0, %v535
    %v537 = vpop.f32.mrb[0].mxu0
    %v538 = vadd.f32 0.0, %v537
    %539 = vmatprep.mubr.bf16.mxu0 %v220
    %540 = vmatmul.mubr.bf16.gmra.mrb[0].mxu0 %v219
    %v541 = vpop.f32.mrb[0].mxu0
    %v542 = vadd.f32 0.0, %v541
    %v543 = vpop.f32.mrb[0].mxu0
    %v544 = vadd.f32 0.0, %v543
    %v545 = vpop.f32.mrb[0].mxu0
    %v546 = vadd.f32 0.0, %v545
    %v547 = vpop.f32.mrb[0].mxu0
    %v548 = vadd.f32 0.0, %v547
    %549 = vmatprep.mubr.bf16.mxu0 %v222
    %550 = vmatmul.mubr.bf16.gmra.mrb[0].mxu0 %v221
    %v551 = vpop.f32.mrb[0].mxu0
    %v552 = vadd.f32 0.0, %v551
    %v553 = vpop.f32.mrb[0].mxu0
    %v554 = vadd.f32 0.0, %v553
    %v555 = vpop.f32.mrb[0].mxu0
    %v556 = vadd.f32 0.0, %v555
    %v557 = vpop.f32.mrb[0].mxu0
    %v558 = vadd.f32 0.0, %v557
    %559 = vmatprep.mubr.bf16.mxu0 %v224
    %560 = vmatmul.mubr.bf16.gmra.mrb[0].mxu0 %v223
    %v561 = vpop.f32.mrb[0].mxu0
    %v562 = vadd.f32 0.0, %v561
    %v563 = vpop.f32.mrb[0].mxu0
    %v564 = vadd.f32 0.0, %v563
    %v565 = vpop.f32.mrb[0].mxu0
    %v566 = vadd.f32 0.0, %v565
    %v567 = vpop.f32.mrb[0].mxu0
    %v568 = vadd.f32 0.0, %v567
    %569 = vmatprep.mubr.bf16.mxu0 %v226
    %570 = vmatmul.mubr.bf16.gmra.mrb[0].mxu0 %v225
    %v571 = vpop.f32.mrb[0].mxu0
    %v572 = vadd.f32 0.0, %v571
    %v573 = vpop.f32.mrb[0].mxu0
    %v574 = vadd.f32 0.0, %v573
    %v575 = vpop.f32.mrb[0].mxu0
    %v576 = vadd.f32 0.0, %v575
    %v577 = vpop.f32.mrb[0].mxu0
    %v578 = vadd.f32 0.0, %v577
    %579 = vmatprep.mubr.bf16.mxu0 %v228
    %580 = vmatmul.mubr.bf16.gmra.mrb[0].mxu0 %v227
    %v581 = vpop.f32.mrb[0].mxu0
    %v582 = vadd.f32 0.0, %v581
    %v583 = vpop.f32.mrb[0].mxu0
    %v584 = vadd.f32 0.0, %v583
    %v585 = vpop.f32.mrb[0].mxu0
    %v586 = vadd.f32 0.0, %v585
    %v587 = vpop.f32.mrb[0].mxu0
    %v588 = vadd.f32 0.0, %v587
    %589 = vmatprep.mubr.bf16.mxu0 %v230
    %590 = vmatmul.mubr.bf16.gmra.mrb[0].mxu0 %v229
    %v591 = vpop.f32.mrb[0].mxu0
    %v592 = vadd.f32 0.0, %v591
    %v593 = vpop.f32.mrb[0].mxu0
    %v594 = vadd.f32 0.0, %v593
    %v595 = vpop.f32.mrb[0].mxu0
    %v596 = vadd.f32 0.0, %v595
    %v597 = vpop.f32.mrb[0].mxu0
    %v598 = vadd.f32 0.0, %v597
    %599 = vmatprep.mubr.bf16.mxu0 %v232
    %600 = vmatmul.mubr.bf16.gmra.mrb[0].mxu0 %v231
    %v601 = vpop.f32.mrb[0].mxu0
    %v602 = vadd.f32 0.0, %v601
    %v603 = vpop.f32.mrb[0].mxu0
    %v604 = vadd.f32 0.0, %v603
    %v605 = vpop.f32.mrb[0].mxu0
    %v606 = vadd.f32 0.0, %v605
    %v607 = vpop.f32.mrb[0].mxu0
    %v608 = vadd.f32 0.0, %v607
    %609 = vmatprep.mubr.bf16.mxu0 %v234
    %610 = vmatmul.mubr.bf16.gmra.mrb[0].mxu0 %v233
    %v611 = vpop.f32.mrb[0].mxu0
    %v612 = vadd.f32 0.0, %v611
    %v613 = vpop.f32.mrb[0].mxu0
    %v614 = vadd.f32 0.0, %v613
    %v615 = vpop.f32.mrb[0].mxu0
    %v616 = vadd.f32 0.0, %v615
    %v617 = vpop.f32.mrb[0].mxu0
    %v618 = vadd.f32 0.0, %v617
    %619 = vdwg.mxu0
    %v620 = vpack.c.bf16 %v466, %v462
    %v621 = vpack.c.bf16 %v468, %v464
    %v622 = vpack.c.bf16 %v476, %v472
    %v623 = vpack.c.bf16 %v478, %v474
    %v624 = vpack.c.bf16 %v486, %v482
    %v625 = vpack.c.bf16 %v488, %v484
    %v626 = vpack.c.bf16 %v496, %v492
    %v627 = vpack.c.bf16 %v498, %v494
    %v628 = vpack.c.bf16 %v506, %v502
    %v629 = vpack.c.bf16 %v508, %v504
    %v630 = vpack.c.bf16 %v516, %v512
    %v631 = vpack.c.bf16 %v518, %v514
    %v632 = vpack.c.bf16 %v526, %v522
    %v633 = vpack.c.bf16 %v528, %v524
    %v634 = vpack.c.bf16 %v536, %v532
    %v635 = vpack.c.bf16 %v538, %v534
    %v636 = vpack.c.bf16 %v546, %v542
    %v637 = vpack.c.bf16 %v548, %v544
    %v638 = vpack.c.bf16 %v556, %v552
    %v639 = vpack.c.bf16 %v558, %v554
    %v640 = vpack.c.bf16 %v566, %v562
    %v641 = vpack.c.bf16 %v568, %v564
    %v642 = vpack.c.bf16 %v576, %v572
    %v643 = vpack.c.bf16 %v578, %v574
    %v644 = vpack.c.bf16 %v586, %v582
    %v645 = vpack.c.bf16 %v588, %v584
    %v646 = vpack.c.bf16 %v596, %v592
    %v647 = vpack.c.bf16 %v598, %v594
    %v648 = vpack.c.bf16 %v606, %v602
    %v649 = vpack.c.bf16 %v608, %v604
    %v650 = vpack.c.bf16 %v616, %v612
    %v651 = vpack.c.bf16 %v618, %v614
    %652 = vst [vmem:[#allocation2] sm:$0xff] %v620
    %653 = vst [vmem:[#allocation2 + $0x8] sm:$0xff] %v621
    %654 = vst [vmem:[#allocation2 + $0x10] sm:$0xff] %v622
    %655 = vst [vmem:[#allocation2 + $0x18] sm:$0xff] %v623
    %656 = vst [vmem:[#allocation2 + $0x20] sm:$0xff] %v624
    %657 = vst [vmem:[#allocation2 + $0x28] sm:$0xff] %v625
    %658 = vst [vmem:[#allocation2 + $0x30] sm:$0xff] %v626
    %659 = vst [vmem:[#allocation2 + $0x38] sm:$0xff] %v627
    %660 = vst [vmem:[#allocation2 + $0x40] sm:$0xff] %v628
    %661 = vst [vmem:[#allocation2 + $0x48] sm:$0xff] %v629
    %662 = vst [vmem:[#allocation2 + $0x50] sm:$0xff] %v630
    %663 = vst [vmem:[#allocation2 + $0x58] sm:$0xff] %v631
    %664 = vst [vmem:[#allocation2 + $0x60] sm:$0xff] %v632
    %665 = vst [vmem:[#allocation2 + $0x68] sm:$0xff] %v633
    %666 = vst [vmem:[#allocation2 + $0x70] sm:$0xff] %v634
    %667 = vst [vmem:[#allocation2 + $0x78] sm:$0xff] %v635
    %668 = vst [vmem:[#allocation2 + $0x80] sm:$0xff] %v636
    %669 = vst [vmem:[#allocation2 + $0x88] sm:$0xff] %v637
    %670 = vst [vmem:[#allocation2 + $0x90] sm:$0xff] %v638
    %671 = vst [vmem:[#allocation2 + $0x98] sm:$0xff] %v639
    %672 = vst [vmem:[#allocation2 + $0xa0] sm:$0xff] %v640
    %673 = vst [vmem:[#allocation2 + $0xa8] sm:$0xff] %v641
    %674 = vst [vmem:[#allocation2 + $0xb0] sm:$0xff] %v642
    %675 = vst [vmem:[#allocation2 + $0xb8] sm:$0xff] %v643
    %676 = vst [vmem:[#allocation2 + $0xc0] sm:$0xff] %v644
    %677 = vst [vmem:[#allocation2 + $0xc8] sm:$0xff] %v645
    %678 = vst [vmem:[#allocation2 + $0xd0] sm:$0xff] %v646
    %679 = vst [vmem:[#allocation2 + $0xd8] sm:$0xff] %v647
    %680 = vst [vmem:[#allocation2 + $0xe0] sm:$0xff] %v648
    %681 = vst [vmem:[#allocation2 + $0xe8] sm:$0xff] %v649
    %682 = vst [vmem:[#allocation2 + $0xf0] sm:$0xff] %v650
    %683 = vst [vmem:[#allocation2 + $0xf8] sm:$0xff] %v651
    %v684 = vld [vmem:[#allocation2] sm:$0xff]
    %v685 = vld [vmem:[#allocation2 + $0x10] sm:$0xff]
    %v686 = vld [vmem:[#allocation2 + $0x20] sm:$0xff]
    %v687 = vld [vmem:[#allocation2 + $0x30] sm:$0xff]
    %v688 = vld [vmem:[#allocation2 + $0x40] sm:$0xff]
    %v689 = vld [vmem:[#allocation2 + $0x50] sm:$0xff]
    %v690 = vld [vmem:[#allocation2 + $0x60] sm:$0xff]
    %v691 = vld [vmem:[#allocation2 + $0x70] sm:$0xff]
    %v692 = vld [vmem:[#allocation2 + $0x80] sm:$0xff]
    %v693 = vld [vmem:[#allocation2 + $0x90] sm:$0xff]
    %v694 = vld [vmem:[#allocation2 + $0xa0] sm:$0xff]
    %v695 = vld [vmem:[#allocation2 + $0xb0] sm:$0xff]
    %v696 = vld [vmem:[#allocation2 + $0xc0] sm:$0xff]
    %v697 = vld [vmem:[#allocation2 + $0xd0] sm:$0xff]
    %v698 = vld [vmem:[#allocation2 + $0xe0] sm:$0xff]
    %v699 = vld [vmem:[#allocation2 + $0xf0] sm:$0xff]
    %700 = vst [vmem:[#allocation3] sm:$0xff] %v684
    %701 = vst [vmem:[#allocation3 + $0x8] sm:$0xff] %v685
    %702 = vst [vmem:[#allocation3 + $0x10] sm:$0xff] %v686
    %703 = vst [vmem:[#allocation3 + $0x18] sm:$0xff] %v687
    %704 = vst [vmem:[#allocation3 + $0x20] sm:$0xff] %v688
    %705 = vst [vmem:[#allocation3 + $0x28] sm:$0xff] %v689
    %706 = vst [vmem:[#allocation3 + $0x30] sm:$0xff] %v690
    %707 = vst [vmem:[#allocation3 + $0x38] sm:$0xff] %v691
    %708 = vst [vmem:[#allocation3 + $0x40] sm:$0xff] %v692
    %709 = vst [vmem:[#allocation3 + $0x48] sm:$0xff] %v693
    %710 = vst [vmem:[#allocation3 + $0x50] sm:$0xff] %v694
    %711 = vst [vmem:[#allocation3 + $0x58] sm:$0xff] %v695
    %712 = vst [vmem:[#allocation3 + $0x60] sm:$0xff] %v696
    %713 = vst [vmem:[#allocation3 + $0x68] sm:$0xff] %v697
    %714 = vst [vmem:[#allocation3 + $0x70] sm:$0xff] %v698
    %715 = vst [vmem:[#allocation3 + $0x78] sm:$0xff] %v699
    %v716 = vld [vmem:[#allocation2] sm:$0xff]
    %v717 = vld [vmem:[#allocation2 + $0x8] sm:$0xff]
    %v718 = vld [vmem:[#allocation2 + $0x10] sm:$0xff]
    %v719 = vld [vmem:[#allocation2 + $0x18] sm:$0xff]
    %v720 = vld [vmem:[#allocation2 + $0x20] sm:$0xff]
    %v721 = vld [vmem:[#allocation2 + $0x28] sm:$0xff]
    %v722 = vld [vmem:[#allocation2 + $0x30] sm:$0xff]
    %v723 = vld [vmem:[#allocation2 + $0x38] sm:$0xff]
    %v724 = vld [vmem:[#allocation2 + $0x40] sm:$0xff]
    %v725 = vld [vmem:[#allocation2 + $0x48] sm:$0xff]
    %v726 = vld [vmem:[#allocation2 + $0x50] sm:$0xff]
    %v727 = vld [vmem:[#allocation2 + $0x58] sm:$0xff]
    %v728 = vld [vmem:[#allocation2 + $0x60] sm:$0xff]
    %v729 = vld [vmem:[#allocation2 + $0x68] sm:$0xff]
    %v730 = vld [vmem:[#allocation2 + $0x70] sm:$0xff]
    %v731 = vld [vmem:[#allocation2 + $0x78] sm:$0xff]
    %v732 = vld [vmem:[#allocation2 + $0x80] sm:$0xff]
    %v733 = vld [vmem:[#allocation2 + $0x88] sm:$0xff]
    %v734 = vld [vmem:[#allocation2 + $0x90] sm:$0xff]
    %v735 = vld [vmem:[#allocation2 + $0x98] sm:$0xff]
    %v736 = vld [vmem:[#allocation2 + $0xa0] sm:$0xff]
    %v737 = vld [vmem:[#allocation2 + $0xa8] sm:$0xff]
    %v738 = vld [vmem:[#allocation2 + $0xb0] sm:$0xff]
    %v739 = vld [vmem:[#allocation2 + $0xb8] sm:$0xff]
    %v740 = vld [vmem:[#allocation2 + $0xc0] sm:$0xff]
    %v741 = vld [vmem:[#allocation2 + $0xc8] sm:$0xff]
    %v742 = vld [vmem:[#allocation2 + $0xd0] sm:$0xff]
    %v743 = vld [vmem:[#allocation2 + $0xd8] sm:$0xff]
    %v744 = vld [vmem:[#allocation2 + $0xe0] sm:$0xff]
    %v745 = vld [vmem:[#allocation2 + $0xe8] sm:$0xff]
    %v746 = vld [vmem:[#allocation2 + $0xf0] sm:$0xff]
    %v747 = vld [vmem:[#allocation2 + $0xf8] sm:$0xff]
    %780 = vrot.lane.b32.xlu0 %v716, 119
    %v781 = vpop.permute.xlu0 %780
    %782 = vrot.lane.b32.xlu0 %v717, 119
    %v783 = vpop.permute.xlu0 %782
    %784 = vrot.lane.b32.xlu0 %v718, 119
    %v785 = vpop.permute.xlu0 %784
    %786 = vrot.lane.b32.xlu0 %v719, 119
    %v787 = vpop.permute.xlu0 %786
    %788 = vrot.lane.b32.xlu0 %v720, 119
    %v789 = vpop.permute.xlu0 %788
    %790 = vrot.lane.b32.xlu0 %v721, 119
    %v791 = vpop.permute.xlu0 %790
    %792 = vrot.lane.b32.xlu0 %v722, 119
    %v793 = vpop.permute.xlu0 %792
    %794 = vrot.lane.b32.xlu0 %v723, 119
    %v795 = vpop.permute.xlu0 %794
    %796 = vrot.lane.b32.xlu0 %v724, 119
    %v797 = vpop.permute.xlu0 %796
    %798 = vrot.lane.b32.xlu0 %v725, 119
    %v799 = vpop.permute.xlu0 %798
    %800 = vrot.lane.b32.xlu0 %v726, 119
    %v801 = vpop.permute.xlu0 %800
    %802 = vrot.lane.b32.xlu0 %v727, 119
    %v803 = vpop.permute.xlu0 %802
    %804 = vrot.lane.b32.xlu0 %v728, 119
    %v805 = vpop.permute.xlu0 %804
    %806 = vrot.lane.b32.xlu0 %v729, 119
    %v807 = vpop.permute.xlu0 %806
    %808 = vrot.lane.b32.xlu0 %v730, 119
    %v809 = vpop.permute.xlu0 %808
    %810 = vrot.lane.b32.xlu0 %v731, 119
    %v811 = vpop.permute.xlu0 %810
    %812 = vrot.lane.b32.xlu0 %v732, 119
    %v813 = vpop.permute.xlu0 %812
    %814 = vrot.lane.b32.xlu0 %v733, 119
    %v815 = vpop.permute.xlu0 %814
    %816 = vrot.lane.b32.xlu0 %v734, 119
    %v817 = vpop.permute.xlu0 %816
    %818 = vrot.lane.b32.xlu0 %v735, 119
    %v819 = vpop.permute.xlu0 %818
    %820 = vrot.lane.b32.xlu0 %v736, 119
    %v821 = vpop.permute.xlu0 %820
    %822 = vrot.lane.b32.xlu0 %v737, 119
    %v823 = vpop.permute.xlu0 %822
    %824 = vrot.lane.b32.xlu0 %v738, 119
    %v825 = vpop.permute.xlu0 %824
    %826 = vrot.lane.b32.xlu0 %v739, 119
    %v827 = vpop.permute.xlu0 %826
    %828 = vrot.lane.b32.xlu0 %v740, 119
    %v829 = vpop.permute.xlu0 %828
    %830 = vrot.lane.b32.xlu0 %v741, 119
    %v831 = vpop.permute.xlu0 %830
    %832 = vrot.lane.b32.xlu0 %v742, 119
    %v833 = vpop.permute.xlu0 %832
    %834 = vrot.lane.b32.xlu0 %v743, 119
    %v835 = vpop.permute.xlu0 %834
    %836 = vrot.lane.b32.xlu0 %v744, 119
    %v837 = vpop.permute.xlu0 %836
    %838 = vrot.lane.b32.xlu0 %v745, 119
    %v839 = vpop.permute.xlu0 %838
    %840 = vrot.lane.b32.xlu0 %v746, 119
    %v841 = vpop.permute.xlu0 %840
    %842 = vrot.lane.b32.xlu0 %v747, 119
    %v843 = vpop.permute.xlu0 %842
    %vm844 = vcmask 973824
    %v845 = vsel %vm844, %v781, %v783
    %v846 = vsel %vm844, %v785, %v787
    %v847 = vsel %vm844, %v789, %v791
    %v848 = vsel %vm844, %v793, %v795
    %v849 = vsel %vm844, %v797, %v799
    %v850 = vsel %vm844, %v801, %v803
    %v851 = vsel %vm844, %v805, %v807
    %v852 = vsel %vm844, %v809, %v811
    %v853 = vsel %vm844, %v813, %v815
    %v854 = vsel %vm844, %v817, %v819
    %v855 = vsel %vm844, %v821, %v823
    %v856 = vsel %vm844, %v825, %v827
    %v857 = vsel %vm844, %v829, %v831
    %v858 = vsel %vm844, %v833, %v835
    %v859 = vsel %vm844, %v837, %v839
    %v860 = vsel %vm844, %v841, %v843
    %877 = vst [vmem:[#allocation3 + $0x180] sm:$0xff] %v845
    %878 = vst [vmem:[#allocation3 + $0x188] sm:$0xff] %v846
    %879 = vst [vmem:[#allocation3 + $0x190] sm:$0xff] %v847
    %880 = vst [vmem:[#allocation3 + $0x198] sm:$0xff] %v848
    %881 = vst [vmem:[#allocation3 + $0x1a0] sm:$0xff] %v849
    %882 = vst [vmem:[#allocation3 + $0x1a8] sm:$0xff] %v850
    %883 = vst [vmem:[#allocation3 + $0x1b0] sm:$0xff] %v851
    %884 = vst [vmem:[#allocation3 + $0x1b8] sm:$0xff] %v852
    %885 = vst [vmem:[#allocation3 + $0x1c0] sm:$0xff] %v853
    %886 = vst [vmem:[#allocation3 + $0x1c8] sm:$0xff] %v854
    %887 = vst [vmem:[#allocation3 + $0x1d0] sm:$0xff] %v855
    %888 = vst [vmem:[#allocation3 + $0x1d8] sm:$0xff] %v856
    %889 = vst [vmem:[#allocation3 + $0x1e0] sm:$0xff] %v857
    %890 = vst [vmem:[#allocation3 + $0x1e8] sm:$0xff] %v858
    %891 = vst [vmem:[#allocation3 + $0x1f0] sm:$0xff] %v859
    %892 = vst [vmem:[#allocation3 + $0x1f8] sm:$0xff] %v860
    %v893 = vld [vmem:[#allocation2] sm:$0xff]
    %v894 = vld [vmem:[#allocation2 + $0x8] sm:$0xff]
    %v895 = vld [vmem:[#allocation2 + $0x10] sm:$0xff]
    %v896 = vld [vmem:[#allocation2 + $0x18] sm:$0xff]
    %v897 = vld [vmem:[#allocation2 + $0x20] sm:$0xff]
    %v898 = vld [vmem:[#allocation2 + $0x28] sm:$0xff]
    %v899 = vld [vmem:[#allocation2 + $0x30] sm:$0xff]
    %v900 = vld [vmem:[#allocation2 + $0x38] sm:$0xff]
    %v901 = vld [vmem:[#allocation2 + $0x40] sm:$0xff]
    %v902 = vld [vmem:[#allocation2 + $0x48] sm:$0xff]
    %v903 = vld [vmem:[#allocation2 + $0x50] sm:$0xff]
    %v904 = vld [vmem:[#allocation2 + $0x58] sm:$0xff]
    %v905 = vld [vmem:[#allocation2 + $0x60] sm:$0xff]
    %v906 = vld [vmem:[#allocation2 + $0x68] sm:$0xff]
    %v907 = vld [vmem:[#allocation2 + $0x70] sm:$0xff]
    %v908 = vld [vmem:[#allocation2 + $0x78] sm:$0xff]
    %v909 = vld [vmem:[#allocation2 + $0x80] sm:$0xff]
    %v910 = vld [vmem:[#allocation2 + $0x88] sm:$0xff]
    %v911 = vld [vmem:[#allocation2 + $0x90] sm:$0xff]
    %v912 = vld [vmem:[#allocation2 + $0x98] sm:$0xff]
    %v913 = vld [vmem:[#allocation2 + $0xa0] sm:$0xff]
    %v914 = vld [vmem:[#allocation2 + $0xa8] sm:$0xff]
    %v915 = vld [vmem:[#allocation2 + $0xb0] sm:$0xff]
    %v916 = vld [vmem:[#allocation2 + $0xb8] sm:$0xff]
    %v917 = vld [vmem:[#allocation2 + $0xc0] sm:$0xff]
    %v918 = vld [vmem:[#allocation2 + $0xc8] sm:$0xff]
    %v919 = vld [vmem:[#allocation2 + $0xd0] sm:$0xff]
    %v920 = vld [vmem:[#allocation2 + $0xd8] sm:$0xff]
    %v921 = vld [vmem:[#allocation2 + $0xe0] sm:$0xff]
    %v922 = vld [vmem:[#allocation2 + $0xe8] sm:$0xff]
    %v923 = vld [vmem:[#allocation2 + $0xf0] sm:$0xff]
    %v924 = vld [vmem:[#allocation2 + $0xf8] sm:$0xff]
    %957 = vrot.lane.b32.xlu0 %v893, 110
    %v958 = vpop.permute.xlu0 %957
    %959 = vrot.lane.b32.xlu0 %v894, 110
    %v960 = vpop.permute.xlu0 %959
    %961 = vrot.lane.b32.xlu0 %v895, 110
    %v962 = vpop.permute.xlu0 %961
    %963 = vrot.lane.b32.xlu0 %v896, 110
    %v964 = vpop.permute.xlu0 %963
    %965 = vrot.lane.b32.xlu0 %v897, 110
    %v966 = vpop.permute.xlu0 %965
    %967 = vrot.lane.b32.xlu0 %v898, 110
    %v968 = vpop.permute.xlu0 %967
    %969 = vrot.lane.b32.xlu0 %v899, 110
    %v970 = vpop.permute.xlu0 %969
    %971 = vrot.lane.b32.xlu0 %v900, 110
    %v972 = vpop.permute.xlu0 %971
    %973 = vrot.lane.b32.xlu0 %v901, 110
    %v974 = vpop.permute.xlu0 %973
    %975 = vrot.lane.b32.xlu0 %v902, 110
    %v976 = vpop.permute.xlu0 %975
    %977 = vrot.lane.b32.xlu0 %v903, 110
    %v978 = vpop.permute.xlu0 %977
    %979 = vrot.lane.b32.xlu0 %v904, 110
    %v980 = vpop.permute.xlu0 %979
    %981 = vrot.lane.b32.xlu0 %v905, 110
    %v982 = vpop.permute.xlu0 %981
    %983 = vrot.lane.b32.xlu0 %v906, 110
    %v984 = vpop.permute.xlu0 %983
    %985 = vrot.lane.b32.xlu0 %v907, 110
    %v986 = vpop.permute.xlu0 %985
    %987 = vrot.lane.b32.xlu0 %v908, 110
    %v988 = vpop.permute.xlu0 %987
    %989 = vrot.lane.b32.xlu0 %v909, 110
    %v990 = vpop.permute.xlu0 %989
    %991 = vrot.lane.b32.xlu0 %v910, 110
    %v992 = vpop.permute.xlu0 %991
    %993 = vrot.lane.b32.xlu0 %v911, 110
    %v994 = vpop.permute.xlu0 %993
    %995 = vrot.lane.b32.xlu0 %v912, 110
    %v996 = vpop.permute.xlu0 %995
    %997 = vrot.lane.b32.xlu0 %v913, 110
    %v998 = vpop.permute.xlu0 %997
    %999 = vrot.lane.b32.xlu0 %v914, 110
    %v1000 = vpop.permute.xlu0 %999
    %1001 = vrot.lane.b32.xlu0 %v915, 110
    %v1002 = vpop.permute.xlu0 %1001
    %1003 = vrot.lane.b32.xlu0 %v916, 110
    %v1004 = vpop.permute.xlu0 %1003
    %1005 = vrot.lane.b32.xlu0 %v917, 110
    %v1006 = vpop.permute.xlu0 %1005
    %1007 = vrot.lane.b32.xlu0 %v918, 110
    %v1008 = vpop.permute.xlu0 %1007
    %1009 = vrot.lane.b32.xlu0 %v919, 110
    %v1010 = vpop.permute.xlu0 %1009
    %1011 = vrot.lane.b32.xlu0 %v920, 110
    %v1012 = vpop.permute.xlu0 %1011
    %1013 = vrot.lane.b32.xlu0 %v921, 110
    %v1014 = vpop.permute.xlu0 %1013
    %1015 = vrot.lane.b32.xlu0 %v922, 110
    %v1016 = vpop.permute.xlu0 %1015
    %1017 = vrot.lane.b32.xlu0 %v923, 110
    %v1018 = vpop.permute.xlu0 %1017
    %1019 = vrot.lane.b32.xlu0 %v924, 110
    %v1020 = vpop.permute.xlu0 %1019
    %vm1021 = vcmask 900096
    %v1022 = vsel %vm1021, %v958, %v960
    %v1023 = vsel %vm1021, %v962, %v964
    %v1024 = vsel %vm1021, %v966, %v968
    %v1025 = vsel %vm1021, %v970, %v972
    %v1026 = vsel %vm1021, %v974, %v976
    %v1027 = vsel %vm1021, %v978, %v980
    %v1028 = vsel %vm1021, %v982, %v984
    %v1029 = vsel %vm1021, %v986, %v988
    %v1030 = vsel %vm1021, %v990, %v992
    %v1031 = vsel %vm1021, %v994, %v996
    %v1032 = vsel %vm1021, %v998, %v1000
    %v1033 = vsel %vm1021, %v1002, %v1004
    %v1034 = vsel %vm1021, %v1006, %v1008
    %v1035 = vsel %vm1021, %v1010, %v1012
    %v1036 = vsel %vm1021, %v1014, %v1016
    %v1037 = vsel %vm1021, %v1018, %v1020
    %1054 = vst [vmem:[#allocation3 + $0x300] sm:$0xff] %v1022
    %1055 = vst [vmem:[#allocation3 + $0x308] sm:$0xff] %v1023
    %1056 = vst [vmem:[#allocation3 + $0x310] sm:$0xff] %v1024
    %1057 = vst [vmem:[#allocation3 + $0x318] sm:$0xff] %v1025
    %1058 = vst [vmem:[#allocation3 + $0x320] sm:$0xff] %v1026
    %1059 = vst [vmem:[#allocation3 + $0x328] sm:$0xff] %v1027
    %1060 = vst [vmem:[#allocation3 + $0x330] sm:$0xff] %v1028
    %1061 = vst [vmem:[#allocation3 + $0x338] sm:$0xff] %v1029
    %1062 = vst [vmem:[#allocation3 + $0x340] sm:$0xff] %v1030
    %1063 = vst [vmem:[#allocation3 + $0x348] sm:$0xff] %v1031
    %1064 = vst [vmem:[#allocation3 + $0x350] sm:$0xff] %v1032
    %1065 = vst [vmem:[#allocation3 + $0x358] sm:$0xff] %v1033
    %1066 = vst [vmem:[#allocation3 + $0x360] sm:$0xff] %v1034
    %1067 = vst [vmem:[#allocation3 + $0x368] sm:$0xff] %v1035
    %1068 = vst [vmem:[#allocation3 + $0x370] sm:$0xff] %v1036
    %1069 = vst [vmem:[#allocation3 + $0x378] sm:$0xff] %v1037
    %s1070 = scalar_lea.vmem [#allocation4], 256
    %v1071 = vld [vmem:[%s1070] sm:$0xff]
    %v1072 = vld [vmem:[%s1070 + $0x8] sm:$0xff]
    %v1073 = vld [vmem:[%s1070 + $0x10] sm:$0xff]
    %v1074 = vld [vmem:[%s1070 + $0x18] sm:$0xff]
    %v1075 = vld [vmem:[%s1070 + $0x20] sm:$0xff]
    %v1076 = vld [vmem:[%s1070 + $0x28] sm:$0xff]
    %v1077 = vld [vmem:[%s1070 + $0x30] sm:$0xff]
    %v1078 = vld [vmem:[%s1070 + $0x38] sm:$0xff]
    %v1079 = vld [vmem:[%s1070 + $0x40] sm:$0xff]
    %v1080 = vld [vmem:[%s1070 + $0x48] sm:$0xff]
    %v1081 = vld [vmem:[%s1070 + $0x50] sm:$0xff]
    %v1082 = vld [vmem:[%s1070 + $0x58] sm:$0xff]
    %v1083 = vld [vmem:[%s1070 + $0x60] sm:$0xff]
    %v1084 = vld [vmem:[%s1070 + $0x68] sm:$0xff]
    %v1085 = vld [vmem:[%s1070 + $0x70] sm:$0xff]
    %v1086 = vld [vmem:[%s1070 + $0x78] sm:$0xff]
    %v1087 = vld [vmem:[%s1070 + $0x80] sm:$0xff]
    %v1088 = vld [vmem:[%s1070 + $0x88] sm:$0xff]
    %v1089 = vld [vmem:[%s1070 + $0x90] sm:$0xff]
    %v1090 = vld [vmem:[%s1070 + $0x98] sm:$0xff]
    %v1091 = vld [vmem:[%s1070 + $0xa0] sm:$0xff]
    %v1092 = vld [vmem:[%s1070 + $0xa8] sm:$0xff]
    %v1093 = vld [vmem:[%s1070 + $0xb0] sm:$0xff]
    %v1094 = vld [vmem:[%s1070 + $0xb8] sm:$0xff]
    %v1095 = vld [vmem:[%s1070 + $0xc0] sm:$0xff]
    %v1096 = vld [vmem:[%s1070 + $0xc8] sm:$0xff]
    %v1097 = vld [vmem:[%s1070 + $0xd0] sm:$0xff]
    %v1098 = vld [vmem:[%s1070 + $0xd8] sm:$0xff]
    %v1099 = vld [vmem:[%s1070 + $0xe0] sm:$0xff]
    %v1100 = vld [vmem:[%s1070 + $0xe8] sm:$0xff]
    %v1101 = vld [vmem:[%s1070 + $0xf0] sm:$0xff]
    %v1102 = vld [vmem:[%s1070 + $0xf8] sm:$0xff]
    %v1135 = vunpack.c.l.b16 %v1071
    %v1136 = vunpack.c.h.b16 %v1071
    %v1137 = vunpack.c.l.b16 %v1072
    %v1138 = vunpack.c.h.b16 %v1072
    %v1139 = vunpack.c.l.b16 %v1073
    %v1140 = vunpack.c.h.b16 %v1073
    %v1141 = vunpack.c.l.b16 %v1074
    %v1142 = vunpack.c.h.b16 %v1074
    %v1143 = vunpack.c.l.b16 %v1075
    %v1144 = vunpack.c.h.b16 %v1075
    %v1145 = vunpack.c.l.b16 %v1076
    %v1146 = vunpack.c.h.b16 %v1076
    %v1147 = vunpack.c.l.b16 %v1077
    %v1148 = vunpack.c.h.b16 %v1077
    %v1149 = vunpack.c.l.b16 %v1078
    %v1150 = vunpack.c.h.b16 %v1078
    %v1151 = vunpack.c.l.b16 %v1079
    %v1152 = vunpack.c.h.b16 %v1079
    %v1153 = vunpack.c.l.b16 %v1080
    %v1154 = vunpack.c.h.b16 %v1080
    %v1155 = vunpack.c.l.b16 %v1081
    %v1156 = vunpack.c.h.b16 %v1081
    %v1157 = vunpack.c.l.b16 %v1082
    %v1158 = vunpack.c.h.b16 %v1082
    %v1159 = vunpack.c.l.b16 %v1083
    %v1160 = vunpack.c.h.b16 %v1083
    %v1161 = vunpack.c.l.b16 %v1084
    %v1162 = vunpack.c.h.b16 %v1084
    %v1163 = vunpack.c.l.b16 %v1085
    %v1164 = vunpack.c.h.b16 %v1085
    %v1165 = vunpack.c.l.b16 %v1086
    %v1166 = vunpack.c.h.b16 %v1086
    %v1167 = vunpack.c.l.b16 %v1087
    %v1168 = vunpack.c.h.b16 %v1087
    %v1169 = vunpack.c.l.b16 %v1088
    %v1170 = vunpack.c.h.b16 %v1088
    %v1171 = vunpack.c.l.b16 %v1089
    %v1172 = vunpack.c.h.b16 %v1089
    %v1173 = vunpack.c.l.b16 %v1090
    %v1174 = vunpack.c.h.b16 %v1090
    %v1175 = vunpack.c.l.b16 %v1091
    %v1176 = vunpack.c.h.b16 %v1091
    %v1177 = vunpack.c.l.b16 %v1092
    %v1178 = vunpack.c.h.b16 %v1092
    %v1179 = vunpack.c.l.b16 %v1093
    %v1180 = vunpack.c.h.b16 %v1093
    %v1181 = vunpack.c.l.b16 %v1094
    %v1182 = vunpack.c.h.b16 %v1094
    %v1183 = vunpack.c.l.b16 %v1095
    %v1184 = vunpack.c.h.b16 %v1095
    %v1185 = vunpack.c.l.b16 %v1096
    %v1186 = vunpack.c.h.b16 %v1096
    %v1187 = vunpack.c.l.b16 %v1097
    %v1188 = vunpack.c.h.b16 %v1097
    %v1189 = vunpack.c.l.b16 %v1098
    %v1190 = vunpack.c.h.b16 %v1098
    %v1191 = vunpack.c.l.b16 %v1099
    %v1192 = vunpack.c.h.b16 %v1099
    %v1193 = vunpack.c.l.b16 %v1100
    %v1194 = vunpack.c.h.b16 %v1100
    %v1195 = vunpack.c.l.b16 %v1101
    %v1196 = vunpack.c.h.b16 %v1101
    %v1197 = vunpack.c.l.b16 %v1102
    %v1198 = vunpack.c.h.b16 %v1102
    %v1199 = vpack.c.b16 %v1137, %v1135
    %v1200 = vpack.c.b16 %v1138, %v1136
    %v1201 = vpack.c.b16 %v1141, %v1139
    %v1202 = vpack.c.b16 %v1142, %v1140
    %v1203 = vpack.c.b16 %v1145, %v1143
    %v1204 = vpack.c.b16 %v1146, %v1144
    %v1205 = vpack.c.b16 %v1149, %v1147
    %v1206 = vpack.c.b16 %v1150, %v1148
    %v1207 = vpack.c.b16 %v1153, %v1151
    %v1208 = vpack.c.b16 %v1154, %v1152
    %v1209 = vpack.c.b16 %v1157, %v1155
    %v1210 = vpack.c.b16 %v1158, %v1156
    %v1211 = vpack.c.b16 %v1161, %v1159
    %v1212 = vpack.c.b16 %v1162, %v1160
    %v1213 = vpack.c.b16 %v1165, %v1163
    %v1214 = vpack.c.b16 %v1166, %v1164
    %v1215 = vpack.c.b16 %v1169, %v1167
    %v1216 = vpack.c.b16 %v1170, %v1168
    %v1217 = vpack.c.b16 %v1173, %v1171
    %v1218 = vpack.c.b16 %v1174, %v1172
    %v1219 = vpack.c.b16 %v1177, %v1175
    %v1220 = vpack.c.b16 %v1178, %v1176
    %v1221 = vpack.c.b16 %v1181, %v1179
    %v1222 = vpack.c.b16 %v1182, %v1180
    %v1223 = vpack.c.b16 %v1185, %v1183
    %v1224 = vpack.c.b16 %v1186, %v1184
    %v1225 = vpack.c.b16 %v1189, %v1187
    %v1226 = vpack.c.b16 %v1190, %v1188
    %v1227 = vpack.c.b16 %v1193, %v1191
    %v1228 = vpack.c.b16 %v1194, %v1192
    %v1229 = vpack.c.b16 %v1197, %v1195
    %v1230 = vpack.c.b16 %v1198, %v1196
    %1263 = vmatprep.subr.bf16.mxu0 %v364
    %1264 = vmatpush1.bf16.msra.mxu0 %v363
    %1265 = vmatprep.subr.bf16.mxu0 %v366
    %1266 = vmatpush1.bf16.msra.mxu0 %v365
    %1267 = vmatprep.subr.bf16.mxu0 %v368
    %1268 = vmatpush1.bf16.msra.mxu0 %v367
    %1269 = vmatprep.subr.bf16.mxu0 %v370
    %1270 = vmatpush1.bf16.msra.mxu0 %v369
    %1271 = vmatprep.subr.bf16.mxu0 %v372
    %1272 = vmatpush1.bf16.msra.mxu0 %v371
    %1273 = vmatprep.subr.bf16.mxu0 %v374
    %1274 = vmatpush1.bf16.msra.mxu0 %v373
    %1275 = vmatprep.subr.bf16.mxu0 %v376
    %1276 = vmatpush1.bf16.msra.mxu0 %v375
    %1277 = vmatprep.subr.bf16.mxu0 %v378
    %1278 = vmatpush1.bf16.msra.mxu0 %v377
    %1279 = vmatprep.subr.bf16.mxu0 %v380
    %1280 = vmatpush1.bf16.msra.mxu0 %v379
    %1281 = vmatprep.subr.bf16.mxu0 %v382
    %1282 = vmatpush1.bf16.msra.mxu0 %v381
    %1283 = vmatprep.subr.bf16.mxu0 %v384
    %1284 = vmatpush1.bf16.msra.mxu0 %v383
    %1285 = vmatprep.subr.bf16.mxu0 %v386
    %1286 = vmatpush1.bf16.msra.mxu0 %v385
    %1287 = vmatprep.subr.bf16.mxu0 %v388
    %1288 = vmatpush1.bf16.msra.mxu0 %v387
    %1289 = vmatprep.subr.bf16.mxu0 %v390
    %1290 = vmatpush1.bf16.msra.mxu0 %v389
    %1291 = vmatprep.subr.bf16.mxu0 %v392
    %1292 = vmatpush1.bf16.msra.mxu0 %v391
    %1293 = vmatprep.subr.bf16.mxu0 %v394
    %1294 = vmatpush1.bf16.msra.mxu0 %v393
    %1295 = vmatprep.mubr.bf16.mxu0 %v1200
    %1296 = vmatmul.mubr.bf16.gmra.mrb[0].mxu0 %v1199
    %v1297 = vpop.f32.mrb[0].mxu0
    %v1298 = vadd.f32 0.0, %v1297
    %v1299 = vpop.f32.mrb[0].mxu0
    %v1300 = vadd.f32 0.0, %v1299
    %v1301 = vpop.f32.mrb[0].mxu0
    %v1302 = vadd.f32 0.0, %v1301
    %v1303 = vpop.f32.mrb[0].mxu0
    %v1304 = vadd.f32 0.0, %v1303
    %1305 = vmatprep.mubr.bf16.mxu0 %v1202
    %1306 = vmatmul.mubr.bf16.gmra.mrb[0].mxu0 %v1201
    %v1307 = vpop.f32.mrb[0].mxu0
    %v1308 = vadd.f32 0.0, %v1307
    %v1309 = vpop.f32.mrb[0].mxu0
    %v1310 = vadd.f32 0.0, %v1309
    %v1311 = vpop.f32.mrb[0].mxu0
    %v1312 = vadd.f32 0.0, %v1311
    %v1313 = vpop.f32.mrb[0].mxu0
    %v1314 = vadd.f32 0.0, %v1313
    %1315 = vmatprep.mubr.bf16.mxu0 %v1204
    %1316 = vmatmul.mubr.bf16.gmra.mrb[0].mxu0 %v1203
    %v1317 = vpop.f32.mrb[0].mxu0
    %v1318 = vadd.f32 0.0, %v1317
    %v1319 = vpop.f32.mrb[0].mxu0
    %v1320 = vadd.f32 0.0, %v1319
    %v1321 = vpop.f32.mrb[0].mxu0
    %v1322 = vadd.f32 0.0, %v1321
    %v1323 = vpop.f32.mrb[0].mxu0
    %v1324 = vadd.f32 0.0, %v1323
    %1325 = vmatprep.mubr.bf16.mxu0 %v1206
    %1326 = vmatmul.mubr.bf16.gmra.mrb[0].mxu0 %v1205
    %v1327 = vpop.f32.mrb[0].mxu0
    %v1328 = vadd.f32 0.0, %v1327
    %v1329 = vpop.f32.mrb[0].mxu0
    %v1330 = vadd.f32 0.0, %v1329
    %v1331 = vpop.f32.mrb[0].mxu0
    %v1332 = vadd.f32 0.0, %v1331
    %v1333 = vpop.f32.mrb[0].mxu0
    %v1334 = vadd.f32 0.0, %v1333
    %1335 = vmatprep.mubr.bf16.mxu0 %v1208
    %1336 = vmatmul.mubr.bf16.gmra.mrb[0].mxu0 %v1207
    %v1337 = vpop.f32.mrb[0].mxu0
    %v1338 = vadd.f32 0.0, %v1337
    %v1339 = vpop.f32.mrb[0].mxu0
    %v1340 = vadd.f32 0.0, %v1339
    %v1341 = vpop.f32.mrb[0].mxu0
    %v1342 = vadd.f32 0.0, %v1341
    %v1343 = vpop.f32.mrb[0].mxu0
    %v1344 = vadd.f32 0.0, %v1343
    %1345 = vmatprep.mubr.bf16.mxu0 %v1210
    %1346 = vmatmul.mubr.bf16.gmra.mrb[0].mxu0 %v1209
    %v1347 = vpop.f32.mrb[0].mxu0
    %v1348 = vadd.f32 0.0, %v1347
    %v1349 = vpop.f32.mrb[0].mxu0
    %v1350 = vadd.f32 0.0, %v1349
    %v1351 = vpop.f32.mrb[0].mxu0
    %v1352 = vadd.f32 0.0, %v1351
    %v1353 = vpop.f32.mrb[0].mxu0
    %v1354 = vadd.f32 0.0, %v1353
    %1355 = vmatprep.mubr.bf16.mxu0 %v1212
    %1356 = vmatmul.mubr.bf16.gmra.mrb[0].mxu0 %v1211
    %v1357 = vpop.f32.mrb[0].mxu0
    %v1358 = vadd.f32 0.0, %v1357
    %v1359 = vpop.f32.mrb[0].mxu0
    %v1360 = vadd.f32 0.0, %v1359
    %v1361 = vpop.f32.mrb[0].mxu0
    %v1362 = vadd.f32 0.0, %v1361
    %v1363 = vpop.f32.mrb[0].mxu0
    %v1364 = vadd.f32 0.0, %v1363
    %1365 = vmatprep.mubr.bf16.mxu0 %v1214
    %1366 = vmatmul.mubr.bf16.gmra.mrb[0].mxu0 %v1213
    %v1367 = vpop.f32.mrb[0].mxu0
    %v1368 = vadd.f32 0.0, %v1367
    %v1369 = vpop.f32.mrb[0].mxu0
    %v1370 = vadd.f32 0.0, %v1369
    %v1371 = vpop.f32.mrb[0].mxu0
    %v1372 = vadd.f32 0.0, %v1371
    %v1373 = vpop.f32.mrb[0].mxu0
    %v1374 = vadd.f32 0.0, %v1373
    %1375 = vmatprep.mubr.bf16.mxu0 %v1216
    %1376 = vmatmul.mubr.bf16.gmra.mrb[0].mxu0 %v1215
    %v1377 = vpop.f32.mrb[0].mxu0
    %v1378 = vadd.f32 0.0, %v1377
    %v1379 = vpop.f32.mrb[0].mxu0
    %v1380 = vadd.f32 0.0, %v1379
    %v1381 = vpop.f32.mrb[0].mxu0
    %v1382 = vadd.f32 0.0, %v1381
    %v1383 = vpop.f32.mrb[0].mxu0
    %v1384 = vadd.f32 0.0, %v1383
    %1385 = vmatprep.mubr.bf16.mxu0 %v1218
    %1386 = vmatmul.mubr.bf16.gmra.mrb[0].mxu0 %v1217
    %v1387 = vpop.f32.mrb[0].mxu0
    %v1388 = vadd.f32 0.0, %v1387
    %v1389 = vpop.f32.mrb[0].mxu0
    %v1390 = vadd.f32 0.0, %v1389
    %v1391 = vpop.f32.mrb[0].mxu0
    %v1392 = vadd.f32 0.0, %v1391
    %v1393 = vpop.f32.mrb[0].mxu0
    %v1394 = vadd.f32 0.0, %v1393
    %1395 = vmatprep.mubr.bf16.mxu0 %v1220
    %1396 = vmatmul.mubr.bf16.gmra.mrb[0].mxu0 %v1219
    %v1397 = vpop.f32.mrb[0].mxu0
    %v1398 = vadd.f32 0.0, %v1397
    %v1399 = vpop.f32.mrb[0].mxu0
    %v1400 = vadd.f32 0.0, %v1399
    %v1401 = vpop.f32.mrb[0].mxu0
    %v1402 = vadd.f32 0.0, %v1401
    %v1403 = vpop.f32.mrb[0].mxu0
    %v1404 = vadd.f32 0.0, %v1403
    %1405 = vmatprep.mubr.bf16.mxu0 %v1222
    %1406 = vmatmul.mubr.bf16.gmra.mrb[0].mxu0 %v1221
    %v1407 = vpop.f32.mrb[0].mxu0
    %v1408 = vadd.f32 0.0, %v1407
    %v1409 = vpop.f32.mrb[0].mxu0
    %v1410 = vadd.f32 0.0, %v1409
    %v1411 = vpop.f32.mrb[0].mxu0
    %v1412 = vadd.f32 0.0, %v1411
    %v1413 = vpop.f32.mrb[0].mxu0
    %v1414 = vadd.f32 0.0, %v1413
    %1415 = vmatprep.mubr.bf16.mxu0 %v1224
    %1416 = vmatmul.mubr.bf16.gmra.mrb[0].mxu0 %v1223
    %v1417 = vpop.f32.mrb[0].mxu0
    %v1418 = vadd.f32 0.0, %v1417
    %v1419 = vpop.f32.mrb[0].mxu0
    %v1420 = vadd.f32 0.0, %v1419
    %v1421 = vpop.f32.mrb[0].mxu0
    %v1422 = vadd.f32 0.0, %v1421
    %v1423 = vpop.f32.mrb[0].mxu0
    %v1424 = vadd.f32 0.0, %v1423
    %1425 = vmatprep.mubr.bf16.mxu0 %v1226
    %1426 = vmatmul.mubr.bf16.gmra.mrb[0].mxu0 %v1225
    %v1427 = vpop.f32.mrb[0].mxu0
    %v1428 = vadd.f32 0.0, %v1427
    %v1429 = vpop.f32.mrb[0].mxu0
    %v1430 = vadd.f32 0.0, %v1429
    %v1431 = vpop.f32.mrb[0].mxu0
    %v1432 = vadd.f32 0.0, %v1431
    %v1433 = vpop.f32.mrb[0].mxu0
    %v1434 = vadd.f32 0.0, %v1433
    %1435 = vmatprep.mubr.bf16.mxu0 %v1228
    %1436 = vmatmul.mubr.bf16.gmra.mrb[0].mxu0 %v1227
    %v1437 = vpop.f32.mrb[0].mxu0
    %v1438 = vadd.f32 0.0, %v1437
    %v1439 = vpop.f32.mrb[0].mxu0
    %v1440 = vadd.f32 0.0, %v1439
    %v1441 = vpop.f32.mrb[0].mxu0
    %v1442 = vadd.f32 0.0, %v1441
    %v1443 = vpop.f32.mrb[0].mxu0
    %v1444 = vadd.f32 0.0, %v1443
    %1445 = vmatprep.mubr.bf16.mxu0 %v1230
    %1446 = vmatmul.mubr.bf16.gmra.mrb[0].mxu0 %v1229
    %v1447 = vpop.f32.mrb[0].mxu0
    %v1448 = vadd.f32 0.0, %v1447
    %v1449 = vpop.f32.mrb[0].mxu0
    %v1450 = vadd.f32 0.0, %v1449
    %v1451 = vpop.f32.mrb[0].mxu0
    %v1452 = vadd.f32 0.0, %v1451
    %v1453 = vpop.f32.mrb[0].mxu0
    %v1454 = vadd.f32 0.0, %v1453
    %1455 = vdwg.mxu0
    %v1456 = vpack.c.bf16 %v1302, %v1298
    %v1457 = vpack.c.bf16 %v1304, %v1300
    %v1458 = vpack.c.bf16 %v1312, %v1308
    %v1459 = vpack.c.bf16 %v1314, %v1310
    %v1460 = vpack.c.bf16 %v1322, %v1318
    %v1461 = vpack.c.bf16 %v1324, %v1320
    %v1462 = vpack.c.bf16 %v1332, %v1328
    %v1463 = vpack.c.bf16 %v1334, %v1330
    %v1464 = vpack.c.bf16 %v1342, %v1338
    %v1465 = vpack.c.bf16 %v1344, %v1340
    %v1466 = vpack.c.bf16 %v1352, %v1348
    %v1467 = vpack.c.bf16 %v1354, %v1350
    %v1468 = vpack.c.bf16 %v1362, %v1358
    %v1469 = vpack.c.bf16 %v1364, %v1360
    %v1470 = vpack.c.bf16 %v1372, %v1368
    %v1471 = vpack.c.bf16 %v1374, %v1370
    %v1472 = vpack.c.bf16 %v1382, %v1378
    %v1473 = vpack.c.bf16 %v1384, %v1380
    %v1474 = vpack.c.bf16 %v1392, %v1388
    %v1475 = vpack.c.bf16 %v1394, %v1390
    %v1476 = vpack.c.bf16 %v1402, %v1398
    %v1477 = vpack.c.bf16 %v1404, %v1400
    %v1478 = vpack.c.bf16 %v1412, %v1408
    %v1479 = vpack.c.bf16 %v1414, %v1410
    %v1480 = vpack.c.bf16 %v1422, %v1418
    %v1481 = vpack.c.bf16 %v1424, %v1420
    %v1482 = vpack.c.bf16 %v1432, %v1428
    %v1483 = vpack.c.bf16 %v1434, %v1430
    %v1484 = vpack.c.bf16 %v1442, %v1438
    %v1485 = vpack.c.bf16 %v1444, %v1440
    %v1486 = vpack.c.bf16 %v1452, %v1448
    %v1487 = vpack.c.bf16 %v1454, %v1450
    %1488 = vst [vmem:[#allocation2] sm:$0xff] %v1456
    %1489 = vst [vmem:[#allocation2 + $0x8] sm:$0xff] %v1457
    %1490 = vst [vmem:[#allocation2 + $0x10] sm:$0xff] %v1458
    %1491 = vst [vmem:[#allocation2 + $0x18] sm:$0xff] %v1459
    %1492 = vst [vmem:[#allocation2 + $0x20] sm:$0xff] %v1460
    %1493 = vst [vmem:[#allocation2 + $0x28] sm:$0xff] %v1461
    %1494 = vst [vmem:[#allocation2 + $0x30] sm:$0xff] %v1462
    %1495 = vst [vmem:[#allocation2 + $0x38] sm:$0xff] %v1463
    %1496 = vst [vmem:[#allocation2 + $0x40] sm:$0xff] %v1464
    %1497 = vst [vmem:[#allocation2 + $0x48] sm:$0xff] %v1465
    %1498 = vst [vmem:[#allocation2 + $0x50] sm:$0xff] %v1466
    %1499 = vst [vmem:[#allocation2 + $0x58] sm:$0xff] %v1467
    %1500 = vst [vmem:[#allocation2 + $0x60] sm:$0xff] %v1468
    %1501 = vst [vmem:[#allocation2 + $0x68] sm:$0xff] %v1469
    %1502 = vst [vmem:[#allocation2 + $0x70] sm:$0xff] %v1470
    %1503 = vst [vmem:[#allocation2 + $0x78] sm:$0xff] %v1471
    %1504 = vst [vmem:[#allocation2 + $0x80] sm:$0xff] %v1472
    %1505 = vst [vmem:[#allocation2 + $0x88] sm:$0xff] %v1473
    %1506 = vst [vmem:[#allocation2 + $0x90] sm:$0xff] %v1474
    %1507 = vst [vmem:[#allocation2 + $0x98] sm:$0xff] %v1475
    %1508 = vst [vmem:[#allocation2 + $0xa0] sm:$0xff] %v1476
    %1509 = vst [vmem:[#allocation2 + $0xa8] sm:$0xff] %v1477
    %1510 = vst [vmem:[#allocation2 + $0xb0] sm:$0xff] %v1478
    %1511 = vst [vmem:[#allocation2 + $0xb8] sm:$0xff] %v1479
    %1512 = vst [vmem:[#allocation2 + $0xc0] sm:$0xff] %v1480
    %1513 = vst [vmem:[#allocation2 + $0xc8] sm:$0xff] %v1481
    %1514 = vst [vmem:[#allocation2 + $0xd0] sm:$0xff] %v1482
    %1515 = vst [vmem:[#allocation2 + $0xd8] sm:$0xff] %v1483
    %1516 = vst [vmem:[#allocation2 + $0xe0] sm:$0xff] %v1484
    %1517 = vst [vmem:[#allocation2 + $0xe8] sm:$0xff] %v1485
    %1518 = vst [vmem:[#allocation2 + $0xf0] sm:$0xff] %v1486
    %1519 = vst [vmem:[#allocation2 + $0xf8] sm:$0xff] %v1487
    %v1520 = vld [vmem:[#allocation2] sm:$0xff]
    %v1521 = vld [vmem:[#allocation2 + $0x8] sm:$0xff]
    %v1522 = vld [vmem:[#allocation2 + $0x10] sm:$0xff]
    %v1523 = vld [vmem:[#allocation2 + $0x18] sm:$0xff]
    %v1524 = vld [vmem:[#allocation2 + $0x20] sm:$0xff]
    %v1525 = vld [vmem:[#allocation2 + $0x28] sm:$0xff]
    %v1526 = vld [vmem:[#allocation2 + $0x30] sm:$0xff]
    %v1527 = vld [vmem:[#allocation2 + $0x38] sm:$0xff]
    %v1528 = vld [vmem:[#allocation2 + $0x40] sm:$0xff]
    %v1529 = vld [vmem:[#allocation2 + $0x48] sm:$0xff]
    %v1530 = vld [vmem:[#allocation2 + $0x50] sm:$0xff]
    %v1531 = vld [vmem:[#allocation2 + $0x58] sm:$0xff]
    %v1532 = vld [vmem:[#allocation2 + $0x60] sm:$0xff]
    %v1533 = vld [vmem:[#allocation2 + $0x68] sm:$0xff]
    %v1534 = vld [vmem:[#allocation2 + $0x70] sm:$0xff]
    %v1535 = vld [vmem:[#allocation2 + $0x78] sm:$0xff]
    %v1536 = vld [vmem:[#allocation2 + $0x80] sm:$0xff]
    %v1537 = vld [vmem:[#allocation2 + $0x88] sm:$0xff]
    %v1538 = vld [vmem:[#allocation2 + $0x90] sm:$0xff]
    %v1539 = vld [vmem:[#allocation2 + $0x98] sm:$0xff]
    %v1540 = vld [vmem:[#allocation2 + $0xa0] sm:$0xff]
    %v1541 = vld [vmem:[#allocation2 + $0xa8] sm:$0xff]
    %v1542 = vld [vmem:[#allocation2 + $0xb0] sm:$0xff]
    %v1543 = vld [vmem:[#allocation2 + $0xb8] sm:$0xff]
    %v1544 = vld [vmem:[#allocation2 + $0xc0] sm:$0xff]
    %v1545 = vld [vmem:[#allocation2 + $0xc8] sm:$0xff]
    %v1546 = vld [vmem:[#allocation2 + $0xd0] sm:$0xff]
    %v1547 = vld [vmem:[#allocation2 + $0xd8] sm:$0xff]
    %v1548 = vld [vmem:[#allocation2 + $0xe0] sm:$0xff]
    %v1549 = vld [vmem:[#allocation2 + $0xe8] sm:$0xff]
    %v1550 = vld [vmem:[#allocation2 + $0xf0] sm:$0xff]
    %v1551 = vld [vmem:[#allocation2 + $0xf8] sm:$0xff]
    %1584 = vrot.lane.b32.xlu0 %v1520, 127
    %v1585 = vpop.permute.xlu0 %1584
    %1586 = vrot.lane.b32.xlu0 %v1521, 127
    %v1587 = vpop.permute.xlu0 %1586
    %1588 = vrot.lane.b32.xlu0 %v1522, 127
    %v1589 = vpop.permute.xlu0 %1588
    %1590 = vrot.lane.b32.xlu0 %v1523, 127
    %v1591 = vpop.permute.xlu0 %1590
    %1592 = vrot.lane.b32.xlu0 %v1524, 127
    %v1593 = vpop.permute.xlu0 %1592
    %1594 = vrot.lane.b32.xlu0 %v1525, 127
    %v1595 = vpop.permute.xlu0 %1594
    %1596 = vrot.lane.b32.xlu0 %v1526, 127
    %v1597 = vpop.permute.xlu0 %1596
    %1598 = vrot.lane.b32.xlu0 %v1527, 127
    %v1599 = vpop.permute.xlu0 %1598
    %1600 = vrot.lane.b32.xlu0 %v1528, 127
    %v1601 = vpop.permute.xlu0 %1600
    %1602 = vrot.lane.b32.xlu0 %v1529, 127
    %v1603 = vpop.permute.xlu0 %1602
    %1604 = vrot.lane.b32.xlu0 %v1530, 127
    %v1605 = vpop.permute.xlu0 %1604
    %1606 = vrot.lane.b32.xlu0 %v1531, 127
    %v1607 = vpop.permute.xlu0 %1606
    %1608 = vrot.lane.b32.xlu0 %v1532, 127
    %v1609 = vpop.permute.xlu0 %1608
    %1610 = vrot.lane.b32.xlu0 %v1533, 127
    %v1611 = vpop.permute.xlu0 %1610
    %1612 = vrot.lane.b32.xlu0 %v1534, 127
    %v1613 = vpop.permute.xlu0 %1612
    %1614 = vrot.lane.b32.xlu0 %v1535, 127
    %v1615 = vpop.permute.xlu0 %1614
    %1616 = vrot.lane.b32.xlu0 %v1536, 127
    %v1617 = vpop.permute.xlu0 %1616
    %1618 = vrot.lane.b32.xlu0 %v1537, 127
    %v1619 = vpop.permute.xlu0 %1618
    %1620 = vrot.lane.b32.xlu0 %v1538, 127
    %v1621 = vpop.permute.xlu0 %1620
    %1622 = vrot.lane.b32.xlu0 %v1539, 127
    %v1623 = vpop.permute.xlu0 %1622
    %1624 = vrot.lane.b32.xlu0 %v1540, 127
    %v1625 = vpop.permute.xlu0 %1624
    %1626 = vrot.lane.b32.xlu0 %v1541, 127
    %v1627 = vpop.permute.xlu0 %1626
    %1628 = vrot.lane.b32.xlu0 %v1542, 127
    %v1629 = vpop.permute.xlu0 %1628
    %1630 = vrot.lane.b32.xlu0 %v1543, 127
    %v1631 = vpop.permute.xlu0 %1630
    %1632 = vrot.lane.b32.xlu0 %v1544, 127
    %v1633 = vpop.permute.xlu0 %1632
    %1634 = vrot.lane.b32.xlu0 %v1545, 127
    %v1635 = vpop.permute.xlu0 %1634
    %1636 = vrot.lane.b32.xlu0 %v1546, 127
    %v1637 = vpop.permute.xlu0 %1636
    %1638 = vrot.lane.b32.xlu0 %v1547, 127
    %v1639 = vpop.permute.xlu0 %1638
    %1640 = vrot.lane.b32.xlu0 %v1548, 127
    %v1641 = vpop.permute.xlu0 %1640
    %1642 = vrot.lane.b32.xlu0 %v1549, 127
    %v1643 = vpop.permute.xlu0 %1642
    %1644 = vrot.lane.b32.xlu0 %v1550, 127
    %v1645 = vpop.permute.xlu0 %1644
    %1646 = vrot.lane.b32.xlu0 %v1551, 127
    %v1647 = vpop.permute.xlu0 %1646
    %vm1648 = vcmask 1039360
    %v1649 = vsel %vm1648, %v1585, %v1587
    %v1650 = vsel %vm1648, %v1589, %v1591
    %v1651 = vsel %vm1648, %v1593, %v1595
    %v1652 = vsel %vm1648, %v1597, %v1599
    %v1653 = vsel %vm1648, %v1601, %v1603
    %v1654 = vsel %vm1648, %v1605, %v1607
    %v1655 = vsel %vm1648, %v1609, %v1611
    %v1656 = vsel %vm1648, %v1613, %v1615
    %v1657 = vsel %vm1648, %v1617, %v1619
    %v1658 = vsel %vm1648, %v1621, %v1623
    %v1659 = vsel %vm1648, %v1625, %v1627
    %v1660 = vsel %vm1648, %v1629, %v1631
    %v1661 = vsel %vm1648, %v1633, %v1635
    %v1662 = vsel %vm1648, %v1637, %v1639
    %v1663 = vsel %vm1648, %v1641, %v1643
    %v1664 = vsel %vm1648, %v1645, %v1647
    %1681 = vst [vmem:[#allocation3 + $0x80] sm:$0xff] %v1649
    %1682 = vst [vmem:[#allocation3 + $0x88] sm:$0xff] %v1650
    %1683 = vst [vmem:[#allocation3 + $0x90] sm:$0xff] %v1651
    %1684 = vst [vmem:[#allocation3 + $0x98] sm:$0xff] %v1652
    %1685 = vst [vmem:[#allocation3 + $0xa0] sm:$0xff] %v1653
    %1686 = vst [vmem:[#allocation3 + $0xa8] sm:$0xff] %v1654
    %1687 = vst [vmem:[#allocation3 + $0xb0] sm:$0xff] %v1655
    %1688 = vst [vmem:[#allocation3 + $0xb8] sm:$0xff] %v1656
    %1689 = vst [vmem:[#allocation3 + $0xc0] sm:$0xff] %v1657
    %1690 = vst [vmem:[#allocation3 + $0xc8] sm:$0xff] %v1658
    %1691 = vst [vmem:[#allocation3 + $0xd0] sm:$0xff] %v1659
    %1692 = vst [vmem:[#allocation3 + $0xd8] sm:$0xff] %v1660
    %1693 = vst [vmem:[#allocation3 + $0xe0] sm:$0xff] %v1661
    %1694 = vst [vmem:[#allocation3 + $0xe8] sm:$0xff] %v1662
    %1695 = vst [vmem:[#allocation3 + $0xf0] sm:$0xff] %v1663
    %1696 = vst [vmem:[#allocation3 + $0xf8] sm:$0xff] %v1664
    %v1697 = vld [vmem:[#allocation2] sm:$0xff]
    %v1698 = vld [vmem:[#allocation2 + $0x8] sm:$0xff]
    %v1699 = vld [vmem:[#allocation2 + $0x10] sm:$0xff]
    %v1700 = vld [vmem:[#allocation2 + $0x18] sm:$0xff]
    %v1701 = vld [vmem:[#allocation2 + $0x20] sm:$0xff]
    %v1702 = vld [vmem:[#allocation2 + $0x28] sm:$0xff]
    %v1703 = vld [vmem:[#allocation2 + $0x30] sm:$0xff]
    %v1704 = vld [vmem:[#allocation2 + $0x38] sm:$0xff]
    %v1705 = vld [vmem:[#allocation2 + $0x40] sm:$0xff]
    %v1706 = vld [vmem:[#allocation2 + $0x48] sm:$0xff]
    %v1707 = vld [vmem:[#allocation2 + $0x50] sm:$0xff]
    %v1708 = vld [vmem:[#allocation2 + $0x58] sm:$0xff]
    %v1709 = vld [vmem:[#allocation2 + $0x60] sm:$0xff]
    %v1710 = vld [vmem:[#allocation2 + $0x68] sm:$0xff]
    %v1711 = vld [vmem:[#allocation2 + $0x70] sm:$0xff]
    %v1712 = vld [vmem:[#allocation2 + $0x78] sm:$0xff]
    %v1713 = vld [vmem:[#allocation2 + $0x80] sm:$0xff]
    %v1714 = vld [vmem:[#allocation2 + $0x88] sm:$0xff]
    %v1715 = vld [vmem:[#allocation2 + $0x90] sm:$0xff]
    %v1716 = vld [vmem:[#allocation2 + $0x98] sm:$0xff]
    %v1717 = vld [vmem:[#allocation2 + $0xa0] sm:$0xff]
    %v1718 = vld [vmem:[#allocation2 + $0xa8] sm:$0xff]
    %v1719 = vld [vmem:[#allocation2 + $0xb0] sm:$0xff]
    %v1720 = vld [vmem:[#allocation2 + $0xb8] sm:$0xff]
    %v1721 = vld [vmem:[#allocation2 + $0xc0] sm:$0xff]
    %v1722 = vld [vmem:[#allocation2 + $0xc8] sm:$0xff]
    %v1723 = vld [vmem:[#allocation2 + $0xd0] sm:$0xff]
    %v1724 = vld [vmem:[#allocation2 + $0xd8] sm:$0xff]
    %v1725 = vld [vmem:[#allocation2 + $0xe0] sm:$0xff]
    %v1726 = vld [vmem:[#allocation2 + $0xe8] sm:$0xff]
    %v1727 = vld [vmem:[#allocation2 + $0xf0] sm:$0xff]
    %v1728 = vld [vmem:[#allocation2 + $0xf8] sm:$0xff]
    %1761 = vrot.lane.b32.xlu0 %v1697, 118
    %v1762 = vpop.permute.xlu0 %1761
    %1763 = vrot.lane.b32.xlu0 %v1698, 118
    %v1764 = vpop.permute.xlu0 %1763
    %1765 = vrot.lane.b32.xlu0 %v1699, 118
    %v1766 = vpop.permute.xlu0 %1765
    %1767 = vrot.lane.b32.xlu0 %v1700, 118
    %v1768 = vpop.permute.xlu0 %1767
    %1769 = vrot.lane.b32.xlu0 %v1701, 118
    %v1770 = vpop.permute.xlu0 %1769
    %1771 = vrot.lane.b32.xlu0 %v1702, 118
    %v1772 = vpop.permute.xlu0 %1771
    %1773 = vrot.lane.b32.xlu0 %v1703, 118
    %v1774 = vpop.permute.xlu0 %1773
    %1775 = vrot.lane.b32.xlu0 %v1704, 118
    %v1776 = vpop.permute.xlu0 %1775
    %1777 = vrot.lane.b32.xlu0 %v1705, 118
    %v1778 = vpop.permute.xlu0 %1777
    %1779 = vrot.lane.b32.xlu0 %v1706, 118
    %v1780 = vpop.permute.xlu0 %1779
    %1781 = vrot.lane.b32.xlu0 %v1707, 118
    %v1782 = vpop.permute.xlu0 %1781
    %1783 = vrot.lane.b32.xlu0 %v1708, 118
    %v1784 = vpop.permute.xlu0 %1783
    %1785 = vrot.lane.b32.xlu0 %v1709, 118
    %v1786 = vpop.permute.xlu0 %1785
    %1787 = vrot.lane.b32.xlu0 %v1710, 118
    %v1788 = vpop.permute.xlu0 %1787
    %1789 = vrot.lane.b32.xlu0 %v1711, 118
    %v1790 = vpop.permute.xlu0 %1789
    %1791 = vrot.lane.b32.xlu0 %v1712, 118
    %v1792 = vpop.permute.xlu0 %1791
    %1793 = vrot.lane.b32.xlu0 %v1713, 118
    %v1794 = vpop.permute.xlu0 %1793
    %1795 = vrot.lane.b32.xlu0 %v1714, 118
    %v1796 = vpop.permute.xlu0 %1795
    %1797 = vrot.lane.b32.xlu0 %v1715, 118
    %v1798 = vpop.permute.xlu0 %1797
    %1799 = vrot.lane.b32.xlu0 %v1716, 118
    %v1800 = vpop.permute.xlu0 %1799
    %1801 = vrot.lane.b32.xlu0 %v1717, 118
    %v1802 = vpop.permute.xlu0 %1801
    %1803 = vrot.lane.b32.xlu0 %v1718, 118
    %v1804 = vpop.permute.xlu0 %1803
    %1805 = vrot.lane.b32.xlu0 %v1719, 118
    %v1806 = vpop.permute.xlu0 %1805
    %1807 = vrot.lane.b32.xlu0 %v1720, 118
    %v1808 = vpop.permute.xlu0 %1807
    %1809 = vrot.lane.b32.xlu0 %v1721, 118
    %v1810 = vpop.permute.xlu0 %1809
    %1811 = vrot.lane.b32.xlu0 %v1722, 118
    %v1812 = vpop.permute.xlu0 %1811
    %1813 = vrot.lane.b32.xlu0 %v1723, 118
    %v1814 = vpop.permute.xlu0 %1813
    %1815 = vrot.lane.b32.xlu0 %v1724, 118
    %v1816 = vpop.permute.xlu0 %1815
    %1817 = vrot.lane.b32.xlu0 %v1725, 118
    %v1818 = vpop.permute.xlu0 %1817
    %1819 = vrot.lane.b32.xlu0 %v1726, 118
    %v1820 = vpop.permute.xlu0 %1819
    %1821 = vrot.lane.b32.xlu0 %v1727, 118
    %v1822 = vpop.permute.xlu0 %1821
    %1823 = vrot.lane.b32.xlu0 %v1728, 118
    %v1824 = vpop.permute.xlu0 %1823
    %vm1825 = vcmask 965632
    %v1826 = vsel %vm1825, %v1762, %v1764
    %v1827 = vsel %vm1825, %v1766, %v1768
    %v1828 = vsel %vm1825, %v1770, %v1772
    %v1829 = vsel %vm1825, %v1774, %v1776
    %v1830 = vsel %vm1825, %v1778, %v1780
    %v1831 = vsel %vm1825, %v1782, %v1784
    %v1832 = vsel %vm1825, %v1786, %v1788
    %v1833 = vsel %vm1825, %v1790, %v1792
    %v1834 = vsel %vm1825, %v1794, %v1796
    %v1835 = vsel %vm1825, %v1798, %v1800
    %v1836 = vsel %vm1825, %v1802, %v1804
    %v1837 = vsel %vm1825, %v1806, %v1808
    %v1838 = vsel %vm1825, %v1810, %v1812
    %v1839 = vsel %vm1825, %v1814, %v1816
    %v1840 = vsel %vm1825, %v1818, %v1820
    %v1841 = vsel %vm1825, %v1822, %v1824
    %1858 = vst [vmem:[#allocation3 + $0x200] sm:$0xff] %v1826
    %1859 = vst [vmem:[#allocation3 + $0x208] sm:$0xff] %v1827
    %1860 = vst [vmem:[#allocation3 + $0x210] sm:$0xff] %v1828
    %1861 = vst [vmem:[#allocation3 + $0x218] sm:$0xff] %v1829
    %1862 = vst [vmem:[#allocation3 + $0x220] sm:$0xff] %v1830
    %1863 = vst [vmem:[#allocation3 + $0x228] sm:$0xff] %v1831
    %1864 = vst [vmem:[#allocation3 + $0x230] sm:$0xff] %v1832
    %1865 = vst [vmem:[#allocation3 + $0x238] sm:$0xff] %v1833
    %1866 = vst [vmem:[#allocation3 + $0x240] sm:$0xff] %v1834
    %1867 = vst [vmem:[#allocation3 + $0x248] sm:$0xff] %v1835
    %1868 = vst [vmem:[#allocation3 + $0x250] sm:$0xff] %v1836
    %1869 = vst [vmem:[#allocation3 + $0x258] sm:$0xff] %v1837
    %1870 = vst [vmem:[#allocation3 + $0x260] sm:$0xff] %v1838
    %1871 = vst [vmem:[#allocation3 + $0x268] sm:$0xff] %v1839
    %1872 = vst [vmem:[#allocation3 + $0x270] sm:$0xff] %v1840
    %1873 = vst [vmem:[#allocation3 + $0x278] sm:$0xff] %v1841
    %v1874 = vld [vmem:[#allocation2] sm:$0xff]
    %v1875 = vld [vmem:[#allocation2 + $0x8] sm:$0xff]
    %v1876 = vld [vmem:[#allocation2 + $0x10] sm:$0xff]
    %v1877 = vld [vmem:[#allocation2 + $0x18] sm:$0xff]
    %v1878 = vld [vmem:[#allocation2 + $0x20] sm:$0xff]
    %v1879 = vld [vmem:[#allocation2 + $0x28] sm:$0xff]
    %v1880 = vld [vmem:[#allocation2 + $0x30] sm:$0xff]
    %v1881 = vld [vmem:[#allocation2 + $0x38] sm:$0xff]
    %v1882 = vld [vmem:[#allocation2 + $0x40] sm:$0xff]
    %v1883 = vld [vmem:[#allocation2 + $0x48] sm:$0xff]
    %v1884 = vld [vmem:[#allocation2 + $0x50] sm:$0xff]
    %v1885 = vld [vmem:[#allocation2 + $0x58] sm:$0xff]
    %v1886 = vld [vmem:[#allocation2 + $0x60] sm:$0xff]
    %v1887 = vld [vmem:[#allocation2 + $0x68] sm:$0xff]
    %v1888 = vld [vmem:[#allocation2 + $0x70] sm:$0xff]
    %v1889 = vld [vmem:[#allocation2 + $0x78] sm:$0xff]
    %v1890 = vld [vmem:[#allocation2 + $0x80] sm:$0xff]
    %v1891 = vld [vmem:[#allocation2 + $0x88] sm:$0xff]
    %v1892 = vld [vmem:[#allocation2 + $0x90] sm:$0xff]
    %v1893 = vld [vmem:[#allocation2 + $0x98] sm:$0xff]
    %v1894 = vld [vmem:[#allocation2 + $0xa0] sm:$0xff]
    %v1895 = vld [vmem:[#allocation2 + $0xa8] sm:$0xff]
    %v1896 = vld [vmem:[#allocation2 + $0xb0] sm:$0xff]
    %v1897 = vld [vmem:[#allocation2 + $0xb8] sm:$0xff]
    %v1898 = vld [vmem:[#allocation2 + $0xc0] sm:$0xff]
    %v1899 = vld [vmem:[#allocation2 + $0xc8] sm:$0xff]
    %v1900 = vld [vmem:[#allocation2 + $0xd0] sm:$0xff]
    %v1901 = vld [vmem:[#allocation2 + $0xd8] sm:$0xff]
    %v1902 = vld [vmem:[#allocation2 + $0xe0] sm:$0xff]
    %v1903 = vld [vmem:[#allocation2 + $0xe8] sm:$0xff]
    %v1904 = vld [vmem:[#allocation2 + $0xf0] sm:$0xff]
    %v1905 = vld [vmem:[#allocation2 + $0xf8] sm:$0xff]
    %1938 = vrot.lane.b32.xlu0 %v1874, 109
    %v1939 = vpop.permute.xlu0 %1938
    %1940 = vrot.lane.b32.xlu0 %v1875, 109
    %v1941 = vpop.permute.xlu0 %1940
    %1942 = vrot.lane.b32.xlu0 %v1876, 109
    %v1943 = vpop.permute.xlu0 %1942
    %1944 = vrot.lane.b32.xlu0 %v1877, 109
    %v1945 = vpop.permute.xlu0 %1944
    %1946 = vrot.lane.b32.xlu0 %v1878, 109
    %v1947 = vpop.permute.xlu0 %1946
    %1948 = vrot.lane.b32.xlu0 %v1879, 109
    %v1949 = vpop.permute.xlu0 %1948
    %1950 = vrot.lane.b32.xlu0 %v1880, 109
    %v1951 = vpop.permute.xlu0 %1950
    %1952 = vrot.lane.b32.xlu0 %v1881, 109
    %v1953 = vpop.permute.xlu0 %1952
    %1954 = vrot.lane.b32.xlu0 %v1882, 109
    %v1955 = vpop.permute.xlu0 %1954
    %1956 = vrot.lane.b32.xlu0 %v1883, 109
    %v1957 = vpop.permute.xlu0 %1956
    %1958 = vrot.lane.b32.xlu0 %v1884, 109
    %v1959 = vpop.permute.xlu0 %1958
    %1960 = vrot.lane.b32.xlu0 %v1885, 109
    %v1961 = vpop.permute.xlu0 %1960
    %1962 = vrot.lane.b32.xlu0 %v1886, 109
    %v1963 = vpop.permute.xlu0 %1962
    %1964 = vrot.lane.b32.xlu0 %v1887, 109
    %v1965 = vpop.permute.xlu0 %1964
    %1966 = vrot.lane.b32.xlu0 %v1888, 109
    %v1967 = vpop.permute.xlu0 %1966
    %1968 = vrot.lane.b32.xlu0 %v1889, 109
    %v1969 = vpop.permute.xlu0 %1968
    %1970 = vrot.lane.b32.xlu0 %v1890, 109
    %v1971 = vpop.permute.xlu0 %1970
    %1972 = vrot.lane.b32.xlu0 %v1891, 109
    %v1973 = vpop.permute.xlu0 %1972
    %1974 = vrot.lane.b32.xlu0 %v1892, 109
    %v1975 = vpop.permute.xlu0 %1974
    %1976 = vrot.lane.b32.xlu0 %v1893, 109
    %v1977 = vpop.permute.xlu0 %1976
    %1978 = vrot.lane.b32.xlu0 %v1894, 109
    %v1979 = vpop.permute.xlu0 %1978
    %1980 = vrot.lane.b32.xlu0 %v1895, 109
    %v1981 = vpop.permute.xlu0 %1980
    %1982 = vrot.lane.b32.xlu0 %v1896, 109
    %v1983 = vpop.permute.xlu0 %1982
    %1984 = vrot.lane.b32.xlu0 %v1897, 109
    %v1985 = vpop.permute.xlu0 %1984
    %1986 = vrot.lane.b32.xlu0 %v1898, 109
    %v1987 = vpop.permute.xlu0 %1986
    %1988 = vrot.lane.b32.xlu0 %v1899, 109
    %v1989 = vpop.permute.xlu0 %1988
    %1990 = vrot.lane.b32.xlu0 %v1900, 109
    %v1991 = vpop.permute.xlu0 %1990
    %1992 = vrot.lane.b32.xlu0 %v1901, 109
    %v1993 = vpop.permute.xlu0 %1992
    %1994 = vrot.lane.b32.xlu0 %v1902, 109
    %v1995 = vpop.permute.xlu0 %1994
    %1996 = vrot.lane.b32.xlu0 %v1903, 109
    %v1997 = vpop.permute.xlu0 %1996
    %1998 = vrot.lane.b32.xlu0 %v1904, 109
    %v1999 = vpop.permute.xlu0 %1998
    %2000 = vrot.lane.b32.xlu0 %v1905, 109
    %v2001 = vpop.permute.xlu0 %2000
    %vm2002 = vcmask 891904
    %v2003 = vsel %vm2002, %v1939, %v1941
    %v2004 = vsel %vm2002, %v1943, %v1945
    %v2005 = vsel %vm2002, %v1947, %v1949
    %v2006 = vsel %vm2002, %v1951, %v1953
    %v2007 = vsel %vm2002, %v1955, %v1957
    %v2008 = vsel %vm2002, %v1959, %v1961
    %v2009 = vsel %vm2002, %v1963, %v1965
    %v2010 = vsel %vm2002, %v1967, %v1969
    %v2011 = vsel %vm2002, %v1971, %v1973
    %v2012 = vsel %vm2002, %v1975, %v1977
    %v2013 = vsel %vm2002, %v1979, %v1981
    %v2014 = vsel %vm2002, %v1983, %v1985
    %v2015 = vsel %vm2002, %v1987, %v1989
    %v2016 = vsel %vm2002, %v1991, %v1993
    %v2017 = vsel %vm2002, %v1995, %v1997
    %v2018 = vsel %vm2002, %v1999, %v2001
    %2035 = vst [vmem:[#allocation3 + $0x380] sm:$0xff] %v2003
    %2036 = vst [vmem:[#allocation3 + $0x388] sm:$0xff] %v2004
    %2037 = vst [vmem:[#allocation3 + $0x390] sm:$0xff] %v2005
    %2038 = vst [vmem:[#allocation3 + $0x398] sm:$0xff] %v2006
    %2039 = vst [vmem:[#allocation3 + $0x3a0] sm:$0xff] %v2007
    %2040 = vst [vmem:[#allocation3 + $0x3a8] sm:$0xff] %v2008
    %2041 = vst [vmem:[#allocation3 + $0x3b0] sm:$0xff] %v2009
    %2042 = vst [vmem:[#allocation3 + $0x3b8] sm:$0xff] %v2010
    %2043 = vst [vmem:[#allocation3 + $0x3c0] sm:$0xff] %v2011
    %2044 = vst [vmem:[#allocation3 + $0x3c8] sm:$0xff] %v2012
    %2045 = vst [vmem:[#allocation3 + $0x3d0] sm:$0xff] %v2013
    %2046 = vst [vmem:[#allocation3 + $0x3d8] sm:$0xff] %v2014
    %2047 = vst [vmem:[#allocation3 + $0x3e0] sm:$0xff] %v2015
    %2048 = vst [vmem:[#allocation3 + $0x3e8] sm:$0xff] %v2016
    %2049 = vst [vmem:[#allocation3 + $0x3f0] sm:$0xff] %v2017
    %2050 = vst [vmem:[#allocation3 + $0x3f8] sm:$0xff] %v2018
    %s2051 = scalar_lea.vmem [#allocation4], 512
    %v2052 = vld [vmem:[%s2051] sm:$0xff]
    %v2053 = vld [vmem:[%s2051 + $0x8] sm:$0xff]
    %v2054 = vld [vmem:[%s2051 + $0x10] sm:$0xff]
    %v2055 = vld [vmem:[%s2051 + $0x18] sm:$0xff]
    %v2056 = vld [vmem:[%s2051 + $0x20] sm:$0xff]
    %v2057 = vld [vmem:[%s2051 + $0x28] sm:$0xff]
    %v2058 = vld [vmem:[%s2051 + $0x30] sm:$0xff]
    %v2059 = vld [vmem:[%s2051 + $0x38] sm:$0xff]
    %v2060 = vld [vmem:[%s2051 + $0x40] sm:$0xff]
    %v2061 = vld [vmem:[%s2051 + $0x48] sm:$0xff]
    %v2062 = vld [vmem:[%s2051 + $0x50] sm:$0xff]
    %v2063 = vld [vmem:[%s2051 + $0x58] sm:$0xff]
    %v2064 = vld [vmem:[%s2051 + $0x60] sm:$0xff]
    %v2065 = vld [vmem:[%s2051 + $0x68] sm:$0xff]
    %v2066 = vld [vmem:[%s2051 + $0x70] sm:$0xff]
    %v2067 = vld [vmem:[%s2051 + $0x78] sm:$0xff]
    %v2068 = vld [vmem:[%s2051 + $0x80] sm:$0xff]
    %v2069 = vld [vmem:[%s2051 + $0x88] sm:$0xff]
    %v2070 = vld [vmem:[%s2051 + $0x90] sm:$0xff]
    %v2071 = vld [vmem:[%s2051 + $0x98] sm:$0xff]
    %v2072 = vld [vmem:[%s2051 + $0xa0] sm:$0xff]
    %v2073 = vld [vmem:[%s2051 + $0xa8] sm:$0xff]
    %v2074 = vld [vmem:[%s2051 + $0xb0] sm:$0xff]
    %v2075 = vld [vmem:[%s2051 + $0xb8] sm:$0xff]
    %v2076 = vld [vmem:[%s2051 + $0xc0] sm:$0xff]
    %v2077 = vld [vmem:[%s2051 + $0xc8] sm:$0xff]
    %v2078 = vld [vmem:[%s2051 + $0xd0] sm:$0xff]
    %v2079 = vld [vmem:[%s2051 + $0xd8] sm:$0xff]
    %v2080 = vld [vmem:[%s2051 + $0xe0] sm:$0xff]
    %v2081 = vld [vmem:[%s2051 + $0xe8] sm:$0xff]
    %v2082 = vld [vmem:[%s2051 + $0xf0] sm:$0xff]
    %v2083 = vld [vmem:[%s2051 + $0xf8] sm:$0xff]
    %v2116 = vunpack.c.l.b16 %v2052
    %v2117 = vunpack.c.h.b16 %v2052
    %v2118 = vunpack.c.l.b16 %v2053
    %v2119 = vunpack.c.h.b16 %v2053
    %v2120 = vunpack.c.l.b16 %v2054
    %v2121 = vunpack.c.h.b16 %v2054
    %v2122 = vunpack.c.l.b16 %v2055
    %v2123 = vunpack.c.h.b16 %v2055
    %v2124 = vunpack.c.l.b16 %v2056
    %v2125 = vunpack.c.h.b16 %v2056
    %v2126 = vunpack.c.l.b16 %v2057
    %v2127 = vunpack.c.h.b16 %v2057
    %v2128 = vunpack.c.l.b16 %v2058
    %v2129 = vunpack.c.h.b16 %v2058
    %v2130 = vunpack.c.l.b16 %v2059
    %v2131 = vunpack.c.h.b16 %v2059
    %v2132 = vunpack.c.l.b16 %v2060
    %v2133 = vunpack.c.h.b16 %v2060
    %v2134 = vunpack.c.l.b16 %v2061
    %v2135 = vunpack.c.h.b16 %v2061
    %v2136 = vunpack.c.l.b16 %v2062
    %v2137 = vunpack.c.h.b16 %v2062
    %v2138 = vunpack.c.l.b16 %v2063
    %v2139 = vunpack.c.h.b16 %v2063
    %v2140 = vunpack.c.l.b16 %v2064
    %v2141 = vunpack.c.h.b16 %v2064
    %v2142 = vunpack.c.l.b16 %v2065
    %v2143 = vunpack.c.h.b16 %v2065
    %v2144 = vunpack.c.l.b16 %v2066
    %v2145 = vunpack.c.h.b16 %v2066
    %v2146 = vunpack.c.l.b16 %v2067
    %v2147 = vunpack.c.h.b16 %v2067
    %v2148 = vunpack.c.l.b16 %v2068
    %v2149 = vunpack.c.h.b16 %v2068
    %v2150 = vunpack.c.l.b16 %v2069
    %v2151 = vunpack.c.h.b16 %v2069
    %v2152 = vunpack.c.l.b16 %v2070
    %v2153 = vunpack.c.h.b16 %v2070
    %v2154 = vunpack.c.l.b16 %v2071
    %v2155 = vunpack.c.h.b16 %v2071
    %v2156 = vunpack.c.l.b16 %v2072
    %v2157 = vunpack.c.h.b16 %v2072
    %v2158 = vunpack.c.l.b16 %v2073
    %v2159 = vunpack.c.h.b16 %v2073
    %v2160 = vunpack.c.l.b16 %v2074
    %v2161 = vunpack.c.h.b16 %v2074
    %v2162 = vunpack.c.l.b16 %v2075
    %v2163 = vunpack.c.h.b16 %v2075
    %v2164 = vunpack.c.l.b16 %v2076
    %v2165 = vunpack.c.h.b16 %v2076
    %v2166 = vunpack.c.l.b16 %v2077
    %v2167 = vunpack.c.h.b16 %v2077
    %v2168 = vunpack.c.l.b16 %v2078
    %v2169 = vunpack.c.h.b16 %v2078
    %v2170 = vunpack.c.l.b16 %v2079
    %v2171 = vunpack.c.h.b16 %v2079
    %v2172 = vunpack.c.l.b16 %v2080
    %v2173 = vunpack.c.h.b16 %v2080
    %v2174 = vunpack.c.l.b16 %v2081
    %v2175 = vunpack.c.h.b16 %v2081
    %v2176 = vunpack.c.l.b16 %v2082
    %v2177 = vunpack.c.h.b16 %v2082
    %v2178 = vunpack.c.l.b16 %v2083
    %v2179 = vunpack.c.h.b16 %v2083
    %v2180 = vpack.c.b16 %v2118, %v2116
    %v2181 = vpack.c.b16 %v2119, %v2117
    %v2182 = vpack.c.b16 %v2122, %v2120
    %v2183 = vpack.c.b16 %v2123, %v2121
    %v2184 = vpack.c.b16 %v2126, %v2124
    %v2185 = vpack.c.b16 %v2127, %v2125
    %v2186 = vpack.c.b16 %v2130, %v2128
    %v2187 = vpack.c.b16 %v2131, %v2129
    %v2188 = vpack.c.b16 %v2134, %v2132
    %v2189 = vpack.c.b16 %v2135, %v2133
    %v2190 = vpack.c.b16 %v2138, %v2136
    %v2191 = vpack.c.b16 %v2139, %v2137
    %v2192 = vpack.c.b16 %v2142, %v2140
    %v2193 = vpack.c.b16 %v2143, %v2141
    %v2194 = vpack.c.b16 %v2146, %v2144
    %v2195 = vpack.c.b16 %v2147, %v2145
    %v2196 = vpack.c.b16 %v2150, %v2148
    %v2197 = vpack.c.b16 %v2151, %v2149
    %v2198 = vpack.c.b16 %v2154, %v2152
    %v2199 = vpack.c.b16 %v2155, %v2153
    %v2200 = vpack.c.b16 %v2158, %v2156
    %v2201 = vpack.c.b16 %v2159, %v2157
    %v2202 = vpack.c.b16 %v2162, %v2160
    %v2203 = vpack.c.b16 %v2163, %v2161
    %v2204 = vpack.c.b16 %v2166, %v2164
    %v2205 = vpack.c.b16 %v2167, %v2165
    %v2206 = vpack.c.b16 %v2170, %v2168
    %v2207 = vpack.c.b16 %v2171, %v2169
    %v2208 = vpack.c.b16 %v2174, %v2172
    %v2209 = vpack.c.b16 %v2175, %v2173
    %v2210 = vpack.c.b16 %v2178, %v2176
    %v2211 = vpack.c.b16 %v2179, %v2177
    %2244 = vmatprep.subr.bf16.mxu0 %v364
    %2245 = vmatpush1.bf16.msra.mxu0 %v363
    %2246 = vmatprep.subr.bf16.mxu0 %v366
    %2247 = vmatpush1.bf16.msra.mxu0 %v365
    %2248 = vmatprep.subr.bf16.mxu0 %v368
    %2249 = vmatpush1.bf16.msra.mxu0 %v367
    %2250 = vmatprep.subr.bf16.mxu0 %v370
    %2251 = vmatpush1.bf16.msra.mxu0 %v369
    %2252 = vmatprep.subr.bf16.mxu0 %v372
    %2253 = vmatpush1.bf16.msra.mxu0 %v371
    %2254 = vmatprep.subr.bf16.mxu0 %v374
    %2255 = vmatpush1.bf16.msra.mxu0 %v373
    %2256 = vmatprep.subr.bf16.mxu0 %v376
    %2257 = vmatpush1.bf16.msra.mxu0 %v375
    %2258 = vmatprep.subr.bf16.mxu0 %v378
    %2259 = vmatpush1.bf16.msra.mxu0 %v377
    %2260 = vmatprep.subr.bf16.mxu0 %v380
    %2261 = vmatpush1.bf16.msra.mxu0 %v379
    %2262 = vmatprep.subr.bf16.mxu0 %v382
    %2263 = vmatpush1.bf16.msra.mxu0 %v381
    %2264 = vmatprep.subr.bf16.mxu0 %v384
    %2265 = vmatpush1.bf16.msra.mxu0 %v383
    %2266 = vmatprep.subr.bf16.mxu0 %v386
    %2267 = vmatpush1.bf16.msra.mxu0 %v385
    %2268 = vmatprep.subr.bf16.mxu0 %v388
    %2269 = vmatpush1.bf16.msra.mxu0 %v387
    %2270 = vmatprep.subr.bf16.mxu0 %v390
    %2271 = vmatpush1.bf16.msra.mxu0 %v389
    %2272 = vmatprep.subr.bf16.mxu0 %v392
    %2273 = vmatpush1.bf16.msra.mxu0 %v391
    %2274 = vmatprep.subr.bf16.mxu0 %v394
    %2275 = vmatpush1.bf16.msra.mxu0 %v393
    %2276 = vmatprep.mubr.bf16.mxu0 %v2181
    %2277 = vmatmul.mubr.bf16.gmra.mrb[0].mxu0 %v2180
    %v2278 = vpop.f32.mrb[0].mxu0
    %v2279 = vadd.f32 0.0, %v2278
    %v2280 = vpop.f32.mrb[0].mxu0
    %v2281 = vadd.f32 0.0, %v2280
    %v2282 = vpop.f32.mrb[0].mxu0
    %v2283 = vadd.f32 0.0, %v2282
    %v2284 = vpop.f32.mrb[0].mxu0
    %v2285 = vadd.f32 0.0, %v2284
    %2286 = vmatprep.mubr.bf16.mxu0 %v2183
    %2287 = vmatmul.mubr.bf16.gmra.mrb[0].mxu0 %v2182
    %v2288 = vpop.f32.mrb[0].mxu0
    %v2289 = vadd.f32 0.0, %v2288
    %v2290 = vpop.f32.mrb[0].mxu0
    %v2291 = vadd.f32 0.0, %v2290
    %v2292 = vpop.f32.mrb[0].mxu0
    %v2293 = vadd.f32 0.0, %v2292
    %v2294 = vpop.f32.mrb[0].mxu0
    %v2295 = vadd.f32 0.0, %v2294
    %2296 = vmatprep.mubr.bf16.mxu0 %v2185
    %2297 = vmatmul.mubr.bf16.gmra.mrb[0].mxu0 %v2184
    %v2298 = vpop.f32.mrb[0].mxu0
    %v2299 = vadd.f32 0.0, %v2298
    %v2300 = vpop.f32.mrb[0].mxu0
    %v2301 = vadd.f32 0.0, %v2300
    %v2302 = vpop.f32.mrb[0].mxu0
    %v2303 = vadd.f32 0.0, %v2302
    %v2304 = vpop.f32.mrb[0].mxu0
    %v2305 = vadd.f32 0.0, %v2304
    %2306 = vmatprep.mubr.bf16.mxu0 %v2187
    %2307 = vmatmul.mubr.bf16.gmra.mrb[0].mxu0 %v2186
    %v2308 = vpop.f32.mrb[0].mxu0
    %v2309 = vadd.f32 0.0, %v2308
    %v2310 = vpop.f32.mrb[0].mxu0
    %v2311 = vadd.f32 0.0, %v2310
    %v2312 = vpop.f32.mrb[0].mxu0
    %v2313 = vadd.f32 0.0, %v2312
    %v2314 = vpop.f32.mrb[0].mxu0
    %v2315 = vadd.f32 0.0, %v2314
    %2316 = vmatprep.mubr.bf16.mxu0 %v2189
    %2317 = vmatmul.mubr.bf16.gmra.mrb[0].mxu0 %v2188
    %v2318 = vpop.f32.mrb[0].mxu0
    %v2319 = vadd.f32 0.0, %v2318
    %v2320 = vpop.f32.mrb[0].mxu0
    %v2321 = vadd.f32 0.0, %v2320
    %v2322 = vpop.f32.mrb[0].mxu0
    %v2323 = vadd.f32 0.0, %v2322
    %v2324 = vpop.f32.mrb[0].mxu0
    %v2325 = vadd.f32 0.0, %v2324
    %2326 = vmatprep.mubr.bf16.mxu0 %v2191
    %2327 = vmatmul.mubr.bf16.gmra.mrb[0].mxu0 %v2190
    %v2328 = vpop.f32.mrb[0].mxu0
    %v2329 = vadd.f32 0.0, %v2328
    %v2330 = vpop.f32.mrb[0].mxu0
    %v2331 = vadd.f32 0.0, %v2330
    %v2332 = vpop.f32.mrb[0].mxu0
    %v2333 = vadd.f32 0.0, %v2332
    %v2334 = vpop.f32.mrb[0].mxu0
    %v2335 = vadd.f32 0.0, %v2334
    %2336 = vmatprep.mubr.bf16.mxu0 %v2193
    %2337 = vmatmul.mubr.bf16.gmra.mrb[0].mxu0 %v2192
    %v2338 = vpop.f32.mrb[0].mxu0
    %v2339 = vadd.f32 0.0, %v2338
    %v2340 = vpop.f32.mrb[0].mxu0
    %v2341 = vadd.f32 0.0, %v2340
    %v2342 = vpop.f32.mrb[0].mxu0
    %v2343 = vadd.f32 0.0, %v2342
    %v2344 = vpop.f32.mrb[0].mxu0
    %v2345 = vadd.f32 0.0, %v2344
    %2346 = vmatprep.mubr.bf16.mxu0 %v2195
    %2347 = vmatmul.mubr.bf16.gmra.mrb[0].mxu0 %v2194
    %v2348 = vpop.f32.mrb[0].mxu0
    %v2349 = vadd.f32 0.0, %v2348
    %v2350 = vpop.f32.mrb[0].mxu0
    %v2351 = vadd.f32 0.0, %v2350
    %v2352 = vpop.f32.mrb[0].mxu0
    %v2353 = vadd.f32 0.0, %v2352
    %v2354 = vpop.f32.mrb[0].mxu0
    %v2355 = vadd.f32 0.0, %v2354
    %2356 = vmatprep.mubr.bf16.mxu0 %v2197
    %2357 = vmatmul.mubr.bf16.gmra.mrb[0].mxu0 %v2196
    %v2358 = vpop.f32.mrb[0].mxu0
    %v2359 = vadd.f32 0.0, %v2358
    %v2360 = vpop.f32.mrb[0].mxu0
    %v2361 = vadd.f32 0.0, %v2360
    %v2362 = vpop.f32.mrb[0].mxu0
    %v2363 = vadd.f32 0.0, %v2362
    %v2364 = vpop.f32.mrb[0].mxu0
    %v2365 = vadd.f32 0.0, %v2364
    %2366 = vmatprep.mubr.bf16.mxu0 %v2199
    %2367 = vmatmul.mubr.bf16.gmra.mrb[0].mxu0 %v2198
    %v2368 = vpop.f32.mrb[0].mxu0
    %v2369 = vadd.f32 0.0, %v2368
    %v2370 = vpop.f32.mrb[0].mxu0
    %v2371 = vadd.f32 0.0, %v2370
    %v2372 = vpop.f32.mrb[0].mxu0
    %v2373 = vadd.f32 0.0, %v2372
    %v2374 = vpop.f32.mrb[0].mxu0
    %v2375 = vadd.f32 0.0, %v2374
    %2376 = vmatprep.mubr.bf16.mxu0 %v2201
    %2377 = vmatmul.mubr.bf16.gmra.mrb[0].mxu0 %v2200
    %v2378 = vpop.f32.mrb[0].mxu0
    %v2379 = vadd.f32 0.0, %v2378
    %v2380 = vpop.f32.mrb[0].mxu0
    %v2381 = vadd.f32 0.0, %v2380
    %v2382 = vpop.f32.mrb[0].mxu0
    %v2383 = vadd.f32 0.0, %v2382
    %v2384 = vpop.f32.mrb[0].mxu0
    %v2385 = vadd.f32 0.0, %v2384
    %2386 = vmatprep.mubr.bf16.mxu0 %v2203
    %2387 = vmatmul.mubr.bf16.gmra.mrb[0].mxu0 %v2202
    %v2388 = vpop.f32.mrb[0].mxu0
    %v2389 = vadd.f32 0.0, %v2388
    %v2390 = vpop.f32.mrb[0].mxu0
    %v2391 = vadd.f32 0.0, %v2390
    %v2392 = vpop.f32.mrb[0].mxu0
    %v2393 = vadd.f32 0.0, %v2392
    %v2394 = vpop.f32.mrb[0].mxu0
    %v2395 = vadd.f32 0.0, %v2394
    %2396 = vmatprep.mubr.bf16.mxu0 %v2205
    %2397 = vmatmul.mubr.bf16.gmra.mrb[0].mxu0 %v2204
    %v2398 = vpop.f32.mrb[0].mxu0
    %v2399 = vadd.f32 0.0, %v2398
    %v2400 = vpop.f32.mrb[0].mxu0
    %v2401 = vadd.f32 0.0, %v2400
    %v2402 = vpop.f32.mrb[0].mxu0
    %v2403 = vadd.f32 0.0, %v2402
    %v2404 = vpop.f32.mrb[0].mxu0
    %v2405 = vadd.f32 0.0, %v2404
    %2406 = vmatprep.mubr.bf16.mxu0 %v2207
    %2407 = vmatmul.mubr.bf16.gmra.mrb[0].mxu0 %v2206
    %v2408 = vpop.f32.mrb[0].mxu0
    %v2409 = vadd.f32 0.0, %v2408
    %v2410 = vpop.f32.mrb[0].mxu0
    %v2411 = vadd.f32 0.0, %v2410
    %v2412 = vpop.f32.mrb[0].mxu0
    %v2413 = vadd.f32 0.0, %v2412
    %v2414 = vpop.f32.mrb[0].mxu0
    %v2415 = vadd.f32 0.0, %v2414
    %2416 = vmatprep.mubr.bf16.mxu0 %v2209
    %2417 = vmatmul.mubr.bf16.gmra.mrb[0].mxu0 %v2208
    %v2418 = vpop.f32.mrb[0].mxu0
    %v2419 = vadd.f32 0.0, %v2418
    %v2420 = vpop.f32.mrb[0].mxu0
    %v2421 = vadd.f32 0.0, %v2420
    %v2422 = vpop.f32.mrb[0].mxu0
    %v2423 = vadd.f32 0.0, %v2422
    %v2424 = vpop.f32.mrb[0].mxu0
    %v2425 = vadd.f32 0.0, %v2424
    %2426 = vmatprep.mubr.bf16.mxu0 %v2211
    %2427 = vmatmul.mubr.bf16.gmra.mrb[0].mxu0 %v2210
    %v2428 = vpop.f32.mrb[0].mxu0
    %v2429 = vadd.f32 0.0, %v2428
    %v2430 = vpop.f32.mrb[0].mxu0
    %v2431 = vadd.f32 0.0, %v2430
    %v2432 = vpop.f32.mrb[0].mxu0
    %v2433 = vadd.f32 0.0, %v2432
    %v2434 = vpop.f32.mrb[0].mxu0
    %v2435 = vadd.f32 0.0, %v2434
    %2436 = vdwg.mxu0
    %v2437 = vpack.c.bf16 %v2283, %v2279
    %v2438 = vpack.c.bf16 %v2285, %v2281
    %v2439 = vpack.c.bf16 %v2293, %v2289
    %v2440 = vpack.c.bf16 %v2295, %v2291
    %v2441 = vpack.c.bf16 %v2303, %v2299
    %v2442 = vpack.c.bf16 %v2305, %v2301
    %v2443 = vpack.c.bf16 %v2313, %v2309
    %v2444 = vpack.c.bf16 %v2315, %v2311
    %v2445 = vpack.c.bf16 %v2323, %v2319
    %v2446 = vpack.c.bf16 %v2325, %v2321
    %v2447 = vpack.c.bf16 %v2333, %v2329
    %v2448 = vpack.c.bf16 %v2335, %v2331
    %v2449 = vpack.c.bf16 %v2343, %v2339
    %v2450 = vpack.c.bf16 %v2345, %v2341
    %v2451 = vpack.c.bf16 %v2353, %v2349
    %v2452 = vpack.c.bf16 %v2355, %v2351
    %v2453 = vpack.c.bf16 %v2363, %v2359
    %v2454 = vpack.c.bf16 %v2365, %v2361
    %v2455 = vpack.c.bf16 %v2373, %v2369
    %v2456 = vpack.c.bf16 %v2375, %v2371
    %v2457 = vpack.c.bf16 %v2383, %v2379
    %v2458 = vpack.c.bf16 %v2385, %v2381
    %v2459 = vpack.c.bf16 %v2393, %v2389
    %v2460 = vpack.c.bf16 %v2395, %v2391
    %v2461 = vpack.c.bf16 %v2403, %v2399
    %v2462 = vpack.c.bf16 %v2405, %v2401
    %v2463 = vpack.c.bf16 %v2413, %v2409
    %v2464 = vpack.c.bf16 %v2415, %v2411
    %v2465 = vpack.c.bf16 %v2423, %v2419
    %v2466 = vpack.c.bf16 %v2425, %v2421
    %v2467 = vpack.c.bf16 %v2433, %v2429
    %v2468 = vpack.c.bf16 %v2435, %v2431
    %2469 = vst [vmem:[#allocation2] sm:$0xff] %v2437
    %2470 = vst [vmem:[#allocation2 + $0x8] sm:$0xff] %v2438
    %2471 = vst [vmem:[#allocation2 + $0x10] sm:$0xff] %v2439
    %2472 = vst [vmem:[#allocation2 + $0x18] sm:$0xff] %v2440
    %2473 = vst [vmem:[#allocation2 + $0x20] sm:$0xff] %v2441
    %2474 = vst [vmem:[#allocation2 + $0x28] sm:$0xff] %v2442
    %2475 = vst [vmem:[#allocation2 + $0x30] sm:$0xff] %v2443
    %2476 = vst [vmem:[#allocation2 + $0x38] sm:$0xff] %v2444
    %2477 = vst [vmem:[#allocation2 + $0x40] sm:$0xff] %v2445
    %2478 = vst [vmem:[#allocation2 + $0x48] sm:$0xff] %v2446
    %2479 = vst [vmem:[#allocation2 + $0x50] sm:$0xff] %v2447
    %2480 = vst [vmem:[#allocation2 + $0x58] sm:$0xff] %v2448
    %2481 = vst [vmem:[#allocation2 + $0x60] sm:$0xff] %v2449
    %2482 = vst [vmem:[#allocation2 + $0x68] sm:$0xff] %v2450
    %2483 = vst [vmem:[#allocation2 + $0x70] sm:$0xff] %v2451
    %2484 = vst [vmem:[#allocation2 + $0x78] sm:$0xff] %v2452
    %2485 = vst [vmem:[#allocation2 + $0x80] sm:$0xff] %v2453
    %2486 = vst [vmem:[#allocation2 + $0x88] sm:$0xff] %v2454
    %2487 = vst [vmem:[#allocation2 + $0x90] sm:$0xff] %v2455
    %2488 = vst [vmem:[#allocation2 + $0x98] sm:$0xff] %v2456
    %2489 = vst [vmem:[#allocation2 + $0xa0] sm:$0xff] %v2457
    %2490 = vst [vmem:[#allocation2 + $0xa8] sm:$0xff] %v2458
    %2491 = vst [vmem:[#allocation2 + $0xb0] sm:$0xff] %v2459
    %2492 = vst [vmem:[#allocation2 + $0xb8] sm:$0xff] %v2460
    %2493 = vst [vmem:[#allocation2 + $0xc0] sm:$0xff] %v2461
    %2494 = vst [vmem:[#allocation2 + $0xc8] sm:$0xff] %v2462
    %2495 = vst [vmem:[#allocation2 + $0xd0] sm:$0xff] %v2463
    %2496 = vst [vmem:[#allocation2 + $0xd8] sm:$0xff] %v2464
    %2497 = vst [vmem:[#allocation2 + $0xe0] sm:$0xff] %v2465
    %2498 = vst [vmem:[#allocation2 + $0xe8] sm:$0xff] %v2466
    %2499 = vst [vmem:[#allocation2 + $0xf0] sm:$0xff] %v2467
    %2500 = vst [vmem:[#allocation2 + $0xf8] sm:$0xff] %v2468
    %v2501 = vld [vmem:[#allocation2] sm:$0xff]
    %v2502 = vld [vmem:[#allocation2 + $0x8] sm:$0xff]
    %v2503 = vld [vmem:[#allocation2 + $0x10] sm:$0xff]
    %v2504 = vld [vmem:[#allocation2 + $0x18] sm:$0xff]
    %v2505 = vld [vmem:[#allocation2 + $0x20] sm:$0xff]
    %v2506 = vld [vmem:[#allocation2 + $0x28] sm:$0xff]
    %v2507 = vld [vmem:[#allocation2 + $0x30] sm:$0xff]
    %v2508 = vld [vmem:[#allocation2 + $0x38] sm:$0xff]
    %v2509 = vld [vmem:[#allocation2 + $0x40] sm:$0xff]
    %v2510 = vld [vmem:[#allocation2 + $0x48] sm:$0xff]
    %v2511 = vld [vmem:[#allocation2 + $0x50] sm:$0xff]
    %v2512 = vld [vmem:[#allocation2 + $0x58] sm:$0xff]
    %v2513 = vld [vmem:[#allocation2 + $0x60] sm:$0xff]
    %v2514 = vld [vmem:[#allocation2 + $0x68] sm:$0xff]
    %v2515 = vld [vmem:[#allocation2 + $0x70] sm:$0xff]
    %v2516 = vld [vmem:[#allocation2 + $0x78] sm:$0xff]
    %v2517 = vld [vmem:[#allocation2 + $0x80] sm:$0xff]
    %v2518 = vld [vmem:[#allocation2 + $0x88] sm:$0xff]
    %v2519 = vld [vmem:[#allocation2 + $0x90] sm:$0xff]
    %v2520 = vld [vmem:[#allocation2 + $0x98] sm:$0xff]
    %v2521 = vld [vmem:[#allocation2 + $0xa0] sm:$0xff]
    %v2522 = vld [vmem:[#allocation2 + $0xa8] sm:$0xff]
    %v2523 = vld [vmem:[#allocation2 + $0xb0] sm:$0xff]
    %v2524 = vld [vmem:[#allocation2 + $0xb8] sm:$0xff]
    %v2525 = vld [vmem:[#allocation2 + $0xc0] sm:$0xff]
    %v2526 = vld [vmem:[#allocation2 + $0xc8] sm:$0xff]
    %v2527 = vld [vmem:[#allocation2 + $0xd0] sm:$0xff]
    %v2528 = vld [vmem:[#allocation2 + $0xd8] sm:$0xff]
    %v2529 = vld [vmem:[#allocation2 + $0xe0] sm:$0xff]
    %v2530 = vld [vmem:[#allocation2 + $0xe8] sm:$0xff]
    %v2531 = vld [vmem:[#allocation2 + $0xf0] sm:$0xff]
    %v2532 = vld [vmem:[#allocation2 + $0xf8] sm:$0xff]
    %2565 = vrot.lane.b32.xlu0 %v2501, 126
    %v2566 = vpop.permute.xlu0 %2565
    %2567 = vrot.lane.b32.xlu0 %v2502, 126
    %v2568 = vpop.permute.xlu0 %2567
    %2569 = vrot.lane.b32.xlu0 %v2503, 126
    %v2570 = vpop.permute.xlu0 %2569
    %2571 = vrot.lane.b32.xlu0 %v2504, 126
    %v2572 = vpop.permute.xlu0 %2571
    %2573 = vrot.lane.b32.xlu0 %v2505, 126
    %v2574 = vpop.permute.xlu0 %2573
    %2575 = vrot.lane.b32.xlu0 %v2506, 126
    %v2576 = vpop.permute.xlu0 %2575
    %2577 = vrot.lane.b32.xlu0 %v2507, 126
    %v2578 = vpop.permute.xlu0 %2577
    %2579 = vrot.lane.b32.xlu0 %v2508, 126
    %v2580 = vpop.permute.xlu0 %2579
    %2581 = vrot.lane.b32.xlu0 %v2509, 126
    %v2582 = vpop.permute.xlu0 %2581
    %2583 = vrot.lane.b32.xlu0 %v2510, 126
    %v2584 = vpop.permute.xlu0 %2583
    %2585 = vrot.lane.b32.xlu0 %v2511, 126
    %v2586 = vpop.permute.xlu0 %2585
    %2587 = vrot.lane.b32.xlu0 %v2512, 126
    %v2588 = vpop.permute.xlu0 %2587
    %2589 = vrot.lane.b32.xlu0 %v2513, 126
    %v2590 = vpop.permute.xlu0 %2589
    %2591 = vrot.lane.b32.xlu0 %v2514, 126
    %v2592 = vpop.permute.xlu0 %2591
    %2593 = vrot.lane.b32.xlu0 %v2515, 126
    %v2594 = vpop.permute.xlu0 %2593
    %2595 = vrot.lane.b32.xlu0 %v2516, 126
    %v2596 = vpop.permute.xlu0 %2595
    %2597 = vrot.lane.b32.xlu0 %v2517, 126
    %v2598 = vpop.permute.xlu0 %2597
    %2599 = vrot.lane.b32.xlu0 %v2518, 126
    %v2600 = vpop.permute.xlu0 %2599
    %2601 = vrot.lane.b32.xlu0 %v2519, 126
    %v2602 = vpop.permute.xlu0 %2601
    %2603 = vrot.lane.b32.xlu0 %v2520, 126
    %v2604 = vpop.permute.xlu0 %2603
    %2605 = vrot.lane.b32.xlu0 %v2521, 126
    %v2606 = vpop.permute.xlu0 %2605
    %2607 = vrot.lane.b32.xlu0 %v2522, 126
    %v2608 = vpop.permute.xlu0 %2607
    %2609 = vrot.lane.b32.xlu0 %v2523, 126
    %v2610 = vpop.permute.xlu0 %2609
    %2611 = vrot.lane.b32.xlu0 %v2524, 126
    %v2612 = vpop.permute.xlu0 %2611
    %2613 = vrot.lane.b32.xlu0 %v2525, 126
    %v2614 = vpop.permute.xlu0 %2613
    %2615 = vrot.lane.b32.xlu0 %v2526, 126
    %v2616 = vpop.permute.xlu0 %2615
    %2617 = vrot.lane.b32.xlu0 %v2527, 126
    %v2618 = vpop.permute.xlu0 %2617
    %2619 = vrot.lane.b32.xlu0 %v2528, 126
    %v2620 = vpop.permute.xlu0 %2619
    %2621 = vrot.lane.b32.xlu0 %v2529, 126
    %v2622 = vpop.permute.xlu0 %2621
    %2623 = vrot.lane.b32.xlu0 %v2530, 126
    %v2624 = vpop.permute.xlu0 %2623
    %2625 = vrot.lane.b32.xlu0 %v2531, 126
    %v2626 = vpop.permute.xlu0 %2625
    %2627 = vrot.lane.b32.xlu0 %v2532, 126
    %v2628 = vpop.permute.xlu0 %2627
    %vm2629 = vcmask 1031168
    %v2630 = vsel %vm2629, %v2566, %v2568
    %v2631 = vsel %vm2629, %v2570, %v2572
    %v2632 = vsel %vm2629, %v2574, %v2576
    %v2633 = vsel %vm2629, %v2578, %v2580
    %v2634 = vsel %vm2629, %v2582, %v2584
    %v2635 = vsel %vm2629, %v2586, %v2588
    %v2636 = vsel %vm2629, %v2590, %v2592
    %v2637 = vsel %vm2629, %v2594, %v2596
    %v2638 = vsel %vm2629, %v2598, %v2600
    %v2639 = vsel %vm2629, %v2602, %v2604
    %v2640 = vsel %vm2629, %v2606, %v2608
    %v2641 = vsel %vm2629, %v2610, %v2612
    %v2642 = vsel %vm2629, %v2614, %v2616
    %v2643 = vsel %vm2629, %v2618, %v2620
    %v2644 = vsel %vm2629, %v2622, %v2624
    %v2645 = vsel %vm2629, %v2626, %v2628
    %2662 = vst [vmem:[#allocation3 + $0x100] sm:$0xff] %v2630
    %2663 = vst [vmem:[#allocation3 + $0x108] sm:$0xff] %v2631
    %2664 = vst [vmem:[#allocation3 + $0x110] sm:$0xff] %v2632
    %2665 = vst [vmem:[#allocation3 + $0x118] sm:$0xff] %v2633
    %2666 = vst [vmem:[#allocation3 + $0x120] sm:$0xff] %v2634
    %2667 = vst [vmem:[#allocation3 + $0x128] sm:$0xff] %v2635
    %2668 = vst [vmem:[#allocation3 + $0x130] sm:$0xff] %v2636
    %2669 = vst [vmem:[#allocation3 + $0x138] sm:$0xff] %v2637
    %2670 = vst [vmem:[#allocation3 + $0x140] sm:$0xff] %v2638
    %2671 = vst [vmem:[#allocation3 + $0x148] sm:$0xff] %v2639
    %2672 = vst [vmem:[#allocation3 + $0x150] sm:$0xff] %v2640
    %2673 = vst [vmem:[#allocation3 + $0x158] sm:$0xff] %v2641
    %2674 = vst [vmem:[#allocation3 + $0x160] sm:$0xff] %v2642
    %2675 = vst [vmem:[#allocation3 + $0x168] sm:$0xff] %v2643
    %2676 = vst [vmem:[#allocation3 + $0x170] sm:$0xff] %v2644
    %2677 = vst [vmem:[#allocation3 + $0x178] sm:$0xff] %v2645
    %v2678 = vld [vmem:[#allocation2] sm:$0xff]
    %v2679 = vld [vmem:[#allocation2 + $0x8] sm:$0xff]
    %v2680 = vld [vmem:[#allocation2 + $0x10] sm:$0xff]
    %v2681 = vld [vmem:[#allocation2 + $0x18] sm:$0xff]
    %v2682 = vld [vmem:[#allocation2 + $0x20] sm:$0xff]
    %v2683 = vld [vmem:[#allocation2 + $0x28] sm:$0xff]
    %v2684 = vld [vmem:[#allocation2 + $0x30] sm:$0xff]
    %v2685 = vld [vmem:[#allocation2 + $0x38] sm:$0xff]
    %v2686 = vld [vmem:[#allocation2 + $0x40] sm:$0xff]
    %v2687 = vld [vmem:[#allocation2 + $0x48] sm:$0xff]
    %v2688 = vld [vmem:[#allocation2 + $0x50] sm:$0xff]
    %v2689 = vld [vmem:[#allocation2 + $0x58] sm:$0xff]
    %v2690 = vld [vmem:[#allocation2 + $0x60] sm:$0xff]
    %v2691 = vld [vmem:[#allocation2 + $0x68] sm:$0xff]
    %v2692 = vld [vmem:[#allocation2 + $0x70] sm:$0xff]
    %v2693 = vld [vmem:[#allocation2 + $0x78] sm:$0xff]
    %v2694 = vld [vmem:[#allocation2 + $0x80] sm:$0xff]
    %v2695 = vld [vmem:[#allocation2 + $0x88] sm:$0xff]
    %v2696 = vld [vmem:[#allocation2 + $0x90] sm:$0xff]
    %v2697 = vld [vmem:[#allocation2 + $0x98] sm:$0xff]
    %v2698 = vld [vmem:[#allocation2 + $0xa0] sm:$0xff]
    %v2699 = vld [vmem:[#allocation2 + $0xa8] sm:$0xff]
    %v2700 = vld [vmem:[#allocation2 + $0xb0] sm:$0xff]
    %v2701 = vld [vmem:[#allocation2 + $0xb8] sm:$0xff]
    %v2702 = vld [vmem:[#allocation2 + $0xc0] sm:$0xff]
    %v2703 = vld [vmem:[#allocation2 + $0xc8] sm:$0xff]
    %v2704 = vld [vmem:[#allocation2 + $0xd0] sm:$0xff]
    %v2705 = vld [vmem:[#allocation2 + $0xd8] sm:$0xff]
    %v2706 = vld [vmem:[#allocation2 + $0xe0] sm:$0xff]
    %v2707 = vld [vmem:[#allocation2 + $0xe8] sm:$0xff]
    %v2708 = vld [vmem:[#allocation2 + $0xf0] sm:$0xff]
    %v2709 = vld [vmem:[#allocation2 + $0xf8] sm:$0xff]
    %2742 = vrot.lane.b32.xlu0 %v2678, 117
    %v2743 = vpop.permute.xlu0 %2742
    %2744 = vrot.lane.b32.xlu0 %v2679, 117
    %v2745 = vpop.permute.xlu0 %2744
    %2746 = vrot.lane.b32.xlu0 %v2680, 117
    %v2747 = vpop.permute.xlu0 %2746
    %2748 = vrot.lane.b32.xlu0 %v2681, 117
    %v2749 = vpop.permute.xlu0 %2748
    %2750 = vrot.lane.b32.xlu0 %v2682, 117
    %v2751 = vpop.permute.xlu0 %2750
    %2752 = vrot.lane.b32.xlu0 %v2683, 117
    %v2753 = vpop.permute.xlu0 %2752
    %2754 = vrot.lane.b32.xlu0 %v2684, 117
    %v2755 = vpop.permute.xlu0 %2754
    %2756 = vrot.lane.b32.xlu0 %v2685, 117
    %v2757 = vpop.permute.xlu0 %2756
    %2758 = vrot.lane.b32.xlu0 %v2686, 117
    %v2759 = vpop.permute.xlu0 %2758
    %2760 = vrot.lane.b32.xlu0 %v2687, 117
    %v2761 = vpop.permute.xlu0 %2760
    %2762 = vrot.lane.b32.xlu0 %v2688, 117
    %v2763 = vpop.permute.xlu0 %2762
    %2764 = vrot.lane.b32.xlu0 %v2689, 117
    %v2765 = vpop.permute.xlu0 %2764
    %2766 = vrot.lane.b32.xlu0 %v2690, 117
    %v2767 = vpop.permute.xlu0 %2766
    %2768 = vrot.lane.b32.xlu0 %v2691, 117
    %v2769 = vpop.permute.xlu0 %2768
    %2770 = vrot.lane.b32.xlu0 %v2692, 117
    %v2771 = vpop.permute.xlu0 %2770
    %2772 = vrot.lane.b32.xlu0 %v2693, 117
    %v2773 = vpop.permute.xlu0 %2772
    %2774 = vrot.lane.b32.xlu0 %v2694, 117
    %v2775 = vpop.permute.xlu0 %2774
    %2776 = vrot.lane.b32.xlu0 %v2695, 117
    %v2777 = vpop.permute.xlu0 %2776
    %2778 = vrot.lane.b32.xlu0 %v2696, 117
    %v2779 = vpop.permute.xlu0 %2778
    %2780 = vrot.lane.b32.xlu0 %v2697, 117
    %v2781 = vpop.permute.xlu0 %2780
    %2782 = vrot.lane.b32.xlu0 %v2698, 117
    %v2783 = vpop.permute.xlu0 %2782
    %2784 = vrot.lane.b32.xlu0 %v2699, 117
    %v2785 = vpop.permute.xlu0 %2784
    %2786 = vrot.lane.b32.xlu0 %v2700, 117
    %v2787 = vpop.permute.xlu0 %2786
    %2788 = vrot.lane.b32.xlu0 %v2701, 117
    %v2789 = vpop.permute.xlu0 %2788
    %2790 = vrot.lane.b32.xlu0 %v2702, 117
    %v2791 = vpop.permute.xlu0 %2790
    %2792 = vrot.lane.b32.xlu0 %v2703, 117
    %v2793 = vpop.permute.xlu0 %2792
    %2794 = vrot.lane.b32.xlu0 %v2704, 117
    %v2795 = vpop.permute.xlu0 %2794
    %2796 = vrot.lane.b32.xlu0 %v2705, 117
    %v2797 = vpop.permute.xlu0 %2796
    %2798 = vrot.lane.b32.xlu0 %v2706, 117
    %v2799 = vpop.permute.xlu0 %2798
    %2800 = vrot.lane.b32.xlu0 %v2707, 117
    %v2801 = vpop.permute.xlu0 %2800
    %2802 = vrot.lane.b32.xlu0 %v2708, 117
    %v2803 = vpop.permute.xlu0 %2802
    %2804 = vrot.lane.b32.xlu0 %v2709, 117
    %v2805 = vpop.permute.xlu0 %2804
    %vm2806 = vcmask 957440
    %v2807 = vsel %vm2806, %v2743, %v2745
    %v2808 = vsel %vm2806, %v2747, %v2749
    %v2809 = vsel %vm2806, %v2751, %v2753
    %v2810 = vsel %vm2806, %v2755, %v2757
    %v2811 = vsel %vm2806, %v2759, %v2761
    %v2812 = vsel %vm2806, %v2763, %v2765
    %v2813 = vsel %vm2806, %v2767, %v2769
    %v2814 = vsel %vm2806, %v2771, %v2773
    %v2815 = vsel %vm2806, %v2775, %v2777
    %v2816 = vsel %vm2806, %v2779, %v2781
    %v2817 = vsel %vm2806, %v2783, %v2785
    %v2818 = vsel %vm2806, %v2787, %v2789
    %v2819 = vsel %vm2806, %v2791, %v2793
    %v2820 = vsel %vm2806, %v2795, %v2797
    %v2821 = vsel %vm2806, %v2799, %v2801
    %v2822 = vsel %vm2806, %v2803, %v2805
    %2839 = vst [vmem:[#allocation3 + $0x280] sm:$0xff] %v2807
    %2840 = vst [vmem:[#allocation3 + $0x288] sm:$0xff] %v2808
    %2841 = vst [vmem:[#allocation3 + $0x290] sm:$0xff] %v2809
    %2842 = vst [vmem:[#allocation3 + $0x298] sm:$0xff] %v2810
    %2843 = vst [vmem:[#allocation3 + $0x2a0] sm:$0xff] %v2811
    %2844 = vst [vmem:[#allocation3 + $0x2a8] sm:$0xff] %v2812
    %2845 = vst [vmem:[#allocation3 + $0x2b0] sm:$0xff] %v2813
    %2846 = vst [vmem:[#allocation3 + $0x2b8] sm:$0xff] %v2814
    %2847 = vst [vmem:[#allocation3 + $0x2c0] sm:$0xff] %v2815
    %2848 = vst [vmem:[#allocation3 + $0x2c8] sm:$0xff] %v2816
    %2849 = vst [vmem:[#allocation3 + $0x2d0] sm:$0xff] %v2817
    %2850 = vst [vmem:[#allocation3 + $0x2d8] sm:$0xff] %v2818
    %2851 = vst [vmem:[#allocation3 + $0x2e0] sm:$0xff] %v2819
    %2852 = vst [vmem:[#allocation3 + $0x2e8] sm:$0xff] %v2820
    %2853 = vst [vmem:[#allocation3 + $0x2f0] sm:$0xff] %v2821
    %2854 = vst [vmem:[#allocation3 + $0x2f8] sm:$0xff] %v2822
    %v2855 = vld [vmem:[#allocation2] sm:$0xff]
    %v2856 = vld [vmem:[#allocation2 + $0x8] sm:$0xff]
    %v2857 = vld [vmem:[#allocation2 + $0x10] sm:$0xff]
    %v2858 = vld [vmem:[#allocation2 + $0x18] sm:$0xff]
    %v2859 = vld [vmem:[#allocation2 + $0x20] sm:$0xff]
    %v2860 = vld [vmem:[#allocation2 + $0x28] sm:$0xff]
    %v2861 = vld [vmem:[#allocation2 + $0x30] sm:$0xff]
    %v2862 = vld [vmem:[#allocation2 + $0x38] sm:$0xff]
    %v2863 = vld [vmem:[#allocation2 + $0x40] sm:$0xff]
    %v2864 = vld [vmem:[#allocation2 + $0x48] sm:$0xff]
    %v2865 = vld [vmem:[#allocation2 + $0x50] sm:$0xff]
    %v2866 = vld [vmem:[#allocation2 + $0x58] sm:$0xff]
    %v2867 = vld [vmem:[#allocation2 + $0x60] sm:$0xff]
    %v2868 = vld [vmem:[#allocation2 + $0x68] sm:$0xff]
    %v2869 = vld [vmem:[#allocation2 + $0x70] sm:$0xff]
    %v2870 = vld [vmem:[#allocation2 + $0x78] sm:$0xff]
    %v2871 = vld [vmem:[#allocation2 + $0x80] sm:$0xff]
    %v2872 = vld [vmem:[#allocation2 + $0x88] sm:$0xff]
    %v2873 = vld [vmem:[#allocation2 + $0x90] sm:$0xff]
    %v2874 = vld [vmem:[#allocation2 + $0x98] sm:$0xff]
    %v2875 = vld [vmem:[#allocation2 + $0xa0] sm:$0xff]
    %v2876 = vld [vmem:[#allocation2 + $0xa8] sm:$0xff]
    %v2877 = vld [vmem:[#allocation2 + $0xb0] sm:$0xff]
    %v2878 = vld [vmem:[#allocation2 + $0xb8] sm:$0xff]
    %v2879 = vld [vmem:[#allocation2 + $0xc0] sm:$0xff]
    %v2880 = vld [vmem:[#allocation2 + $0xc8] sm:$0xff]
    %v2881 = vld [vmem:[#allocation2 + $0xd0] sm:$0xff]
    %v2882 = vld [vmem:[#allocation2 + $0xd8] sm:$0xff]
    %v2883 = vld [vmem:[#allocation2 + $0xe0] sm:$0xff]
    %v2884 = vld [vmem:[#allocation2 + $0xe8] sm:$0xff]
    %v2885 = vld [vmem:[#allocation2 + $0xf0] sm:$0xff]
    %v2886 = vld [vmem:[#allocation2 + $0xf8] sm:$0xff]
    %2919 = vrot.lane.b32.xlu0 %v2855, 108
    %v2920 = vpop.permute.xlu0 %2919
    %2921 = vrot.lane.b32.xlu0 %v2856, 108
    %v2922 = vpop.permute.xlu0 %2921
    %2923 = vrot.lane.b32.xlu0 %v2857, 108
    %v2924 = vpop.permute.xlu0 %2923
    %2925 = vrot.lane.b32.xlu0 %v2858, 108
    %v2926 = vpop.permute.xlu0 %2925
    %2927 = vrot.lane.b32.xlu0 %v2859, 108
    %v2928 = vpop.permute.xlu0 %2927
    %2929 = vrot.lane.b32.xlu0 %v2860, 108
    %v2930 = vpop.permute.xlu0 %2929
    %2931 = vrot.lane.b32.xlu0 %v2861, 108
    %v2932 = vpop.permute.xlu0 %2931
    %2933 = vrot.lane.b32.xlu0 %v2862, 108
    %v2934 = vpop.permute.xlu0 %2933
    %2935 = vrot.lane.b32.xlu0 %v2863, 108
    %v2936 = vpop.permute.xlu0 %2935
    %2937 = vrot.lane.b32.xlu0 %v2864, 108
    %v2938 = vpop.permute.xlu0 %2937
    %2939 = vrot.lane.b32.xlu0 %v2865, 108
    %v2940 = vpop.permute.xlu0 %2939
    %2941 = vrot.lane.b32.xlu0 %v2866, 108
    %v2942 = vpop.permute.xlu0 %2941
    %2943 = vrot.lane.b32.xlu0 %v2867, 108
    %v2944 = vpop.permute.xlu0 %2943
    %2945 = vrot.lane.b32.xlu0 %v2868, 108
    %v2946 = vpop.permute.xlu0 %2945
    %2947 = vrot.lane.b32.xlu0 %v2869, 108
    %v2948 = vpop.permute.xlu0 %2947
    %2949 = vrot.lane.b32.xlu0 %v2870, 108
    %v2950 = vpop.permute.xlu0 %2949
    %2951 = vrot.lane.b32.xlu0 %v2871, 108
    %v2952 = vpop.permute.xlu0 %2951
    %2953 = vrot.lane.b32.xlu0 %v2872, 108
    %v2954 = vpop.permute.xlu0 %2953
    %2955 = vrot.lane.b32.xlu0 %v2873, 108
    %v2956 = vpop.permute.xlu0 %2955
    %2957 = vrot.lane.b32.xlu0 %v2874, 108
    %v2958 = vpop.permute.xlu0 %2957
    %2959 = vrot.lane.b32.xlu0 %v2875, 108
    %v2960 = vpop.permute.xlu0 %2959
    %2961 = vrot.lane.b32.xlu0 %v2876, 108
    %v2962 = vpop.permute.xlu0 %2961
    %2963 = vrot.lane.b32.xlu0 %v2877, 108
    %v2964 = vpop.permute.xlu0 %2963
    %2965 = vrot.lane.b32.xlu0 %v2878, 108
    %v2966 = vpop.permute.xlu0 %2965
    %2967 = vrot.lane.b32.xlu0 %v2879, 108
    %v2968 = vpop.permute.xlu0 %2967
    %2969 = vrot.lane.b32.xlu0 %v2880, 108
    %v2970 = vpop.permute.xlu0 %2969
    %2971 = vrot.lane.b32.xlu0 %v2881, 108
    %v2972 = vpop.permute.xlu0 %2971
    %2973 = vrot.lane.b32.xlu0 %v2882, 108
    %v2974 = vpop.permute.xlu0 %2973
    %2975 = vrot.lane.b32.xlu0 %v2883, 108
    %v2976 = vpop.permute.xlu0 %2975
    %2977 = vrot.lane.b32.xlu0 %v2884, 108
    %v2978 = vpop.permute.xlu0 %2977
    %2979 = vrot.lane.b32.xlu0 %v2885, 108
    %v2980 = vpop.permute.xlu0 %2979
    %2981 = vrot.lane.b32.xlu0 %v2886, 108
    %v2982 = vpop.permute.xlu0 %2981
    %vm2983 = vcmask 883712
    %v2984 = vsel %vm2983, %v2920, %v2922
    %v2985 = vsel %vm2983, %v2924, %v2926
    %v2986 = vsel %vm2983, %v2928, %v2930
    %v2987 = vsel %vm2983, %v2932, %v2934
    %v2988 = vsel %vm2983, %v2936, %v2938
    %v2989 = vsel %vm2983, %v2940, %v2942
    %v2990 = vsel %vm2983, %v2944, %v2946
    %v2991 = vsel %vm2983, %v2948, %v2950
    %v2992 = vsel %vm2983, %v2952, %v2954
    %v2993 = vsel %vm2983, %v2956, %v2958
    %v2994 = vsel %vm2983, %v2960, %v2962
    %v2995 = vsel %vm2983, %v2964, %v2966
    %v2996 = vsel %vm2983, %v2968, %v2970
    %v2997 = vsel %vm2983, %v2972, %v2974
    %v2998 = vsel %vm2983, %v2976, %v2978
    %v2999 = vsel %vm2983, %v2980, %v2982
    %3016 = vst [vmem:[#allocation3 + $0x400] sm:$0xff] %v2984
    %3017 = vst [vmem:[#allocation3 + $0x408] sm:$0xff] %v2985
    %3018 = vst [vmem:[#allocation3 + $0x410] sm:$0xff] %v2986
    %3019 = vst [vmem:[#allocation3 + $0x418] sm:$0xff] %v2987
    %3020 = vst [vmem:[#allocation3 + $0x420] sm:$0xff] %v2988
    %3021 = vst [vmem:[#allocation3 + $0x428] sm:$0xff] %v2989
    %3022 = vst [vmem:[#allocation3 + $0x430] sm:$0xff] %v2990
    %3023 = vst [vmem:[#allocation3 + $0x438] sm:$0xff] %v2991
    %3024 = vst [vmem:[#allocation3 + $0x440] sm:$0xff] %v2992
    %3025 = vst [vmem:[#allocation3 + $0x448] sm:$0xff] %v2993
    %3026 = vst [vmem:[#allocation3 + $0x450] sm:$0xff] %v2994
    %3027 = vst [vmem:[#allocation3 + $0x458] sm:$0xff] %v2995
    %3028 = vst [vmem:[#allocation3 + $0x460] sm:$0xff] %v2996
    %3029 = vst [vmem:[#allocation3 + $0x468] sm:$0xff] %v2997
    %3030 = vst [vmem:[#allocation3 + $0x470] sm:$0xff] %v2998
    %3031 = vst [vmem:[#allocation3 + $0x478] sm:$0xff] %v2999
    %v3032 = vld [vmem:[#allocation6] sm:$0xff]
    %v3033 = vld [vmem:[#allocation6 + $0x8] sm:$0xff]
    %v3034 = vld [vmem:[#allocation6 + $0x10] sm:$0xff]
    %v3035 = vld [vmem:[#allocation6 + $0x18] sm:$0xff]
    %v3036 = vld [vmem:[#allocation6 + $0x20] sm:$0xff]
    %v3037 = vld [vmem:[#allocation6 + $0x28] sm:$0xff]
    %v3038 = vld [vmem:[#allocation6 + $0x30] sm:$0xff]
    %v3039 = vld [vmem:[#allocation6 + $0x38] sm:$0xff]
    %v3040 = vld [vmem:[#allocation6 + $0x40] sm:$0xff]
    %v3041 = vld [vmem:[#allocation6 + $0x48] sm:$0xff]
    %v3042 = vld [vmem:[#allocation6 + $0x50] sm:$0xff]
    %v3043 = vld [vmem:[#allocation6 + $0x58] sm:$0xff]
    %v3044 = vld [vmem:[#allocation6 + $0x60] sm:$0xff]
    %v3045 = vld [vmem:[#allocation6 + $0x68] sm:$0xff]
    %v3046 = vld [vmem:[#allocation6 + $0x70] sm:$0xff]
    %v3047 = vld [vmem:[#allocation6 + $0x78] sm:$0xff]
    %v3048 = vld [vmem:[#allocation6 + $0x80] sm:$0xff]
    %v3049 = vld [vmem:[#allocation6 + $0x88] sm:$0xff]
    %v3050 = vld [vmem:[#allocation6 + $0x90] sm:$0xff]
    %v3051 = vld [vmem:[#allocation6 + $0x98] sm:$0xff]
    %v3052 = vld [vmem:[#allocation6 + $0xa0] sm:$0xff]
    %v3053 = vld [vmem:[#allocation6 + $0xa8] sm:$0xff]
    %v3054 = vld [vmem:[#allocation6 + $0xb0] sm:$0xff]
    %v3055 = vld [vmem:[#allocation6 + $0xb8] sm:$0xff]
    %v3056 = vld [vmem:[#allocation6 + $0xc0] sm:$0xff]
    %v3057 = vld [vmem:[#allocation6 + $0xc8] sm:$0xff]
    %v3058 = vld [vmem:[#allocation6 + $0xd0] sm:$0xff]
    %v3059 = vld [vmem:[#allocation6 + $0xd8] sm:$0xff]
    %v3060 = vld [vmem:[#allocation6 + $0xe0] sm:$0xff]
    %v3061 = vld [vmem:[#allocation6 + $0xe8] sm:$0xff]
    %v3062 = vld [vmem:[#allocation6 + $0xf0] sm:$0xff]
    %v3063 = vld [vmem:[#allocation6 + $0xf8] sm:$0xff]
    %v3064 = vld [vmem:[#allocation6 + $0x100] sm:$0xff]
    %v3065 = vld [vmem:[#allocation6 + $0x108] sm:$0xff]
    %v3066 = vld [vmem:[#allocation6 + $0x110] sm:$0xff]
    %v3067 = vld [vmem:[#allocation6 + $0x118] sm:$0xff]
    %v3068 = vld [vmem:[#allocation6 + $0x120] sm:$0xff]
    %v3069 = vld [vmem:[#allocation6 + $0x128] sm:$0xff]
    %v3070 = vld [vmem:[#allocation6 + $0x130] sm:$0xff]
    %v3071 = vld [vmem:[#allocation6 + $0x138] sm:$0xff]
    %v3072 = vld [vmem:[#allocation6 + $0x140] sm:$0xff]
    %v3073 = vld [vmem:[#allocation6 + $0x148] sm:$0xff]
    %v3074 = vld [vmem:[#allocation6 + $0x150] sm:$0xff]
    %v3075 = vld [vmem:[#allocation6 + $0x158] sm:$0xff]
    %v3076 = vld [vmem:[#allocation6 + $0x160] sm:$0xff]
    %v3077 = vld [vmem:[#allocation6 + $0x168] sm:$0xff]
    %v3078 = vld [vmem:[#allocation6 + $0x170] sm:$0xff]
    %v3079 = vld [vmem:[#allocation6 + $0x178] sm:$0xff]
    %v3080 = vld [vmem:[#allocation6 + $0x180] sm:$0xff]
    %v3081 = vld [vmem:[#allocation6 + $0x188] sm:$0xff]
    %v3082 = vld [vmem:[#allocation6 + $0x190] sm:$0xff]
    %v3083 = vld [vmem:[#allocation6 + $0x198] sm:$0xff]
    %v3084 = vld [vmem:[#allocation6 + $0x1a0] sm:$0xff]
    %v3085 = vld [vmem:[#allocation6 + $0x1a8] sm:$0xff]
    %v3086 = vld [vmem:[#allocation6 + $0x1b0] sm:$0xff]
    %v3087 = vld [vmem:[#allocation6 + $0x1b8] sm:$0xff]
    %v3088 = vld [vmem:[#allocation6 + $0x1c0] sm:$0xff]
    %v3089 = vld [vmem:[#allocation6 + $0x1c8] sm:$0xff]
    %v3090 = vld [vmem:[#allocation6 + $0x1d0] sm:$0xff]
    %v3091 = vld [vmem:[#allocation6 + $0x1d8] sm:$0xff]
    %v3092 = vld [vmem:[#allocation6 + $0x1e0] sm:$0xff]
    %v3093 = vld [vmem:[#allocation6 + $0x1e8] sm:$0xff]
    %v3094 = vld [vmem:[#allocation6 + $0x1f0] sm:$0xff]
    %v3095 = vld [vmem:[#allocation6 + $0x1f8] sm:$0xff]
    %v3096 = vld [vmem:[#allocation6 + $0x200] sm:$0xff]
    %v3097 = vld [vmem:[#allocation6 + $0x208] sm:$0xff]
    %v3098 = vld [vmem:[#allocation6 + $0x210] sm:$0xff]
    %v3099 = vld [vmem:[#allocation6 + $0x218] sm:$0xff]
    %v3100 = vld [vmem:[#allocation6 + $0x220] sm:$0xff]
    %v3101 = vld [vmem:[#allocation6 + $0x228] sm:$0xff]
    %v3102 = vld [vmem:[#allocation6 + $0x230] sm:$0xff]
    %v3103 = vld [vmem:[#allocation6 + $0x238] sm:$0xff]
    %v3104 = vld [vmem:[#allocation6 + $0x240] sm:$0xff]
    %v3105 = vld [vmem:[#allocation6 + $0x248] sm:$0xff]
    %v3106 = vld [vmem:[#allocation6 + $0x250] sm:$0xff]
    %v3107 = vld [vmem:[#allocation6 + $0x258] sm:$0xff]
    %v3108 = vld [vmem:[#allocation6 + $0x260] sm:$0xff]
    %v3109 = vld [vmem:[#allocation6 + $0x268] sm:$0xff]
    %v3110 = vld [vmem:[#allocation6 + $0x270] sm:$0xff]
    %v3111 = vld [vmem:[#allocation6 + $0x278] sm:$0xff]
    %v3112 = vld [vmem:[#allocation6 + $0x280] sm:$0xff]
    %v3113 = vld [vmem:[#allocation6 + $0x288] sm:$0xff]
    %v3114 = vld [vmem:[#allocation6 + $0x290] sm:$0xff]
    %v3115 = vld [vmem:[#allocation6 + $0x298] sm:$0xff]
    %v3116 = vld [vmem:[#allocation6 + $0x2a0] sm:$0xff]
    %v3117 = vld [vmem:[#allocation6 + $0x2a8] sm:$0xff]
    %v3118 = vld [vmem:[#allocation6 + $0x2b0] sm:$0xff]
    %v3119 = vld [vmem:[#allocation6 + $0x2b8] sm:$0xff]
    %v3120 = vld [vmem:[#allocation6 + $0x2c0] sm:$0xff]
    %v3121 = vld [vmem:[#allocation6 + $0x2c8] sm:$0xff]
    %v3122 = vld [vmem:[#allocation6 + $0x2d0] sm:$0xff]
    %v3123 = vld [vmem:[#allocation6 + $0x2d8] sm:$0xff]
    %v3124 = vld [vmem:[#allocation6 + $0x2e0] sm:$0xff]
    %v3125 = vld [vmem:[#allocation6 + $0x2e8] sm:$0xff]
    %v3126 = vld [vmem:[#allocation6 + $0x2f0] sm:$0xff]
    %v3127 = vld [vmem:[#allocation6 + $0x2f8] sm:$0xff]
    %v3128 = vld [vmem:[#allocation6 + $0x300] sm:$0xff]
    %v3129 = vld [vmem:[#allocation6 + $0x308] sm:$0xff]
    %v3130 = vld [vmem:[#allocation6 + $0x310] sm:$0xff]
    %v3131 = vld [vmem:[#allocation6 + $0x318] sm:$0xff]
    %v3132 = vld [vmem:[#allocation6 + $0x320] sm:$0xff]
    %v3133 = vld [vmem:[#allocation6 + $0x328] sm:$0xff]
    %v3134 = vld [vmem:[#allocation6 + $0x330] sm:$0xff]
    %v3135 = vld [vmem:[#allocation6 + $0x338] sm:$0xff]
    %v3136 = vld [vmem:[#allocation6 + $0x340] sm:$0xff]
    %v3137 = vld [vmem:[#allocation6 + $0x348] sm:$0xff]
    %v3138 = vld [vmem:[#allocation6 + $0x350] sm:$0xff]
    %v3139 = vld [vmem:[#allocation6 + $0x358] sm:$0xff]
    %v3140 = vld [vmem:[#allocation6 + $0x360] sm:$0xff]
    %v3141 = vld [vmem:[#allocation6 + $0x368] sm:$0xff]
    %v3142 = vld [vmem:[#allocation6 + $0x370] sm:$0xff]
    %v3143 = vld [vmem:[#allocation6 + $0x378] sm:$0xff]
    %v3144 = vld [vmem:[#allocation6 + $0x380] sm:$0xff]
    %v3145 = vld [vmem:[#allocation6 + $0x388] sm:$0xff]
    %v3146 = vld [vmem:[#allocation6 + $0x390] sm:$0xff]
    %v3147 = vld [vmem:[#allocation6 + $0x398] sm:$0xff]
    %v3148 = vld [vmem:[#allocation6 + $0x3a0] sm:$0xff]
    %v3149 = vld [vmem:[#allocation6 + $0x3a8] sm:$0xff]
    %v3150 = vld [vmem:[#allocation6 + $0x3b0] sm:$0xff]
    %v3151 = vld [vmem:[#allocation6 + $0x3b8] sm:$0xff]
    %v3152 = vld [vmem:[#allocation6 + $0x3c0] sm:$0xff]
    %v3153 = vld [vmem:[#allocation6 + $0x3c8] sm:$0xff]
    %v3154 = vld [vmem:[#allocation6 + $0x3d0] sm:$0xff]
    %v3155 = vld [vmem:[#allocation6 + $0x3d8] sm:$0xff]
    %v3156 = vld [vmem:[#allocation6 + $0x3e0] sm:$0xff]
    %v3157 = vld [vmem:[#allocation6 + $0x3e8] sm:$0xff]
    %v3158 = vld [vmem:[#allocation6 + $0x3f0] sm:$0xff]
    %v3159 = vld [vmem:[#allocation6 + $0x3f8] sm:$0xff]
    %v3160 = vld [vmem:[#allocation6 + $0x400] sm:$0xff]
    %v3161 = vld [vmem:[#allocation6 + $0x408] sm:$0xff]
    %v3162 = vld [vmem:[#allocation6 + $0x410] sm:$0xff]
    %v3163 = vld [vmem:[#allocation6 + $0x418] sm:$0xff]
    %v3164 = vld [vmem:[#allocation6 + $0x420] sm:$0xff]
    %v3165 = vld [vmem:[#allocation6 + $0x428] sm:$0xff]
    %v3166 = vld [vmem:[#allocation6 + $0x430] sm:$0xff]
    %v3167 = vld [vmem:[#allocation6 + $0x438] sm:$0xff]
    %v3168 = vld [vmem:[#allocation6 + $0x440] sm:$0xff]
    %v3169 = vld [vmem:[#allocation6 + $0x448] sm:$0xff]
    %v3170 = vld [vmem:[#allocation6 + $0x450] sm:$0xff]
    %v3171 = vld [vmem:[#allocation6 + $0x458] sm:$0xff]
    %v3172 = vld [vmem:[#allocation6 + $0x460] sm:$0xff]
    %v3173 = vld [vmem:[#allocation6 + $0x468] sm:$0xff]
    %v3174 = vld [vmem:[#allocation6 + $0x470] sm:$0xff]
    %v3175 = vld [vmem:[#allocation6 + $0x478] sm:$0xff]
    %v3176 = vld [vmem:[#allocation6 + $0x480] sm:$0xff]
    %v3177 = vld [vmem:[#allocation6 + $0x488] sm:$0xff]
    %v3178 = vld [vmem:[#allocation6 + $0x490] sm:$0xff]
    %v3179 = vld [vmem:[#allocation6 + $0x498] sm:$0xff]
    %v3180 = vld [vmem:[#allocation6 + $0x4a0] sm:$0xff]
    %v3181 = vld [vmem:[#allocation6 + $0x4a8] sm:$0xff]
    %v3182 = vld [vmem:[#allocation6 + $0x4b0] sm:$0xff]
    %v3183 = vld [vmem:[#allocation6 + $0x4b8] sm:$0xff]
    %v3184 = vld [vmem:[#allocation6 + $0x4c0] sm:$0xff]
    %v3185 = vld [vmem:[#allocation6 + $0x4c8] sm:$0xff]
    %v3186 = vld [vmem:[#allocation6 + $0x4d0] sm:$0xff]
    %v3187 = vld [vmem:[#allocation6 + $0x4d8] sm:$0xff]
    %v3188 = vld [vmem:[#allocation6 + $0x4e0] sm:$0xff]
    %v3189 = vld [vmem:[#allocation6 + $0x4e8] sm:$0xff]
    %v3190 = vld [vmem:[#allocation6 + $0x4f0] sm:$0xff]
    %v3191 = vld [vmem:[#allocation6 + $0x4f8] sm:$0xff]
    %v3192 = vld [vmem:[#allocation6 + $0x500] sm:$0xff]
    %v3193 = vld [vmem:[#allocation6 + $0x508] sm:$0xff]
    %v3194 = vld [vmem:[#allocation6 + $0x510] sm:$0xff]
    %v3195 = vld [vmem:[#allocation6 + $0x518] sm:$0xff]
    %v3196 = vld [vmem:[#allocation6 + $0x520] sm:$0xff]
    %v3197 = vld [vmem:[#allocation6 + $0x528] sm:$0xff]
    %v3198 = vld [vmem:[#allocation6 + $0x530] sm:$0xff]
    %v3199 = vld [vmem:[#allocation6 + $0x538] sm:$0xff]
    %v3200 = vld [vmem:[#allocation6 + $0x540] sm:$0xff]
    %v3201 = vld [vmem:[#allocation6 + $0x548] sm:$0xff]
    %v3202 = vld [vmem:[#allocation6 + $0x550] sm:$0xff]
    %v3203 = vld [vmem:[#allocation6 + $0x558] sm:$0xff]
    %v3204 = vld [vmem:[#allocation6 + $0x560] sm:$0xff]
    %v3205 = vld [vmem:[#allocation6 + $0x568] sm:$0xff]
    %v3206 = vld [vmem:[#allocation6 + $0x570] sm:$0xff]
    %v3207 = vld [vmem:[#allocation6 + $0x578] sm:$0xff]
    %v3208 = vld [vmem:[#allocation6 + $0x580] sm:$0xff]
    %v3209 = vld [vmem:[#allocation6 + $0x588] sm:$0xff]
    %v3210 = vld [vmem:[#allocation6 + $0x590] sm:$0xff]
    %v3211 = vld [vmem:[#allocation6 + $0x598] sm:$0xff]
    %v3212 = vld [vmem:[#allocation6 + $0x5a0] sm:$0xff]
    %v3213 = vld [vmem:[#allocation6 + $0x5a8] sm:$0xff]
    %v3214 = vld [vmem:[#allocation6 + $0x5b0] sm:$0xff]
    %v3215 = vld [vmem:[#allocation6 + $0x5b8] sm:$0xff]
    %v3216 = vld [vmem:[#allocation6 + $0x5c0] sm:$0xff]
    %v3217 = vld [vmem:[#allocation6 + $0x5c8] sm:$0xff]
    %v3218 = vld [vmem:[#allocation6 + $0x5d0] sm:$0xff]
    %v3219 = vld [vmem:[#allocation6 + $0x5d8] sm:$0xff]
    %v3220 = vld [vmem:[#allocation6 + $0x5e0] sm:$0xff]
    %v3221 = vld [vmem:[#allocation6 + $0x5e8] sm:$0xff]
    %v3222 = vld [vmem:[#allocation6 + $0x5f0] sm:$0xff]
    %v3223 = vld [vmem:[#allocation6 + $0x5f8] sm:$0xff]
    %v3224 = vld [vmem:[#allocation6 + $0x600] sm:$0xff]
    %v3225 = vld [vmem:[#allocation6 + $0x608] sm:$0xff]
    %v3226 = vld [vmem:[#allocation6 + $0x610] sm:$0xff]
    %v3227 = vld [vmem:[#allocation6 + $0x618] sm:$0xff]
    %v3228 = vld [vmem:[#allocation6 + $0x620] sm:$0xff]
    %v3229 = vld [vmem:[#allocation6 + $0x628] sm:$0xff]
    %v3230 = vld [vmem:[#allocation6 + $0x630] sm:$0xff]
    %v3231 = vld [vmem:[#allocation6 + $0x638] sm:$0xff]
    %v3232 = vld [vmem:[#allocation6 + $0x640] sm:$0xff]
    %v3233 = vld [vmem:[#allocation6 + $0x648] sm:$0xff]
    %v3234 = vld [vmem:[#allocation6 + $0x650] sm:$0xff]
    %v3235 = vld [vmem:[#allocation6 + $0x658] sm:$0xff]
    %v3236 = vld [vmem:[#allocation6 + $0x660] sm:$0xff]
    %v3237 = vld [vmem:[#allocation6 + $0x668] sm:$0xff]
    %v3238 = vld [vmem:[#allocation6 + $0x670] sm:$0xff]
    %v3239 = vld [vmem:[#allocation6 + $0x678] sm:$0xff]
    %v3240 = vld [vmem:[#allocation6 + $0x680] sm:$0xff]
    %v3241 = vld [vmem:[#allocation6 + $0x688] sm:$0xff]
    %v3242 = vld [vmem:[#allocation6 + $0x690] sm:$0xff]
    %v3243 = vld [vmem:[#allocation6 + $0x698] sm:$0xff]
    %v3244 = vld [vmem:[#allocation6 + $0x6a0] sm:$0xff]
    %v3245 = vld [vmem:[#allocation6 + $0x6a8] sm:$0xff]
    %v3246 = vld [vmem:[#allocation6 + $0x6b0] sm:$0xff]
    %v3247 = vld [vmem:[#allocation6 + $0x6b8] sm:$0xff]
    %v3248 = vld [vmem:[#allocation6 + $0x6c0] sm:$0xff]
    %v3249 = vld [vmem:[#allocation6 + $0x6c8] sm:$0xff]
    %v3250 = vld [vmem:[#allocation6 + $0x6d0] sm:$0xff]
    %v3251 = vld [vmem:[#allocation6 + $0x6d8] sm:$0xff]
    %v3252 = vld [vmem:[#allocation6 + $0x6e0] sm:$0xff]
    %v3253 = vld [vmem:[#allocation6 + $0x6e8] sm:$0xff]
    %v3254 = vld [vmem:[#allocation6 + $0x6f0] sm:$0xff]
    %v3255 = vld [vmem:[#allocation6 + $0x6f8] sm:$0xff]
    %v3256 = vld [vmem:[#allocation6 + $0x700] sm:$0xff]
    %v3257 = vld [vmem:[#allocation6 + $0x708] sm:$0xff]
    %v3258 = vld [vmem:[#allocation6 + $0x710] sm:$0xff]
    %v3259 = vld [vmem:[#allocation6 + $0x718] sm:$0xff]
    %v3260 = vld [vmem:[#allocation6 + $0x720] sm:$0xff]
    %v3261 = vld [vmem:[#allocation6 + $0x728] sm:$0xff]
    %v3262 = vld [vmem:[#allocation6 + $0x730] sm:$0xff]
    %v3263 = vld [vmem:[#allocation6 + $0x738] sm:$0xff]
    %v3264 = vld [vmem:[#allocation6 + $0x740] sm:$0xff]
    %v3265 = vld [vmem:[#allocation6 + $0x748] sm:$0xff]
    %v3266 = vld [vmem:[#allocation6 + $0x750] sm:$0xff]
    %v3267 = vld [vmem:[#allocation6 + $0x758] sm:$0xff]
    %v3268 = vld [vmem:[#allocation6 + $0x760] sm:$0xff]
    %v3269 = vld [vmem:[#allocation6 + $0x768] sm:$0xff]
    %v3270 = vld [vmem:[#allocation6 + $0x770] sm:$0xff]
    %v3271 = vld [vmem:[#allocation6 + $0x778] sm:$0xff]
    %v3272 = vld [vmem:[#allocation6 + $0x780] sm:$0xff]
    %v3273 = vld [vmem:[#allocation6 + $0x788] sm:$0xff]
    %v3274 = vld [vmem:[#allocation6 + $0x790] sm:$0xff]
    %v3275 = vld [vmem:[#allocation6 + $0x798] sm:$0xff]
    %v3276 = vld [vmem:[#allocation6 + $0x7a0] sm:$0xff]
    %v3277 = vld [vmem:[#allocation6 + $0x7a8] sm:$0xff]
    %v3278 = vld [vmem:[#allocation6 + $0x7b0] sm:$0xff]
    %v3279 = vld [vmem:[#allocation6 + $0x7b8] sm:$0xff]
    %v3280 = vld [vmem:[#allocation6 + $0x7c0] sm:$0xff]
    %v3281 = vld [vmem:[#allocation6 + $0x7c8] sm:$0xff]
    %v3282 = vld [vmem:[#allocation6 + $0x7d0] sm:$0xff]
    %v3283 = vld [vmem:[#allocation6 + $0x7d8] sm:$0xff]
    %v3284 = vld [vmem:[#allocation6 + $0x7e0] sm:$0xff]
    %v3285 = vld [vmem:[#allocation6 + $0x7e8] sm:$0xff]
    %v3286 = vld [vmem:[#allocation6 + $0x7f0] sm:$0xff]
    %v3287 = vld [vmem:[#allocation6 + $0x7f8] sm:$0xff]
    %v3288 = vld [vmem:[#allocation6 + $0x800] sm:$0xff]
    %v3289 = vld [vmem:[#allocation6 + $0x808] sm:$0xff]
    %v3290 = vld [vmem:[#allocation6 + $0x810] sm:$0xff]
    %v3291 = vld [vmem:[#allocation6 + $0x818] sm:$0xff]
    %v3292 = vld [vmem:[#allocation6 + $0x820] sm:$0xff]
    %v3293 = vld [vmem:[#allocation6 + $0x828] sm:$0xff]
    %v3294 = vld [vmem:[#allocation6 + $0x830] sm:$0xff]
    %v3295 = vld [vmem:[#allocation6 + $0x838] sm:$0xff]
    %v3296 = vld [vmem:[#allocation6 + $0x840] sm:$0xff]
    %v3297 = vld [vmem:[#allocation6 + $0x848] sm:$0xff]
    %v3298 = vld [vmem:[#allocation6 + $0x850] sm:$0xff]
    %v3299 = vld [vmem:[#allocation6 + $0x858] sm:$0xff]
    %v3300 = vld [vmem:[#allocation6 + $0x860] sm:$0xff]
    %v3301 = vld [vmem:[#allocation6 + $0x868] sm:$0xff]
    %v3302 = vld [vmem:[#allocation6 + $0x870] sm:$0xff]
    %v3303 = vld [vmem:[#allocation6 + $0x878] sm:$0xff]
    %v3304 = vld [vmem:[#allocation6 + $0x880] sm:$0xff]
    %v3305 = vld [vmem:[#allocation6 + $0x888] sm:$0xff]
    %v3306 = vld [vmem:[#allocation6 + $0x890] sm:$0xff]
    %v3307 = vld [vmem:[#allocation6 + $0x898] sm:$0xff]
    %v3308 = vld [vmem:[#allocation6 + $0x8a0] sm:$0xff]
    %v3309 = vld [vmem:[#allocation6 + $0x8a8] sm:$0xff]
    %v3310 = vld [vmem:[#allocation6 + $0x8b0] sm:$0xff]
    %v3311 = vld [vmem:[#allocation6 + $0x8b8] sm:$0xff]
    %v3312 = vld [vmem:[#allocation6 + $0x8c0] sm:$0xff]
    %v3313 = vld [vmem:[#allocation6 + $0x8c8] sm:$0xff]
    %v3314 = vld [vmem:[#allocation6 + $0x8d0] sm:$0xff]
    %v3315 = vld [vmem:[#allocation6 + $0x8d8] sm:$0xff]
    %v3316 = vld [vmem:[#allocation6 + $0x8e0] sm:$0xff]
    %v3317 = vld [vmem:[#allocation6 + $0x8e8] sm:$0xff]
    %v3318 = vld [vmem:[#allocation6 + $0x8f0] sm:$0xff]
    %v3319 = vld [vmem:[#allocation6 + $0x8f8] sm:$0xff]
    %v3320 = vld [vmem:[#allocation6 + $0x900] sm:$0xff]
    %v3321 = vld [vmem:[#allocation6 + $0x908] sm:$0xff]
    %v3322 = vld [vmem:[#allocation6 + $0x910] sm:$0xff]
    %v3323 = vld [vmem:[#allocation6 + $0x918] sm:$0xff]
    %v3324 = vld [vmem:[#allocation6 + $0x920] sm:$0xff]
    %v3325 = vld [vmem:[#allocation6 + $0x928] sm:$0xff]
    %v3326 = vld [vmem:[#allocation6 + $0x930] sm:$0xff]
    %v3327 = vld [vmem:[#allocation6 + $0x938] sm:$0xff]
    %v3328 = vld [vmem:[#allocation6 + $0x940] sm:$0xff]
    %v3329 = vld [vmem:[#allocation6 + $0x948] sm:$0xff]
    %v3330 = vld [vmem:[#allocation6 + $0x950] sm:$0xff]
    %v3331 = vld [vmem:[#allocation6 + $0x958] sm:$0xff]
    %v3332 = vld [vmem:[#allocation6 + $0x960] sm:$0xff]
    %v3333 = vld [vmem:[#allocation6 + $0x968] sm:$0xff]
    %v3334 = vld [vmem:[#allocation6 + $0x970] sm:$0xff]
    %v3335 = vld [vmem:[#allocation6 + $0x978] sm:$0xff]
    %v3336 = vld [vmem:[#allocation6 + $0x980] sm:$0xff]
    %v3337 = vld [vmem:[#allocation6 + $0x988] sm:$0xff]
    %v3338 = vld [vmem:[#allocation6 + $0x990] sm:$0xff]
    %v3339 = vld [vmem:[#allocation6 + $0x998] sm:$0xff]
    %v3340 = vld [vmem:[#allocation6 + $0x9a0] sm:$0xff]
    %v3341 = vld [vmem:[#allocation6 + $0x9a8] sm:$0xff]
    %v3342 = vld [vmem:[#allocation6 + $0x9b0] sm:$0xff]
    %v3343 = vld [vmem:[#allocation6 + $0x9b8] sm:$0xff]
    %v3344 = vld [vmem:[#allocation6 + $0x9c0] sm:$0xff]
    %v3345 = vld [vmem:[#allocation6 + $0x9c8] sm:$0xff]
    %v3346 = vld [vmem:[#allocation6 + $0x9d0] sm:$0xff]
    %v3347 = vld [vmem:[#allocation6 + $0x9d8] sm:$0xff]
    %v3348 = vld [vmem:[#allocation6 + $0x9e0] sm:$0xff]
    %v3349 = vld [vmem:[#allocation6 + $0x9e8] sm:$0xff]
    %v3350 = vld [vmem:[#allocation6 + $0x9f0] sm:$0xff]
    %v3351 = vld [vmem:[#allocation6 + $0x9f8] sm:$0xff]
    %v3352 = vld [vmem:[#allocation6 + $0xa00] sm:$0xff]
    %v3353 = vld [vmem:[#allocation6 + $0xa08] sm:$0xff]
    %v3354 = vld [vmem:[#allocation6 + $0xa10] sm:$0xff]
    %v3355 = vld [vmem:[#allocation6 + $0xa18] sm:$0xff]
    %v3356 = vld [vmem:[#allocation6 + $0xa20] sm:$0xff]
    %v3357 = vld [vmem:[#allocation6 + $0xa28] sm:$0xff]
    %v3358 = vld [vmem:[#allocation6 + $0xa30] sm:$0xff]
    %v3359 = vld [vmem:[#allocation6 + $0xa38] sm:$0xff]
    %v3360 = vld [vmem:[#allocation6 + $0xa40] sm:$0xff]
    %v3361 = vld [vmem:[#allocation6 + $0xa48] sm:$0xff]
    %v3362 = vld [vmem:[#allocation6 + $0xa50] sm:$0xff]
    %v3363 = vld [vmem:[#allocation6 + $0xa58] sm:$0xff]
    %v3364 = vld [vmem:[#allocation6 + $0xa60] sm:$0xff]
    %v3365 = vld [vmem:[#allocation6 + $0xa68] sm:$0xff]
    %v3366 = vld [vmem:[#allocation6 + $0xa70] sm:$0xff]
    %v3367 = vld [vmem:[#allocation6 + $0xa78] sm:$0xff]
    %v3368 = vld [vmem:[#allocation6 + $0xa80] sm:$0xff]
    %v3369 = vld [vmem:[#allocation6 + $0xa88] sm:$0xff]
    %v3370 = vld [vmem:[#allocation6 + $0xa90] sm:$0xff]
    %v3371 = vld [vmem:[#allocation6 + $0xa98] sm:$0xff]
    %v3372 = vld [vmem:[#allocation6 + $0xaa0] sm:$0xff]
    %v3373 = vld [vmem:[#allocation6 + $0xaa8] sm:$0xff]
    %v3374 = vld [vmem:[#allocation6 + $0xab0] sm:$0xff]
    %v3375 = vld [vmem:[#allocation6 + $0xab8] sm:$0xff]
    %v3376 = vld [vmem:[#allocation6 + $0xac0] sm:$0xff]
    %v3377 = vld [vmem:[#allocation6 + $0xac8] sm:$0xff]
    %v3378 = vld [vmem:[#allocation6 + $0xad0] sm:$0xff]
    %v3379 = vld [vmem:[#allocation6 + $0xad8] sm:$0xff]
    %v3380 = vld [vmem:[#allocation6 + $0xae0] sm:$0xff]
    %v3381 = vld [vmem:[#allocation6 + $0xae8] sm:$0xff]
    %v3382 = vld [vmem:[#allocation6 + $0xaf0] sm:$0xff]
    %v3383 = vld [vmem:[#allocation6 + $0xaf8] sm:$0xff]
    %v3384 = vld [vmem:[#allocation6 + $0xb00] sm:$0xff]
    %v3385 = vld [vmem:[#allocation6 + $0xb08] sm:$0xff]
    %v3386 = vld [vmem:[#allocation6 + $0xb10] sm:$0xff]
    %v3387 = vld [vmem:[#allocation6 + $0xb18] sm:$0xff]
    %v3388 = vld [vmem:[#allocation6 + $0xb20] sm:$0xff]
    %v3389 = vld [vmem:[#allocation6 + $0xb28] sm:$0xff]
    %v3390 = vld [vmem:[#allocation6 + $0xb30] sm:$0xff]
    %v3391 = vld [vmem:[#allocation6 + $0xb38] sm:$0xff]
    %v3392 = vld [vmem:[#allocation6 + $0xb40] sm:$0xff]
    %v3393 = vld [vmem:[#allocation6 + $0xb48] sm:$0xff]
    %v3394 = vld [vmem:[#allocation6 + $0xb50] sm:$0xff]
    %v3395 = vld [vmem:[#allocation6 + $0xb58] sm:$0xff]
    %v3396 = vld [vmem:[#allocation6 + $0xb60] sm:$0xff]
    %v3397 = vld [vmem:[#allocation6 + $0xb68] sm:$0xff]
    %v3398 = vld [vmem:[#allocation6 + $0xb70] sm:$0xff]
    %v3399 = vld [vmem:[#allocation6 + $0xb78] sm:$0xff]
    %v3400 = vld [vmem:[#allocation6 + $0xb80] sm:$0xff]
    %v3401 = vld [vmem:[#allocation6 + $0xb88] sm:$0xff]
    %v3402 = vld [vmem:[#allocation6 + $0xb90] sm:$0xff]
    %v3403 = vld [vmem:[#allocation6 + $0xb98] sm:$0xff]
    %v3404 = vld [vmem:[#allocation6 + $0xba0] sm:$0xff]
    %v3405 = vld [vmem:[#allocation6 + $0xba8] sm:$0xff]
    %v3406 = vld [vmem:[#allocation6 + $0xbb0] sm:$0xff]
    %v3407 = vld [vmem:[#allocation6 + $0xbb8] sm:$0xff]
    %v3408 = vld [vmem:[#allocation6 + $0xbc0] sm:$0xff]
    %v3409 = vld [vmem:[#allocation6 + $0xbc8] sm:$0xff]
    %v3410 = vld [vmem:[#allocation6 + $0xbd0] sm:$0xff]
    %v3411 = vld [vmem:[#allocation6 + $0xbd8] sm:$0xff]
    %v3412 = vld [vmem:[#allocation6 + $0xbe0] sm:$0xff]
    %v3413 = vld [vmem:[#allocation6 + $0xbe8] sm:$0xff]
    %v3414 = vld [vmem:[#allocation6 + $0xbf0] sm:$0xff]
    %v3415 = vld [vmem:[#allocation6 + $0xbf8] sm:$0xff]
    %v3416 = vld [vmem:[#allocation6 + $0xc00] sm:$0xff]
    %v3417 = vld [vmem:[#allocation6 + $0xc08] sm:$0xff]
    %v3418 = vld [vmem:[#allocation6 + $0xc10] sm:$0xff]
    %v3419 = vld [vmem:[#allocation6 + $0xc18] sm:$0xff]
    %v3420 = vld [vmem:[#allocation6 + $0xc20] sm:$0xff]
    %v3421 = vld [vmem:[#allocation6 + $0xc28] sm:$0xff]
    %v3422 = vld [vmem:[#allocation6 + $0xc30] sm:$0xff]
    %v3423 = vld [vmem:[#allocation6 + $0xc38] sm:$0xff]
    %v3424 = vld [vmem:[#allocation6 + $0xc40] sm:$0xff]
    %v3425 = vld [vmem:[#allocation6 + $0xc48] sm:$0xff]
    %v3426 = vld [vmem:[#allocation6 + $0xc50] sm:$0xff]
    %v3427 = vld [vmem:[#allocation6 + $0xc58] sm:$0xff]
    %v3428 = vld [vmem:[#allocation6 + $0xc60] sm:$0xff]
    %v3429 = vld [vmem:[#allocation6 + $0xc68] sm:$0xff]
    %v3430 = vld [vmem:[#allocation6 + $0xc70] sm:$0xff]
    %v3431 = vld [vmem:[#allocation6 + $0xc78] sm:$0xff]
    %v3432 = vld [vmem:[#allocation6 + $0xc80] sm:$0xff]
    %v3433 = vld [vmem:[#allocation6 + $0xc88] sm:$0xff]
    %v3434 = vld [vmem:[#allocation6 + $0xc90] sm:$0xff]
    %v3435 = vld [vmem:[#allocation6 + $0xc98] sm:$0xff]
    %v3436 = vld [vmem:[#allocation6 + $0xca0] sm:$0xff]
    %v3437 = vld [vmem:[#allocation6 + $0xca8] sm:$0xff]
    %v3438 = vld [vmem:[#allocation6 + $0xcb0] sm:$0xff]
    %v3439 = vld [vmem:[#allocation6 + $0xcb8] sm:$0xff]
    %v3440 = vld [vmem:[#allocation6 + $0xcc0] sm:$0xff]
    %v3441 = vld [vmem:[#allocation6 + $0xcc8] sm:$0xff]
    %v3442 = vld [vmem:[#allocation6 + $0xcd0] sm:$0xff]
    %v3443 = vld [vmem:[#allocation6 + $0xcd8] sm:$0xff]
    %v3444 = vld [vmem:[#allocation6 + $0xce0] sm:$0xff]
    %v3445 = vld [vmem:[#allocation6 + $0xce8] sm:$0xff]
    %v3446 = vld [vmem:[#allocation6 + $0xcf0] sm:$0xff]
    %v3447 = vld [vmem:[#allocation6 + $0xcf8] sm:$0xff]
    %v3448 = vld [vmem:[#allocation6 + $0xd00] sm:$0xff]
    %v3449 = vld [vmem:[#allocation6 + $0xd08] sm:$0xff]
    %v3450 = vld [vmem:[#allocation6 + $0xd10] sm:$0xff]
    %v3451 = vld [vmem:[#allocation6 + $0xd18] sm:$0xff]
    %v3452 = vld [vmem:[#allocation6 + $0xd20] sm:$0xff]
    %v3453 = vld [vmem:[#allocation6 + $0xd28] sm:$0xff]
    %v3454 = vld [vmem:[#allocation6 + $0xd30] sm:$0xff]
    %v3455 = vld [vmem:[#allocation6 + $0xd38] sm:$0xff]
    %v3456 = vld [vmem:[#allocation6 + $0xd40] sm:$0xff]
    %v3457 = vld [vmem:[#allocation6 + $0xd48] sm:$0xff]
    %v3458 = vld [vmem:[#allocation6 + $0xd50] sm:$0xff]
    %v3459 = vld [vmem:[#allocation6 + $0xd58] sm:$0xff]
    %v3460 = vld [vmem:[#allocation6 + $0xd60] sm:$0xff]
    %v3461 = vld [vmem:[#allocation6 + $0xd68] sm:$0xff]
    %v3462 = vld [vmem:[#allocation6 + $0xd70] sm:$0xff]
    %v3463 = vld [vmem:[#allocation6 + $0xd78] sm:$0xff]
    %v3464 = vld [vmem:[#allocation6 + $0xd80] sm:$0xff]
    %v3465 = vld [vmem:[#allocation6 + $0xd88] sm:$0xff]
    %v3466 = vld [vmem:[#allocation6 + $0xd90] sm:$0xff]
    %v3467 = vld [vmem:[#allocation6 + $0xd98] sm:$0xff]
    %v3468 = vld [vmem:[#allocation6 + $0xda0] sm:$0xff]
    %v3469 = vld [vmem:[#allocation6 + $0xda8] sm:$0xff]
    %v3470 = vld [vmem:[#allocation6 + $0xdb0] sm:$0xff]
    %v3471 = vld [vmem:[#allocation6 + $0xdb8] sm:$0xff]
    %v3472 = vld [vmem:[#allocation6 + $0xdc0] sm:$0xff]
    %v3473 = vld [vmem:[#allocation6 + $0xdc8] sm:$0xff]
    %v3474 = vld [vmem:[#allocation6 + $0xdd0] sm:$0xff]
    %v3475 = vld [vmem:[#allocation6 + $0xdd8] sm:$0xff]
    %v3476 = vld [vmem:[#allocation6 + $0xde0] sm:$0xff]
    %v3477 = vld [vmem:[#allocation6 + $0xde8] sm:$0xff]
    %v3478 = vld [vmem:[#allocation6 + $0xdf0] sm:$0xff]
    %v3479 = vld [vmem:[#allocation6 + $0xdf8] sm:$0xff]
    %v3480 = vld [vmem:[#allocation6 + $0xe00] sm:$0xff]
    %v3481 = vld [vmem:[#allocation6 + $0xe08] sm:$0xff]
    %v3482 = vld [vmem:[#allocation6 + $0xe10] sm:$0xff]
    %v3483 = vld [vmem:[#allocation6 + $0xe18] sm:$0xff]
    %v3484 = vld [vmem:[#allocation6 + $0xe20] sm:$0xff]
    %v3485 = vld [vmem:[#allocation6 + $0xe28] sm:$0xff]
    %v3486 = vld [vmem:[#allocation6 + $0xe30] sm:$0xff]
    %v3487 = vld [vmem:[#allocation6 + $0xe38] sm:$0xff]
    %v3488 = vld [vmem:[#allocation6 + $0xe40] sm:$0xff]
    %v3489 = vld [vmem:[#allocation6 + $0xe48] sm:$0xff]
    %v3490 = vld [vmem:[#allocation6 + $0xe50] sm:$0xff]
    %v3491 = vld [vmem:[#allocation6 + $0xe58] sm:$0xff]
    %v3492 = vld [vmem:[#allocation6 + $0xe60] sm:$0xff]
    %v3493 = vld [vmem:[#allocation6 + $0xe68] sm:$0xff]
    %v3494 = vld [vmem:[#allocation6 + $0xe70] sm:$0xff]
    %v3495 = vld [vmem:[#allocation6 + $0xe78] sm:$0xff]
    %v3496 = vld [vmem:[#allocation6 + $0xe80] sm:$0xff]
    %v3497 = vld [vmem:[#allocation6 + $0xe88] sm:$0xff]
    %v3498 = vld [vmem:[#allocation6 + $0xe90] sm:$0xff]
    %v3499 = vld [vmem:[#allocation6 + $0xe98] sm:$0xff]
    %v3500 = vld [vmem:[#allocation6 + $0xea0] sm:$0xff]
    %v3501 = vld [vmem:[#allocation6 + $0xea8] sm:$0xff]
    %v3502 = vld [vmem:[#allocation6 + $0xeb0] sm:$0xff]
    %v3503 = vld [vmem:[#allocation6 + $0xeb8] sm:$0xff]
    %v3504 = vld [vmem:[#allocation6 + $0xec0] sm:$0xff]
    %v3505 = vld [vmem:[#allocation6 + $0xec8] sm:$0xff]
    %v3506 = vld [vmem:[#allocation6 + $0xed0] sm:$0xff]
    %v3507 = vld [vmem:[#allocation6 + $0xed8] sm:$0xff]
    %v3508 = vld [vmem:[#allocation6 + $0xee0] sm:$0xff]
    %v3509 = vld [vmem:[#allocation6 + $0xee8] sm:$0xff]
    %v3510 = vld [vmem:[#allocation6 + $0xef0] sm:$0xff]
    %v3511 = vld [vmem:[#allocation6 + $0xef8] sm:$0xff]
    %v3512 = vld [vmem:[#allocation6 + $0xf00] sm:$0xff]
    %v3513 = vld [vmem:[#allocation6 + $0xf08] sm:$0xff]
    %v3514 = vld [vmem:[#allocation6 + $0xf10] sm:$0xff]
    %v3515 = vld [vmem:[#allocation6 + $0xf18] sm:$0xff]
    %v3516 = vld [vmem:[#allocation6 + $0xf20] sm:$0xff]
    %v3517 = vld [vmem:[#allocation6 + $0xf28] sm:$0xff]
    %v3518 = vld [vmem:[#allocation6 + $0xf30] sm:$0xff]
    %v3519 = vld [vmem:[#allocation6 + $0xf38] sm:$0xff]
    %v3520 = vld [vmem:[#allocation6 + $0xf40] sm:$0xff]
    %v3521 = vld [vmem:[#allocation6 + $0xf48] sm:$0xff]
    %v3522 = vld [vmem:[#allocation6 + $0xf50] sm:$0xff]
    %v3523 = vld [vmem:[#allocation6 + $0xf58] sm:$0xff]
    %v3524 = vld [vmem:[#allocation6 + $0xf60] sm:$0xff]
    %v3525 = vld [vmem:[#allocation6 + $0xf68] sm:$0xff]
    %v3526 = vld [vmem:[#allocation6 + $0xf70] sm:$0xff]
    %v3527 = vld [vmem:[#allocation6 + $0xf78] sm:$0xff]
    %v3528 = vld [vmem:[#allocation6 + $0xf80] sm:$0xff]
    %v3529 = vld [vmem:[#allocation6 + $0xf88] sm:$0xff]
    %v3530 = vld [vmem:[#allocation6 + $0xf90] sm:$0xff]
    %v3531 = vld [vmem:[#allocation6 + $0xf98] sm:$0xff]
    %v3532 = vld [vmem:[#allocation6 + $0xfa0] sm:$0xff]
    %v3533 = vld [vmem:[#allocation6 + $0xfa8] sm:$0xff]
    %v3534 = vld [vmem:[#allocation6 + $0xfb0] sm:$0xff]
    %v3535 = vld [vmem:[#allocation6 + $0xfb8] sm:$0xff]
    %v3536 = vld [vmem:[#allocation6 + $0xfc0] sm:$0xff]
    %v3537 = vld [vmem:[#allocation6 + $0xfc8] sm:$0xff]
    %v3538 = vld [vmem:[#allocation6 + $0xfd0] sm:$0xff]
    %v3539 = vld [vmem:[#allocation6 + $0xfd8] sm:$0xff]
    %v3540 = vld [vmem:[#allocation6 + $0xfe0] sm:$0xff]
    %v3541 = vld [vmem:[#allocation6 + $0xfe8] sm:$0xff]
    %v3542 = vld [vmem:[#allocation6 + $0xff0] sm:$0xff]
    %v3543 = vld [vmem:[#allocation6 + $0xff8] sm:$0xff]
    %v3544 = vld [vmem:[#allocation6 + $0x1000] sm:$0xff]
    %v3545 = vld [vmem:[#allocation6 + $0x1008] sm:$0xff]
    %v3546 = vld [vmem:[#allocation6 + $0x1010] sm:$0xff]
    %v3547 = vld [vmem:[#allocation6 + $0x1018] sm:$0xff]
    %v3548 = vld [vmem:[#allocation6 + $0x1020] sm:$0xff]
    %v3549 = vld [vmem:[#allocation6 + $0x1028] sm:$0xff]
    %v3550 = vld [vmem:[#allocation6 + $0x1030] sm:$0xff]
    %v3551 = vld [vmem:[#allocation6 + $0x1038] sm:$0xff]
    %v3552 = vld [vmem:[#allocation6 + $0x1040] sm:$0xff]
    %v3553 = vld [vmem:[#allocation6 + $0x1048] sm:$0xff]
    %v3554 = vld [vmem:[#allocation6 + $0x1050] sm:$0xff]
    %v3555 = vld [vmem:[#allocation6 + $0x1058] sm:$0xff]
    %v3556 = vld [vmem:[#allocation6 + $0x1060] sm:$0xff]
    %v3557 = vld [vmem:[#allocation6 + $0x1068] sm:$0xff]
    %v3558 = vld [vmem:[#allocation6 + $0x1070] sm:$0xff]
    %v3559 = vld [vmem:[#allocation6 + $0x1078] sm:$0xff]
    %v3560 = vld [vmem:[#allocation6 + $0x1080] sm:$0xff]
    %v3561 = vld [vmem:[#allocation6 + $0x1088] sm:$0xff]
    %v3562 = vld [vmem:[#allocation6 + $0x1090] sm:$0xff]
    %v3563 = vld [vmem:[#allocation6 + $0x1098] sm:$0xff]
    %v3564 = vld [vmem:[#allocation6 + $0x10a0] sm:$0xff]
    %v3565 = vld [vmem:[#allocation6 + $0x10a8] sm:$0xff]
    %v3566 = vld [vmem:[#allocation6 + $0x10b0] sm:$0xff]
    %v3567 = vld [vmem:[#allocation6 + $0x10b8] sm:$0xff]
    %v3568 = vld [vmem:[#allocation6 + $0x10c0] sm:$0xff]
    %v3569 = vld [vmem:[#allocation6 + $0x10c8] sm:$0xff]
    %v3570 = vld [vmem:[#allocation6 + $0x10d0] sm:$0xff]
    %v3571 = vld [vmem:[#allocation6 + $0x10d8] sm:$0xff]
    %v3572 = vld [vmem:[#allocation6 + $0x10e0] sm:$0xff]
    %v3573 = vld [vmem:[#allocation6 + $0x10e8] sm:$0xff]
    %v3574 = vld [vmem:[#allocation6 + $0x10f0] sm:$0xff]
    %v3575 = vld [vmem:[#allocation6 + $0x10f8] sm:$0xff]
    %v3576 = vld [vmem:[#allocation6 + $0x1100] sm:$0xff]
    %v3577 = vld [vmem:[#allocation6 + $0x1108] sm:$0xff]
    %v3578 = vld [vmem:[#allocation6 + $0x1110] sm:$0xff]
    %v3579 = vld [vmem:[#allocation6 + $0x1118] sm:$0xff]
    %v3580 = vld [vmem:[#allocation6 + $0x1120] sm:$0xff]
    %v3581 = vld [vmem:[#allocation6 + $0x1128] sm:$0xff]
    %v3582 = vld [vmem:[#allocation6 + $0x1130] sm:$0xff]
    %v3583 = vld [vmem:[#allocation6 + $0x1138] sm:$0xff]
    %v3584 = vld [vmem:[#allocation6 + $0x1140] sm:$0xff]
    %v3585 = vld [vmem:[#allocation6 + $0x1148] sm:$0xff]
    %v3586 = vld [vmem:[#allocation6 + $0x1150] sm:$0xff]
    %v3587 = vld [vmem:[#allocation6 + $0x1158] sm:$0xff]
    %v3588 = vld [vmem:[#allocation6 + $0x1160] sm:$0xff]
    %v3589 = vld [vmem:[#allocation6 + $0x1168] sm:$0xff]
    %v3590 = vld [vmem:[#allocation6 + $0x1170] sm:$0xff]
    %v3591 = vld [vmem:[#allocation6 + $0x1178] sm:$0xff]
    %v3592 = vld [vmem:[#allocation6 + $0x1180] sm:$0xff]
    %v3593 = vld [vmem:[#allocation6 + $0x1188] sm:$0xff]
    %v3594 = vld [vmem:[#allocation6 + $0x1190] sm:$0xff]
    %v3595 = vld [vmem:[#allocation6 + $0x1198] sm:$0xff]
    %v3596 = vld [vmem:[#allocation6 + $0x11a0] sm:$0xff]
    %v3597 = vld [vmem:[#allocation6 + $0x11a8] sm:$0xff]
    %v3598 = vld [vmem:[#allocation6 + $0x11b0] sm:$0xff]
    %v3599 = vld [vmem:[#allocation6 + $0x11b8] sm:$0xff]
    %v3600 = vld [vmem:[#allocation6 + $0x11c0] sm:$0xff]
    %v3601 = vld [vmem:[#allocation6 + $0x11c8] sm:$0xff]
    %v3602 = vld [vmem:[#allocation6 + $0x11d0] sm:$0xff]
    %v3603 = vld [vmem:[#allocation6 + $0x11d8] sm:$0xff]
    %v3604 = vld [vmem:[#allocation6 + $0x11e0] sm:$0xff]
    %v3605 = vld [vmem:[#allocation6 + $0x11e8] sm:$0xff]
    %v3606 = vld [vmem:[#allocation6 + $0x11f0] sm:$0xff]
    %v3607 = vld [vmem:[#allocation6 + $0x11f8] sm:$0xff]
    %v3608 = vld [vmem:[#allocation3] sm:$0xff]
    %v3609 = vld [vmem:[#allocation3 + $0x8] sm:$0xff]
    %v3610 = vld [vmem:[#allocation3 + $0x10] sm:$0xff]
    %v3611 = vld [vmem:[#allocation3 + $0x18] sm:$0xff]
    %v3612 = vld [vmem:[#allocation3 + $0x20] sm:$0xff]
    %v3613 = vld [vmem:[#allocation3 + $0x28] sm:$0xff]
    %v3614 = vld [vmem:[#allocation3 + $0x30] sm:$0xff]
    %v3615 = vld [vmem:[#allocation3 + $0x38] sm:$0xff]
    %v3616 = vld [vmem:[#allocation3 + $0x40] sm:$0xff]
    %v3617 = vld [vmem:[#allocation3 + $0x48] sm:$0xff]
    %v3618 = vld [vmem:[#allocation3 + $0x50] sm:$0xff]
    %v3619 = vld [vmem:[#allocation3 + $0x58] sm:$0xff]
    %v3620 = vld [vmem:[#allocation3 + $0x60] sm:$0xff]
    %v3621 = vld [vmem:[#allocation3 + $0x68] sm:$0xff]
    %v3622 = vld [vmem:[#allocation3 + $0x70] sm:$0xff]
    %v3623 = vld [vmem:[#allocation3 + $0x78] sm:$0xff]
    %v3624 = vld [vmem:[#allocation3 + $0x80] sm:$0xff]
    %v3625 = vld [vmem:[#allocation3 + $0x88] sm:$0xff]
    %v3626 = vld [vmem:[#allocation3 + $0x90] sm:$0xff]
    %v3627 = vld [vmem:[#allocation3 + $0x98] sm:$0xff]
    %v3628 = vld [vmem:[#allocation3 + $0xa0] sm:$0xff]
    %v3629 = vld [vmem:[#allocation3 + $0xa8] sm:$0xff]
    %v3630 = vld [vmem:[#allocation3 + $0xb0] sm:$0xff]
    %v3631 = vld [vmem:[#allocation3 + $0xb8] sm:$0xff]
    %v3632 = vld [vmem:[#allocation3 + $0xc0] sm:$0xff]
    %v3633 = vld [vmem:[#allocation3 + $0xc8] sm:$0xff]
    %v3634 = vld [vmem:[#allocation3 + $0xd0] sm:$0xff]
    %v3635 = vld [vmem:[#allocation3 + $0xd8] sm:$0xff]
    %v3636 = vld [vmem:[#allocation3 + $0xe0] sm:$0xff]
    %v3637 = vld [vmem:[#allocation3 + $0xe8] sm:$0xff]
    %v3638 = vld [vmem:[#allocation3 + $0xf0] sm:$0xff]
    %v3639 = vld [vmem:[#allocation3 + $0xf8] sm:$0xff]
    %v3640 = vld [vmem:[#allocation3 + $0x100] sm:$0xff]
    %v3641 = vld [vmem:[#allocation3 + $0x108] sm:$0xff]
    %v3642 = vld [vmem:[#allocation3 + $0x110] sm:$0xff]
    %v3643 = vld [vmem:[#allocation3 + $0x118] sm:$0xff]
    %v3644 = vld [vmem:[#allocation3 + $0x120] sm:$0xff]
    %v3645 = vld [vmem:[#allocation3 + $0x128] sm:$0xff]
    %v3646 = vld [vmem:[#allocation3 + $0x130] sm:$0xff]
    %v3647 = vld [vmem:[#allocation3 + $0x138] sm:$0xff]
    %v3648 = vld [vmem:[#allocation3 + $0x140] sm:$0xff]
    %v3649 = vld [vmem:[#allocation3 + $0x148] sm:$0xff]
    %v3650 = vld [vmem:[#allocation3 + $0x150] sm:$0xff]
    %v3651 = vld [vmem:[#allocation3 + $0x158] sm:$0xff]
    %v3652 = vld [vmem:[#allocation3 + $0x160] sm:$0xff]
    %v3653 = vld [vmem:[#allocation3 + $0x168] sm:$0xff]
    %v3654 = vld [vmem:[#allocation3 + $0x170] sm:$0xff]
    %v3655 = vld [vmem:[#allocation3 + $0x178] sm:$0xff]
    %v3656 = vld [vmem:[#allocation3 + $0x180] sm:$0xff]
    %v3657 = vld [vmem:[#allocation3 + $0x188] sm:$0xff]
    %v3658 = vld [vmem:[#allocation3 + $0x190] sm:$0xff]
    %v3659 = vld [vmem:[#allocation3 + $0x198] sm:$0xff]
    %v3660 = vld [vmem:[#allocation3 + $0x1a0] sm:$0xff]
    %v3661 = vld [vmem:[#allocation3 + $0x1a8] sm:$0xff]
    %v3662 = vld [vmem:[#allocation3 + $0x1b0] sm:$0xff]
    %v3663 = vld [vmem:[#allocation3 + $0x1b8] sm:$0xff]
    %v3664 = vld [vmem:[#allocation3 + $0x1c0] sm:$0xff]
    %v3665 = vld [vmem:[#allocation3 + $0x1c8] sm:$0xff]
    %v3666 = vld [vmem:[#allocation3 + $0x1d0] sm:$0xff]
    %v3667 = vld [vmem:[#allocation3 + $0x1d8] sm:$0xff]
    %v3668 = vld [vmem:[#allocation3 + $0x1e0] sm:$0xff]
    %v3669 = vld [vmem:[#allocation3 + $0x1e8] sm:$0xff]
    %v3670 = vld [vmem:[#allocation3 + $0x1f0] sm:$0xff]
    %v3671 = vld [vmem:[#allocation3 + $0x1f8] sm:$0xff]
    %v3672 = vld [vmem:[#allocation3 + $0x200] sm:$0xff]
    %v3673 = vld [vmem:[#allocation3 + $0x208] sm:$0xff]
    %v3674 = vld [vmem:[#allocation3 + $0x210] sm:$0xff]
    %v3675 = vld [vmem:[#allocation3 + $0x218] sm:$0xff]
    %v3676 = vld [vmem:[#allocation3 + $0x220] sm:$0xff]
    %v3677 = vld [vmem:[#allocation3 + $0x228] sm:$0xff]
    %v3678 = vld [vmem:[#allocation3 + $0x230] sm:$0xff]
    %v3679 = vld [vmem:[#allocation3 + $0x238] sm:$0xff]
    %v3680 = vld [vmem:[#allocation3 + $0x240] sm:$0xff]
    %v3681 = vld [vmem:[#allocation3 + $0x248] sm:$0xff]
    %v3682 = vld [vmem:[#allocation3 + $0x250] sm:$0xff]
    %v3683 = vld [vmem:[#allocation3 + $0x258] sm:$0xff]
    %v3684 = vld [vmem:[#allocation3 + $0x260] sm:$0xff]
    %v3685 = vld [vmem:[#allocation3 + $0x268] sm:$0xff]
    %v3686 = vld [vmem:[#allocation3 + $0x270] sm:$0xff]
    %v3687 = vld [vmem:[#allocation3 + $0x278] sm:$0xff]
    %v3688 = vld [vmem:[#allocation3 + $0x280] sm:$0xff]
    %v3689 = vld [vmem:[#allocation3 + $0x288] sm:$0xff]
    %v3690 = vld [vmem:[#allocation3 + $0x290] sm:$0xff]
    %v3691 = vld [vmem:[#allocation3 + $0x298] sm:$0xff]
    %v3692 = vld [vmem:[#allocation3 + $0x2a0] sm:$0xff]
    %v3693 = vld [vmem:[#allocation3 + $0x2a8] sm:$0xff]
    %v3694 = vld [vmem:[#allocation3 + $0x2b0] sm:$0xff]
    %v3695 = vld [vmem:[#allocation3 + $0x2b8] sm:$0xff]
    %v3696 = vld [vmem:[#allocation3 + $0x2c0] sm:$0xff]
    %v3697 = vld [vmem:[#allocation3 + $0x2c8] sm:$0xff]
    %v3698 = vld [vmem:[#allocation3 + $0x2d0] sm:$0xff]
    %v3699 = vld [vmem:[#allocation3 + $0x2d8] sm:$0xff]
    %v3700 = vld [vmem:[#allocation3 + $0x2e0] sm:$0xff]
    %v3701 = vld [vmem:[#allocation3 + $0x2e8] sm:$0xff]
    %v3702 = vld [vmem:[#allocation3 + $0x2f0] sm:$0xff]
    %v3703 = vld [vmem:[#allocation3 + $0x2f8] sm:$0xff]
    %v3704 = vld [vmem:[#allocation3 + $0x300] sm:$0xff]
    %v3705 = vld [vmem:[#allocation3 + $0x308] sm:$0xff]
    %v3706 = vld [vmem:[#allocation3 + $0x310] sm:$0xff]
    %v3707 = vld [vmem:[#allocation3 + $0x318] sm:$0xff]
    %v3708 = vld [vmem:[#allocation3 + $0x320] sm:$0xff]
    %v3709 = vld [vmem:[#allocation3 + $0x328] sm:$0xff]
    %v3710 = vld [vmem:[#allocation3 + $0x330] sm:$0xff]
    %v3711 = vld [vmem:[#allocation3 + $0x338] sm:$0xff]
    %v3712 = vld [vmem:[#allocation3 + $0x340] sm:$0xff]
    %v3713 = vld [vmem:[#allocation3 + $0x348] sm:$0xff]
    %v3714 = vld [vmem:[#allocation3 + $0x350] sm:$0xff]
    %v3715 = vld [vmem:[#allocation3 + $0x358] sm:$0xff]
    %v3716 = vld [vmem:[#allocation3 + $0x360] sm:$0xff]
    %v3717 = vld [vmem:[#allocation3 + $0x368] sm:$0xff]
    %v3718 = vld [vmem:[#allocation3 + $0x370] sm:$0xff]
    %v3719 = vld [vmem:[#allocation3 + $0x378] sm:$0xff]
    %v3720 = vld [vmem:[#allocation3 + $0x380] sm:$0xff]
    %v3721 = vld [vmem:[#allocation3 + $0x388] sm:$0xff]
    %v3722 = vld [vmem:[#allocation3 + $0x390] sm:$0xff]
    %v3723 = vld [vmem:[#allocation3 + $0x398] sm:$0xff]
    %v3724 = vld [vmem:[#allocation3 + $0x3a0] sm:$0xff]
    %v3725 = vld [vmem:[#allocation3 + $0x3a8] sm:$0xff]
    %v3726 = vld [vmem:[#allocation3 + $0x3b0] sm:$0xff]
    %v3727 = vld [vmem:[#allocation3 + $0x3b8] sm:$0xff]
    %v3728 = vld [vmem:[#allocation3 + $0x3c0] sm:$0xff]
    %v3729 = vld [vmem:[#allocation3 + $0x3c8] sm:$0xff]
    %v3730 = vld [vmem:[#allocation3 + $0x3d0] sm:$0xff]
    %v3731 = vld [vmem:[#allocation3 + $0x3d8] sm:$0xff]
    %v3732 = vld [vmem:[#allocation3 + $0x3e0] sm:$0xff]
    %v3733 = vld [vmem:[#allocation3 + $0x3e8] sm:$0xff]
    %v3734 = vld [vmem:[#allocation3 + $0x3f0] sm:$0xff]
    %v3735 = vld [vmem:[#allocation3 + $0x3f8] sm:$0xff]
    %v3736 = vld [vmem:[#allocation3 + $0x400] sm:$0xff]
    %v3737 = vld [vmem:[#allocation3 + $0x408] sm:$0xff]
    %v3738 = vld [vmem:[#allocation3 + $0x410] sm:$0xff]
    %v3739 = vld [vmem:[#allocation3 + $0x418] sm:$0xff]
    %v3740 = vld [vmem:[#allocation3 + $0x420] sm:$0xff]
    %v3741 = vld [vmem:[#allocation3 + $0x428] sm:$0xff]
    %v3742 = vld [vmem:[#allocation3 + $0x430] sm:$0xff]
    %v3743 = vld [vmem:[#allocation3 + $0x438] sm:$0xff]
    %v3744 = vld [vmem:[#allocation3 + $0x440] sm:$0xff]
    %v3745 = vld [vmem:[#allocation3 + $0x448] sm:$0xff]
    %v3746 = vld [vmem:[#allocation3 + $0x450] sm:$0xff]
    %v3747 = vld [vmem:[#allocation3 + $0x458] sm:$0xff]
    %v3748 = vld [vmem:[#allocation3 + $0x460] sm:$0xff]
    %v3749 = vld [vmem:[#allocation3 + $0x468] sm:$0xff]
    %v3750 = vld [vmem:[#allocation3 + $0x470] sm:$0xff]
    %v3751 = vld [vmem:[#allocation3 + $0x478] sm:$0xff]
    %v4328 = vunpack.c.l.b16 %v3032
    %v4329 = vunpack.c.h.b16 %v3032
    %v4330 = vunpack.c.l.b16 %v3033
    %v4331 = vunpack.c.h.b16 %v3033
    %v4332 = vunpack.c.l.b16 %v3034
    %v4333 = vunpack.c.h.b16 %v3034
    %v4334 = vunpack.c.l.b16 %v3035
    %v4335 = vunpack.c.h.b16 %v3035
    %v4336 = vunpack.c.l.b16 %v3036
    %v4337 = vunpack.c.h.b16 %v3036
    %v4338 = vunpack.c.l.b16 %v3037
    %v4339 = vunpack.c.h.b16 %v3037
    %v4340 = vunpack.c.l.b16 %v3038
    %v4341 = vunpack.c.h.b16 %v3038
    %v4342 = vunpack.c.l.b16 %v3039
    %v4343 = vunpack.c.h.b16 %v3039
    %v4344 = vunpack.c.l.b16 %v3040
    %v4345 = vunpack.c.h.b16 %v3040
    %v4346 = vunpack.c.l.b16 %v3041
    %v4347 = vunpack.c.h.b16 %v3041
    %v4348 = vunpack.c.l.b16 %v3042
    %v4349 = vunpack.c.h.b16 %v3042
    %v4350 = vunpack.c.l.b16 %v3043
    %v4351 = vunpack.c.h.b16 %v3043
    %v4352 = vunpack.c.l.b16 %v3044
    %v4353 = vunpack.c.h.b16 %v3044
    %v4354 = vunpack.c.l.b16 %v3045
    %v4355 = vunpack.c.h.b16 %v3045
    %v4356 = vunpack.c.l.b16 %v3046
    %v4357 = vunpack.c.h.b16 %v3046
    %v4358 = vunpack.c.l.b16 %v3047
    %v4359 = vunpack.c.h.b16 %v3047
    %v4360 = vunpack.c.l.b16 %v3048
    %v4361 = vunpack.c.h.b16 %v3048
    %v4362 = vunpack.c.l.b16 %v3049
    %v4363 = vunpack.c.h.b16 %v3049
    %v4364 = vunpack.c.l.b16 %v3050
    %v4365 = vunpack.c.h.b16 %v3050
    %v4366 = vunpack.c.l.b16 %v3051
    %v4367 = vunpack.c.h.b16 %v3051
    %v4368 = vunpack.c.l.b16 %v3052
    %v4369 = vunpack.c.h.b16 %v3052
    %v4370 = vunpack.c.l.b16 %v3053
    %v4371 = vunpack.c.h.b16 %v3053
    %v4372 = vunpack.c.l.b16 %v3054
    %v4373 = vunpack.c.h.b16 %v3054
    %v4374 = vunpack.c.l.b16 %v3055
    %v4375 = vunpack.c.h.b16 %v3055
    %v4376 = vunpack.c.l.b16 %v3056
    %v4377 = vunpack.c.h.b16 %v3056
    %v4378 = vunpack.c.l.b16 %v3057
    %v4379 = vunpack.c.h.b16 %v3057
    %v4380 = vunpack.c.l.b16 %v3058
    %v4381 = vunpack.c.h.b16 %v3058
    %v4382 = vunpack.c.l.b16 %v3059
    %v4383 = vunpack.c.h.b16 %v3059
    %v4384 = vunpack.c.l.b16 %v3060
    %v4385 = vunpack.c.h.b16 %v3060
    %v4386 = vunpack.c.l.b16 %v3061
    %v4387 = vunpack.c.h.b16 %v3061
    %v4388 = vunpack.c.l.b16 %v3062
    %v4389 = vunpack.c.h.b16 %v3062
    %v4390 = vunpack.c.l.b16 %v3063
    %v4391 = vunpack.c.h.b16 %v3063
    %v4392 = vunpack.c.l.b16 %v3064
    %v4393 = vunpack.c.h.b16 %v3064
    %v4394 = vunpack.c.l.b16 %v3065
    %v4395 = vunpack.c.h.b16 %v3065
    %v4396 = vunpack.c.l.b16 %v3066
    %v4397 = vunpack.c.h.b16 %v3066
    %v4398 = vunpack.c.l.b16 %v3067
    %v4399 = vunpack.c.h.b16 %v3067
    %v4400 = vunpack.c.l.b16 %v3068
    %v4401 = vunpack.c.h.b16 %v3068
    %v4402 = vunpack.c.l.b16 %v3069
    %v4403 = vunpack.c.h.b16 %v3069
    %v4404 = vunpack.c.l.b16 %v3070
    %v4405 = vunpack.c.h.b16 %v3070
    %v4406 = vunpack.c.l.b16 %v3071
    %v4407 = vunpack.c.h.b16 %v3071
    %v4408 = vunpack.c.l.b16 %v3072
    %v4409 = vunpack.c.h.b16 %v3072
    %v4410 = vunpack.c.l.b16 %v3073
    %v4411 = vunpack.c.h.b16 %v3073
    %v4412 = vunpack.c.l.b16 %v3074
    %v4413 = vunpack.c.h.b16 %v3074
    %v4414 = vunpack.c.l.b16 %v3075
    %v4415 = vunpack.c.h.b16 %v3075
    %v4416 = vunpack.c.l.b16 %v3076
    %v4417 = vunpack.c.h.b16 %v3076
    %v4418 = vunpack.c.l.b16 %v3077
    %v4419 = vunpack.c.h.b16 %v3077
    %v4420 = vunpack.c.l.b16 %v3078
    %v4421 = vunpack.c.h.b16 %v3078
    %v4422 = vunpack.c.l.b16 %v3079
    %v4423 = vunpack.c.h.b16 %v3079
    %v4424 = vunpack.c.l.b16 %v3080
    %v4425 = vunpack.c.h.b16 %v3080
    %v4426 = vunpack.c.l.b16 %v3081
    %v4427 = vunpack.c.h.b16 %v3081
    %v4428 = vunpack.c.l.b16 %v3082
    %v4429 = vunpack.c.h.b16 %v3082
    %v4430 = vunpack.c.l.b16 %v3083
    %v4431 = vunpack.c.h.b16 %v3083
    %v4432 = vunpack.c.l.b16 %v3084
    %v4433 = vunpack.c.h.b16 %v3084
    %v4434 = vunpack.c.l.b16 %v3085
    %v4435 = vunpack.c.h.b16 %v3085
    %v4436 = vunpack.c.l.b16 %v3086
    %v4437 = vunpack.c.h.b16 %v3086
    %v4438 = vunpack.c.l.b16 %v3087
    %v4439 = vunpack.c.h.b16 %v3087
    %v4440 = vunpack.c.l.b16 %v3088
    %v4441 = vunpack.c.h.b16 %v3088
    %v4442 = vunpack.c.l.b16 %v3089
    %v4443 = vunpack.c.h.b16 %v3089
    %v4444 = vunpack.c.l.b16 %v3090
    %v4445 = vunpack.c.h.b16 %v3090
    %v4446 = vunpack.c.l.b16 %v3091
    %v4447 = vunpack.c.h.b16 %v3091
    %v4448 = vunpack.c.l.b16 %v3092
    %v4449 = vunpack.c.h.b16 %v3092
    %v4450 = vunpack.c.l.b16 %v3093
    %v4451 = vunpack.c.h.b16 %v3093
    %v4452 = vunpack.c.l.b16 %v3094
    %v4453 = vunpack.c.h.b16 %v3094
    %v4454 = vunpack.c.l.b16 %v3095
    %v4455 = vunpack.c.h.b16 %v3095
    %v4456 = vunpack.c.l.b16 %v3096
    %v4457 = vunpack.c.h.b16 %v3096
    %v4458 = vunpack.c.l.b16 %v3097
    %v4459 = vunpack.c.h.b16 %v3097
    %v4460 = vunpack.c.l.b16 %v3098
    %v4461 = vunpack.c.h.b16 %v3098
    %v4462 = vunpack.c.l.b16 %v3099
    %v4463 = vunpack.c.h.b16 %v3099
    %v4464 = vunpack.c.l.b16 %v3100
    %v4465 = vunpack.c.h.b16 %v3100
    %v4466 = vunpack.c.l.b16 %v3101
    %v4467 = vunpack.c.h.b16 %v3101
    %v4468 = vunpack.c.l.b16 %v3102
    %v4469 = vunpack.c.h.b16 %v3102
    %v4470 = vunpack.c.l.b16 %v3103
    %v4471 = vunpack.c.h.b16 %v3103
    %v4472 = vunpack.c.l.b16 %v3104
    %v4473 = vunpack.c.h.b16 %v3104
    %v4474 = vunpack.c.l.b16 %v3105
    %v4475 = vunpack.c.h.b16 %v3105
    %v4476 = vunpack.c.l.b16 %v3106
    %v4477 = vunpack.c.h.b16 %v3106
    %v4478 = vunpack.c.l.b16 %v3107
    %v4479 = vunpack.c.h.b16 %v3107
    %v4480 = vunpack.c.l.b16 %v3108
    %v4481 = vunpack.c.h.b16 %v3108
    %v4482 = vunpack.c.l.b16 %v3109
    %v4483 = vunpack.c.h.b16 %v3109
    %v4484 = vunpack.c.l.b16 %v3110
    %v4485 = vunpack.c.h.b16 %v3110
    %v4486 = vunpack.c.l.b16 %v3111
    %v4487 = vunpack.c.h.b16 %v3111
    %v4488 = vunpack.c.l.b16 %v3112
    %v4489 = vunpack.c.h.b16 %v3112
    %v4490 = vunpack.c.l.b16 %v3113
    %v4491 = vunpack.c.h.b16 %v3113
    %v4492 = vunpack.c.l.b16 %v3114
    %v4493 = vunpack.c.h.b16 %v3114
    %v4494 = vunpack.c.l.b16 %v3115
    %v4495 = vunpack.c.h.b16 %v3115
    %v4496 = vunpack.c.l.b16 %v3116
    %v4497 = vunpack.c.h.b16 %v3116
    %v4498 = vunpack.c.l.b16 %v3117
    %v4499 = vunpack.c.h.b16 %v3117
    %v4500 = vunpack.c.l.b16 %v3118
    %v4501 = vunpack.c.h.b16 %v3118
    %v4502 = vunpack.c.l.b16 %v3119
    %v4503 = vunpack.c.h.b16 %v3119
    %v4504 = vunpack.c.l.b16 %v3120
    %v4505 = vunpack.c.h.b16 %v3120
    %v4506 = vunpack.c.l.b16 %v3121
    %v4507 = vunpack.c.h.b16 %v3121
    %v4508 = vunpack.c.l.b16 %v3122
    %v4509 = vunpack.c.h.b16 %v3122
    %v4510 = vunpack.c.l.b16 %v3123
    %v4511 = vunpack.c.h.b16 %v3123
    %v4512 = vunpack.c.l.b16 %v3124
    %v4513 = vunpack.c.h.b16 %v3124
    %v4514 = vunpack.c.l.b16 %v3125
    %v4515 = vunpack.c.h.b16 %v3125
    %v4516 = vunpack.c.l.b16 %v3126
    %v4517 = vunpack.c.h.b16 %v3126
    %v4518 = vunpack.c.l.b16 %v3127
    %v4519 = vunpack.c.h.b16 %v3127
    %v4520 = vunpack.c.l.b16 %v3128
    %v4521 = vunpack.c.h.b16 %v3128
    %v4522 = vunpack.c.l.b16 %v3129
    %v4523 = vunpack.c.h.b16 %v3129
    %v4524 = vunpack.c.l.b16 %v3130
    %v4525 = vunpack.c.h.b16 %v3130
    %v4526 = vunpack.c.l.b16 %v3131
    %v4527 = vunpack.c.h.b16 %v3131
    %v4528 = vunpack.c.l.b16 %v3132
    %v4529 = vunpack.c.h.b16 %v3132
    %v4530 = vunpack.c.l.b16 %v3133
    %v4531 = vunpack.c.h.b16 %v3133
    %v4532 = vunpack.c.l.b16 %v3134
    %v4533 = vunpack.c.h.b16 %v3134
    %v4534 = vunpack.c.l.b16 %v3135
    %v4535 = vunpack.c.h.b16 %v3135
    %v4536 = vunpack.c.l.b16 %v3136
    %v4537 = vunpack.c.h.b16 %v3136
    %v4538 = vunpack.c.l.b16 %v3137
    %v4539 = vunpack.c.h.b16 %v3137
    %v4540 = vunpack.c.l.b16 %v3138
    %v4541 = vunpack.c.h.b16 %v3138
    %v4542 = vunpack.c.l.b16 %v3139
    %v4543 = vunpack.c.h.b16 %v3139
    %v4544 = vunpack.c.l.b16 %v3140
    %v4545 = vunpack.c.h.b16 %v3140
    %v4546 = vunpack.c.l.b16 %v3141
    %v4547 = vunpack.c.h.b16 %v3141
    %v4548 = vunpack.c.l.b16 %v3142
    %v4549 = vunpack.c.h.b16 %v3142
    %v4550 = vunpack.c.l.b16 %v3143
    %v4551 = vunpack.c.h.b16 %v3143
    %v4552 = vunpack.c.l.b16 %v3144
    %v4553 = vunpack.c.h.b16 %v3144
    %v4554 = vunpack.c.l.b16 %v3145
    %v4555 = vunpack.c.h.b16 %v3145
    %v4556 = vunpack.c.l.b16 %v3146
    %v4557 = vunpack.c.h.b16 %v3146
    %v4558 = vunpack.c.l.b16 %v3147
    %v4559 = vunpack.c.h.b16 %v3147
    %v4560 = vunpack.c.l.b16 %v3148
    %v4561 = vunpack.c.h.b16 %v3148
    %v4562 = vunpack.c.l.b16 %v3149
    %v4563 = vunpack.c.h.b16 %v3149
    %v4564 = vunpack.c.l.b16 %v3150
    %v4565 = vunpack.c.h.b16 %v3150
    %v4566 = vunpack.c.l.b16 %v3151
    %v4567 = vunpack.c.h.b16 %v3151
    %v4568 = vunpack.c.l.b16 %v3152
    %v4569 = vunpack.c.h.b16 %v3152
    %v4570 = vunpack.c.l.b16 %v3153
    %v4571 = vunpack.c.h.b16 %v3153
    %v4572 = vunpack.c.l.b16 %v3154
    %v4573 = vunpack.c.h.b16 %v3154
    %v4574 = vunpack.c.l.b16 %v3155
    %v4575 = vunpack.c.h.b16 %v3155
    %v4576 = vunpack.c.l.b16 %v3156
    %v4577 = vunpack.c.h.b16 %v3156
    %v4578 = vunpack.c.l.b16 %v3157
    %v4579 = vunpack.c.h.b16 %v3157
    %v4580 = vunpack.c.l.b16 %v3158
    %v4581 = vunpack.c.h.b16 %v3158
    %v4582 = vunpack.c.l.b16 %v3159
    %v4583 = vunpack.c.h.b16 %v3159
    %v4584 = vunpack.c.l.b16 %v3160
    %v4585 = vunpack.c.h.b16 %v3160
    %v4586 = vunpack.c.l.b16 %v3161
    %v4587 = vunpack.c.h.b16 %v3161
    %v4588 = vunpack.c.l.b16 %v3162
    %v4589 = vunpack.c.h.b16 %v3162
    %v4590 = vunpack.c.l.b16 %v3163
    %v4591 = vunpack.c.h.b16 %v3163
    %v4592 = vunpack.c.l.b16 %v3164
    %v4593 = vunpack.c.h.b16 %v3164
    %v4594 = vunpack.c.l.b16 %v3165
    %v4595 = vunpack.c.h.b16 %v3165
    %v4596 = vunpack.c.l.b16 %v3166
    %v4597 = vunpack.c.h.b16 %v3166
    %v4598 = vunpack.c.l.b16 %v3167
    %v4599 = vunpack.c.h.b16 %v3167
    %v4600 = vunpack.c.l.b16 %v3168
    %v4601 = vunpack.c.h.b16 %v3168
    %v4602 = vunpack.c.l.b16 %v3169
    %v4603 = vunpack.c.h.b16 %v3169
    %v4604 = vunpack.c.l.b16 %v3170
    %v4605 = vunpack.c.h.b16 %v3170
    %v4606 = vunpack.c.l.b16 %v3171
    %v4607 = vunpack.c.h.b16 %v3171
    %v4608 = vunpack.c.l.b16 %v3172
    %v4609 = vunpack.c.h.b16 %v3172
    %v4610 = vunpack.c.l.b16 %v3173
    %v4611 = vunpack.c.h.b16 %v3173
    %v4612 = vunpack.c.l.b16 %v3174
    %v4613 = vunpack.c.h.b16 %v3174
    %v4614 = vunpack.c.l.b16 %v3175
    %v4615 = vunpack.c.h.b16 %v3175
    %v4616 = vunpack.c.l.b16 %v3176
    %v4617 = vunpack.c.h.b16 %v3176
    %v4618 = vunpack.c.l.b16 %v3177
    %v4619 = vunpack.c.h.b16 %v3177
    %v4620 = vunpack.c.l.b16 %v3178
    %v4621 = vunpack.c.h.b16 %v3178
    %v4622 = vunpack.c.l.b16 %v3179
    %v4623 = vunpack.c.h.b16 %v3179
    %v4624 = vunpack.c.l.b16 %v3180
    %v4625 = vunpack.c.h.b16 %v3180
    %v4626 = vunpack.c.l.b16 %v3181
    %v4627 = vunpack.c.h.b16 %v3181
    %v4628 = vunpack.c.l.b16 %v3182
    %v4629 = vunpack.c.h.b16 %v3182
    %v4630 = vunpack.c.l.b16 %v3183
    %v4631 = vunpack.c.h.b16 %v3183
    %v4632 = vunpack.c.l.b16 %v3184
    %v4633 = vunpack.c.h.b16 %v3184
    %v4634 = vunpack.c.l.b16 %v3185
    %v4635 = vunpack.c.h.b16 %v3185
    %v4636 = vunpack.c.l.b16 %v3186
    %v4637 = vunpack.c.h.b16 %v3186
    %v4638 = vunpack.c.l.b16 %v3187
    %v4639 = vunpack.c.h.b16 %v3187
    %v4640 = vunpack.c.l.b16 %v3188
    %v4641 = vunpack.c.h.b16 %v3188
    %v4642 = vunpack.c.l.b16 %v3189
    %v4643 = vunpack.c.h.b16 %v3189
    %v4644 = vunpack.c.l.b16 %v3190
    %v4645 = vunpack.c.h.b16 %v3190
    %v4646 = vunpack.c.l.b16 %v3191
    %v4647 = vunpack.c.h.b16 %v3191
    %v4648 = vunpack.c.l.b16 %v3192
    %v4649 = vunpack.c.h.b16 %v3192
    %v4650 = vunpack.c.l.b16 %v3193
    %v4651 = vunpack.c.h.b16 %v3193
    %v4652 = vunpack.c.l.b16 %v3194
    %v4653 = vunpack.c.h.b16 %v3194
    %v4654 = vunpack.c.l.b16 %v3195
    %v4655 = vunpack.c.h.b16 %v3195
    %v4656 = vunpack.c.l.b16 %v3196
    %v4657 = vunpack.c.h.b16 %v3196
    %v4658 = vunpack.c.l.b16 %v3197
    %v4659 = vunpack.c.h.b16 %v3197
    %v4660 = vunpack.c.l.b16 %v3198
    %v4661 = vunpack.c.h.b16 %v3198
    %v4662 = vunpack.c.l.b16 %v3199
    %v4663 = vunpack.c.h.b16 %v3199
    %v4664 = vunpack.c.l.b16 %v3200
    %v4665 = vunpack.c.h.b16 %v3200
    %v4666 = vunpack.c.l.b16 %v3201
    %v4667 = vunpack.c.h.b16 %v3201
    %v4668 = vunpack.c.l.b16 %v3202
    %v4669 = vunpack.c.h.b16 %v3202
    %v4670 = vunpack.c.l.b16 %v3203
    %v4671 = vunpack.c.h.b16 %v3203
    %v4672 = vunpack.c.l.b16 %v3204
    %v4673 = vunpack.c.h.b16 %v3204
    %v4674 = vunpack.c.l.b16 %v3205
    %v4675 = vunpack.c.h.b16 %v3205
    %v4676 = vunpack.c.l.b16 %v3206
    %v4677 = vunpack.c.h.b16 %v3206
    %v4678 = vunpack.c.l.b16 %v3207
    %v4679 = vunpack.c.h.b16 %v3207
    %v4680 = vunpack.c.l.b16 %v3208
    %v4681 = vunpack.c.h.b16 %v3208
    %v4682 = vunpack.c.l.b16 %v3209
    %v4683 = vunpack.c.h.b16 %v3209
    %v4684 = vunpack.c.l.b16 %v3210
    %v4685 = vunpack.c.h.b16 %v3210
    %v4686 = vunpack.c.l.b16 %v3211
    %v4687 = vunpack.c.h.b16 %v3211
    %v4688 = vunpack.c.l.b16 %v3212
    %v4689 = vunpack.c.h.b16 %v3212
    %v4690 = vunpack.c.l.b16 %v3213
    %v4691 = vunpack.c.h.b16 %v3213
    %v4692 = vunpack.c.l.b16 %v3214
    %v4693 = vunpack.c.h.b16 %v3214
    %v4694 = vunpack.c.l.b16 %v3215
    %v4695 = vunpack.c.h.b16 %v3215
    %v4696 = vunpack.c.l.b16 %v3216
    %v4697 = vunpack.c.h.b16 %v3216
    %v4698 = vunpack.c.l.b16 %v3217
    %v4699 = vunpack.c.h.b16 %v3217
    %v4700 = vunpack.c.l.b16 %v3218
    %v4701 = vunpack.c.h.b16 %v3218
    %v4702 = vunpack.c.l.b16 %v3219
    %v4703 = vunpack.c.h.b16 %v3219
    %v4704 = vunpack.c.l.b16 %v3220
    %v4705 = vunpack.c.h.b16 %v3220
    %v4706 = vunpack.c.l.b16 %v3221
    %v4707 = vunpack.c.h.b16 %v3221
    %v4708 = vunpack.c.l.b16 %v3222
    %v4709 = vunpack.c.h.b16 %v3222
    %v4710 = vunpack.c.l.b16 %v3223
    %v4711 = vunpack.c.h.b16 %v3223
    %v4712 = vunpack.c.l.b16 %v3224
    %v4713 = vunpack.c.h.b16 %v3224
    %v4714 = vunpack.c.l.b16 %v3225
    %v4715 = vunpack.c.h.b16 %v3225
    %v4716 = vunpack.c.l.b16 %v3226
    %v4717 = vunpack.c.h.b16 %v3226
    %v4718 = vunpack.c.l.b16 %v3227
    %v4719 = vunpack.c.h.b16 %v3227
    %v4720 = vunpack.c.l.b16 %v3228
    %v4721 = vunpack.c.h.b16 %v3228
    %v4722 = vunpack.c.l.b16 %v3229
    %v4723 = vunpack.c.h.b16 %v3229
    %v4724 = vunpack.c.l.b16 %v3230
    %v4725 = vunpack.c.h.b16 %v3230
    %v4726 = vunpack.c.l.b16 %v3231
    %v4727 = vunpack.c.h.b16 %v3231
    %v4728 = vunpack.c.l.b16 %v3232
    %v4729 = vunpack.c.h.b16 %v3232
    %v4730 = vunpack.c.l.b16 %v3233
    %v4731 = vunpack.c.h.b16 %v3233
    %v4732 = vunpack.c.l.b16 %v3234
    %v4733 = vunpack.c.h.b16 %v3234
    %v4734 = vunpack.c.l.b16 %v3235
    %v4735 = vunpack.c.h.b16 %v3235
    %v4736 = vunpack.c.l.b16 %v3236
    %v4737 = vunpack.c.h.b16 %v3236
    %v4738 = vunpack.c.l.b16 %v3237
    %v4739 = vunpack.c.h.b16 %v3237
    %v4740 = vunpack.c.l.b16 %v3238
    %v4741 = vunpack.c.h.b16 %v3238
    %v4742 = vunpack.c.l.b16 %v3239
    %v4743 = vunpack.c.h.b16 %v3239
    %v4744 = vunpack.c.l.b16 %v3240
    %v4745 = vunpack.c.h.b16 %v3240
    %v4746 = vunpack.c.l.b16 %v3241
    %v4747 = vunpack.c.h.b16 %v3241
    %v4748 = vunpack.c.l.b16 %v3242
    %v4749 = vunpack.c.h.b16 %v3242
    %v4750 = vunpack.c.l.b16 %v3243
    %v4751 = vunpack.c.h.b16 %v3243
    %v4752 = vunpack.c.l.b16 %v3244
    %v4753 = vunpack.c.h.b16 %v3244
    %v4754 = vunpack.c.l.b16 %v3245
    %v4755 = vunpack.c.h.b16 %v3245
    %v4756 = vunpack.c.l.b16 %v3246
    %v4757 = vunpack.c.h.b16 %v3246
    %v4758 = vunpack.c.l.b16 %v3247
    %v4759 = vunpack.c.h.b16 %v3247
    %v4760 = vunpack.c.l.b16 %v3248
    %v4761 = vunpack.c.h.b16 %v3248
    %v4762 = vunpack.c.l.b16 %v3249
    %v4763 = vunpack.c.h.b16 %v3249
    %v4764 = vunpack.c.l.b16 %v3250
    %v4765 = vunpack.c.h.b16 %v3250
    %v4766 = vunpack.c.l.b16 %v3251
    %v4767 = vunpack.c.h.b16 %v3251
    %v4768 = vunpack.c.l.b16 %v3252
    %v4769 = vunpack.c.h.b16 %v3252
    %v4770 = vunpack.c.l.b16 %v3253
    %v4771 = vunpack.c.h.b16 %v3253
    %v4772 = vunpack.c.l.b16 %v3254
    %v4773 = vunpack.c.h.b16 %v3254
    %v4774 = vunpack.c.l.b16 %v3255
    %v4775 = vunpack.c.h.b16 %v3255
    %v4776 = vunpack.c.l.b16 %v3256
    %v4777 = vunpack.c.h.b16 %v3256
    %v4778 = vunpack.c.l.b16 %v3257
    %v4779 = vunpack.c.h.b16 %v3257
    %v4780 = vunpack.c.l.b16 %v3258
    %v4781 = vunpack.c.h.b16 %v3258
    %v4782 = vunpack.c.l.b16 %v3259
    %v4783 = vunpack.c.h.b16 %v3259
    %v4784 = vunpack.c.l.b16 %v3260
    %v4785 = vunpack.c.h.b16 %v3260
    %v4786 = vunpack.c.l.b16 %v3261
    %v4787 = vunpack.c.h.b16 %v3261
    %v4788 = vunpack.c.l.b16 %v3262
    %v4789 = vunpack.c.h.b16 %v3262
    %v4790 = vunpack.c.l.b16 %v3263
    %v4791 = vunpack.c.h.b16 %v3263
    %v4792 = vunpack.c.l.b16 %v3264
    %v4793 = vunpack.c.h.b16 %v3264
    %v4794 = vunpack.c.l.b16 %v3265
    %v4795 = vunpack.c.h.b16 %v3265
    %v4796 = vunpack.c.l.b16 %v3266
    %v4797 = vunpack.c.h.b16 %v3266
    %v4798 = vunpack.c.l.b16 %v3267
    %v4799 = vunpack.c.h.b16 %v3267
    %v4800 = vunpack.c.l.b16 %v3268
    %v4801 = vunpack.c.h.b16 %v3268
    %v4802 = vunpack.c.l.b16 %v3269
    %v4803 = vunpack.c.h.b16 %v3269
    %v4804 = vunpack.c.l.b16 %v3270
    %v4805 = vunpack.c.h.b16 %v3270
    %v4806 = vunpack.c.l.b16 %v3271
    %v4807 = vunpack.c.h.b16 %v3271
    %v4808 = vunpack.c.l.b16 %v3272
    %v4809 = vunpack.c.h.b16 %v3272
    %v4810 = vunpack.c.l.b16 %v3273
    %v4811 = vunpack.c.h.b16 %v3273
    %v4812 = vunpack.c.l.b16 %v3274
    %v4813 = vunpack.c.h.b16 %v3274
    %v4814 = vunpack.c.l.b16 %v3275
    %v4815 = vunpack.c.h.b16 %v3275
    %v4816 = vunpack.c.l.b16 %v3276
    %v4817 = vunpack.c.h.b16 %v3276
    %v4818 = vunpack.c.l.b16 %v3277
    %v4819 = vunpack.c.h.b16 %v3277
    %v4820 = vunpack.c.l.b16 %v3278
    %v4821 = vunpack.c.h.b16 %v3278
    %v4822 = vunpack.c.l.b16 %v3279
    %v4823 = vunpack.c.h.b16 %v3279
    %v4824 = vunpack.c.l.b16 %v3280
    %v4825 = vunpack.c.h.b16 %v3280
    %v4826 = vunpack.c.l.b16 %v3281
    %v4827 = vunpack.c.h.b16 %v3281
    %v4828 = vunpack.c.l.b16 %v3282
    %v4829 = vunpack.c.h.b16 %v3282
    %v4830 = vunpack.c.l.b16 %v3283
    %v4831 = vunpack.c.h.b16 %v3283
    %v4832 = vunpack.c.l.b16 %v3284
    %v4833 = vunpack.c.h.b16 %v3284
    %v4834 = vunpack.c.l.b16 %v3285
    %v4835 = vunpack.c.h.b16 %v3285
    %v4836 = vunpack.c.l.b16 %v3286
    %v4837 = vunpack.c.h.b16 %v3286
    %v4838 = vunpack.c.l.b16 %v3287
    %v4839 = vunpack.c.h.b16 %v3287
    %v4840 = vunpack.c.l.b16 %v3288
    %v4841 = vunpack.c.h.b16 %v3288
    %v4842 = vunpack.c.l.b16 %v3289
    %v4843 = vunpack.c.h.b16 %v3289
    %v4844 = vunpack.c.l.b16 %v3290
    %v4845 = vunpack.c.h.b16 %v3290
    %v4846 = vunpack.c.l.b16 %v3291
    %v4847 = vunpack.c.h.b16 %v3291
    %v4848 = vunpack.c.l.b16 %v3292
    %v4849 = vunpack.c.h.b16 %v3292
    %v4850 = vunpack.c.l.b16 %v3293
    %v4851 = vunpack.c.h.b16 %v3293
    %v4852 = vunpack.c.l.b16 %v3294
    %v4853 = vunpack.c.h.b16 %v3294
    %v4854 = vunpack.c.l.b16 %v3295
    %v4855 = vunpack.c.h.b16 %v3295
    %v4856 = vunpack.c.l.b16 %v3296
    %v4857 = vunpack.c.h.b16 %v3296
    %v4858 = vunpack.c.l.b16 %v3297
    %v4859 = vunpack.c.h.b16 %v3297
    %v4860 = vunpack.c.l.b16 %v3298
    %v4861 = vunpack.c.h.b16 %v3298
    %v4862 = vunpack.c.l.b16 %v3299
    %v4863 = vunpack.c.h.b16 %v3299
    %v4864 = vunpack.c.l.b16 %v3300
    %v4865 = vunpack.c.h.b16 %v3300
    %v4866 = vunpack.c.l.b16 %v3301
    %v4867 = vunpack.c.h.b16 %v3301
    %v4868 = vunpack.c.l.b16 %v3302
    %v4869 = vunpack.c.h.b16 %v3302
    %v4870 = vunpack.c.l.b16 %v3303
    %v4871 = vunpack.c.h.b16 %v3303
    %v4872 = vunpack.c.l.b16 %v3304
    %v4873 = vunpack.c.h.b16 %v3304
    %v4874 = vunpack.c.l.b16 %v3305
    %v4875 = vunpack.c.h.b16 %v3305
    %v4876 = vunpack.c.l.b16 %v3306
    %v4877 = vunpack.c.h.b16 %v3306
    %v4878 = vunpack.c.l.b16 %v3307
    %v4879 = vunpack.c.h.b16 %v3307
    %v4880 = vunpack.c.l.b16 %v3308
    %v4881 = vunpack.c.h.b16 %v3308
    %v4882 = vunpack.c.l.b16 %v3309
    %v4883 = vunpack.c.h.b16 %v3309
    %v4884 = vunpack.c.l.b16 %v3310
    %v4885 = vunpack.c.h.b16 %v3310
    %v4886 = vunpack.c.l.b16 %v3311
    %v4887 = vunpack.c.h.b16 %v3311
    %v4888 = vunpack.c.l.b16 %v3312
    %v4889 = vunpack.c.h.b16 %v3312
    %v4890 = vunpack.c.l.b16 %v3313
    %v4891 = vunpack.c.h.b16 %v3313
    %v4892 = vunpack.c.l.b16 %v3314
    %v4893 = vunpack.c.h.b16 %v3314
    %v4894 = vunpack.c.l.b16 %v3315
    %v4895 = vunpack.c.h.b16 %v3315
    %v4896 = vunpack.c.l.b16 %v3316
    %v4897 = vunpack.c.h.b16 %v3316
    %v4898 = vunpack.c.l.b16 %v3317
    %v4899 = vunpack.c.h.b16 %v3317
    %v4900 = vunpack.c.l.b16 %v3318
    %v4901 = vunpack.c.h.b16 %v3318
    %v4902 = vunpack.c.l.b16 %v3319
    %v4903 = vunpack.c.h.b16 %v3319
    %v4904 = vunpack.c.l.b16 %v3320
    %v4905 = vunpack.c.h.b16 %v3320
    %v4906 = vunpack.c.l.b16 %v3321
    %v4907 = vunpack.c.h.b16 %v3321
    %v4908 = vunpack.c.l.b16 %v3322
    %v4909 = vunpack.c.h.b16 %v3322
    %v4910 = vunpack.c.l.b16 %v3323
    %v4911 = vunpack.c.h.b16 %v3323
    %v4912 = vunpack.c.l.b16 %v3324
    %v4913 = vunpack.c.h.b16 %v3324
    %v4914 = vunpack.c.l.b16 %v3325
    %v4915 = vunpack.c.h.b16 %v3325
    %v4916 = vunpack.c.l.b16 %v3326
    %v4917 = vunpack.c.h.b16 %v3326
    %v4918 = vunpack.c.l.b16 %v3327
    %v4919 = vunpack.c.h.b16 %v3327
    %v4920 = vunpack.c.l.b16 %v3328
    %v4921 = vunpack.c.h.b16 %v3328
    %v4922 = vunpack.c.l.b16 %v3329
    %v4923 = vunpack.c.h.b16 %v3329
    %v4924 = vunpack.c.l.b16 %v3330
    %v4925 = vunpack.c.h.b16 %v3330
    %v4926 = vunpack.c.l.b16 %v3331
    %v4927 = vunpack.c.h.b16 %v3331
    %v4928 = vunpack.c.l.b16 %v3332
    %v4929 = vunpack.c.h.b16 %v3332
    %v4930 = vunpack.c.l.b16 %v3333
    %v4931 = vunpack.c.h.b16 %v3333
    %v4932 = vunpack.c.l.b16 %v3334
    %v4933 = vunpack.c.h.b16 %v3334
    %v4934 = vunpack.c.l.b16 %v3335
    %v4935 = vunpack.c.h.b16 %v3335
    %v4936 = vunpack.c.l.b16 %v3336
    %v4937 = vunpack.c.h.b16 %v3336
    %v4938 = vunpack.c.l.b16 %v3337
    %v4939 = vunpack.c.h.b16 %v3337
    %v4940 = vunpack.c.l.b16 %v3338
    %v4941 = vunpack.c.h.b16 %v3338
    %v4942 = vunpack.c.l.b16 %v3339
    %v4943 = vunpack.c.h.b16 %v3339
    %v4944 = vunpack.c.l.b16 %v3340
    %v4945 = vunpack.c.h.b16 %v3340
    %v4946 = vunpack.c.l.b16 %v3341
    %v4947 = vunpack.c.h.b16 %v3341
    %v4948 = vunpack.c.l.b16 %v3342
    %v4949 = vunpack.c.h.b16 %v3342
    %v4950 = vunpack.c.l.b16 %v3343
    %v4951 = vunpack.c.h.b16 %v3343
    %v4952 = vunpack.c.l.b16 %v3344
    %v4953 = vunpack.c.h.b16 %v3344
    %v4954 = vunpack.c.l.b16 %v3345
    %v4955 = vunpack.c.h.b16 %v3345
    %v4956 = vunpack.c.l.b16 %v3346
    %v4957 = vunpack.c.h.b16 %v3346
    %v4958 = vunpack.c.l.b16 %v3347
    %v4959 = vunpack.c.h.b16 %v3347
    %v4960 = vunpack.c.l.b16 %v3348
    %v4961 = vunpack.c.h.b16 %v3348
    %v4962 = vunpack.c.l.b16 %v3349
    %v4963 = vunpack.c.h.b16 %v3349
    %v4964 = vunpack.c.l.b16 %v3350
    %v4965 = vunpack.c.h.b16 %v3350
    %v4966 = vunpack.c.l.b16 %v3351
    %v4967 = vunpack.c.h.b16 %v3351
    %v4968 = vunpack.c.l.b16 %v3352
    %v4969 = vunpack.c.h.b16 %v3352
    %v4970 = vunpack.c.l.b16 %v3353
    %v4971 = vunpack.c.h.b16 %v3353
    %v4972 = vunpack.c.l.b16 %v3354
    %v4973 = vunpack.c.h.b16 %v3354
    %v4974 = vunpack.c.l.b16 %v3355
    %v4975 = vunpack.c.h.b16 %v3355
    %v4976 = vunpack.c.l.b16 %v3356
    %v4977 = vunpack.c.h.b16 %v3356
    %v4978 = vunpack.c.l.b16 %v3357
    %v4979 = vunpack.c.h.b16 %v3357
    %v4980 = vunpack.c.l.b16 %v3358
    %v4981 = vunpack.c.h.b16 %v3358
    %v4982 = vunpack.c.l.b16 %v3359
    %v4983 = vunpack.c.h.b16 %v3359
    %v4984 = vunpack.c.l.b16 %v3360
    %v4985 = vunpack.c.h.b16 %v3360
    %v4986 = vunpack.c.l.b16 %v3361
    %v4987 = vunpack.c.h.b16 %v3361
    %v4988 = vunpack.c.l.b16 %v3362
    %v4989 = vunpack.c.h.b16 %v3362
    %v4990 = vunpack.c.l.b16 %v3363
    %v4991 = vunpack.c.h.b16 %v3363
    %v4992 = vunpack.c.l.b16 %v3364
    %v4993 = vunpack.c.h.b16 %v3364
    %v4994 = vunpack.c.l.b16 %v3365
    %v4995 = vunpack.c.h.b16 %v3365
    %v4996 = vunpack.c.l.b16 %v3366
    %v4997 = vunpack.c.h.b16 %v3366
    %v4998 = vunpack.c.l.b16 %v3367
    %v4999 = vunpack.c.h.b16 %v3367
    %v5000 = vunpack.c.l.b16 %v3368
    %v5001 = vunpack.c.h.b16 %v3368
    %v5002 = vunpack.c.l.b16 %v3369
    %v5003 = vunpack.c.h.b16 %v3369
    %v5004 = vunpack.c.l.b16 %v3370
    %v5005 = vunpack.c.h.b16 %v3370
    %v5006 = vunpack.c.l.b16 %v3371
    %v5007 = vunpack.c.h.b16 %v3371
    %v5008 = vunpack.c.l.b16 %v3372
    %v5009 = vunpack.c.h.b16 %v3372
    %v5010 = vunpack.c.l.b16 %v3373
    %v5011 = vunpack.c.h.b16 %v3373
    %v5012 = vunpack.c.l.b16 %v3374
    %v5013 = vunpack.c.h.b16 %v3374
    %v5014 = vunpack.c.l.b16 %v3375
    %v5015 = vunpack.c.h.b16 %v3375
    %v5016 = vunpack.c.l.b16 %v3376
    %v5017 = vunpack.c.h.b16 %v3376
    %v5018 = vunpack.c.l.b16 %v3377
    %v5019 = vunpack.c.h.b16 %v3377
    %v5020 = vunpack.c.l.b16 %v3378
    %v5021 = vunpack.c.h.b16 %v3378
    %v5022 = vunpack.c.l.b16 %v3379
    %v5023 = vunpack.c.h.b16 %v3379
    %v5024 = vunpack.c.l.b16 %v3380
    %v5025 = vunpack.c.h.b16 %v3380
    %v5026 = vunpack.c.l.b16 %v3381
    %v5027 = vunpack.c.h.b16 %v3381
    %v5028 = vunpack.c.l.b16 %v3382
    %v5029 = vunpack.c.h.b16 %v3382
    %v5030 = vunpack.c.l.b16 %v3383
    %v5031 = vunpack.c.h.b16 %v3383
    %v5032 = vunpack.c.l.b16 %v3384
    %v5033 = vunpack.c.h.b16 %v3384
    %v5034 = vunpack.c.l.b16 %v3385
    %v5035 = vunpack.c.h.b16 %v3385
    %v5036 = vunpack.c.l.b16 %v3386
    %v5037 = vunpack.c.h.b16 %v3386
    %v5038 = vunpack.c.l.b16 %v3387
    %v5039 = vunpack.c.h.b16 %v3387
    %v5040 = vunpack.c.l.b16 %v3388
    %v5041 = vunpack.c.h.b16 %v3388
    %v5042 = vunpack.c.l.b16 %v3389
    %v5043 = vunpack.c.h.b16 %v3389
    %v5044 = vunpack.c.l.b16 %v3390
    %v5045 = vunpack.c.h.b16 %v3390
    %v5046 = vunpack.c.l.b16 %v3391
    %v5047 = vunpack.c.h.b16 %v3391
    %v5048 = vunpack.c.l.b16 %v3392
    %v5049 = vunpack.c.h.b16 %v3392
    %v5050 = vunpack.c.l.b16 %v3393
    %v5051 = vunpack.c.h.b16 %v3393
    %v5052 = vunpack.c.l.b16 %v3394
    %v5053 = vunpack.c.h.b16 %v3394
    %v5054 = vunpack.c.l.b16 %v3395
    %v5055 = vunpack.c.h.b16 %v3395
    %v5056 = vunpack.c.l.b16 %v3396
    %v5057 = vunpack.c.h.b16 %v3396
    %v5058 = vunpack.c.l.b16 %v3397
    %v5059 = vunpack.c.h.b16 %v3397
    %v5060 = vunpack.c.l.b16 %v3398
    %v5061 = vunpack.c.h.b16 %v3398
    %v5062 = vunpack.c.l.b16 %v3399
    %v5063 = vunpack.c.h.b16 %v3399
    %v5064 = vunpack.c.l.b16 %v3400
    %v5065 = vunpack.c.h.b16 %v3400
    %v5066 = vunpack.c.l.b16 %v3401
    %v5067 = vunpack.c.h.b16 %v3401
    %v5068 = vunpack.c.l.b16 %v3402
    %v5069 = vunpack.c.h.b16 %v3402
    %v5070 = vunpack.c.l.b16 %v3403
    %v5071 = vunpack.c.h.b16 %v3403
    %v5072 = vunpack.c.l.b16 %v3404
    %v5073 = vunpack.c.h.b16 %v3404
    %v5074 = vunpack.c.l.b16 %v3405
    %v5075 = vunpack.c.h.b16 %v3405
    %v5076 = vunpack.c.l.b16 %v3406
    %v5077 = vunpack.c.h.b16 %v3406
    %v5078 = vunpack.c.l.b16 %v3407
    %v5079 = vunpack.c.h.b16 %v3407
    %v5080 = vunpack.c.l.b16 %v3408
    %v5081 = vunpack.c.h.b16 %v3408
    %v5082 = vunpack.c.l.b16 %v3409
    %v5083 = vunpack.c.h.b16 %v3409
    %v5084 = vunpack.c.l.b16 %v3410
    %v5085 = vunpack.c.h.b16 %v3410
    %v5086 = vunpack.c.l.b16 %v3411
    %v5087 = vunpack.c.h.b16 %v3411
    %v5088 = vunpack.c.l.b16 %v3412
    %v5089 = vunpack.c.h.b16 %v3412
    %v5090 = vunpack.c.l.b16 %v3413
    %v5091 = vunpack.c.h.b16 %v3413
    %v5092 = vunpack.c.l.b16 %v3414
    %v5093 = vunpack.c.h.b16 %v3414
    %v5094 = vunpack.c.l.b16 %v3415
    %v5095 = vunpack.c.h.b16 %v3415
    %v5096 = vunpack.c.l.b16 %v3416
    %v5097 = vunpack.c.h.b16 %v3416
    %v5098 = vunpack.c.l.b16 %v3417
    %v5099 = vunpack.c.h.b16 %v3417
    %v5100 = vunpack.c.l.b16 %v3418
    %v5101 = vunpack.c.h.b16 %v3418
    %v5102 = vunpack.c.l.b16 %v3419
    %v5103 = vunpack.c.h.b16 %v3419
    %v5104 = vunpack.c.l.b16 %v3420
    %v5105 = vunpack.c.h.b16 %v3420
    %v5106 = vunpack.c.l.b16 %v3421
    %v5107 = vunpack.c.h.b16 %v3421
    %v5108 = vunpack.c.l.b16 %v3422
    %v5109 = vunpack.c.h.b16 %v3422
    %v5110 = vunpack.c.l.b16 %v3423
    %v5111 = vunpack.c.h.b16 %v3423
    %v5112 = vunpack.c.l.b16 %v3424
    %v5113 = vunpack.c.h.b16 %v3424
    %v5114 = vunpack.c.l.b16 %v3425
    %v5115 = vunpack.c.h.b16 %v3425
    %v5116 = vunpack.c.l.b16 %v3426
    %v5117 = vunpack.c.h.b16 %v3426
    %v5118 = vunpack.c.l.b16 %v3427
    %v5119 = vunpack.c.h.b16 %v3427
    %v5120 = vunpack.c.l.b16 %v3428
    %v5121 = vunpack.c.h.b16 %v3428
    %v5122 = vunpack.c.l.b16 %v3429
    %v5123 = vunpack.c.h.b16 %v3429
    %v5124 = vunpack.c.l.b16 %v3430
    %v5125 = vunpack.c.h.b16 %v3430
    %v5126 = vunpack.c.l.b16 %v3431
    %v5127 = vunpack.c.h.b16 %v3431
    %v5128 = vunpack.c.l.b16 %v3432
    %v5129 = vunpack.c.h.b16 %v3432
    %v5130 = vunpack.c.l.b16 %v3433
    %v5131 = vunpack.c.h.b16 %v3433
    %v5132 = vunpack.c.l.b16 %v3434
    %v5133 = vunpack.c.h.b16 %v3434
    %v5134 = vunpack.c.l.b16 %v3435
    %v5135 = vunpack.c.h.b16 %v3435
    %v5136 = vunpack.c.l.b16 %v3436
    %v5137 = vunpack.c.h.b16 %v3436
    %v5138 = vunpack.c.l.b16 %v3437
    %v5139 = vunpack.c.h.b16 %v3437
    %v5140 = vunpack.c.l.b16 %v3438
    %v5141 = vunpack.c.h.b16 %v3438
    %v5142 = vunpack.c.l.b16 %v3439
    %v5143 = vunpack.c.h.b16 %v3439
    %v5144 = vunpack.c.l.b16 %v3440
    %v5145 = vunpack.c.h.b16 %v3440
    %v5146 = vunpack.c.l.b16 %v3441
    %v5147 = vunpack.c.h.b16 %v3441
    %v5148 = vunpack.c.l.b16 %v3442
    %v5149 = vunpack.c.h.b16 %v3442
    %v5150 = vunpack.c.l.b16 %v3443
    %v5151 = vunpack.c.h.b16 %v3443
    %v5152 = vunpack.c.l.b16 %v3444
    %v5153 = vunpack.c.h.b16 %v3444
    %v5154 = vunpack.c.l.b16 %v3445
    %v5155 = vunpack.c.h.b16 %v3445
    %v5156 = vunpack.c.l.b16 %v3446
    %v5157 = vunpack.c.h.b16 %v3446
    %v5158 = vunpack.c.l.b16 %v3447
    %v5159 = vunpack.c.h.b16 %v3447
    %v5160 = vunpack.c.l.b16 %v3448
    %v5161 = vunpack.c.h.b16 %v3448
    %v5162 = vunpack.c.l.b16 %v3449
    %v5163 = vunpack.c.h.b16 %v3449
    %v5164 = vunpack.c.l.b16 %v3450
    %v5165 = vunpack.c.h.b16 %v3450
    %v5166 = vunpack.c.l.b16 %v3451
    %v5167 = vunpack.c.h.b16 %v3451
    %v5168 = vunpack.c.l.b16 %v3452
    %v5169 = vunpack.c.h.b16 %v3452
    %v5170 = vunpack.c.l.b16 %v3453
    %v5171 = vunpack.c.h.b16 %v3453
    %v5172 = vunpack.c.l.b16 %v3454
    %v5173 = vunpack.c.h.b16 %v3454
    %v5174 = vunpack.c.l.b16 %v3455
    %v5175 = vunpack.c.h.b16 %v3455
    %v5176 = vunpack.c.l.b16 %v3456
    %v5177 = vunpack.c.h.b16 %v3456
    %v5178 = vunpack.c.l.b16 %v3457
    %v5179 = vunpack.c.h.b16 %v3457
    %v5180 = vunpack.c.l.b16 %v3458
    %v5181 = vunpack.c.h.b16 %v3458
    %v5182 = vunpack.c.l.b16 %v3459
    %v5183 = vunpack.c.h.b16 %v3459
    %v5184 = vunpack.c.l.b16 %v3460
    %v5185 = vunpack.c.h.b16 %v3460
    %v5186 = vunpack.c.l.b16 %v3461
    %v5187 = vunpack.c.h.b16 %v3461
    %v5188 = vunpack.c.l.b16 %v3462
    %v5189 = vunpack.c.h.b16 %v3462
    %v5190 = vunpack.c.l.b16 %v3463
    %v5191 = vunpack.c.h.b16 %v3463
    %v5192 = vunpack.c.l.b16 %v3464
    %v5193 = vunpack.c.h.b16 %v3464
    %v5194 = vunpack.c.l.b16 %v3465
    %v5195 = vunpack.c.h.b16 %v3465
    %v5196 = vunpack.c.l.b16 %v3466
    %v5197 = vunpack.c.h.b16 %v3466
    %v5198 = vunpack.c.l.b16 %v3467
    %v5199 = vunpack.c.h.b16 %v3467
    %v5200 = vunpack.c.l.b16 %v3468
    %v5201 = vunpack.c.h.b16 %v3468
    %v5202 = vunpack.c.l.b16 %v3469
    %v5203 = vunpack.c.h.b16 %v3469
    %v5204 = vunpack.c.l.b16 %v3470
    %v5205 = vunpack.c.h.b16 %v3470
    %v5206 = vunpack.c.l.b16 %v3471
    %v5207 = vunpack.c.h.b16 %v3471
    %v5208 = vunpack.c.l.b16 %v3472
    %v5209 = vunpack.c.h.b16 %v3472
    %v5210 = vunpack.c.l.b16 %v3473
    %v5211 = vunpack.c.h.b16 %v3473
    %v5212 = vunpack.c.l.b16 %v3474
    %v5213 = vunpack.c.h.b16 %v3474
    %v5214 = vunpack.c.l.b16 %v3475
    %v5215 = vunpack.c.h.b16 %v3475
    %v5216 = vunpack.c.l.b16 %v3476
    %v5217 = vunpack.c.h.b16 %v3476
    %v5218 = vunpack.c.l.b16 %v3477
    %v5219 = vunpack.c.h.b16 %v3477
    %v5220 = vunpack.c.l.b16 %v3478
    %v5221 = vunpack.c.h.b16 %v3478
    %v5222 = vunpack.c.l.b16 %v3479
    %v5223 = vunpack.c.h.b16 %v3479
    %v5224 = vunpack.c.l.b16 %v3480
    %v5225 = vunpack.c.h.b16 %v3480
    %v5226 = vunpack.c.l.b16 %v3481
    %v5227 = vunpack.c.h.b16 %v3481
    %v5228 = vunpack.c.l.b16 %v3482
    %v5229 = vunpack.c.h.b16 %v3482
    %v5230 = vunpack.c.l.b16 %v3483
    %v5231 = vunpack.c.h.b16 %v3483
    %v5232 = vunpack.c.l.b16 %v3484
    %v5233 = vunpack.c.h.b16 %v3484
    %v5234 = vunpack.c.l.b16 %v3485
    %v5235 = vunpack.c.h.b16 %v3485
    %v5236 = vunpack.c.l.b16 %v3486
    %v5237 = vunpack.c.h.b16 %v3486
    %v5238 = vunpack.c.l.b16 %v3487
    %v5239 = vunpack.c.h.b16 %v3487
    %v5240 = vunpack.c.l.b16 %v3488
    %v5241 = vunpack.c.h.b16 %v3488
    %v5242 = vunpack.c.l.b16 %v3489
    %v5243 = vunpack.c.h.b16 %v3489
    %v5244 = vunpack.c.l.b16 %v3490
    %v5245 = vunpack.c.h.b16 %v3490
    %v5246 = vunpack.c.l.b16 %v3491
    %v5247 = vunpack.c.h.b16 %v3491
    %v5248 = vunpack.c.l.b16 %v3492
    %v5249 = vunpack.c.h.b16 %v3492
    %v5250 = vunpack.c.l.b16 %v3493
    %v5251 = vunpack.c.h.b16 %v3493
    %v5252 = vunpack.c.l.b16 %v3494
    %v5253 = vunpack.c.h.b16 %v3494
    %v5254 = vunpack.c.l.b16 %v3495
    %v5255 = vunpack.c.h.b16 %v3495
    %v5256 = vunpack.c.l.b16 %v3496
    %v5257 = vunpack.c.h.b16 %v3496
    %v5258 = vunpack.c.l.b16 %v3497
    %v5259 = vunpack.c.h.b16 %v3497
    %v5260 = vunpack.c.l.b16 %v3498
    %v5261 = vunpack.c.h.b16 %v3498
    %v5262 = vunpack.c.l.b16 %v3499
    %v5263 = vunpack.c.h.b16 %v3499
    %v5264 = vunpack.c.l.b16 %v3500
    %v5265 = vunpack.c.h.b16 %v3500
    %v5266 = vunpack.c.l.b16 %v3501
    %v5267 = vunpack.c.h.b16 %v3501
    %v5268 = vunpack.c.l.b16 %v3502
    %v5269 = vunpack.c.h.b16 %v3502
    %v5270 = vunpack.c.l.b16 %v3503
    %v5271 = vunpack.c.h.b16 %v3503
    %v5272 = vunpack.c.l.b16 %v3504
    %v5273 = vunpack.c.h.b16 %v3504
    %v5274 = vunpack.c.l.b16 %v3505
    %v5275 = vunpack.c.h.b16 %v3505
    %v5276 = vunpack.c.l.b16 %v3506
    %v5277 = vunpack.c.h.b16 %v3506
    %v5278 = vunpack.c.l.b16 %v3507
    %v5279 = vunpack.c.h.b16 %v3507
    %v5280 = vunpack.c.l.b16 %v3508
    %v5281 = vunpack.c.h.b16 %v3508
    %v5282 = vunpack.c.l.b16 %v3509
    %v5283 = vunpack.c.h.b16 %v3509
    %v5284 = vunpack.c.l.b16 %v3510
    %v5285 = vunpack.c.h.b16 %v3510
    %v5286 = vunpack.c.l.b16 %v3511
    %v5287 = vunpack.c.h.b16 %v3511
    %v5288 = vunpack.c.l.b16 %v3512
    %v5289 = vunpack.c.h.b16 %v3512
    %v5290 = vunpack.c.l.b16 %v3513
    %v5291 = vunpack.c.h.b16 %v3513
    %v5292 = vunpack.c.l.b16 %v3514
    %v5293 = vunpack.c.h.b16 %v3514
    %v5294 = vunpack.c.l.b16 %v3515
    %v5295 = vunpack.c.h.b16 %v3515
    %v5296 = vunpack.c.l.b16 %v3516
    %v5297 = vunpack.c.h.b16 %v3516
    %v5298 = vunpack.c.l.b16 %v3517
    %v5299 = vunpack.c.h.b16 %v3517
    %v5300 = vunpack.c.l.b16 %v3518
    %v5301 = vunpack.c.h.b16 %v3518
    %v5302 = vunpack.c.l.b16 %v3519
    %v5303 = vunpack.c.h.b16 %v3519
    %v5304 = vunpack.c.l.b16 %v3520
    %v5305 = vunpack.c.h.b16 %v3520
    %v5306 = vunpack.c.l.b16 %v3521
    %v5307 = vunpack.c.h.b16 %v3521
    %v5308 = vunpack.c.l.b16 %v3522
    %v5309 = vunpack.c.h.b16 %v3522
    %v5310 = vunpack.c.l.b16 %v3523
    %v5311 = vunpack.c.h.b16 %v3523
    %v5312 = vunpack.c.l.b16 %v3524
    %v5313 = vunpack.c.h.b16 %v3524
    %v5314 = vunpack.c.l.b16 %v3525
    %v5315 = vunpack.c.h.b16 %v3525
    %v5316 = vunpack.c.l.b16 %v3526
    %v5317 = vunpack.c.h.b16 %v3526
    %v5318 = vunpack.c.l.b16 %v3527
    %v5319 = vunpack.c.h.b16 %v3527
    %v5320 = vunpack.c.l.b16 %v3528
    %v5321 = vunpack.c.h.b16 %v3528
    %v5322 = vunpack.c.l.b16 %v3529
    %v5323 = vunpack.c.h.b16 %v3529
    %v5324 = vunpack.c.l.b16 %v3530
    %v5325 = vunpack.c.h.b16 %v3530
    %v5326 = vunpack.c.l.b16 %v3531
    %v5327 = vunpack.c.h.b16 %v3531
    %v5328 = vunpack.c.l.b16 %v3532
    %v5329 = vunpack.c.h.b16 %v3532
    %v5330 = vunpack.c.l.b16 %v3533
    %v5331 = vunpack.c.h.b16 %v3533
    %v5332 = vunpack.c.l.b16 %v3534
    %v5333 = vunpack.c.h.b16 %v3534
    %v5334 = vunpack.c.l.b16 %v3535
    %v5335 = vunpack.c.h.b16 %v3535
    %v5336 = vunpack.c.l.b16 %v3536
    %v5337 = vunpack.c.h.b16 %v3536
    %v5338 = vunpack.c.l.b16 %v3537
    %v5339 = vunpack.c.h.b16 %v3537
    %v5340 = vunpack.c.l.b16 %v3538
    %v5341 = vunpack.c.h.b16 %v3538
    %v5342 = vunpack.c.l.b16 %v3539
    %v5343 = vunpack.c.h.b16 %v3539
    %v5344 = vunpack.c.l.b16 %v3540
    %v5345 = vunpack.c.h.b16 %v3540
    %v5346 = vunpack.c.l.b16 %v3541
    %v5347 = vunpack.c.h.b16 %v3541
    %v5348 = vunpack.c.l.b16 %v3542
    %v5349 = vunpack.c.h.b16 %v3542
    %v5350 = vunpack.c.l.b16 %v3543
    %v5351 = vunpack.c.h.b16 %v3543
    %v5352 = vunpack.c.l.b16 %v3544
    %v5353 = vunpack.c.h.b16 %v3544
    %v5354 = vunpack.c.l.b16 %v3545
    %v5355 = vunpack.c.h.b16 %v3545
    %v5356 = vunpack.c.l.b16 %v3546
    %v5357 = vunpack.c.h.b16 %v3546
    %v5358 = vunpack.c.l.b16 %v3547
    %v5359 = vunpack.c.h.b16 %v3547
    %v5360 = vunpack.c.l.b16 %v3548
    %v5361 = vunpack.c.h.b16 %v3548
    %v5362 = vunpack.c.l.b16 %v3549
    %v5363 = vunpack.c.h.b16 %v3549
    %v5364 = vunpack.c.l.b16 %v3550
    %v5365 = vunpack.c.h.b16 %v3550
    %v5366 = vunpack.c.l.b16 %v3551
    %v5367 = vunpack.c.h.b16 %v3551
    %v5368 = vunpack.c.l.b16 %v3552
    %v5369 = vunpack.c.h.b16 %v3552
    %v5370 = vunpack.c.l.b16 %v3553
    %v5371 = vunpack.c.h.b16 %v3553
    %v5372 = vunpack.c.l.b16 %v3554
    %v5373 = vunpack.c.h.b16 %v3554
    %v5374 = vunpack.c.l.b16 %v3555
    %v5375 = vunpack.c.h.b16 %v3555
    %v5376 = vunpack.c.l.b16 %v3556
    %v5377 = vunpack.c.h.b16 %v3556
    %v5378 = vunpack.c.l.b16 %v3557
    %v5379 = vunpack.c.h.b16 %v3557
    %v5380 = vunpack.c.l.b16 %v3558
    %v5381 = vunpack.c.h.b16 %v3558
    %v5382 = vunpack.c.l.b16 %v3559
    %v5383 = vunpack.c.h.b16 %v3559
    %v5384 = vunpack.c.l.b16 %v3560
    %v5385 = vunpack.c.h.b16 %v3560
    %v5386 = vunpack.c.l.b16 %v3561
    %v5387 = vunpack.c.h.b16 %v3561
    %v5388 = vunpack.c.l.b16 %v3562
    %v5389 = vunpack.c.h.b16 %v3562
    %v5390 = vunpack.c.l.b16 %v3563
    %v5391 = vunpack.c.h.b16 %v3563
    %v5392 = vunpack.c.l.b16 %v3564
    %v5393 = vunpack.c.h.b16 %v3564
    %v5394 = vunpack.c.l.b16 %v3565
    %v5395 = vunpack.c.h.b16 %v3565
    %v5396 = vunpack.c.l.b16 %v3566
    %v5397 = vunpack.c.h.b16 %v3566
    %v5398 = vunpack.c.l.b16 %v3567
    %v5399 = vunpack.c.h.b16 %v3567
    %v5400 = vunpack.c.l.b16 %v3568
    %v5401 = vunpack.c.h.b16 %v3568
    %v5402 = vunpack.c.l.b16 %v3569
    %v5403 = vunpack.c.h.b16 %v3569
    %v5404 = vunpack.c.l.b16 %v3570
    %v5405 = vunpack.c.h.b16 %v3570
    %v5406 = vunpack.c.l.b16 %v3571
    %v5407 = vunpack.c.h.b16 %v3571
    %v5408 = vunpack.c.l.b16 %v3572
    %v5409 = vunpack.c.h.b16 %v3572
    %v5410 = vunpack.c.l.b16 %v3573
    %v5411 = vunpack.c.h.b16 %v3573
    %v5412 = vunpack.c.l.b16 %v3574
    %v5413 = vunpack.c.h.b16 %v3574
    %v5414 = vunpack.c.l.b16 %v3575
    %v5415 = vunpack.c.h.b16 %v3575
    %v5416 = vunpack.c.l.b16 %v3576
    %v5417 = vunpack.c.h.b16 %v3576
    %v5418 = vunpack.c.l.b16 %v3577
    %v5419 = vunpack.c.h.b16 %v3577
    %v5420 = vunpack.c.l.b16 %v3578
    %v5421 = vunpack.c.h.b16 %v3578
    %v5422 = vunpack.c.l.b16 %v3579
    %v5423 = vunpack.c.h.b16 %v3579
    %v5424 = vunpack.c.l.b16 %v3580
    %v5425 = vunpack.c.h.b16 %v3580
    %v5426 = vunpack.c.l.b16 %v3581
    %v5427 = vunpack.c.h.b16 %v3581
    %v5428 = vunpack.c.l.b16 %v3582
    %v5429 = vunpack.c.h.b16 %v3582
    %v5430 = vunpack.c.l.b16 %v3583
    %v5431 = vunpack.c.h.b16 %v3583
    %v5432 = vunpack.c.l.b16 %v3584
    %v5433 = vunpack.c.h.b16 %v3584
    %v5434 = vunpack.c.l.b16 %v3585
    %v5435 = vunpack.c.h.b16 %v3585
    %v5436 = vunpack.c.l.b16 %v3586
    %v5437 = vunpack.c.h.b16 %v3586
    %v5438 = vunpack.c.l.b16 %v3587
    %v5439 = vunpack.c.h.b16 %v3587
    %v5440 = vunpack.c.l.b16 %v3588
    %v5441 = vunpack.c.h.b16 %v3588
    %v5442 = vunpack.c.l.b16 %v3589
    %v5443 = vunpack.c.h.b16 %v3589
    %v5444 = vunpack.c.l.b16 %v3590
    %v5445 = vunpack.c.h.b16 %v3590
    %v5446 = vunpack.c.l.b16 %v3591
    %v5447 = vunpack.c.h.b16 %v3591
    %v5448 = vunpack.c.l.b16 %v3592
    %v5449 = vunpack.c.h.b16 %v3592
    %v5450 = vunpack.c.l.b16 %v3593
    %v5451 = vunpack.c.h.b16 %v3593
    %v5452 = vunpack.c.l.b16 %v3594
    %v5453 = vunpack.c.h.b16 %v3594
    %v5454 = vunpack.c.l.b16 %v3595
    %v5455 = vunpack.c.h.b16 %v3595
    %v5456 = vunpack.c.l.b16 %v3596
    %v5457 = vunpack.c.h.b16 %v3596
    %v5458 = vunpack.c.l.b16 %v3597
    %v5459 = vunpack.c.h.b16 %v3597
    %v5460 = vunpack.c.l.b16 %v3598
    %v5461 = vunpack.c.h.b16 %v3598
    %v5462 = vunpack.c.l.b16 %v3599
    %v5463 = vunpack.c.h.b16 %v3599
    %v5464 = vunpack.c.l.b16 %v3600
    %v5465 = vunpack.c.h.b16 %v3600
    %v5466 = vunpack.c.l.b16 %v3601
    %v5467 = vunpack.c.h.b16 %v3601
    %v5468 = vunpack.c.l.b16 %v3602
    %v5469 = vunpack.c.h.b16 %v3602
    %v5470 = vunpack.c.l.b16 %v3603
    %v5471 = vunpack.c.h.b16 %v3603
    %v5472 = vunpack.c.l.b16 %v3604
    %v5473 = vunpack.c.h.b16 %v3604
    %v5474 = vunpack.c.l.b16 %v3605
    %v5475 = vunpack.c.h.b16 %v3605
    %v5476 = vunpack.c.l.b16 %v3606
    %v5477 = vunpack.c.h.b16 %v3606
    %v5478 = vunpack.c.l.b16 %v3607
    %v5479 = vunpack.c.h.b16 %v3607
    %v5480 = vpack.c.b16 %v4346, %v4328
    %v5481 = vpack.c.b16 %v4347, %v4329
    %v5482 = vpack.c.b16 %v4348, %v4330
    %v5483 = vpack.c.b16 %v4349, %v4331
    %v5484 = vpack.c.b16 %v4350, %v4332
    %v5485 = vpack.c.b16 %v4351, %v4333
    %v5486 = vpack.c.b16 %v4352, %v4334
    %v5487 = vpack.c.b16 %v4353, %v4335
    %v5488 = vpack.c.b16 %v4354, %v4336
    %v5489 = vpack.c.b16 %v4355, %v4337
    %v5490 = vpack.c.b16 %v4356, %v4338
    %v5491 = vpack.c.b16 %v4357, %v4339
    %v5492 = vpack.c.b16 %v4358, %v4340
    %v5493 = vpack.c.b16 %v4359, %v4341
    %v5494 = vpack.c.b16 %v4360, %v4342
    %v5495 = vpack.c.b16 %v4361, %v4343
    %v5496 = vpack.c.b16 %v4362, %v4344
    %v5497 = vpack.c.b16 %v4363, %v4345
    %v5498 = vpack.c.b16 %v4382, %v4364
    %v5499 = vpack.c.b16 %v4383, %v4365
    %v5500 = vpack.c.b16 %v4384, %v4366
    %v5501 = vpack.c.b16 %v4385, %v4367
    %v5502 = vpack.c.b16 %v4386, %v4368
    %v5503 = vpack.c.b16 %v4387, %v4369
    %v5504 = vpack.c.b16 %v4388, %v4370
    %v5505 = vpack.c.b16 %v4389, %v4371
    %v5506 = vpack.c.b16 %v4390, %v4372
    %v5507 = vpack.c.b16 %v4391, %v4373
    %v5508 = vpack.c.b16 %v4392, %v4374
    %v5509 = vpack.c.b16 %v4393, %v4375
    %v5510 = vpack.c.b16 %v4394, %v4376
    %v5511 = vpack.c.b16 %v4395, %v4377
    %v5512 = vpack.c.b16 %v4396, %v4378
    %v5513 = vpack.c.b16 %v4397, %v4379
    %v5514 = vpack.c.b16 %v4398, %v4380
    %v5515 = vpack.c.b16 %v4399, %v4381
    %v5516 = vpack.c.b16 %v4418, %v4400
    %v5517 = vpack.c.b16 %v4419, %v4401
    %v5518 = vpack.c.b16 %v4420, %v4402
    %v5519 = vpack.c.b16 %v4421, %v4403
    %v5520 = vpack.c.b16 %v4422, %v4404
    %v5521 = vpack.c.b16 %v4423, %v4405
    %v5522 = vpack.c.b16 %v4424, %v4406
    %v5523 = vpack.c.b16 %v4425, %v4407
    %v5524 = vpack.c.b16 %v4426, %v4408
    %v5525 = vpack.c.b16 %v4427, %v4409
    %v5526 = vpack.c.b16 %v4428, %v4410
    %v5527 = vpack.c.b16 %v4429, %v4411
    %v5528 = vpack.c.b16 %v4430, %v4412
    %v5529 = vpack.c.b16 %v4431, %v4413
    %v5530 = vpack.c.b16 %v4432, %v4414
    %v5531 = vpack.c.b16 %v4433, %v4415
    %v5532 = vpack.c.b16 %v4434, %v4416
    %v5533 = vpack.c.b16 %v4435, %v4417
    %v5534 = vpack.c.b16 %v4454, %v4436
    %v5535 = vpack.c.b16 %v4455, %v4437
    %v5536 = vpack.c.b16 %v4456, %v4438
    %v5537 = vpack.c.b16 %v4457, %v4439
    %v5538 = vpack.c.b16 %v4458, %v4440
    %v5539 = vpack.c.b16 %v4459, %v4441
    %v5540 = vpack.c.b16 %v4460, %v4442
    %v5541 = vpack.c.b16 %v4461, %v4443
    %v5542 = vpack.c.b16 %v4462, %v4444
    %v5543 = vpack.c.b16 %v4463, %v4445
    %v5544 = vpack.c.b16 %v4464, %v4446
    %v5545 = vpack.c.b16 %v4465, %v4447
    %v5546 = vpack.c.b16 %v4466, %v4448
    %v5547 = vpack.c.b16 %v4467, %v4449
    %v5548 = vpack.c.b16 %v4468, %v4450
    %v5549 = vpack.c.b16 %v4469, %v4451
    %v5550 = vpack.c.b16 %v4470, %v4452
    %v5551 = vpack.c.b16 %v4471, %v4453
    %v5552 = vpack.c.b16 %v4490, %v4472
    %v5553 = vpack.c.b16 %v4491, %v4473
    %v5554 = vpack.c.b16 %v4492, %v4474
    %v5555 = vpack.c.b16 %v4493, %v4475
    %v5556 = vpack.c.b16 %v4494, %v4476
    %v5557 = vpack.c.b16 %v4495, %v4477
    %v5558 = vpack.c.b16 %v4496, %v4478
    %v5559 = vpack.c.b16 %v4497, %v4479
    %v5560 = vpack.c.b16 %v4498, %v4480
    %v5561 = vpack.c.b16 %v4499, %v4481
    %v5562 = vpack.c.b16 %v4500, %v4482
    %v5563 = vpack.c.b16 %v4501, %v4483
    %v5564 = vpack.c.b16 %v4502, %v4484
    %v5565 = vpack.c.b16 %v4503, %v4485
    %v5566 = vpack.c.b16 %v4504, %v4486
    %v5567 = vpack.c.b16 %v4505, %v4487
    %v5568 = vpack.c.b16 %v4506, %v4488
    %v5569 = vpack.c.b16 %v4507, %v4489
    %v5570 = vpack.c.b16 %v4526, %v4508
    %v5571 = vpack.c.b16 %v4527, %v4509
    %v5572 = vpack.c.b16 %v4528, %v4510
    %v5573 = vpack.c.b16 %v4529, %v4511
    %v5574 = vpack.c.b16 %v4530, %v4512
    %v5575 = vpack.c.b16 %v4531, %v4513
    %v5576 = vpack.c.b16 %v4532, %v4514
    %v5577 = vpack.c.b16 %v4533, %v4515
    %v5578 = vpack.c.b16 %v4534, %v4516
    %v5579 = vpack.c.b16 %v4535, %v4517
    %v5580 = vpack.c.b16 %v4536, %v4518
    %v5581 = vpack.c.b16 %v4537, %v4519
    %v5582 = vpack.c.b16 %v4538, %v4520
    %v5583 = vpack.c.b16 %v4539, %v4521
    %v5584 = vpack.c.b16 %v4540, %v4522
    %v5585 = vpack.c.b16 %v4541, %v4523
    %v5586 = vpack.c.b16 %v4542, %v4524
    %v5587 = vpack.c.b16 %v4543, %v4525
    %v5588 = vpack.c.b16 %v4562, %v4544
    %v5589 = vpack.c.b16 %v4563, %v4545
    %v5590 = vpack.c.b16 %v4564, %v4546
    %v5591 = vpack.c.b16 %v4565, %v4547
    %v5592 = vpack.c.b16 %v4566, %v4548
    %v5593 = vpack.c.b16 %v4567, %v4549
    %v5594 = vpack.c.b16 %v4568, %v4550
    %v5595 = vpack.c.b16 %v4569, %v4551
    %v5596 = vpack.c.b16 %v4570, %v4552
    %v5597 = vpack.c.b16 %v4571, %v4553
    %v5598 = vpack.c.b16 %v4572, %v4554
    %v5599 = vpack.c.b16 %v4573, %v4555
    %v5600 = vpack.c.b16 %v4574, %v4556
    %v5601 = vpack.c.b16 %v4575, %v4557
    %v5602 = vpack.c.b16 %v4576, %v4558
    %v5603 = vpack.c.b16 %v4577, %v4559
    %v5604 = vpack.c.b16 %v4578, %v4560
    %v5605 = vpack.c.b16 %v4579, %v4561
    %v5606 = vpack.c.b16 %v4598, %v4580
    %v5607 = vpack.c.b16 %v4599, %v4581
    %v5608 = vpack.c.b16 %v4600, %v4582
    %v5609 = vpack.c.b16 %v4601, %v4583
    %v5610 = vpack.c.b16 %v4602, %v4584
    %v5611 = vpack.c.b16 %v4603, %v4585
    %v5612 = vpack.c.b16 %v4604, %v4586
    %v5613 = vpack.c.b16 %v4605, %v4587
    %v5614 = vpack.c.b16 %v4606, %v4588
    %v5615 = vpack.c.b16 %v4607, %v4589
    %v5616 = vpack.c.b16 %v4608, %v4590
    %v5617 = vpack.c.b16 %v4609, %v4591
    %v5618 = vpack.c.b16 %v4610, %v4592
    %v5619 = vpack.c.b16 %v4611, %v4593
    %v5620 = vpack.c.b16 %v4612, %v4594
    %v5621 = vpack.c.b16 %v4613, %v4595
    %v5622 = vpack.c.b16 %v4614, %v4596
    %v5623 = vpack.c.b16 %v4615, %v4597
    %v5624 = vpack.c.b16 %v4634, %v4616
    %v5625 = vpack.c.b16 %v4635, %v4617
    %v5626 = vpack.c.b16 %v4636, %v4618
    %v5627 = vpack.c.b16 %v4637, %v4619
    %v5628 = vpack.c.b16 %v4638, %v4620
    %v5629 = vpack.c.b16 %v4639, %v4621
    %v5630 = vpack.c.b16 %v4640, %v4622
    %v5631 = vpack.c.b16 %v4641, %v4623
    %v5632 = vpack.c.b16 %v4642, %v4624
    %v5633 = vpack.c.b16 %v4643, %v4625
    %v5634 = vpack.c.b16 %v4644, %v4626
    %v5635 = vpack.c.b16 %v4645, %v4627
    %v5636 = vpack.c.b16 %v4646, %v4628
    %v5637 = vpack.c.b16 %v4647, %v4629
    %v5638 = vpack.c.b16 %v4648, %v4630
    %v5639 = vpack.c.b16 %v4649, %v4631
    %v5640 = vpack.c.b16 %v4650, %v4632
    %v5641 = vpack.c.b16 %v4651, %v4633
    %v5642 = vpack.c.b16 %v4670, %v4652
    %v5643 = vpack.c.b16 %v4671, %v4653
    %v5644 = vpack.c.b16 %v4672, %v4654
    %v5645 = vpack.c.b16 %v4673, %v4655
    %v5646 = vpack.c.b16 %v4674, %v4656
    %v5647 = vpack.c.b16 %v4675, %v4657
    %v5648 = vpack.c.b16 %v4676, %v4658
    %v5649 = vpack.c.b16 %v4677, %v4659
    %v5650 = vpack.c.b16 %v4678, %v4660
    %v5651 = vpack.c.b16 %v4679, %v4661
    %v5652 = vpack.c.b16 %v4680, %v4662
    %v5653 = vpack.c.b16 %v4681, %v4663
    %v5654 = vpack.c.b16 %v4682, %v4664
    %v5655 = vpack.c.b16 %v4683, %v4665
    %v5656 = vpack.c.b16 %v4684, %v4666
    %v5657 = vpack.c.b16 %v4685, %v4667
    %v5658 = vpack.c.b16 %v4686, %v4668
    %v5659 = vpack.c.b16 %v4687, %v4669
    %v5660 = vpack.c.b16 %v4706, %v4688
    %v5661 = vpack.c.b16 %v4707, %v4689
    %v5662 = vpack.c.b16 %v4708, %v4690
    %v5663 = vpack.c.b16 %v4709, %v4691
    %v5664 = vpack.c.b16 %v4710, %v4692
    %v5665 = vpack.c.b16 %v4711, %v4693
    %v5666 = vpack.c.b16 %v4712, %v4694
    %v5667 = vpack.c.b16 %v4713, %v4695
    %v5668 = vpack.c.b16 %v4714, %v4696
    %v5669 = vpack.c.b16 %v4715, %v4697
    %v5670 = vpack.c.b16 %v4716, %v4698
    %v5671 = vpack.c.b16 %v4717, %v4699
    %v5672 = vpack.c.b16 %v4718, %v4700
    %v5673 = vpack.c.b16 %v4719, %v4701
    %v5674 = vpack.c.b16 %v4720, %v4702
    %v5675 = vpack.c.b16 %v4721, %v4703
    %v5676 = vpack.c.b16 %v4722, %v4704
    %v5677 = vpack.c.b16 %v4723, %v4705
    %v5678 = vpack.c.b16 %v4742, %v4724
    %v5679 = vpack.c.b16 %v4743, %v4725
    %v5680 = vpack.c.b16 %v4744, %v4726
    %v5681 = vpack.c.b16 %v4745, %v4727
    %v5682 = vpack.c.b16 %v4746, %v4728
    %v5683 = vpack.c.b16 %v4747, %v4729
    %v5684 = vpack.c.b16 %v4748, %v4730
    %v5685 = vpack.c.b16 %v4749, %v4731
    %v5686 = vpack.c.b16 %v4750, %v4732
    %v5687 = vpack.c.b16 %v4751, %v4733
    %v5688 = vpack.c.b16 %v4752, %v4734
    %v5689 = vpack.c.b16 %v4753, %v4735
    %v5690 = vpack.c.b16 %v4754, %v4736
    %v5691 = vpack.c.b16 %v4755, %v4737
    %v5692 = vpack.c.b16 %v4756, %v4738
    %v5693 = vpack.c.b16 %v4757, %v4739
    %v5694 = vpack.c.b16 %v4758, %v4740
    %v5695 = vpack.c.b16 %v4759, %v4741
    %v5696 = vpack.c.b16 %v4778, %v4760
    %v5697 = vpack.c.b16 %v4779, %v4761
    %v5698 = vpack.c.b16 %v4780, %v4762
    %v5699 = vpack.c.b16 %v4781, %v4763
    %v5700 = vpack.c.b16 %v4782, %v4764
    %v5701 = vpack.c.b16 %v4783, %v4765
    %v5702 = vpack.c.b16 %v4784, %v4766
    %v5703 = vpack.c.b16 %v4785, %v4767
    %v5704 = vpack.c.b16 %v4786, %v4768
    %v5705 = vpack.c.b16 %v4787, %v4769
    %v5706 = vpack.c.b16 %v4788, %v4770
    %v5707 = vpack.c.b16 %v4789, %v4771
    %v5708 = vpack.c.b16 %v4790, %v4772
    %v5709 = vpack.c.b16 %v4791, %v4773
    %v5710 = vpack.c.b16 %v4792, %v4774
    %v5711 = vpack.c.b16 %v4793, %v4775
    %v5712 = vpack.c.b16 %v4794, %v4776
    %v5713 = vpack.c.b16 %v4795, %v4777
    %v5714 = vpack.c.b16 %v4814, %v4796
    %v5715 = vpack.c.b16 %v4815, %v4797
    %v5716 = vpack.c.b16 %v4816, %v4798
    %v5717 = vpack.c.b16 %v4817, %v4799
    %v5718 = vpack.c.b16 %v4818, %v4800
    %v5719 = vpack.c.b16 %v4819, %v4801
    %v5720 = vpack.c.b16 %v4820, %v4802
    %v5721 = vpack.c.b16 %v4821, %v4803
    %v5722 = vpack.c.b16 %v4822, %v4804
    %v5723 = vpack.c.b16 %v4823, %v4805
    %v5724 = vpack.c.b16 %v4824, %v4806
    %v5725 = vpack.c.b16 %v4825, %v4807
    %v5726 = vpack.c.b16 %v4826, %v4808
    %v5727 = vpack.c.b16 %v4827, %v4809
    %v5728 = vpack.c.b16 %v4828, %v4810
    %v5729 = vpack.c.b16 %v4829, %v4811
    %v5730 = vpack.c.b16 %v4830, %v4812
    %v5731 = vpack.c.b16 %v4831, %v4813
    %v5732 = vpack.c.b16 %v4850, %v4832
    %v5733 = vpack.c.b16 %v4851, %v4833
    %v5734 = vpack.c.b16 %v4852, %v4834
    %v5735 = vpack.c.b16 %v4853, %v4835
    %v5736 = vpack.c.b16 %v4854, %v4836
    %v5737 = vpack.c.b16 %v4855, %v4837
    %v5738 = vpack.c.b16 %v4856, %v4838
    %v5739 = vpack.c.b16 %v4857, %v4839
    %v5740 = vpack.c.b16 %v4858, %v4840
    %v5741 = vpack.c.b16 %v4859, %v4841
    %v5742 = vpack.c.b16 %v4860, %v4842
    %v5743 = vpack.c.b16 %v4861, %v4843
    %v5744 = vpack.c.b16 %v4862, %v4844
    %v5745 = vpack.c.b16 %v4863, %v4845
    %v5746 = vpack.c.b16 %v4864, %v4846
    %v5747 = vpack.c.b16 %v4865, %v4847
    %v5748 = vpack.c.b16 %v4866, %v4848
    %v5749 = vpack.c.b16 %v4867, %v4849
    %v5750 = vpack.c.b16 %v4886, %v4868
    %v5751 = vpack.c.b16 %v4887, %v4869
    %v5752 = vpack.c.b16 %v4888, %v4870
    %v5753 = vpack.c.b16 %v4889, %v4871
    %v5754 = vpack.c.b16 %v4890, %v4872
    %v5755 = vpack.c.b16 %v4891, %v4873
    %v5756 = vpack.c.b16 %v4892, %v4874
    %v5757 = vpack.c.b16 %v4893, %v4875
    %v5758 = vpack.c.b16 %v4894, %v4876
    %v5759 = vpack.c.b16 %v4895, %v4877
    %v5760 = vpack.c.b16 %v4896, %v4878
    %v5761 = vpack.c.b16 %v4897, %v4879
    %v5762 = vpack.c.b16 %v4898, %v4880
    %v5763 = vpack.c.b16 %v4899, %v4881
    %v5764 = vpack.c.b16 %v4900, %v4882
    %v5765 = vpack.c.b16 %v4901, %v4883
    %v5766 = vpack.c.b16 %v4902, %v4884
    %v5767 = vpack.c.b16 %v4903, %v4885
    %v5768 = vpack.c.b16 %v4922, %v4904
    %v5769 = vpack.c.b16 %v4923, %v4905
    %v5770 = vpack.c.b16 %v4924, %v4906
    %v5771 = vpack.c.b16 %v4925, %v4907
    %v5772 = vpack.c.b16 %v4926, %v4908
    %v5773 = vpack.c.b16 %v4927, %v4909
    %v5774 = vpack.c.b16 %v4928, %v4910
    %v5775 = vpack.c.b16 %v4929, %v4911
    %v5776 = vpack.c.b16 %v4930, %v4912
    %v5777 = vpack.c.b16 %v4931, %v4913
    %v5778 = vpack.c.b16 %v4932, %v4914
    %v5779 = vpack.c.b16 %v4933, %v4915
    %v5780 = vpack.c.b16 %v4934, %v4916
    %v5781 = vpack.c.b16 %v4935, %v4917
    %v5782 = vpack.c.b16 %v4936, %v4918
    %v5783 = vpack.c.b16 %v4937, %v4919
    %v5784 = vpack.c.b16 %v4938, %v4920
    %v5785 = vpack.c.b16 %v4939, %v4921
    %v5786 = vpack.c.b16 %v4958, %v4940
    %v5787 = vpack.c.b16 %v4959, %v4941
    %v5788 = vpack.c.b16 %v4960, %v4942
    %v5789 = vpack.c.b16 %v4961, %v4943
    %v5790 = vpack.c.b16 %v4962, %v4944
    %v5791 = vpack.c.b16 %v4963, %v4945
    %v5792 = vpack.c.b16 %v4964, %v4946
    %v5793 = vpack.c.b16 %v4965, %v4947
    %v5794 = vpack.c.b16 %v4966, %v4948
    %v5795 = vpack.c.b16 %v4967, %v4949
    %v5796 = vpack.c.b16 %v4968, %v4950
    %v5797 = vpack.c.b16 %v4969, %v4951
    %v5798 = vpack.c.b16 %v4970, %v4952
    %v5799 = vpack.c.b16 %v4971, %v4953
    %v5800 = vpack.c.b16 %v4972, %v4954
    %v5801 = vpack.c.b16 %v4973, %v4955
    %v5802 = vpack.c.b16 %v4974, %v4956
    %v5803 = vpack.c.b16 %v4975, %v4957
    %v5804 = vpack.c.b16 %v4994, %v4976
    %v5805 = vpack.c.b16 %v4995, %v4977
    %v5806 = vpack.c.b16 %v4996, %v4978
    %v5807 = vpack.c.b16 %v4997, %v4979
    %v5808 = vpack.c.b16 %v4998, %v4980
    %v5809 = vpack.c.b16 %v4999, %v4981
    %v5810 = vpack.c.b16 %v5000, %v4982
    %v5811 = vpack.c.b16 %v5001, %v4983
    %v5812 = vpack.c.b16 %v5002, %v4984
    %v5813 = vpack.c.b16 %v5003, %v4985
    %v5814 = vpack.c.b16 %v5004, %v4986
    %v5815 = vpack.c.b16 %v5005, %v4987
    %v5816 = vpack.c.b16 %v5006, %v4988
    %v5817 = vpack.c.b16 %v5007, %v4989
    %v5818 = vpack.c.b16 %v5008, %v4990
    %v5819 = vpack.c.b16 %v5009, %v4991
    %v5820 = vpack.c.b16 %v5010, %v4992
    %v5821 = vpack.c.b16 %v5011, %v4993
    %v5822 = vpack.c.b16 %v5030, %v5012
    %v5823 = vpack.c.b16 %v5031, %v5013
    %v5824 = vpack.c.b16 %v5032, %v5014
    %v5825 = vpack.c.b16 %v5033, %v5015
    %v5826 = vpack.c.b16 %v5034, %v5016
    %v5827 = vpack.c.b16 %v5035, %v5017
    %v5828 = vpack.c.b16 %v5036, %v5018
    %v5829 = vpack.c.b16 %v5037, %v5019
    %v5830 = vpack.c.b16 %v5038, %v5020
    %v5831 = vpack.c.b16 %v5039, %v5021
    %v5832 = vpack.c.b16 %v5040, %v5022
    %v5833 = vpack.c.b16 %v5041, %v5023
    %v5834 = vpack.c.b16 %v5042, %v5024
    %v5835 = vpack.c.b16 %v5043, %v5025
    %v5836 = vpack.c.b16 %v5044, %v5026
    %v5837 = vpack.c.b16 %v5045, %v5027
    %v5838 = vpack.c.b16 %v5046, %v5028
    %v5839 = vpack.c.b16 %v5047, %v5029
    %v5840 = vpack.c.b16 %v5066, %v5048
    %v5841 = vpack.c.b16 %v5067, %v5049
    %v5842 = vpack.c.b16 %v5068, %v5050
    %v5843 = vpack.c.b16 %v5069, %v5051
    %v5844 = vpack.c.b16 %v5070, %v5052
    %v5845 = vpack.c.b16 %v5071, %v5053
    %v5846 = vpack.c.b16 %v5072, %v5054
    %v5847 = vpack.c.b16 %v5073, %v5055
    %v5848 = vpack.c.b16 %v5074, %v5056
    %v5849 = vpack.c.b16 %v5075, %v5057
    %v5850 = vpack.c.b16 %v5076, %v5058
    %v5851 = vpack.c.b16 %v5077, %v5059
    %v5852 = vpack.c.b16 %v5078, %v5060
    %v5853 = vpack.c.b16 %v5079, %v5061
    %v5854 = vpack.c.b16 %v5080, %v5062
    %v5855 = vpack.c.b16 %v5081, %v5063
    %v5856 = vpack.c.b16 %v5082, %v5064
    %v5857 = vpack.c.b16 %v5083, %v5065
    %v5858 = vpack.c.b16 %v5102, %v5084
    %v5859 = vpack.c.b16 %v5103, %v5085
    %v5860 = vpack.c.b16 %v5104, %v5086
    %v5861 = vpack.c.b16 %v5105, %v5087
    %v5862 = vpack.c.b16 %v5106, %v5088
    %v5863 = vpack.c.b16 %v5107, %v5089
    %v5864 = vpack.c.b16 %v5108, %v5090
    %v5865 = vpack.c.b16 %v5109, %v5091
    %v5866 = vpack.c.b16 %v5110, %v5092
    %v5867 = vpack.c.b16 %v5111, %v5093
    %v5868 = vpack.c.b16 %v5112, %v5094
    %v5869 = vpack.c.b16 %v5113, %v5095
    %v5870 = vpack.c.b16 %v5114, %v5096
    %v5871 = vpack.c.b16 %v5115, %v5097
    %v5872 = vpack.c.b16 %v5116, %v5098
    %v5873 = vpack.c.b16 %v5117, %v5099
    %v5874 = vpack.c.b16 %v5118, %v5100
    %v5875 = vpack.c.b16 %v5119, %v5101
    %v5876 = vpack.c.b16 %v5138, %v5120
    %v5877 = vpack.c.b16 %v5139, %v5121
    %v5878 = vpack.c.b16 %v5140, %v5122
    %v5879 = vpack.c.b16 %v5141, %v5123
    %v5880 = vpack.c.b16 %v5142, %v5124
    %v5881 = vpack.c.b16 %v5143, %v5125
    %v5882 = vpack.c.b16 %v5144, %v5126
    %v5883 = vpack.c.b16 %v5145, %v5127
    %v5884 = vpack.c.b16 %v5146, %v5128
    %v5885 = vpack.c.b16 %v5147, %v5129
    %v5886 = vpack.c.b16 %v5148, %v5130
    %v5887 = vpack.c.b16 %v5149, %v5131
    %v5888 = vpack.c.b16 %v5150, %v5132
    %v5889 = vpack.c.b16 %v5151, %v5133
    %v5890 = vpack.c.b16 %v5152, %v5134
    %v5891 = vpack.c.b16 %v5153, %v5135
    %v5892 = vpack.c.b16 %v5154, %v5136
    %v5893 = vpack.c.b16 %v5155, %v5137
    %v5894 = vpack.c.b16 %v5174, %v5156
    %v5895 = vpack.c.b16 %v5175, %v5157
    %v5896 = vpack.c.b16 %v5176, %v5158
    %v5897 = vpack.c.b16 %v5177, %v5159
    %v5898 = vpack.c.b16 %v5178, %v5160
    %v5899 = vpack.c.b16 %v5179, %v5161
    %v5900 = vpack.c.b16 %v5180, %v5162
    %v5901 = vpack.c.b16 %v5181, %v5163
    %v5902 = vpack.c.b16 %v5182, %v5164
    %v5903 = vpack.c.b16 %v5183, %v5165
    %v5904 = vpack.c.b16 %v5184, %v5166
    %v5905 = vpack.c.b16 %v5185, %v5167
    %v5906 = vpack.c.b16 %v5186, %v5168
    %v5907 = vpack.c.b16 %v5187, %v5169
    %v5908 = vpack.c.b16 %v5188, %v5170
    %v5909 = vpack.c.b16 %v5189, %v5171
    %v5910 = vpack.c.b16 %v5190, %v5172
    %v5911 = vpack.c.b16 %v5191, %v5173
    %v5912 = vpack.c.b16 %v5210, %v5192
    %v5913 = vpack.c.b16 %v5211, %v5193
    %v5914 = vpack.c.b16 %v5212, %v5194
    %v5915 = vpack.c.b16 %v5213, %v5195
    %v5916 = vpack.c.b16 %v5214, %v5196
    %v5917 = vpack.c.b16 %v5215, %v5197
    %v5918 = vpack.c.b16 %v5216, %v5198
    %v5919 = vpack.c.b16 %v5217, %v5199
    %v5920 = vpack.c.b16 %v5218, %v5200
    %v5921 = vpack.c.b16 %v5219, %v5201
    %v5922 = vpack.c.b16 %v5220, %v5202
    %v5923 = vpack.c.b16 %v5221, %v5203
    %v5924 = vpack.c.b16 %v5222, %v5204
    %v5925 = vpack.c.b16 %v5223, %v5205
    %v5926 = vpack.c.b16 %v5224, %v5206
    %v5927 = vpack.c.b16 %v5225, %v5207
    %v5928 = vpack.c.b16 %v5226, %v5208
    %v5929 = vpack.c.b16 %v5227, %v5209
    %v5930 = vpack.c.b16 %v5246, %v5228
    %v5931 = vpack.c.b16 %v5247, %v5229
    %v5932 = vpack.c.b16 %v5248, %v5230
    %v5933 = vpack.c.b16 %v5249, %v5231
    %v5934 = vpack.c.b16 %v5250, %v5232
    %v5935 = vpack.c.b16 %v5251, %v5233
    %v5936 = vpack.c.b16 %v5252, %v5234
    %v5937 = vpack.c.b16 %v5253, %v5235
    %v5938 = vpack.c.b16 %v5254, %v5236
    %v5939 = vpack.c.b16 %v5255, %v5237
    %v5940 = vpack.c.b16 %v5256, %v5238
    %v5941 = vpack.c.b16 %v5257, %v5239
    %v5942 = vpack.c.b16 %v5258, %v5240
    %v5943 = vpack.c.b16 %v5259, %v5241
    %v5944 = vpack.c.b16 %v5260, %v5242
    %v5945 = vpack.c.b16 %v5261, %v5243
    %v5946 = vpack.c.b16 %v5262, %v5244
    %v5947 = vpack.c.b16 %v5263, %v5245
    %v5948 = vpack.c.b16 %v5282, %v5264
    %v5949 = vpack.c.b16 %v5283, %v5265
    %v5950 = vpack.c.b16 %v5284, %v5266
    %v5951 = vpack.c.b16 %v5285, %v5267
    %v5952 = vpack.c.b16 %v5286, %v5268
    %v5953 = vpack.c.b16 %v5287, %v5269
    %v5954 = vpack.c.b16 %v5288, %v5270
    %v5955 = vpack.c.b16 %v5289, %v5271
    %v5956 = vpack.c.b16 %v5290, %v5272
    %v5957 = vpack.c.b16 %v5291, %v5273
    %v5958 = vpack.c.b16 %v5292, %v5274
    %v5959 = vpack.c.b16 %v5293, %v5275
    %v5960 = vpack.c.b16 %v5294, %v5276
    %v5961 = vpack.c.b16 %v5295, %v5277
    %v5962 = vpack.c.b16 %v5296, %v5278
    %v5963 = vpack.c.b16 %v5297, %v5279
    %v5964 = vpack.c.b16 %v5298, %v5280
    %v5965 = vpack.c.b16 %v5299, %v5281
    %v5966 = vpack.c.b16 %v5318, %v5300
    %v5967 = vpack.c.b16 %v5319, %v5301
    %v5968 = vpack.c.b16 %v5320, %v5302
    %v5969 = vpack.c.b16 %v5321, %v5303
    %v5970 = vpack.c.b16 %v5322, %v5304
    %v5971 = vpack.c.b16 %v5323, %v5305
    %v5972 = vpack.c.b16 %v5324, %v5306
    %v5973 = vpack.c.b16 %v5325, %v5307
    %v5974 = vpack.c.b16 %v5326, %v5308
    %v5975 = vpack.c.b16 %v5327, %v5309
    %v5976 = vpack.c.b16 %v5328, %v5310
    %v5977 = vpack.c.b16 %v5329, %v5311
    %v5978 = vpack.c.b16 %v5330, %v5312
    %v5979 = vpack.c.b16 %v5331, %v5313
    %v5980 = vpack.c.b16 %v5332, %v5314
    %v5981 = vpack.c.b16 %v5333, %v5315
    %v5982 = vpack.c.b16 %v5334, %v5316
    %v5983 = vpack.c.b16 %v5335, %v5317
    %v5984 = vpack.c.b16 %v5354, %v5336
    %v5985 = vpack.c.b16 %v5355, %v5337
    %v5986 = vpack.c.b16 %v5356, %v5338
    %v5987 = vpack.c.b16 %v5357, %v5339
    %v5988 = vpack.c.b16 %v5358, %v5340
    %v5989 = vpack.c.b16 %v5359, %v5341
    %v5990 = vpack.c.b16 %v5360, %v5342
    %v5991 = vpack.c.b16 %v5361, %v5343
    %v5992 = vpack.c.b16 %v5362, %v5344
    %v5993 = vpack.c.b16 %v5363, %v5345
    %v5994 = vpack.c.b16 %v5364, %v5346
    %v5995 = vpack.c.b16 %v5365, %v5347
    %v5996 = vpack.c.b16 %v5366, %v5348
    %v5997 = vpack.c.b16 %v5367, %v5349
    %v5998 = vpack.c.b16 %v5368, %v5350
    %v5999 = vpack.c.b16 %v5369, %v5351
    %v6000 = vpack.c.b16 %v5370, %v5352
    %v6001 = vpack.c.b16 %v5371, %v5353
    %v6002 = vpack.c.b16 %v5390, %v5372
    %v6003 = vpack.c.b16 %v5391, %v5373
    %v6004 = vpack.c.b16 %v5392, %v5374
    %v6005 = vpack.c.b16 %v5393, %v5375
    %v6006 = vpack.c.b16 %v5394, %v5376
    %v6007 = vpack.c.b16 %v5395, %v5377
    %v6008 = vpack.c.b16 %v5396, %v5378
    %v6009 = vpack.c.b16 %v5397, %v5379
    %v6010 = vpack.c.b16 %v5398, %v5380
    %v6011 = vpack.c.b16 %v5399, %v5381
    %v6012 = vpack.c.b16 %v5400, %v5382
    %v6013 = vpack.c.b16 %v5401, %v5383
    %v6014 = vpack.c.b16 %v5402, %v5384
    %v6015 = vpack.c.b16 %v5403, %v5385
    %v6016 = vpack.c.b16 %v5404, %v5386
    %v6017 = vpack.c.b16 %v5405, %v5387
    %v6018 = vpack.c.b16 %v5406, %v5388
    %v6019 = vpack.c.b16 %v5407, %v5389
    %v6020 = vpack.c.b16 %v5426, %v5408
    %v6021 = vpack.c.b16 %v5427, %v5409
    %v6022 = vpack.c.b16 %v5428, %v5410
    %v6023 = vpack.c.b16 %v5429, %v5411
    %v6024 = vpack.c.b16 %v5430, %v5412
    %v6025 = vpack.c.b16 %v5431, %v5413
    %v6026 = vpack.c.b16 %v5432, %v5414
    %v6027 = vpack.c.b16 %v5433, %v5415
    %v6028 = vpack.c.b16 %v5434, %v5416
    %v6029 = vpack.c.b16 %v5435, %v5417
    %v6030 = vpack.c.b16 %v5436, %v5418
    %v6031 = vpack.c.b16 %v5437, %v5419
    %v6032 = vpack.c.b16 %v5438, %v5420
    %v6033 = vpack.c.b16 %v5439, %v5421
    %v6034 = vpack.c.b16 %v5440, %v5422
    %v6035 = vpack.c.b16 %v5441, %v5423
    %v6036 = vpack.c.b16 %v5442, %v5424
    %v6037 = vpack.c.b16 %v5443, %v5425
    %v6038 = vpack.c.b16 %v5462, %v5444
    %v6039 = vpack.c.b16 %v5463, %v5445
    %v6040 = vpack.c.b16 %v5464, %v5446
    %v6041 = vpack.c.b16 %v5465, %v5447
    %v6042 = vpack.c.b16 %v5466, %v5448
    %v6043 = vpack.c.b16 %v5467, %v5449
    %v6044 = vpack.c.b16 %v5468, %v5450
    %v6045 = vpack.c.b16 %v5469, %v5451
    %v6046 = vpack.c.b16 %v5470, %v5452
    %v6047 = vpack.c.b16 %v5471, %v5453
    %v6048 = vpack.c.b16 %v5472, %v5454
    %v6049 = vpack.c.b16 %v5473, %v5455
    %v6050 = vpack.c.b16 %v5474, %v5456
    %v6051 = vpack.c.b16 %v5475, %v5457
    %v6052 = vpack.c.b16 %v5476, %v5458
    %v6053 = vpack.c.b16 %v5477, %v5459
    %v6054 = vpack.c.b16 %v5478, %v5460
    %v6055 = vpack.c.b16 %v5479, %v5461
    %6632 = vmatprep.subr.bf16.mxu0 0
    %6633 = vmatpush1.bf16.msra.mxu0 %v3608
    %6634 = vmatprep.subr.bf16.mxu0 0
    %6635 = vmatpush1.bf16.msra.mxu0 %v3609
    %6636 = vmatprep.subr.bf16.mxu0 0
    %6637 = vmatpush1.bf16.msra.mxu0 %v3610
    %6638 = vmatprep.subr.bf16.mxu0 0
    %6639 = vmatpush1.bf16.msra.mxu0 %v3611
    %6640 = vmatprep.subr.bf16.mxu0 0
    %6641 = vmatpush1.bf16.msra.mxu0 %v3612
    %6642 = vmatprep.subr.bf16.mxu0 0
    %6643 = vmatpush1.bf16.msra.mxu0 %v3613
    %6644 = vmatprep.subr.bf16.mxu0 0
    %6645 = vmatpush1.bf16.msra.mxu0 %v3614
    %6646 = vmatprep.subr.bf16.mxu0 0
    %6647 = vmatpush1.bf16.msra.mxu0 %v3615
    %6648 = vmatprep.subr.bf16.mxu0 0
    %6649 = vmatpush1.bf16.msra.mxu0 %v3616
    %6650 = vmatprep.subr.bf16.mxu0 0
    %6651 = vmatpush1.bf16.msra.mxu0 %v3617
    %6652 = vmatprep.subr.bf16.mxu0 0
    %6653 = vmatpush1.bf16.msra.mxu0 %v3618
    %6654 = vmatprep.subr.bf16.mxu0 0
    %6655 = vmatpush1.bf16.msra.mxu0 %v3619
    %6656 = vmatprep.subr.bf16.mxu0 0
    %6657 = vmatpush1.bf16.msra.mxu0 %v3620
    %6658 = vmatprep.subr.bf16.mxu0 0
    %6659 = vmatpush1.bf16.msra.mxu0 %v3621
    %6660 = vmatprep.subr.bf16.mxu0 0
    %6661 = vmatpush1.bf16.msra.mxu0 %v3622
    %6662 = vmatprep.subr.bf16.mxu0 0
    %6663 = vmatpush1.bf16.msra.mxu0 %v3623
    %6664 = vmatprep.mubr.bf16.mxu0 %v5481
    %6665 = vmatmul.mubr.bf16.gmra.mrb[0].mxu0 %v5480
    %v6666 = vpop.f32.mrb[0].mxu0
    %v6667 = vadd.f32 0.0, %v6666
    %v6668 = vpop.f32.mrb[0].mxu0
    %v6669 = vpop.f32.mrb[0].mxu0
    %v6670 = vadd.f32 0.0, %v6669
    %v6671 = vpop.f32.mrb[0].mxu0
    %6672 = vmatprep.mubr.bf16.mxu0 %v5499
    %6673 = vmatmul.mubr.bf16.gmra.mrb[0].mxu0 %v5498
    %v6674 = vpop.f32.mrb[0].mxu0
    %v6675 = vadd.f32 0.0, %v6674
    %v6676 = vpop.f32.mrb[0].mxu0
    %v6677 = vpop.f32.mrb[0].mxu0
    %v6678 = vadd.f32 0.0, %v6677
    %v6679 = vpop.f32.mrb[0].mxu0
    %6680 = vmatprep.mubr.bf16.mxu0 %v5517
    %6681 = vmatmul.mubr.bf16.gmra.mrb[0].mxu0 %v5516
    %v6682 = vpop.f32.mrb[0].mxu0
    %v6683 = vadd.f32 0.0, %v6682
    %v6684 = vpop.f32.mrb[0].mxu0
    %v6685 = vpop.f32.mrb[0].mxu0
    %v6686 = vadd.f32 0.0, %v6685
    %v6687 = vpop.f32.mrb[0].mxu0
    %6688 = vmatprep.mubr.bf16.mxu0 %v5535
    %6689 = vmatmul.mubr.bf16.gmra.mrb[0].mxu0 %v5534
    %v6690 = vpop.f32.mrb[0].mxu0
    %v6691 = vadd.f32 0.0, %v6690
    %v6692 = vpop.f32.mrb[0].mxu0
    %v6693 = vpop.f32.mrb[0].mxu0
    %v6694 = vadd.f32 0.0, %v6693
    %v6695 = vpop.f32.mrb[0].mxu0
    %6696 = vmatprep.mubr.bf16.mxu0 %v5553
    %6697 = vmatmul.mubr.bf16.gmra.mrb[0].mxu0 %v5552
    %v6698 = vpop.f32.mrb[0].mxu0
    %v6699 = vadd.f32 0.0, %v6698
    %v6700 = vpop.f32.mrb[0].mxu0
    %v6701 = vpop.f32.mrb[0].mxu0
    %v6702 = vadd.f32 0.0, %v6701
    %v6703 = vpop.f32.mrb[0].mxu0
    %6704 = vmatprep.mubr.bf16.mxu0 %v5571
    %6705 = vmatmul.mubr.bf16.gmra.mrb[0].mxu0 %v5570
    %v6706 = vpop.f32.mrb[0].mxu0
    %v6707 = vadd.f32 0.0, %v6706
    %v6708 = vpop.f32.mrb[0].mxu0
    %v6709 = vpop.f32.mrb[0].mxu0
    %v6710 = vadd.f32 0.0, %v6709
    %v6711 = vpop.f32.mrb[0].mxu0
    %6712 = vmatprep.mubr.bf16.mxu0 %v5589
    %6713 = vmatmul.mubr.bf16.gmra.mrb[0].mxu0 %v5588
    %v6714 = vpop.f32.mrb[0].mxu0
    %v6715 = vadd.f32 0.0, %v6714
    %v6716 = vpop.f32.mrb[0].mxu0
    %v6717 = vpop.f32.mrb[0].mxu0
    %v6718 = vadd.f32 0.0, %v6717
    %v6719 = vpop.f32.mrb[0].mxu0
    %6720 = vmatprep.mubr.bf16.mxu0 %v5607
    %6721 = vmatmul.mubr.bf16.gmra.mrb[0].mxu0 %v5606
    %v6722 = vpop.f32.mrb[0].mxu0
    %v6723 = vadd.f32 0.0, %v6722
    %v6724 = vpop.f32.mrb[0].mxu0
    %v6725 = vpop.f32.mrb[0].mxu0
    %v6726 = vadd.f32 0.0, %v6725
    %v6727 = vpop.f32.mrb[0].mxu0
    %6728 = vmatprep.mubr.bf16.mxu0 %v5625
    %6729 = vmatmul.mubr.bf16.gmra.mrb[0].mxu0 %v5624
    %v6730 = vpop.f32.mrb[0].mxu0
    %v6731 = vadd.f32 0.0, %v6730
    %v6732 = vpop.f32.mrb[0].mxu0
    %v6733 = vpop.f32.mrb[0].mxu0
    %v6734 = vadd.f32 0.0, %v6733
    %v6735 = vpop.f32.mrb[0].mxu0
    %6736 = vmatprep.mubr.bf16.mxu0 %v5643
    %6737 = vmatmul.mubr.bf16.gmra.mrb[0].mxu0 %v5642
    %v6738 = vpop.f32.mrb[0].mxu0
    %v6739 = vadd.f32 0.0, %v6738
    %v6740 = vpop.f32.mrb[0].mxu0
    %v6741 = vpop.f32.mrb[0].mxu0
    %v6742 = vadd.f32 0.0, %v6741
    %v6743 = vpop.f32.mrb[0].mxu0
    %6744 = vmatprep.mubr.bf16.mxu0 %v5661
    %6745 = vmatmul.mubr.bf16.gmra.mrb[0].mxu0 %v5660
    %v6746 = vpop.f32.mrb[0].mxu0
    %v6747 = vadd.f32 0.0, %v6746
    %v6748 = vpop.f32.mrb[0].mxu0
    %v6749 = vpop.f32.mrb[0].mxu0
    %v6750 = vadd.f32 0.0, %v6749
    %v6751 = vpop.f32.mrb[0].mxu0
    %6752 = vmatprep.mubr.bf16.mxu0 %v5679
    %6753 = vmatmul.mubr.bf16.gmra.mrb[0].mxu0 %v5678
    %v6754 = vpop.f32.mrb[0].mxu0
    %v6755 = vadd.f32 0.0, %v6754
    %v6756 = vpop.f32.mrb[0].mxu0
    %v6757 = vpop.f32.mrb[0].mxu0
    %v6758 = vadd.f32 0.0, %v6757
    %v6759 = vpop.f32.mrb[0].mxu0
    %6760 = vmatprep.mubr.bf16.mxu0 %v5697
    %6761 = vmatmul.mubr.bf16.gmra.mrb[0].mxu0 %v5696
    %v6762 = vpop.f32.mrb[0].mxu0
    %v6763 = vadd.f32 0.0, %v6762
    %v6764 = vpop.f32.mrb[0].mxu0
    %v6765 = vpop.f32.mrb[0].mxu0
    %v6766 = vadd.f32 0.0, %v6765
    %v6767 = vpop.f32.mrb[0].mxu0
    %6768 = vmatprep.mubr.bf16.mxu0 %v5715
    %6769 = vmatmul.mubr.bf16.gmra.mrb[0].mxu0 %v5714
    %v6770 = vpop.f32.mrb[0].mxu0
    %v6771 = vadd.f32 0.0, %v6770
    %v6772 = vpop.f32.mrb[0].mxu0
    %v6773 = vpop.f32.mrb[0].mxu0
    %v6774 = vadd.f32 0.0, %v6773
    %v6775 = vpop.f32.mrb[0].mxu0
    %6776 = vmatprep.mubr.bf16.mxu0 %v5733
    %6777 = vmatmul.mubr.bf16.gmra.mrb[0].mxu0 %v5732
    %v6778 = vpop.f32.mrb[0].mxu0
    %v6779 = vadd.f32 0.0, %v6778
    %v6780 = vpop.f32.mrb[0].mxu0
    %v6781 = vpop.f32.mrb[0].mxu0
    %v6782 = vadd.f32 0.0, %v6781
    %v6783 = vpop.f32.mrb[0].mxu0
    %6784 = vmatprep.mubr.bf16.mxu0 %v5751
    %6785 = vmatmul.mubr.bf16.gmra.mrb[0].mxu0 %v5750
    %v6786 = vpop.f32.mrb[0].mxu0
    %v6787 = vadd.f32 0.0, %v6786
    %v6788 = vpop.f32.mrb[0].mxu0
    %v6789 = vpop.f32.mrb[0].mxu0
    %v6790 = vadd.f32 0.0, %v6789
    %v6791 = vpop.f32.mrb[0].mxu0
    %6792 = vmatprep.mubr.bf16.mxu0 %v5769
    %6793 = vmatmul.mubr.bf16.gmra.mrb[0].mxu0 %v5768
    %v6794 = vpop.f32.mrb[0].mxu0
    %v6795 = vadd.f32 0.0, %v6794
    %v6796 = vpop.f32.mrb[0].mxu0
    %v6797 = vpop.f32.mrb[0].mxu0
    %v6798 = vadd.f32 0.0, %v6797
    %v6799 = vpop.f32.mrb[0].mxu0
    %6800 = vmatprep.mubr.bf16.mxu0 %v5787
    %6801 = vmatmul.mubr.bf16.gmra.mrb[0].mxu0 %v5786
    %v6802 = vpop.f32.mrb[0].mxu0
    %v6803 = vadd.f32 0.0, %v6802
    %v6804 = vpop.f32.mrb[0].mxu0
    %v6805 = vpop.f32.mrb[0].mxu0
    %v6806 = vadd.f32 0.0, %v6805
    %v6807 = vpop.f32.mrb[0].mxu0
    %6808 = vmatprep.mubr.bf16.mxu0 %v5805
    %6809 = vmatmul.mubr.bf16.gmra.mrb[0].mxu0 %v5804
    %v6810 = vpop.f32.mrb[0].mxu0
    %v6811 = vadd.f32 0.0, %v6810
    %v6812 = vpop.f32.mrb[0].mxu0
    %v6813 = vpop.f32.mrb[0].mxu0
    %v6814 = vadd.f32 0.0, %v6813
    %v6815 = vpop.f32.mrb[0].mxu0
    %6816 = vmatprep.mubr.bf16.mxu0 %v5823
    %6817 = vmatmul.mubr.bf16.gmra.mrb[0].mxu0 %v5822
    %v6818 = vpop.f32.mrb[0].mxu0
    %v6819 = vadd.f32 0.0, %v6818
    %v6820 = vpop.f32.mrb[0].mxu0
    %v6821 = vpop.f32.mrb[0].mxu0
    %v6822 = vadd.f32 0.0, %v6821
    %v6823 = vpop.f32.mrb[0].mxu0
    %6824 = vmatprep.mubr.bf16.mxu0 %v5841
    %6825 = vmatmul.mubr.bf16.gmra.mrb[0].mxu0 %v5840
    %v6826 = vpop.f32.mrb[0].mxu0
    %v6827 = vadd.f32 0.0, %v6826
    %v6828 = vpop.f32.mrb[0].mxu0
    %v6829 = vpop.f32.mrb[0].mxu0
    %v6830 = vadd.f32 0.0, %v6829
    %v6831 = vpop.f32.mrb[0].mxu0
    %6832 = vmatprep.mubr.bf16.mxu0 %v5859
    %6833 = vmatmul.mubr.bf16.gmra.mrb[0].mxu0 %v5858
    %v6834 = vpop.f32.mrb[0].mxu0
    %v6835 = vadd.f32 0.0, %v6834
    %v6836 = vpop.f32.mrb[0].mxu0
    %v6837 = vpop.f32.mrb[0].mxu0
    %v6838 = vadd.f32 0.0, %v6837
    %v6839 = vpop.f32.mrb[0].mxu0
    %6840 = vmatprep.mubr.bf16.mxu0 %v5877
    %6841 = vmatmul.mubr.bf16.gmra.mrb[0].mxu0 %v5876
    %v6842 = vpop.f32.mrb[0].mxu0
    %v6843 = vadd.f32 0.0, %v6842
    %v6844 = vpop.f32.mrb[0].mxu0
    %v6845 = vpop.f32.mrb[0].mxu0
    %v6846 = vadd.f32 0.0, %v6845
    %v6847 = vpop.f32.mrb[0].mxu0
    %6848 = vmatprep.mubr.bf16.mxu0 %v5895
    %6849 = vmatmul.mubr.bf16.gmra.mrb[0].mxu0 %v5894
    %v6850 = vpop.f32.mrb[0].mxu0
    %v6851 = vadd.f32 0.0, %v6850
    %v6852 = vpop.f32.mrb[0].mxu0
    %v6853 = vpop.f32.mrb[0].mxu0
    %v6854 = vadd.f32 0.0, %v6853
    %v6855 = vpop.f32.mrb[0].mxu0
    %6856 = vmatprep.mubr.bf16.mxu0 %v5913
    %6857 = vmatmul.mubr.bf16.gmra.mrb[0].mxu0 %v5912
    %v6858 = vpop.f32.mrb[0].mxu0
    %v6859 = vadd.f32 0.0, %v6858
    %v6860 = vpop.f32.mrb[0].mxu0
    %v6861 = vpop.f32.mrb[0].mxu0
    %v6862 = vadd.f32 0.0, %v6861
    %v6863 = vpop.f32.mrb[0].mxu0
    %6864 = vmatprep.mubr.bf16.mxu0 %v5931
    %6865 = vmatmul.mubr.bf16.gmra.mrb[0].mxu0 %v5930
    %v6866 = vpop.f32.mrb[0].mxu0
    %v6867 = vadd.f32 0.0, %v6866
    %v6868 = vpop.f32.mrb[0].mxu0
    %v6869 = vpop.f32.mrb[0].mxu0
    %v6870 = vadd.f32 0.0, %v6869
    %v6871 = vpop.f32.mrb[0].mxu0
    %6872 = vmatprep.mubr.bf16.mxu0 %v5949
    %6873 = vmatmul.mubr.bf16.gmra.mrb[0].mxu0 %v5948
    %v6874 = vpop.f32.mrb[0].mxu0
    %v6875 = vadd.f32 0.0, %v6874
    %v6876 = vpop.f32.mrb[0].mxu0
    %v6877 = vpop.f32.mrb[0].mxu0
    %v6878 = vadd.f32 0.0, %v6877
    %v6879 = vpop.f32.mrb[0].mxu0
    %6880 = vmatprep.mubr.bf16.mxu0 %v5967
    %6881 = vmatmul.mubr.bf16.gmra.mrb[0].mxu0 %v5966
    %v6882 = vpop.f32.mrb[0].mxu0
    %v6883 = vadd.f32 0.0, %v6882
    %v6884 = vpop.f32.mrb[0].mxu0
    %v6885 = vpop.f32.mrb[0].mxu0
    %v6886 = vadd.f32 0.0, %v6885
    %v6887 = vpop.f32.mrb[0].mxu0
    %6888 = vmatprep.mubr.bf16.mxu0 %v5985
    %6889 = vmatmul.mubr.bf16.gmra.mrb[0].mxu0 %v5984
    %v6890 = vpop.f32.mrb[0].mxu0
    %v6891 = vadd.f32 0.0, %v6890
    %v6892 = vpop.f32.mrb[0].mxu0
    %v6893 = vpop.f32.mrb[0].mxu0
    %v6894 = vadd.f32 0.0, %v6893
    %v6895 = vpop.f32.mrb[0].mxu0
    %6896 = vmatprep.mubr.bf16.mxu0 %v6003
    %6897 = vmatmul.mubr.bf16.gmra.mrb[0].mxu0 %v6002
    %v6898 = vpop.f32.mrb[0].mxu0
    %v6899 = vadd.f32 0.0, %v6898
    %v6900 = vpop.f32.mrb[0].mxu0
    %v6901 = vpop.f32.mrb[0].mxu0
    %v6902 = vadd.f32 0.0, %v6901
    %v6903 = vpop.f32.mrb[0].mxu0
    %6904 = vmatprep.mubr.bf16.mxu0 %v6021
    %6905 = vmatmul.mubr.bf16.gmra.mrb[0].mxu0 %v6020
    %v6906 = vpop.f32.mrb[0].mxu0
    %v6907 = vadd.f32 0.0, %v6906
    %v6908 = vpop.f32.mrb[0].mxu0
    %v6909 = vpop.f32.mrb[0].mxu0
    %v6910 = vadd.f32 0.0, %v6909
    %v6911 = vpop.f32.mrb[0].mxu0
    %6912 = vmatprep.mubr.bf16.mxu0 %v6039
    %6913 = vmatmul.mubr.bf16.gmra.mrb[0].mxu0 %v6038
    %v6914 = vpop.f32.mrb[0].mxu0
    %v6915 = vadd.f32 0.0, %v6914
    %v6916 = vpop.f32.mrb[0].mxu0
    %v6917 = vpop.f32.mrb[0].mxu0
    %v6918 = vadd.f32 0.0, %v6917
    %v6919 = vpop.f32.mrb[0].mxu0
    %6920 = vdwg.mxu0
    %6921 = vmatprep.subr.bf16.mxu0 0
    %6922 = vmatpush1.bf16.msra.mxu0 %v3624
    %6923 = vmatprep.subr.bf16.mxu0 0
    %6924 = vmatpush1.bf16.msra.mxu0 %v3625
    %6925 = vmatprep.subr.bf16.mxu0 0
    %6926 = vmatpush1.bf16.msra.mxu0 %v3626
    %6927 = vmatprep.subr.bf16.mxu0 0
    %6928 = vmatpush1.bf16.msra.mxu0 %v3627
    %6929 = vmatprep.subr.bf16.mxu0 0
    %6930 = vmatpush1.bf16.msra.mxu0 %v3628
    %6931 = vmatprep.subr.bf16.mxu0 0
    %6932 = vmatpush1.bf16.msra.mxu0 %v3629
    %6933 = vmatprep.subr.bf16.mxu0 0
    %6934 = vmatpush1.bf16.msra.mxu0 %v3630
    %6935 = vmatprep.subr.bf16.mxu0 0
    %6936 = vmatpush1.bf16.msra.mxu0 %v3631
    %6937 = vmatprep.subr.bf16.mxu0 0
    %6938 = vmatpush1.bf16.msra.mxu0 %v3632
    %6939 = vmatprep.subr.bf16.mxu0 0
    %6940 = vmatpush1.bf16.msra.mxu0 %v3633
    %6941 = vmatprep.subr.bf16.mxu0 0
    %6942 = vmatpush1.bf16.msra.mxu0 %v3634
    %6943 = vmatprep.subr.bf16.mxu0 0
    %6944 = vmatpush1.bf16.msra.mxu0 %v3635
    %6945 = vmatprep.subr.bf16.mxu0 0
    %6946 = vmatpush1.bf16.msra.mxu0 %v3636
    %6947 = vmatprep.subr.bf16.mxu0 0
    %6948 = vmatpush1.bf16.msra.mxu0 %v3637
    %6949 = vmatprep.subr.bf16.mxu0 0
    %6950 = vmatpush1.bf16.msra.mxu0 %v3638
    %6951 = vmatprep.subr.bf16.mxu0 0
    %6952 = vmatpush1.bf16.msra.mxu0 %v3639
    %6953 = vmatprep.mubr.bf16.mxu0 %v5483
    %6954 = vmatmul.mubr.bf16.gmra.mrb[0].mxu0 %v5482
    %v6955 = vpop.f32.mrb[0].mxu0
    %v6956 = vadd.f32 %v6667, %v6955
    %v6957 = vpop.f32.mrb[0].mxu0
    %v6958 = vpop.f32.mrb[0].mxu0
    %v6959 = vadd.f32 %v6670, %v6958
    %v6960 = vpop.f32.mrb[0].mxu0
    %6961 = vmatprep.mubr.bf16.mxu0 %v5501
    %6962 = vmatmul.mubr.bf16.gmra.mrb[0].mxu0 %v5500
    %v6963 = vpop.f32.mrb[0].mxu0
    %v6964 = vadd.f32 %v6675, %v6963
    %v6965 = vpop.f32.mrb[0].mxu0
    %v6966 = vpop.f32.mrb[0].mxu0
    %v6967 = vadd.f32 %v6678, %v6966
    %v6968 = vpop.f32.mrb[0].mxu0
    %6969 = vmatprep.mubr.bf16.mxu0 %v5519
    %6970 = vmatmul.mubr.bf16.gmra.mrb[0].mxu0 %v5518
    %v6971 = vpop.f32.mrb[0].mxu0
    %v6972 = vadd.f32 %v6683, %v6971
    %v6973 = vpop.f32.mrb[0].mxu0
    %v6974 = vpop.f32.mrb[0].mxu0
    %v6975 = vadd.f32 %v6686, %v6974
    %v6976 = vpop.f32.mrb[0].mxu0
    %6977 = vmatprep.mubr.bf16.mxu0 %v5537
    %6978 = vmatmul.mubr.bf16.gmra.mrb[0].mxu0 %v5536
    %v6979 = vpop.f32.mrb[0].mxu0
    %v6980 = vadd.f32 %v6691, %v6979
    %v6981 = vpop.f32.mrb[0].mxu0
    %v6982 = vpop.f32.mrb[0].mxu0
    %v6983 = vadd.f32 %v6694, %v6982
    %v6984 = vpop.f32.mrb[0].mxu0
    %6985 = vmatprep.mubr.bf16.mxu0 %v5555
    %6986 = vmatmul.mubr.bf16.gmra.mrb[0].mxu0 %v5554
    %v6987 = vpop.f32.mrb[0].mxu0
    %v6988 = vadd.f32 %v6699, %v6987
    %v6989 = vpop.f32.mrb[0].mxu0
    %v6990 = vpop.f32.mrb[0].mxu0
    %v6991 = vadd.f32 %v6702, %v6990
    %v6992 = vpop.f32.mrb[0].mxu0
    %6993 = vmatprep.mubr.bf16.mxu0 %v5573
    %6994 = vmatmul.mubr.bf16.gmra.mrb[0].mxu0 %v5572
    %v6995 = vpop.f32.mrb[0].mxu0
    %v6996 = vadd.f32 %v6707, %v6995
    %v6997 = vpop.f32.mrb[0].mxu0
    %v6998 = vpop.f32.mrb[0].mxu0
    %v6999 = vadd.f32 %v6710, %v6998
    %v7000 = vpop.f32.mrb[0].mxu0
    %7001 = vmatprep.mubr.bf16.mxu0 %v5591
    %7002 = vmatmul.mubr.bf16.gmra.mrb[0].mxu0 %v5590
    %v7003 = vpop.f32.mrb[0].mxu0
    %v7004 = vadd.f32 %v6715, %v7003
    %v7005 = vpop.f32.mrb[0].mxu0
    %v7006 = vpop.f32.mrb[0].mxu0
    %v7007 = vadd.f32 %v6718, %v7006
    %v7008 = vpop.f32.mrb[0].mxu0
    %7009 = vmatprep.mubr.bf16.mxu0 %v5609
    %7010 = vmatmul.mubr.bf16.gmra.mrb[0].mxu0 %v5608
    %v7011 = vpop.f32.mrb[0].mxu0
    %v7012 = vadd.f32 %v6723, %v7011
    %v7013 = vpop.f32.mrb[0].mxu0
    %v7014 = vpop.f32.mrb[0].mxu0
    %v7015 = vadd.f32 %v6726, %v7014
    %v7016 = vpop.f32.mrb[0].mxu0
    %7017 = vmatprep.mubr.bf16.mxu0 %v5627
    %7018 = vmatmul.mubr.bf16.gmra.mrb[0].mxu0 %v5626
    %v7019 = vpop.f32.mrb[0].mxu0
    %v7020 = vadd.f32 %v6731, %v7019
    %v7021 = vpop.f32.mrb[0].mxu0
    %v7022 = vpop.f32.mrb[0].mxu0
    %v7023 = vadd.f32 %v6734, %v7022
    %v7024 = vpop.f32.mrb[0].mxu0
    %7025 = vmatprep.mubr.bf16.mxu0 %v5645
    %7026 = vmatmul.mubr.bf16.gmra.mrb[0].mxu0 %v5644
    %v7027 = vpop.f32.mrb[0].mxu0
    %v7028 = vadd.f32 %v6739, %v7027
    %v7029 = vpop.f32.mrb[0].mxu0
    %v7030 = vpop.f32.mrb[0].mxu0
    %v7031 = vadd.f32 %v6742, %v7030
    %v7032 = vpop.f32.mrb[0].mxu0
    %7033 = vmatprep.mubr.bf16.mxu0 %v5663
    %7034 = vmatmul.mubr.bf16.gmra.mrb[0].mxu0 %v5662
    %v7035 = vpop.f32.mrb[0].mxu0
    %v7036 = vadd.f32 %v6747, %v7035
    %v7037 = vpop.f32.mrb[0].mxu0
    %v7038 = vpop.f32.mrb[0].mxu0
    %v7039 = vadd.f32 %v6750, %v7038
    %v7040 = vpop.f32.mrb[0].mxu0
    %7041 = vmatprep.mubr.bf16.mxu0 %v5681
    %7042 = vmatmul.mubr.bf16.gmra.mrb[0].mxu0 %v5680
    %v7043 = vpop.f32.mrb[0].mxu0
    %v7044 = vadd.f32 %v6755, %v7043
    %v7045 = vpop.f32.mrb[0].mxu0
    %v7046 = vpop.f32.mrb[0].mxu0
    %v7047 = vadd.f32 %v6758, %v7046
    %v7048 = vpop.f32.mrb[0].mxu0
    %7049 = vmatprep.mubr.bf16.mxu0 %v5699
    %7050 = vmatmul.mubr.bf16.gmra.mrb[0].mxu0 %v5698
    %v7051 = vpop.f32.mrb[0].mxu0
    %v7052 = vadd.f32 %v6763, %v7051
    %v7053 = vpop.f32.mrb[0].mxu0
    %v7054 = vpop.f32.mrb[0].mxu0
    %v7055 = vadd.f32 %v6766, %v7054
    %v7056 = vpop.f32.mrb[0].mxu0
    %7057 = vmatprep.mubr.bf16.mxu0 %v5717
    %7058 = vmatmul.mubr.bf16.gmra.mrb[0].mxu0 %v5716
    %v7059 = vpop.f32.mrb[0].mxu0
    %v7060 = vadd.f32 %v6771, %v7059
    %v7061 = vpop.f32.mrb[0].mxu0
    %v7062 = vpop.f32.mrb[0].mxu0
    %v7063 = vadd.f32 %v6774, %v7062
    %v7064 = vpop.f32.mrb[0].mxu0
    %7065 = vmatprep.mubr.bf16.mxu0 %v5735
    %7066 = vmatmul.mubr.bf16.gmra.mrb[0].mxu0 %v5734
    %v7067 = vpop.f32.mrb[0].mxu0
    %v7068 = vadd.f32 %v6779, %v7067
    %v7069 = vpop.f32.mrb[0].mxu0
    %v7070 = vpop.f32.mrb[0].mxu0
    %v7071 = vadd.f32 %v6782, %v7070
    %v7072 = vpop.f32.mrb[0].mxu0
    %7073 = vmatprep.mubr.bf16.mxu0 %v5753
    %7074 = vmatmul.mubr.bf16.gmra.mrb[0].mxu0 %v5752
    %v7075 = vpop.f32.mrb[0].mxu0
    %v7076 = vadd.f32 %v6787, %v7075
    %v7077 = vpop.f32.mrb[0].mxu0
    %v7078 = vpop.f32.mrb[0].mxu0
    %v7079 = vadd.f32 %v6790, %v7078
    %v7080 = vpop.f32.mrb[0].mxu0
    %7081 = vmatprep.mubr.bf16.mxu0 %v5771
    %7082 = vmatmul.mubr.bf16.gmra.mrb[0].mxu0 %v5770
    %v7083 = vpop.f32.mrb[0].mxu0
    %v7084 = vadd.f32 %v6795, %v7083
    %v7085 = vpop.f32.mrb[0].mxu0
    %v7086 = vpop.f32.mrb[0].mxu0
    %v7087 = vadd.f32 %v6798, %v7086
    %v7088 = vpop.f32.mrb[0].mxu0
    %7089 = vmatprep.mubr.bf16.mxu0 %v5789
    %7090 = vmatmul.mubr.bf16.gmra.mrb[0].mxu0 %v5788
    %v7091 = vpop.f32.mrb[0].mxu0
    %v7092 = vadd.f32 %v6803, %v7091
    %v7093 = vpop.f32.mrb[0].mxu0
    %v7094 = vpop.f32.mrb[0].mxu0
    %v7095 = vadd.f32 %v6806, %v7094
    %v7096 = vpop.f32.mrb[0].mxu0
    %7097 = vmatprep.mubr.bf16.mxu0 %v5807
    %7098 = vmatmul.mubr.bf16.gmra.mrb[0].mxu0 %v5806
    %v7099 = vpop.f32.mrb[0].mxu0
    %v7100 = vadd.f32 %v6811, %v7099
    %v7101 = vpop.f32.mrb[0].mxu0
    %v7102 = vpop.f32.mrb[0].mxu0
    %v7103 = vadd.f32 %v6814, %v7102
    %v7104 = vpop.f32.mrb[0].mxu0
    %7105 = vmatprep.mubr.bf16.mxu0 %v5825
    %7106 = vmatmul.mubr.bf16.gmra.mrb[0].mxu0 %v5824
    %v7107 = vpop.f32.mrb[0].mxu0
    %v7108 = vadd.f32 %v6819, %v7107
    %v7109 = vpop.f32.mrb[0].mxu0
    %v7110 = vpop.f32.mrb[0].mxu0
    %v7111 = vadd.f32 %v6822, %v7110
    %v7112 = vpop.f32.mrb[0].mxu0
    %7113 = vmatprep.mubr.bf16.mxu0 %v5843
    %7114 = vmatmul.mubr.bf16.gmra.mrb[0].mxu0 %v5842
    %v7115 = vpop.f32.mrb[0].mxu0
    %v7116 = vadd.f32 %v6827, %v7115
    %v7117 = vpop.f32.mrb[0].mxu0
    %v7118 = vpop.f32.mrb[0].mxu0
    %v7119 = vadd.f32 %v6830, %v7118
    %v7120 = vpop.f32.mrb[0].mxu0
    %7121 = vmatprep.mubr.bf16.mxu0 %v5861
    %7122 = vmatmul.mubr.bf16.gmra.mrb[0].mxu0 %v5860
    %v7123 = vpop.f32.mrb[0].mxu0
    %v7124 = vadd.f32 %v6835, %v7123
    %v7125 = vpop.f32.mrb[0].mxu0
    %v7126 = vpop.f32.mrb[0].mxu0
    %v7127 = vadd.f32 %v6838, %v7126
    %v7128 = vpop.f32.mrb[0].mxu0
    %7129 = vmatprep.mubr.bf16.mxu0 %v5879
    %7130 = vmatmul.mubr.bf16.gmra.mrb[0].mxu0 %v5878
    %v7131 = vpop.f32.mrb[0].mxu0
    %v7132 = vadd.f32 %v6843, %v7131
    %v7133 = vpop.f32.mrb[0].mxu0
    %v7134 = vpop.f32.mrb[0].mxu0
    %v7135 = vadd.f32 %v6846, %v7134
    %v7136 = vpop.f32.mrb[0].mxu0
    %7137 = vmatprep.mubr.bf16.mxu0 %v5897
    %7138 = vmatmul.mubr.bf16.gmra.mrb[0].mxu0 %v5896
    %v7139 = vpop.f32.mrb[0].mxu0
    %v7140 = vadd.f32 %v6851, %v7139
    %v7141 = vpop.f32.mrb[0].mxu0
    %v7142 = vpop.f32.mrb[0].mxu0
    %v7143 = vadd.f32 %v6854, %v7142
    %v7144 = vpop.f32.mrb[0].mxu0
    %7145 = vmatprep.mubr.bf16.mxu0 %v5915
    %7146 = vmatmul.mubr.bf16.gmra.mrb[0].mxu0 %v5914
    %v7147 = vpop.f32.mrb[0].mxu0
    %v7148 = vadd.f32 %v6859, %v7147
    %v7149 = vpop.f32.mrb[0].mxu0
    %v7150 = vpop.f32.mrb[0].mxu0
    %v7151 = vadd.f32 %v6862, %v7150
    %v7152 = vpop.f32.mrb[0].mxu0
    %7153 = vmatprep.mubr.bf16.mxu0 %v5933
    %7154 = vmatmul.mubr.bf16.gmra.mrb[0].mxu0 %v5932
    %v7155 = vpop.f32.mrb[0].mxu0
    %v7156 = vadd.f32 %v6867, %v7155
    %v7157 = vpop.f32.mrb[0].mxu0
    %v7158 = vpop.f32.mrb[0].mxu0
    %v7159 = vadd.f32 %v6870, %v7158
    %v7160 = vpop.f32.mrb[0].mxu0
    %7161 = vmatprep.mubr.bf16.mxu0 %v5951
    %7162 = vmatmul.mubr.bf16.gmra.mrb[0].mxu0 %v5950
    %v7163 = vpop.f32.mrb[0].mxu0
    %v7164 = vadd.f32 %v6875, %v7163
    %v7165 = vpop.f32.mrb[0].mxu0
    %v7166 = vpop.f32.mrb[0].mxu0
    %v7167 = vadd.f32 %v6878, %v7166
    %v7168 = vpop.f32.mrb[0].mxu0
    %7169 = vmatprep.mubr.bf16.mxu0 %v5969
    %7170 = vmatmul.mubr.bf16.gmra.mrb[0].mxu0 %v5968
    %v7171 = vpop.f32.mrb[0].mxu0
    %v7172 = vadd.f32 %v6883, %v7171
    %v7173 = vpop.f32.mrb[0].mxu0
    %v7174 = vpop.f32.mrb[0].mxu0
    %v7175 = vadd.f32 %v6886, %v7174
    %v7176 = vpop.f32.mrb[0].mxu0
    %7177 = vmatprep.mubr.bf16.mxu0 %v5987
    %7178 = vmatmul.mubr.bf16.gmra.mrb[0].mxu0 %v5986
    %v7179 = vpop.f32.mrb[0].mxu0
    %v7180 = vadd.f32 %v6891, %v7179
    %v7181 = vpop.f32.mrb[0].mxu0
    %v7182 = vpop.f32.mrb[0].mxu0
    %v7183 = vadd.f32 %v6894, %v7182
    %v7184 = vpop.f32.mrb[0].mxu0
    %7185 = vmatprep.mubr.bf16.mxu0 %v6005
    %7186 = vmatmul.mubr.bf16.gmra.mrb[0].mxu0 %v6004
    %v7187 = vpop.f32.mrb[0].mxu0
    %v7188 = vadd.f32 %v6899, %v7187
    %v7189 = vpop.f32.mrb[0].mxu0
    %v7190 = vpop.f32.mrb[0].mxu0
    %v7191 = vadd.f32 %v6902, %v7190
    %v7192 = vpop.f32.mrb[0].mxu0
    %7193 = vmatprep.mubr.bf16.mxu0 %v6023
    %7194 = vmatmul.mubr.bf16.gmra.mrb[0].mxu0 %v6022
    %v7195 = vpop.f32.mrb[0].mxu0
    %v7196 = vadd.f32 %v6907, %v7195
    %v7197 = vpop.f32.mrb[0].mxu0
    %v7198 = vpop.f32.mrb[0].mxu0
    %v7199 = vadd.f32 %v6910, %v7198
    %v7200 = vpop.f32.mrb[0].mxu0
    %7201 = vmatprep.mubr.bf16.mxu0 %v6041
    %7202 = vmatmul.mubr.bf16.gmra.mrb[0].mxu0 %v6040
    %v7203 = vpop.f32.mrb[0].mxu0
    %v7204 = vadd.f32 %v6915, %v7203
    %v7205 = vpop.f32.mrb[0].mxu0
    %v7206 = vpop.f32.mrb[0].mxu0
    %v7207 = vadd.f32 %v6918, %v7206
    %v7208 = vpop.f32.mrb[0].mxu0
    %7209 = vdwg.mxu0
    %7210 = vmatprep.subr.bf16.mxu0 0
    %7211 = vmatpush1.bf16.msra.mxu0 %v3640
    %7212 = vmatprep.subr.bf16.mxu0 0
    %7213 = vmatpush1.bf16.msra.mxu0 %v3641
    %7214 = vmatprep.subr.bf16.mxu0 0
    %7215 = vmatpush1.bf16.msra.mxu0 %v3642
    %7216 = vmatprep.subr.bf16.mxu0 0
    %7217 = vmatpush1.bf16.msra.mxu0 %v3643
    %7218 = vmatprep.subr.bf16.mxu0 0
    %7219 = vmatpush1.bf16.msra.mxu0 %v3644
    %7220 = vmatprep.subr.bf16.mxu0 0
    %7221 = vmatpush1.bf16.msra.mxu0 %v3645
    %7222 = vmatprep.subr.bf16.mxu0 0
    %7223 = vmatpush1.bf16.msra.mxu0 %v3646
    %7224 = vmatprep.subr.bf16.mxu0 0
    %7225 = vmatpush1.bf16.msra.mxu0 %v3647
    %7226 = vmatprep.subr.bf16.mxu0 0
    %7227 = vmatpush1.bf16.msra.mxu0 %v3648
    %7228 = vmatprep.subr.bf16.mxu0 0
    %7229 = vmatpush1.bf16.msra.mxu0 %v3649
    %7230 = vmatprep.subr.bf16.mxu0 0
    %7231 = vmatpush1.bf16.msra.mxu0 %v3650
    %7232 = vmatprep.subr.bf16.mxu0 0
    %7233 = vmatpush1.bf16.msra.mxu0 %v3651
    %7234 = vmatprep.subr.bf16.mxu0 0
    %7235 = vmatpush1.bf16.msra.mxu0 %v3652
    %7236 = vmatprep.subr.bf16.mxu0 0
    %7237 = vmatpush1.bf16.msra.mxu0 %v3653
    %7238 = vmatprep.subr.bf16.mxu0 0
    %7239 = vmatpush1.bf16.msra.mxu0 %v3654
    %7240 = vmatprep.subr.bf16.mxu0 0
    %7241 = vmatpush1.bf16.msra.mxu0 %v3655
    %7242 = vmatprep.mubr.bf16.mxu0 %v5485
    %7243 = vmatmul.mubr.bf16.gmra.mrb[0].mxu0 %v5484
    %v7244 = vpop.f32.mrb[0].mxu0
    %v7245 = vadd.f32 %v6956, %v7244
    %v7246 = vpop.f32.mrb[0].mxu0
    %v7247 = vpop.f32.mrb[0].mxu0
    %v7248 = vadd.f32 %v6959, %v7247
    %v7249 = vpop.f32.mrb[0].mxu0
    %7250 = vmatprep.mubr.bf16.mxu0 %v5503
    %7251 = vmatmul.mubr.bf16.gmra.mrb[0].mxu0 %v5502
    %v7252 = vpop.f32.mrb[0].mxu0
    %v7253 = vadd.f32 %v6964, %v7252
    %v7254 = vpop.f32.mrb[0].mxu0
    %v7255 = vpop.f32.mrb[0].mxu0
    %v7256 = vadd.f32 %v6967, %v7255
    %v7257 = vpop.f32.mrb[0].mxu0
    %7258 = vmatprep.mubr.bf16.mxu0 %v5521
    %7259 = vmatmul.mubr.bf16.gmra.mrb[0].mxu0 %v5520
    %v7260 = vpop.f32.mrb[0].mxu0
    %v7261 = vadd.f32 %v6972, %v7260
    %v7262 = vpop.f32.mrb[0].mxu0
    %v7263 = vpop.f32.mrb[0].mxu0
    %v7264 = vadd.f32 %v6975, %v7263
    %v7265 = vpop.f32.mrb[0].mxu0
    %7266 = vmatprep.mubr.bf16.mxu0 %v5539
    %7267 = vmatmul.mubr.bf16.gmra.mrb[0].mxu0 %v5538
    %v7268 = vpop.f32.mrb[0].mxu0
    %v7269 = vadd.f32 %v6980, %v7268
    %v7270 = vpop.f32.mrb[0].mxu0
    %v7271 = vpop.f32.mrb[0].mxu0
    %v7272 = vadd.f32 %v6983, %v7271
    %v7273 = vpop.f32.mrb[0].mxu0
    %7274 = vmatprep.mubr.bf16.mxu0 %v5557
    %7275 = vmatmul.mubr.bf16.gmra.mrb[0].mxu0 %v5556
    %v7276 = vpop.f32.mrb[0].mxu0
    %v7277 = vadd.f32 %v6988, %v7276
    %v7278 = vpop.f32.mrb[0].mxu0
    %v7279 = vpop.f32.mrb[0].mxu0
    %v7280 = vadd.f32 %v6991, %v7279
    %v7281 = vpop.f32.mrb[0].mxu0
    %7282 = vmatprep.mubr.bf16.mxu0 %v5575
    %7283 = vmatmul.mubr.bf16.gmra.mrb[0].mxu0 %v5574
    %v7284 = vpop.f32.mrb[0].mxu0
    %v7285 = vadd.f32 %v6996, %v7284
    %v7286 = vpop.f32.mrb[0].mxu0
    %v7287 = vpop.f32.mrb[0].mxu0
    %v7288 = vadd.f32 %v6999, %v7287
    %v7289 = vpop.f32.mrb[0].mxu0
    %7290 = vmatprep.mubr.bf16.mxu0 %v5593
    %7291 = vmatmul.mubr.bf16.gmra.mrb[0].mxu0 %v5592
    %v7292 = vpop.f32.mrb[0].mxu0
    %v7293 = vadd.f32 %v7004, %v7292
    %v7294 = vpop.f32.mrb[0].mxu0
    %v7295 = vpop.f32.mrb[0].mxu0
    %v7296 = vadd.f32 %v7007, %v7295
    %v7297 = vpop.f32.mrb[0].mxu0
    %7298 = vmatprep.mubr.bf16.mxu0 %v5611
    %7299 = vmatmul.mubr.bf16.gmra.mrb[0].mxu0 %v5610
    %v7300 = vpop.f32.mrb[0].mxu0
    %v7301 = vadd.f32 %v7012, %v7300
    %v7302 = vpop.f32.mrb[0].mxu0
    %v7303 = vpop.f32.mrb[0].mxu0
    %v7304 = vadd.f32 %v7015, %v7303
    %v7305 = vpop.f32.mrb[0].mxu0
    %7306 = vmatprep.mubr.bf16.mxu0 %v5629
    %7307 = vmatmul.mubr.bf16.gmra.mrb[0].mxu0 %v5628
    %v7308 = vpop.f32.mrb[0].mxu0
    %v7309 = vadd.f32 %v7020, %v7308
    %v7310 = vpop.f32.mrb[0].mxu0
    %v7311 = vpop.f32.mrb[0].mxu0
    %v7312 = vadd.f32 %v7023, %v7311
    %v7313 = vpop.f32.mrb[0].mxu0
    %7314 = vmatprep.mubr.bf16.mxu0 %v5647
    %7315 = vmatmul.mubr.bf16.gmra.mrb[0].mxu0 %v5646
    %v7316 = vpop.f32.mrb[0].mxu0
    %v7317 = vadd.f32 %v7028, %v7316
    %v7318 = vpop.f32.mrb[0].mxu0
    %v7319 = vpop.f32.mrb[0].mxu0
    %v7320 = vadd.f32 %v7031, %v7319
    %v7321 = vpop.f32.mrb[0].mxu0
    %7322 = vmatprep.mubr.bf16.mxu0 %v5665
    %7323 = vmatmul.mubr.bf16.gmra.mrb[0].mxu0 %v5664
    %v7324 = vpop.f32.mrb[0].mxu0
    %v7325 = vadd.f32 %v7036, %v7324
    %v7326 = vpop.f32.mrb[0].mxu0
    %v7327 = vpop.f32.mrb[0].mxu0
    %v7328 = vadd.f32 %v7039, %v7327
    %v7329 = vpop.f32.mrb[0].mxu0
    %7330 = vmatprep.mubr.bf16.mxu0 %v5683
    %7331 = vmatmul.mubr.bf16.gmra.mrb[0].mxu0 %v5682
    %v7332 = vpop.f32.mrb[0].mxu0
    %v7333 = vadd.f32 %v7044, %v7332
    %v7334 = vpop.f32.mrb[0].mxu0
    %v7335 = vpop.f32.mrb[0].mxu0
    %v7336 = vadd.f32 %v7047, %v7335
    %v7337 = vpop.f32.mrb[0].mxu0
    %7338 = vmatprep.mubr.bf16.mxu0 %v5701
    %7339 = vmatmul.mubr.bf16.gmra.mrb[0].mxu0 %v5700
    %v7340 = vpop.f32.mrb[0].mxu0
    %v7341 = vadd.f32 %v7052, %v7340
    %v7342 = vpop.f32.mrb[0].mxu0
    %v7343 = vpop.f32.mrb[0].mxu0
    %v7344 = vadd.f32 %v7055, %v7343
    %v7345 = vpop.f32.mrb[0].mxu0
    %7346 = vmatprep.mubr.bf16.mxu0 %v5719
    %7347 = vmatmul.mubr.bf16.gmra.mrb[0].mxu0 %v5718
    %v7348 = vpop.f32.mrb[0].mxu0
    %v7349 = vadd.f32 %v7060, %v7348
    %v7350 = vpop.f32.mrb[0].mxu0
    %v7351 = vpop.f32.mrb[0].mxu0
    %v7352 = vadd.f32 %v7063, %v7351
    %v7353 = vpop.f32.mrb[0].mxu0
    %7354 = vmatprep.mubr.bf16.mxu0 %v5737
    %7355 = vmatmul.mubr.bf16.gmra.mrb[0].mxu0 %v5736
    %v7356 = vpop.f32.mrb[0].mxu0
    %v7357 = vadd.f32 %v7068, %v7356
    %v7358 = vpop.f32.mrb[0].mxu0
    %v7359 = vpop.f32.mrb[0].mxu0
    %v7360 = vadd.f32 %v7071, %v7359
    %v7361 = vpop.f32.mrb[0].mxu0
    %7362 = vmatprep.mubr.bf16.mxu0 %v5755
    %7363 = vmatmul.mubr.bf16.gmra.mrb[0].mxu0 %v5754
    %v7364 = vpop.f32.mrb[0].mxu0
    %v7365 = vadd.f32 %v7076, %v7364
    %v7366 = vpop.f32.mrb[0].mxu0
    %v7367 = vpop.f32.mrb[0].mxu0
    %v7368 = vadd.f32 %v7079, %v7367
    %v7369 = vpop.f32.mrb[0].mxu0
    %7370 = vmatprep.mubr.bf16.mxu0 %v5773
    %7371 = vmatmul.mubr.bf16.gmra.mrb[0].mxu0 %v5772
    %v7372 = vpop.f32.mrb[0].mxu0
    %v7373 = vadd.f32 %v7084, %v7372
    %v7374 = vpop.f32.mrb[0].mxu0
    %v7375 = vpop.f32.mrb[0].mxu0
    %v7376 = vadd.f32 %v7087, %v7375
    %v7377 = vpop.f32.mrb[0].mxu0
    %7378 = vmatprep.mubr.bf16.mxu0 %v5791
    %7379 = vmatmul.mubr.bf16.gmra.mrb[0].mxu0 %v5790
    %v7380 = vpop.f32.mrb[0].mxu0
    %v7381 = vadd.f32 %v7092, %v7380
    %v7382 = vpop.f32.mrb[0].mxu0
    %v7383 = vpop.f32.mrb[0].mxu0
    %v7384 = vadd.f32 %v7095, %v7383
    %v7385 = vpop.f32.mrb[0].mxu0
    %7386 = vmatprep.mubr.bf16.mxu0 %v5809
    %7387 = vmatmul.mubr.bf16.gmra.mrb[0].mxu0 %v5808
    %v7388 = vpop.f32.mrb[0].mxu0
    %v7389 = vadd.f32 %v7100, %v7388
    %v7390 = vpop.f32.mrb[0].mxu0
    %v7391 = vpop.f32.mrb[0].mxu0
    %v7392 = vadd.f32 %v7103, %v7391
    %v7393 = vpop.f32.mrb[0].mxu0
    %7394 = vmatprep.mubr.bf16.mxu0 %v5827
    %7395 = vmatmul.mubr.bf16.gmra.mrb[0].mxu0 %v5826
    %v7396 = vpop.f32.mrb[0].mxu0
    %v7397 = vadd.f32 %v7108, %v7396
    %v7398 = vpop.f32.mrb[0].mxu0
    %v7399 = vpop.f32.mrb[0].mxu0
    %v7400 = vadd.f32 %v7111, %v7399
    %v7401 = vpop.f32.mrb[0].mxu0
    %7402 = vmatprep.mubr.bf16.mxu0 %v5845
    %7403 = vmatmul.mubr.bf16.gmra.mrb[0].mxu0 %v5844
    %v7404 = vpop.f32.mrb[0].mxu0
    %v7405 = vadd.f32 %v7116, %v7404
    %v7406 = vpop.f32.mrb[0].mxu0
    %v7407 = vpop.f32.mrb[0].mxu0
    %v7408 = vadd.f32 %v7119, %v7407
    %v7409 = vpop.f32.mrb[0].mxu0
    %7410 = vmatprep.mubr.bf16.mxu0 %v5863
    %7411 = vmatmul.mubr.bf16.gmra.mrb[0].mxu0 %v5862
    %v7412 = vpop.f32.mrb[0].mxu0
    %v7413 = vadd.f32 %v7124, %v7412
    %v7414 = vpop.f32.mrb[0].mxu0
    %v7415 = vpop.f32.mrb[0].mxu0
    %v7416 = vadd.f32 %v7127, %v7415
    %v7417 = vpop.f32.mrb[0].mxu0
    %7418 = vmatprep.mubr.bf16.mxu0 %v5881
    %7419 = vmatmul.mubr.bf16.gmra.mrb[0].mxu0 %v5880
    %v7420 = vpop.f32.mrb[0].mxu0
    %v7421 = vadd.f32 %v7132, %v7420
    %v7422 = vpop.f32.mrb[0].mxu0
    %v7423 = vpop.f32.mrb[0].mxu0
    %v7424 = vadd.f32 %v7135, %v7423
    %v7425 = vpop.f32.mrb[0].mxu0
    %7426 = vmatprep.mubr.bf16.mxu0 %v5899
    %7427 = vmatmul.mubr.bf16.gmra.mrb[0].mxu0 %v5898
    %v7428 = vpop.f32.mrb[0].mxu0
    %v7429 = vadd.f32 %v7140, %v7428
    %v7430 = vpop.f32.mrb[0].mxu0
    %v7431 = vpop.f32.mrb[0].mxu0
    %v7432 = vadd.f32 %v7143, %v7431
    %v7433 = vpop.f32.mrb[0].mxu0
    %7434 = vmatprep.mubr.bf16.mxu0 %v5917
    %7435 = vmatmul.mubr.bf16.gmra.mrb[0].mxu0 %v5916
    %v7436 = vpop.f32.mrb[0].mxu0
    %v7437 = vadd.f32 %v7148, %v7436
    %v7438 = vpop.f32.mrb[0].mxu0
    %v7439 = vpop.f32.mrb[0].mxu0
    %v7440 = vadd.f32 %v7151, %v7439
    %v7441 = vpop.f32.mrb[0].mxu0
    %7442 = vmatprep.mubr.bf16.mxu0 %v5935
    %7443 = vmatmul.mubr.bf16.gmra.mrb[0].mxu0 %v5934
    %v7444 = vpop.f32.mrb[0].mxu0
    %v7445 = vadd.f32 %v7156, %v7444
    %v7446 = vpop.f32.mrb[0].mxu0
    %v7447 = vpop.f32.mrb[0].mxu0
    %v7448 = vadd.f32 %v7159, %v7447
    %v7449 = vpop.f32.mrb[0].mxu0
    %7450 = vmatprep.mubr.bf16.mxu0 %v5953
    %7451 = vmatmul.mubr.bf16.gmra.mrb[0].mxu0 %v5952
    %v7452 = vpop.f32.mrb[0].mxu0
    %v7453 = vadd.f32 %v7164, %v7452
    %v7454 = vpop.f32.mrb[0].mxu0
    %v7455 = vpop.f32.mrb[0].mxu0
    %v7456 = vadd.f32 %v7167, %v7455
    %v7457 = vpop.f32.mrb[0].mxu0
    %7458 = vmatprep.mubr.bf16.mxu0 %v5971
    %7459 = vmatmul.mubr.bf16.gmra.mrb[0].mxu0 %v5970
    %v7460 = vpop.f32.mrb[0].mxu0
    %v7461 = vadd.f32 %v7172, %v7460
    %v7462 = vpop.f32.mrb[0].mxu0
    %v7463 = vpop.f32.mrb[0].mxu0
    %v7464 = vadd.f32 %v7175, %v7463
    %v7465 = vpop.f32.mrb[0].mxu0
    %7466 = vmatprep.mubr.bf16.mxu0 %v5989
    %7467 = vmatmul.mubr.bf16.gmra.mrb[0].mxu0 %v5988
    %v7468 = vpop.f32.mrb[0].mxu0
    %v7469 = vadd.f32 %v7180, %v7468
    %v7470 = vpop.f32.mrb[0].mxu0
    %v7471 = vpop.f32.mrb[0].mxu0
    %v7472 = vadd.f32 %v7183, %v7471
    %v7473 = vpop.f32.mrb[0].mxu0
    %7474 = vmatprep.mubr.bf16.mxu0 %v6007
    %7475 = vmatmul.mubr.bf16.gmra.mrb[0].mxu0 %v6006
    %v7476 = vpop.f32.mrb[0].mxu0
    %v7477 = vadd.f32 %v7188, %v7476
    %v7478 = vpop.f32.mrb[0].mxu0
    %v7479 = vpop.f32.mrb[0].mxu0
    %v7480 = vadd.f32 %v7191, %v7479
    %v7481 = vpop.f32.mrb[0].mxu0
    %7482 = vmatprep.mubr.bf16.mxu0 %v6025
    %7483 = vmatmul.mubr.bf16.gmra.mrb[0].mxu0 %v6024
    %v7484 = vpop.f32.mrb[0].mxu0
    %v7485 = vadd.f32 %v7196, %v7484
    %v7486 = vpop.f32.mrb[0].mxu0
    %v7487 = vpop.f32.mrb[0].mxu0
    %v7488 = vadd.f32 %v7199, %v7487
    %v7489 = vpop.f32.mrb[0].mxu0
    %7490 = vmatprep.mubr.bf16.mxu0 %v6043
    %7491 = vmatmul.mubr.bf16.gmra.mrb[0].mxu0 %v6042
    %v7492 = vpop.f32.mrb[0].mxu0
    %v7493 = vadd.f32 %v7204, %v7492
    %v7494 = vpop.f32.mrb[0].mxu0
    %v7495 = vpop.f32.mrb[0].mxu0
    %v7496 = vadd.f32 %v7207, %v7495
    %v7497 = vpop.f32.mrb[0].mxu0
    %7498 = vdwg.mxu0
    %7499 = vmatprep.subr.bf16.mxu0 0
    %7500 = vmatpush1.bf16.msra.mxu0 %v3656
    %7501 = vmatprep.subr.bf16.mxu0 0
    %7502 = vmatpush1.bf16.msra.mxu0 %v3657
    %7503 = vmatprep.subr.bf16.mxu0 0
    %7504 = vmatpush1.bf16.msra.mxu0 %v3658
    %7505 = vmatprep.subr.bf16.mxu0 0
    %7506 = vmatpush1.bf16.msra.mxu0 %v3659
    %7507 = vmatprep.subr.bf16.mxu0 0
    %7508 = vmatpush1.bf16.msra.mxu0 %v3660
    %7509 = vmatprep.subr.bf16.mxu0 0
    %7510 = vmatpush1.bf16.msra.mxu0 %v3661
    %7511 = vmatprep.subr.bf16.mxu0 0
    %7512 = vmatpush1.bf16.msra.mxu0 %v3662
    %7513 = vmatprep.subr.bf16.mxu0 0
    %7514 = vmatpush1.bf16.msra.mxu0 %v3663
    %7515 = vmatprep.subr.bf16.mxu0 0
    %7516 = vmatpush1.bf16.msra.mxu0 %v3664
    %7517 = vmatprep.subr.bf16.mxu0 0
    %7518 = vmatpush1.bf16.msra.mxu0 %v3665
    %7519 = vmatprep.subr.bf16.mxu0 0
    %7520 = vmatpush1.bf16.msra.mxu0 %v3666
    %7521 = vmatprep.subr.bf16.mxu0 0
    %7522 = vmatpush1.bf16.msra.mxu0 %v3667
    %7523 = vmatprep.subr.bf16.mxu0 0
    %7524 = vmatpush1.bf16.msra.mxu0 %v3668
    %7525 = vmatprep.subr.bf16.mxu0 0
    %7526 = vmatpush1.bf16.msra.mxu0 %v3669
    %7527 = vmatprep.subr.bf16.mxu0 0
    %7528 = vmatpush1.bf16.msra.mxu0 %v3670
    %7529 = vmatprep.subr.bf16.mxu0 0
    %7530 = vmatpush1.bf16.msra.mxu0 %v3671
    %7531 = vmatprep.mubr.bf16.mxu0 %v5487
    %7532 = vmatmul.mubr.bf16.gmra.mrb[0].mxu0 %v5486
    %v7533 = vpop.f32.mrb[0].mxu0
    %v7534 = vadd.f32 %v7245, %v7533
    %v7535 = vpop.f32.mrb[0].mxu0
    %v7536 = vpop.f32.mrb[0].mxu0
    %v7537 = vadd.f32 %v7248, %v7536
    %v7538 = vpop.f32.mrb[0].mxu0
    %7539 = vmatprep.mubr.bf16.mxu0 %v5505
    %7540 = vmatmul.mubr.bf16.gmra.mrb[0].mxu0 %v5504
    %v7541 = vpop.f32.mrb[0].mxu0
    %v7542 = vadd.f32 %v7253, %v7541
    %v7543 = vpop.f32.mrb[0].mxu0
    %v7544 = vpop.f32.mrb[0].mxu0
    %v7545 = vadd.f32 %v7256, %v7544
    %v7546 = vpop.f32.mrb[0].mxu0
    %7547 = vmatprep.mubr.bf16.mxu0 %v5523
    %7548 = vmatmul.mubr.bf16.gmra.mrb[0].mxu0 %v5522
    %v7549 = vpop.f32.mrb[0].mxu0
    %v7550 = vadd.f32 %v7261, %v7549
    %v7551 = vpop.f32.mrb[0].mxu0
    %v7552 = vpop.f32.mrb[0].mxu0
    %v7553 = vadd.f32 %v7264, %v7552
    %v7554 = vpop.f32.mrb[0].mxu0
    %7555 = vmatprep.mubr.bf16.mxu0 %v5541
    %7556 = vmatmul.mubr.bf16.gmra.mrb[0].mxu0 %v5540
    %v7557 = vpop.f32.mrb[0].mxu0
    %v7558 = vadd.f32 %v7269, %v7557
    %v7559 = vpop.f32.mrb[0].mxu0
    %v7560 = vpop.f32.mrb[0].mxu0
    %v7561 = vadd.f32 %v7272, %v7560
    %v7562 = vpop.f32.mrb[0].mxu0
    %7563 = vmatprep.mubr.bf16.mxu0 %v5559
    %7564 = vmatmul.mubr.bf16.gmra.mrb[0].mxu0 %v5558
    %v7565 = vpop.f32.mrb[0].mxu0
    %v7566 = vadd.f32 %v7277, %v7565
    %v7567 = vpop.f32.mrb[0].mxu0
    %v7568 = vpop.f32.mrb[0].mxu0
    %v7569 = vadd.f32 %v7280, %v7568
    %v7570 = vpop.f32.mrb[0].mxu0
    %7571 = vmatprep.mubr.bf16.mxu0 %v5577
    %7572 = vmatmul.mubr.bf16.gmra.mrb[0].mxu0 %v5576
    %v7573 = vpop.f32.mrb[0].mxu0
    %v7574 = vadd.f32 %v7285, %v7573
    %v7575 = vpop.f32.mrb[0].mxu0
    %v7576 = vpop.f32.mrb[0].mxu0
    %v7577 = vadd.f32 %v7288, %v7576
    %v7578 = vpop.f32.mrb[0].mxu0
    %7579 = vmatprep.mubr.bf16.mxu0 %v5595
    %7580 = vmatmul.mubr.bf16.gmra.mrb[0].mxu0 %v5594
    %v7581 = vpop.f32.mrb[0].mxu0
    %v7582 = vadd.f32 %v7293, %v7581
    %v7583 = vpop.f32.mrb[0].mxu0
    %v7584 = vpop.f32.mrb[0].mxu0
    %v7585 = vadd.f32 %v7296, %v7584
    %v7586 = vpop.f32.mrb[0].mxu0
    %7587 = vmatprep.mubr.bf16.mxu0 %v5613
    %7588 = vmatmul.mubr.bf16.gmra.mrb[0].mxu0 %v5612
    %v7589 = vpop.f32.mrb[0].mxu0
    %v7590 = vadd.f32 %v7301, %v7589
    %v7591 = vpop.f32.mrb[0].mxu0
    %v7592 = vpop.f32.mrb[0].mxu0
    %v7593 = vadd.f32 %v7304, %v7592
    %v7594 = vpop.f32.mrb[0].mxu0
    %7595 = vmatprep.mubr.bf16.mxu0 %v5631
    %7596 = vmatmul.mubr.bf16.gmra.mrb[0].mxu0 %v5630
    %v7597 = vpop.f32.mrb[0].mxu0
    %v7598 = vadd.f32 %v7309, %v7597
    %v7599 = vpop.f32.mrb[0].mxu0
    %v7600 = vpop.f32.mrb[0].mxu0
    %v7601 = vadd.f32 %v7312, %v7600
    %v7602 = vpop.f32.mrb[0].mxu0
    %7603 = vmatprep.mubr.bf16.mxu0 %v5649
    %7604 = vmatmul.mubr.bf16.gmra.mrb[0].mxu0 %v5648
    %v7605 = vpop.f32.mrb[0].mxu0
    %v7606 = vadd.f32 %v7317, %v7605
    %v7607 = vpop.f32.mrb[0].mxu0
    %v7608 = vpop.f32.mrb[0].mxu0
    %v7609 = vadd.f32 %v7320, %v7608
    %v7610 = vpop.f32.mrb[0].mxu0
    %7611 = vmatprep.mubr.bf16.mxu0 %v5667
    %7612 = vmatmul.mubr.bf16.gmra.mrb[0].mxu0 %v5666
    %v7613 = vpop.f32.mrb[0].mxu0
    %v7614 = vadd.f32 %v7325, %v7613
    %v7615 = vpop.f32.mrb[0].mxu0
    %v7616 = vpop.f32.mrb[0].mxu0
    %v7617 = vadd.f32 %v7328, %v7616
    %v7618 = vpop.f32.mrb[0].mxu0
    %7619 = vmatprep.mubr.bf16.mxu0 %v5685
    %7620 = vmatmul.mubr.bf16.gmra.mrb[0].mxu0 %v5684
    %v7621 = vpop.f32.mrb[0].mxu0
    %v7622 = vadd.f32 %v7333, %v7621
    %v7623 = vpop.f32.mrb[0].mxu0
    %v7624 = vpop.f32.mrb[0].mxu0
    %v7625 = vadd.f32 %v7336, %v7624
    %v7626 = vpop.f32.mrb[0].mxu0
    %7627 = vmatprep.mubr.bf16.mxu0 %v5703
    %7628 = vmatmul.mubr.bf16.gmra.mrb[0].mxu0 %v5702
    %v7629 = vpop.f32.mrb[0].mxu0
    %v7630 = vadd.f32 %v7341, %v7629
    %v7631 = vpop.f32.mrb[0].mxu0
    %v7632 = vpop.f32.mrb[0].mxu0
    %v7633 = vadd.f32 %v7344, %v7632
    %v7634 = vpop.f32.mrb[0].mxu0
    %7635 = vmatprep.mubr.bf16.mxu0 %v5721
    %7636 = vmatmul.mubr.bf16.gmra.mrb[0].mxu0 %v5720
    %v7637 = vpop.f32.mrb[0].mxu0
    %v7638 = vadd.f32 %v7349, %v7637
    %v7639 = vpop.f32.mrb[0].mxu0
    %v7640 = vpop.f32.mrb[0].mxu0
    %v7641 = vadd.f32 %v7352, %v7640
    %v7642 = vpop.f32.mrb[0].mxu0
    %7643 = vmatprep.mubr.bf16.mxu0 %v5739
    %7644 = vmatmul.mubr.bf16.gmra.mrb[0].mxu0 %v5738
    %v7645 = vpop.f32.mrb[0].mxu0
    %v7646 = vadd.f32 %v7357, %v7645
    %v7647 = vpop.f32.mrb[0].mxu0
    %v7648 = vpop.f32.mrb[0].mxu0
    %v7649 = vadd.f32 %v7360, %v7648
    %v7650 = vpop.f32.mrb[0].mxu0
    %7651 = vmatprep.mubr.bf16.mxu0 %v5757
    %7652 = vmatmul.mubr.bf16.gmra.mrb[0].mxu0 %v5756
    %v7653 = vpop.f32.mrb[0].mxu0
    %v7654 = vadd.f32 %v7365, %v7653
    %v7655 = vpop.f32.mrb[0].mxu0
    %v7656 = vpop.f32.mrb[0].mxu0
    %v7657 = vadd.f32 %v7368, %v7656
    %v7658 = vpop.f32.mrb[0].mxu0
    %7659 = vmatprep.mubr.bf16.mxu0 %v5775
    %7660 = vmatmul.mubr.bf16.gmra.mrb[0].mxu0 %v5774
    %v7661 = vpop.f32.mrb[0].mxu0
    %v7662 = vadd.f32 %v7373, %v7661
    %v7663 = vpop.f32.mrb[0].mxu0
    %v7664 = vpop.f32.mrb[0].mxu0
    %v7665 = vadd.f32 %v7376, %v7664
    %v7666 = vpop.f32.mrb[0].mxu0
    %7667 = vmatprep.mubr.bf16.mxu0 %v5793
    %7668 = vmatmul.mubr.bf16.gmra.mrb[0].mxu0 %v5792
    %v7669 = vpop.f32.mrb[0].mxu0
    %v7670 = vadd.f32 %v7381, %v7669
    %v7671 = vpop.f32.mrb[0].mxu0
    %v7672 = vpop.f32.mrb[0].mxu0
    %v7673 = vadd.f32 %v7384, %v7672
    %v7674 = vpop.f32.mrb[0].mxu0
    %7675 = vmatprep.mubr.bf16.mxu0 %v5811
    %7676 = vmatmul.mubr.bf16.gmra.mrb[0].mxu0 %v5810
    %v7677 = vpop.f32.mrb[0].mxu0
    %v7678 = vadd.f32 %v7389, %v7677
    %v7679 = vpop.f32.mrb[0].mxu0
    %v7680 = vpop.f32.mrb[0].mxu0
    %v7681 = vadd.f32 %v7392, %v7680
    %v7682 = vpop.f32.mrb[0].mxu0
    %7683 = vmatprep.mubr.bf16.mxu0 %v5829
    %7684 = vmatmul.mubr.bf16.gmra.mrb[0].mxu0 %v5828
    %v7685 = vpop.f32.mrb[0].mxu0
    %v7686 = vadd.f32 %v7397, %v7685
    %v7687 = vpop.f32.mrb[0].mxu0
    %v7688 = vpop.f32.mrb[0].mxu0
    %v7689 = vadd.f32 %v7400, %v7688
    %v7690 = vpop.f32.mrb[0].mxu0
    %7691 = vmatprep.mubr.bf16.mxu0 %v5847
    %7692 = vmatmul.mubr.bf16.gmra.mrb[0].mxu0 %v5846
    %v7693 = vpop.f32.mrb[0].mxu0
    %v7694 = vadd.f32 %v7405, %v7693
    %v7695 = vpop.f32.mrb[0].mxu0
    %v7696 = vpop.f32.mrb[0].mxu0
    %v7697 = vadd.f32 %v7408, %v7696
    %v7698 = vpop.f32.mrb[0].mxu0
    %7699 = vmatprep.mubr.bf16.mxu0 %v5865
    %7700 = vmatmul.mubr.bf16.gmra.mrb[0].mxu0 %v5864
    %v7701 = vpop.f32.mrb[0].mxu0
    %v7702 = vadd.f32 %v7413, %v7701
    %v7703 = vpop.f32.mrb[0].mxu0
    %v7704 = vpop.f32.mrb[0].mxu0
    %v7705 = vadd.f32 %v7416, %v7704
    %v7706 = vpop.f32.mrb[0].mxu0
    %7707 = vmatprep.mubr.bf16.mxu0 %v5883
    %7708 = vmatmul.mubr.bf16.gmra.mrb[0].mxu0 %v5882
    %v7709 = vpop.f32.mrb[0].mxu0
    %v7710 = vadd.f32 %v7421, %v7709
    %v7711 = vpop.f32.mrb[0].mxu0
    %v7712 = vpop.f32.mrb[0].mxu0
    %v7713 = vadd.f32 %v7424, %v7712
    %v7714 = vpop.f32.mrb[0].mxu0
    %7715 = vmatprep.mubr.bf16.mxu0 %v5901
    %7716 = vmatmul.mubr.bf16.gmra.mrb[0].mxu0 %v5900
    %v7717 = vpop.f32.mrb[0].mxu0
    %v7718 = vadd.f32 %v7429, %v7717
    %v7719 = vpop.f32.mrb[0].mxu0
    %v7720 = vpop.f32.mrb[0].mxu0
    %v7721 = vadd.f32 %v7432, %v7720
    %v7722 = vpop.f32.mrb[0].mxu0
    %7723 = vmatprep.mubr.bf16.mxu0 %v5919
    %7724 = vmatmul.mubr.bf16.gmra.mrb[0].mxu0 %v5918
    %v7725 = vpop.f32.mrb[0].mxu0
    %v7726 = vadd.f32 %v7437, %v7725
    %v7727 = vpop.f32.mrb[0].mxu0
    %v7728 = vpop.f32.mrb[0].mxu0
    %v7729 = vadd.f32 %v7440, %v7728
    %v7730 = vpop.f32.mrb[0].mxu0
    %7731 = vmatprep.mubr.bf16.mxu0 %v5937
    %7732 = vmatmul.mubr.bf16.gmra.mrb[0].mxu0 %v5936
    %v7733 = vpop.f32.mrb[0].mxu0
    %v7734 = vadd.f32 %v7445, %v7733
    %v7735 = vpop.f32.mrb[0].mxu0
    %v7736 = vpop.f32.mrb[0].mxu0
    %v7737 = vadd.f32 %v7448, %v7736
    %v7738 = vpop.f32.mrb[0].mxu0
    %7739 = vmatprep.mubr.bf16.mxu0 %v5955
    %7740 = vmatmul.mubr.bf16.gmra.mrb[0].mxu0 %v5954
    %v7741 = vpop.f32.mrb[0].mxu0
    %v7742 = vadd.f32 %v7453, %v7741
    %v7743 = vpop.f32.mrb[0].mxu0
    %v7744 = vpop.f32.mrb[0].mxu0
    %v7745 = vadd.f32 %v7456, %v7744
    %v7746 = vpop.f32.mrb[0].mxu0
    %7747 = vmatprep.mubr.bf16.mxu0 %v5973
    %7748 = vmatmul.mubr.bf16.gmra.mrb[0].mxu0 %v5972
    %v7749 = vpop.f32.mrb[0].mxu0
    %v7750 = vadd.f32 %v7461, %v7749
    %v7751 = vpop.f32.mrb[0].mxu0
    %v7752 = vpop.f32.mrb[0].mxu0
    %v7753 = vadd.f32 %v7464, %v7752
    %v7754 = vpop.f32.mrb[0].mxu0
    %7755 = vmatprep.mubr.bf16.mxu0 %v5991
    %7756 = vmatmul.mubr.bf16.gmra.mrb[0].mxu0 %v5990
    %v7757 = vpop.f32.mrb[0].mxu0
    %v7758 = vadd.f32 %v7469, %v7757
    %v7759 = vpop.f32.mrb[0].mxu0
    %v7760 = vpop.f32.mrb[0].mxu0
    %v7761 = vadd.f32 %v7472, %v7760
    %v7762 = vpop.f32.mrb[0].mxu0
    %7763 = vmatprep.mubr.bf16.mxu0 %v6009
    %7764 = vmatmul.mubr.bf16.gmra.mrb[0].mxu0 %v6008
    %v7765 = vpop.f32.mrb[0].mxu0
    %v7766 = vadd.f32 %v7477, %v7765
    %v7767 = vpop.f32.mrb[0].mxu0
    %v7768 = vpop.f32.mrb[0].mxu0
    %v7769 = vadd.f32 %v7480, %v7768
    %v7770 = vpop.f32.mrb[0].mxu0
    %7771 = vmatprep.mubr.bf16.mxu0 %v6027
    %7772 = vmatmul.mubr.bf16.gmra.mrb[0].mxu0 %v6026
    %v7773 = vpop.f32.mrb[0].mxu0
    %v7774 = vadd.f32 %v7485, %v7773
    %v7775 = vpop.f32.mrb[0].mxu0
    %v7776 = vpop.f32.mrb[0].mxu0
    %v7777 = vadd.f32 %v7488, %v7776
    %v7778 = vpop.f32.mrb[0].mxu0
    %7779 = vmatprep.mubr.bf16.mxu0 %v6045
    %7780 = vmatmul.mubr.bf16.gmra.mrb[0].mxu0 %v6044
    %v7781 = vpop.f32.mrb[0].mxu0
    %v7782 = vadd.f32 %v7493, %v7781
    %v7783 = vpop.f32.mrb[0].mxu0
    %v7784 = vpop.f32.mrb[0].mxu0
    %v7785 = vadd.f32 %v7496, %v7784
    %v7786 = vpop.f32.mrb[0].mxu0
    %7787 = vdwg.mxu0
    %7788 = vmatprep.subr.bf16.mxu0 0
    %7789 = vmatpush1.bf16.msra.mxu0 %v3672
    %7790 = vmatprep.subr.bf16.mxu0 0
    %7791 = vmatpush1.bf16.msra.mxu0 %v3673
    %7792 = vmatprep.subr.bf16.mxu0 0
    %7793 = vmatpush1.bf16.msra.mxu0 %v3674
    %7794 = vmatprep.subr.bf16.mxu0 0
    %7795 = vmatpush1.bf16.msra.mxu0 %v3675
    %7796 = vmatprep.subr.bf16.mxu0 0
    %7797 = vmatpush1.bf16.msra.mxu0 %v3676
    %7798 = vmatprep.subr.bf16.mxu0 0
    %7799 = vmatpush1.bf16.msra.mxu0 %v3677
    %7800 = vmatprep.subr.bf16.mxu0 0
    %7801 = vmatpush1.bf16.msra.mxu0 %v3678
    %7802 = vmatprep.subr.bf16.mxu0 0
    %7803 = vmatpush1.bf16.msra.mxu0 %v3679
    %7804 = vmatprep.subr.bf16.mxu0 0
    %7805 = vmatpush1.bf16.msra.mxu0 %v3680
    %7806 = vmatprep.subr.bf16.mxu0 0
    %7807 = vmatpush1.bf16.msra.mxu0 %v3681
    %7808 = vmatprep.subr.bf16.mxu0 0
    %7809 = vmatpush1.bf16.msra.mxu0 %v3682
    %7810 = vmatprep.subr.bf16.mxu0 0
    %7811 = vmatpush1.bf16.msra.mxu0 %v3683
    %7812 = vmatprep.subr.bf16.mxu0 0
    %7813 = vmatpush1.bf16.msra.mxu0 %v3684
    %7814 = vmatprep.subr.bf16.mxu0 0
    %7815 = vmatpush1.bf16.msra.mxu0 %v3685
    %7816 = vmatprep.subr.bf16.mxu0 0
    %7817 = vmatpush1.bf16.msra.mxu0 %v3686
    %7818 = vmatprep.subr.bf16.mxu0 0
    %7819 = vmatpush1.bf16.msra.mxu0 %v3687
    %7820 = vmatprep.mubr.bf16.mxu0 %v5489
    %7821 = vmatmul.mubr.bf16.gmra.mrb[0].mxu0 %v5488
    %v7822 = vpop.f32.mrb[0].mxu0
    %v7823 = vadd.f32 %v7534, %v7822
    %v7824 = vpop.f32.mrb[0].mxu0
    %v7825 = vpop.f32.mrb[0].mxu0
    %v7826 = vadd.f32 %v7537, %v7825
    %v7827 = vpop.f32.mrb[0].mxu0
    %7828 = vmatprep.mubr.bf16.mxu0 %v5507
    %7829 = vmatmul.mubr.bf16.gmra.mrb[0].mxu0 %v5506
    %v7830 = vpop.f32.mrb[0].mxu0
    %v7831 = vadd.f32 %v7542, %v7830
    %v7832 = vpop.f32.mrb[0].mxu0
    %v7833 = vpop.f32.mrb[0].mxu0
    %v7834 = vadd.f32 %v7545, %v7833
    %v7835 = vpop.f32.mrb[0].mxu0
    %7836 = vmatprep.mubr.bf16.mxu0 %v5525
    %7837 = vmatmul.mubr.bf16.gmra.mrb[0].mxu0 %v5524
    %v7838 = vpop.f32.mrb[0].mxu0
    %v7839 = vadd.f32 %v7550, %v7838
    %v7840 = vpop.f32.mrb[0].mxu0
    %v7841 = vpop.f32.mrb[0].mxu0
    %v7842 = vadd.f32 %v7553, %v7841
    %v7843 = vpop.f32.mrb[0].mxu0
    %7844 = vmatprep.mubr.bf16.mxu0 %v5543
    %7845 = vmatmul.mubr.bf16.gmra.mrb[0].mxu0 %v5542
    %v7846 = vpop.f32.mrb[0].mxu0
    %v7847 = vadd.f32 %v7558, %v7846
    %v7848 = vpop.f32.mrb[0].mxu0
    %v7849 = vpop.f32.mrb[0].mxu0
    %v7850 = vadd.f32 %v7561, %v7849
    %v7851 = vpop.f32.mrb[0].mxu0
    %7852 = vmatprep.mubr.bf16.mxu0 %v5561
    %7853 = vmatmul.mubr.bf16.gmra.mrb[0].mxu0 %v5560
    %v7854 = vpop.f32.mrb[0].mxu0
    %v7855 = vadd.f32 %v7566, %v7854
    %v7856 = vpop.f32.mrb[0].mxu0
    %v7857 = vpop.f32.mrb[0].mxu0
    %v7858 = vadd.f32 %v7569, %v7857
    %v7859 = vpop.f32.mrb[0].mxu0
    %7860 = vmatprep.mubr.bf16.mxu0 %v5579
    %7861 = vmatmul.mubr.bf16.gmra.mrb[0].mxu0 %v5578
    %v7862 = vpop.f32.mrb[0].mxu0
    %v7863 = vadd.f32 %v7574, %v7862
    %v7864 = vpop.f32.mrb[0].mxu0
    %v7865 = vpop.f32.mrb[0].mxu0
    %v7866 = vadd.f32 %v7577, %v7865
    %v7867 = vpop.f32.mrb[0].mxu0
    %7868 = vmatprep.mubr.bf16.mxu0 %v5597
    %7869 = vmatmul.mubr.bf16.gmra.mrb[0].mxu0 %v5596
    %v7870 = vpop.f32.mrb[0].mxu0
    %v7871 = vadd.f32 %v7582, %v7870
    %v7872 = vpop.f32.mrb[0].mxu0
    %v7873 = vpop.f32.mrb[0].mxu0
    %v7874 = vadd.f32 %v7585, %v7873
    %v7875 = vpop.f32.mrb[0].mxu0
    %7876 = vmatprep.mubr.bf16.mxu0 %v5615
    %7877 = vmatmul.mubr.bf16.gmra.mrb[0].mxu0 %v5614
    %v7878 = vpop.f32.mrb[0].mxu0
    %v7879 = vadd.f32 %v7590, %v7878
    %v7880 = vpop.f32.mrb[0].mxu0
    %v7881 = vpop.f32.mrb[0].mxu0
    %v7882 = vadd.f32 %v7593, %v7881
    %v7883 = vpop.f32.mrb[0].mxu0
    %7884 = vmatprep.mubr.bf16.mxu0 %v5633
    %7885 = vmatmul.mubr.bf16.gmra.mrb[0].mxu0 %v5632
    %v7886 = vpop.f32.mrb[0].mxu0
    %v7887 = vadd.f32 %v7598, %v7886
    %v7888 = vpop.f32.mrb[0].mxu0
    %v7889 = vpop.f32.mrb[0].mxu0
    %v7890 = vadd.f32 %v7601, %v7889
    %v7891 = vpop.f32.mrb[0].mxu0
    %7892 = vmatprep.mubr.bf16.mxu0 %v5651
    %7893 = vmatmul.mubr.bf16.gmra.mrb[0].mxu0 %v5650
    %v7894 = vpop.f32.mrb[0].mxu0
    %v7895 = vadd.f32 %v7606, %v7894
    %v7896 = vpop.f32.mrb[0].mxu0
    %v7897 = vpop.f32.mrb[0].mxu0
    %v7898 = vadd.f32 %v7609, %v7897
    %v7899 = vpop.f32.mrb[0].mxu0
    %7900 = vmatprep.mubr.bf16.mxu0 %v5669
    %7901 = vmatmul.mubr.bf16.gmra.mrb[0].mxu0 %v5668
    %v7902 = vpop.f32.mrb[0].mxu0
    %v7903 = vadd.f32 %v7614, %v7902
    %v7904 = vpop.f32.mrb[0].mxu0
    %v7905 = vpop.f32.mrb[0].mxu0
    %v7906 = vadd.f32 %v7617, %v7905
    %v7907 = vpop.f32.mrb[0].mxu0
    %7908 = vmatprep.mubr.bf16.mxu0 %v5687
    %7909 = vmatmul.mubr.bf16.gmra.mrb[0].mxu0 %v5686
    %v7910 = vpop.f32.mrb[0].mxu0
    %v7911 = vadd.f32 %v7622, %v7910
    %v7912 = vpop.f32.mrb[0].mxu0
    %v7913 = vpop.f32.mrb[0].mxu0
    %v7914 = vadd.f32 %v7625, %v7913
    %v7915 = vpop.f32.mrb[0].mxu0
    %7916 = vmatprep.mubr.bf16.mxu0 %v5705
    %7917 = vmatmul.mubr.bf16.gmra.mrb[0].mxu0 %v5704
    %v7918 = vpop.f32.mrb[0].mxu0
    %v7919 = vadd.f32 %v7630, %v7918
    %v7920 = vpop.f32.mrb[0].mxu0
    %v7921 = vpop.f32.mrb[0].mxu0
    %v7922 = vadd.f32 %v7633, %v7921
    %v7923 = vpop.f32.mrb[0].mxu0
    %7924 = vmatprep.mubr.bf16.mxu0 %v5723
    %7925 = vmatmul.mubr.bf16.gmra.mrb[0].mxu0 %v5722
    %v7926 = vpop.f32.mrb[0].mxu0
    %v7927 = vadd.f32 %v7638, %v7926
    %v7928 = vpop.f32.mrb[0].mxu0
    %v7929 = vpop.f32.mrb[0].mxu0
    %v7930 = vadd.f32 %v7641, %v7929
    %v7931 = vpop.f32.mrb[0].mxu0
    %7932 = vmatprep.mubr.bf16.mxu0 %v5741
    %7933 = vmatmul.mubr.bf16.gmra.mrb[0].mxu0 %v5740
    %v7934 = vpop.f32.mrb[0].mxu0
    %v7935 = vadd.f32 %v7646, %v7934
    %v7936 = vpop.f32.mrb[0].mxu0
    %v7937 = vpop.f32.mrb[0].mxu0
    %v7938 = vadd.f32 %v7649, %v7937
    %v7939 = vpop.f32.mrb[0].mxu0
    %7940 = vmatprep.mubr.bf16.mxu0 %v5759
    %7941 = vmatmul.mubr.bf16.gmra.mrb[0].mxu0 %v5758
    %v7942 = vpop.f32.mrb[0].mxu0
    %v7943 = vadd.f32 %v7654, %v7942
    %v7944 = vpop.f32.mrb[0].mxu0
    %v7945 = vpop.f32.mrb[0].mxu0
    %v7946 = vadd.f32 %v7657, %v7945
    %v7947 = vpop.f32.mrb[0].mxu0
    %7948 = vmatprep.mubr.bf16.mxu0 %v5777
    %7949 = vmatmul.mubr.bf16.gmra.mrb[0].mxu0 %v5776
    %v7950 = vpop.f32.mrb[0].mxu0
    %v7951 = vadd.f32 %v7662, %v7950
    %v7952 = vpop.f32.mrb[0].mxu0
    %v7953 = vpop.f32.mrb[0].mxu0
    %v7954 = vadd.f32 %v7665, %v7953
    %v7955 = vpop.f32.mrb[0].mxu0
    %7956 = vmatprep.mubr.bf16.mxu0 %v5795
    %7957 = vmatmul.mubr.bf16.gmra.mrb[0].mxu0 %v5794
    %v7958 = vpop.f32.mrb[0].mxu0
    %v7959 = vadd.f32 %v7670, %v7958
    %v7960 = vpop.f32.mrb[0].mxu0
    %v7961 = vpop.f32.mrb[0].mxu0
    %v7962 = vadd.f32 %v7673, %v7961
    %v7963 = vpop.f32.mrb[0].mxu0
    %7964 = vmatprep.mubr.bf16.mxu0 %v5813
    %7965 = vmatmul.mubr.bf16.gmra.mrb[0].mxu0 %v5812
    %v7966 = vpop.f32.mrb[0].mxu0
    %v7967 = vadd.f32 %v7678, %v7966
    %v7968 = vpop.f32.mrb[0].mxu0
    %v7969 = vpop.f32.mrb[0].mxu0
    %v7970 = vadd.f32 %v7681, %v7969
    %v7971 = vpop.f32.mrb[0].mxu0
    %7972 = vmatprep.mubr.bf16.mxu0 %v5831
    %7973 = vmatmul.mubr.bf16.gmra.mrb[0].mxu0 %v5830
    %v7974 = vpop.f32.mrb[0].mxu0
    %v7975 = vadd.f32 %v7686, %v7974
    %v7976 = vpop.f32.mrb[0].mxu0
    %v7977 = vpop.f32.mrb[0].mxu0
    %v7978 = vadd.f32 %v7689, %v7977
    %v7979 = vpop.f32.mrb[0].mxu0
    %7980 = vmatprep.mubr.bf16.mxu0 %v5849
    %7981 = vmatmul.mubr.bf16.gmra.mrb[0].mxu0 %v5848
    %v7982 = vpop.f32.mrb[0].mxu0
    %v7983 = vadd.f32 %v7694, %v7982
    %v7984 = vpop.f32.mrb[0].mxu0
    %v7985 = vpop.f32.mrb[0].mxu0
    %v7986 = vadd.f32 %v7697, %v7985
    %v7987 = vpop.f32.mrb[0].mxu0
    %7988 = vmatprep.mubr.bf16.mxu0 %v5867
    %7989 = vmatmul.mubr.bf16.gmra.mrb[0].mxu0 %v5866
    %v7990 = vpop.f32.mrb[0].mxu0
    %v7991 = vadd.f32 %v7702, %v7990
    %v7992 = vpop.f32.mrb[0].mxu0
    %v7993 = vpop.f32.mrb[0].mxu0
    %v7994 = vadd.f32 %v7705, %v7993
    %v7995 = vpop.f32.mrb[0].mxu0
    %7996 = vmatprep.mubr.bf16.mxu0 %v5885
    %7997 = vmatmul.mubr.bf16.gmra.mrb[0].mxu0 %v5884
    %v7998 = vpop.f32.mrb[0].mxu0
    %v7999 = vadd.f32 %v7710, %v7998
    %v8000 = vpop.f32.mrb[0].mxu0
    %v8001 = vpop.f32.mrb[0].mxu0
    %v8002 = vadd.f32 %v7713, %v8001
    %v8003 = vpop.f32.mrb[0].mxu0
    %8004 = vmatprep.mubr.bf16.mxu0 %v5903
    %8005 = vmatmul.mubr.bf16.gmra.mrb[0].mxu0 %v5902
    %v8006 = vpop.f32.mrb[0].mxu0
    %v8007 = vadd.f32 %v7718, %v8006
    %v8008 = vpop.f32.mrb[0].mxu0
    %v8009 = vpop.f32.mrb[0].mxu0
    %v8010 = vadd.f32 %v7721, %v8009
    %v8011 = vpop.f32.mrb[0].mxu0
    %8012 = vmatprep.mubr.bf16.mxu0 %v5921
    %8013 = vmatmul.mubr.bf16.gmra.mrb[0].mxu0 %v5920
    %v8014 = vpop.f32.mrb[0].mxu0
    %v8015 = vadd.f32 %v7726, %v8014
    %v8016 = vpop.f32.mrb[0].mxu0
    %v8017 = vpop.f32.mrb[0].mxu0
    %v8018 = vadd.f32 %v7729, %v8017
    %v8019 = vpop.f32.mrb[0].mxu0
    %8020 = vmatprep.mubr.bf16.mxu0 %v5939
    %8021 = vmatmul.mubr.bf16.gmra.mrb[0].mxu0 %v5938
    %v8022 = vpop.f32.mrb[0].mxu0
    %v8023 = vadd.f32 %v7734, %v8022
    %v8024 = vpop.f32.mrb[0].mxu0
    %v8025 = vpop.f32.mrb[0].mxu0
    %v8026 = vadd.f32 %v7737, %v8025
    %v8027 = vpop.f32.mrb[0].mxu0
    %8028 = vmatprep.mubr.bf16.mxu0 %v5957
    %8029 = vmatmul.mubr.bf16.gmra.mrb[0].mxu0 %v5956
    %v8030 = vpop.f32.mrb[0].mxu0
    %v8031 = vadd.f32 %v7742, %v8030
    %v8032 = vpop.f32.mrb[0].mxu0
    %v8033 = vpop.f32.mrb[0].mxu0
    %v8034 = vadd.f32 %v7745, %v8033
    %v8035 = vpop.f32.mrb[0].mxu0
    %8036 = vmatprep.mubr.bf16.mxu0 %v5975
    %8037 = vmatmul.mubr.bf16.gmra.mrb[0].mxu0 %v5974
    %v8038 = vpop.f32.mrb[0].mxu0
    %v8039 = vadd.f32 %v7750, %v8038
    %v8040 = vpop.f32.mrb[0].mxu0
    %v8041 = vpop.f32.mrb[0].mxu0
    %v8042 = vadd.f32 %v7753, %v8041
    %v8043 = vpop.f32.mrb[0].mxu0
    %8044 = vmatprep.mubr.bf16.mxu0 %v5993
    %8045 = vmatmul.mubr.bf16.gmra.mrb[0].mxu0 %v5992
    %v8046 = vpop.f32.mrb[0].mxu0
    %v8047 = vadd.f32 %v7758, %v8046
    %v8048 = vpop.f32.mrb[0].mxu0
    %v8049 = vpop.f32.mrb[0].mxu0
    %v8050 = vadd.f32 %v7761, %v8049
    %v8051 = vpop.f32.mrb[0].mxu0
    %8052 = vmatprep.mubr.bf16.mxu0 %v6011
    %8053 = vmatmul.mubr.bf16.gmra.mrb[0].mxu0 %v6010
    %v8054 = vpop.f32.mrb[0].mxu0
    %v8055 = vadd.f32 %v7766, %v8054
    %v8056 = vpop.f32.mrb[0].mxu0
    %v8057 = vpop.f32.mrb[0].mxu0
    %v8058 = vadd.f32 %v7769, %v8057
    %v8059 = vpop.f32.mrb[0].mxu0
    %8060 = vmatprep.mubr.bf16.mxu0 %v6029
    %8061 = vmatmul.mubr.bf16.gmra.mrb[0].mxu0 %v6028
    %v8062 = vpop.f32.mrb[0].mxu0
    %v8063 = vadd.f32 %v7774, %v8062
    %v8064 = vpop.f32.mrb[0].mxu0
    %v8065 = vpop.f32.mrb[0].mxu0
    %v8066 = vadd.f32 %v7777, %v8065
    %v8067 = vpop.f32.mrb[0].mxu0
    %8068 = vmatprep.mubr.bf16.mxu0 %v6047
    %8069 = vmatmul.mubr.bf16.gmra.mrb[0].mxu0 %v6046
    %v8070 = vpop.f32.mrb[0].mxu0
    %v8071 = vadd.f32 %v7782, %v8070
    %v8072 = vpop.f32.mrb[0].mxu0
    %v8073 = vpop.f32.mrb[0].mxu0
    %v8074 = vadd.f32 %v7785, %v8073
    %v8075 = vpop.f32.mrb[0].mxu0
    %8076 = vdwg.mxu0
    %8077 = vmatprep.subr.bf16.mxu0 0
    %8078 = vmatpush1.bf16.msra.mxu0 %v3688
    %8079 = vmatprep.subr.bf16.mxu0 0
    %8080 = vmatpush1.bf16.msra.mxu0 %v3689
    %8081 = vmatprep.subr.bf16.mxu0 0
    %8082 = vmatpush1.bf16.msra.mxu0 %v3690
    %8083 = vmatprep.subr.bf16.mxu0 0
    %8084 = vmatpush1.bf16.msra.mxu0 %v3691
    %8085 = vmatprep.subr.bf16.mxu0 0
    %8086 = vmatpush1.bf16.msra.mxu0 %v3692
    %8087 = vmatprep.subr.bf16.mxu0 0
    %8088 = vmatpush1.bf16.msra.mxu0 %v3693
    %8089 = vmatprep.subr.bf16.mxu0 0
    %8090 = vmatpush1.bf16.msra.mxu0 %v3694
    %8091 = vmatprep.subr.bf16.mxu0 0
    %8092 = vmatpush1.bf16.msra.mxu0 %v3695
    %8093 = vmatprep.subr.bf16.mxu0 0
    %8094 = vmatpush1.bf16.msra.mxu0 %v3696
    %8095 = vmatprep.subr.bf16.mxu0 0
    %8096 = vmatpush1.bf16.msra.mxu0 %v3697
    %8097 = vmatprep.subr.bf16.mxu0 0
    %8098 = vmatpush1.bf16.msra.mxu0 %v3698
    %8099 = vmatprep.subr.bf16.mxu0 0
    %8100 = vmatpush1.bf16.msra.mxu0 %v3699
    %8101 = vmatprep.subr.bf16.mxu0 0
    %8102 = vmatpush1.bf16.msra.mxu0 %v3700
    %8103 = vmatprep.subr.bf16.mxu0 0
    %8104 = vmatpush1.bf16.msra.mxu0 %v3701
    %8105 = vmatprep.subr.bf16.mxu0 0
    %8106 = vmatpush1.bf16.msra.mxu0 %v3702
    %8107 = vmatprep.subr.bf16.mxu0 0
    %8108 = vmatpush1.bf16.msra.mxu0 %v3703
    %8109 = vmatprep.mubr.bf16.mxu0 %v5491
    %8110 = vmatmul.mubr.bf16.gmra.mrb[0].mxu0 %v5490
    %v8111 = vpop.f32.mrb[0].mxu0
    %v8112 = vadd.f32 %v7823, %v8111
    %v8113 = vpop.f32.mrb[0].mxu0
    %v8114 = vpop.f32.mrb[0].mxu0
    %v8115 = vadd.f32 %v7826, %v8114
    %v8116 = vpop.f32.mrb[0].mxu0
    %8117 = vmatprep.mubr.bf16.mxu0 %v5509
    %8118 = vmatmul.mubr.bf16.gmra.mrb[0].mxu0 %v5508
    %v8119 = vpop.f32.mrb[0].mxu0
    %v8120 = vadd.f32 %v7831, %v8119
    %v8121 = vpop.f32.mrb[0].mxu0
    %v8122 = vpop.f32.mrb[0].mxu0
    %v8123 = vadd.f32 %v7834, %v8122
    %v8124 = vpop.f32.mrb[0].mxu0
    %8125 = vmatprep.mubr.bf16.mxu0 %v5527
    %8126 = vmatmul.mubr.bf16.gmra.mrb[0].mxu0 %v5526
    %v8127 = vpop.f32.mrb[0].mxu0
    %v8128 = vadd.f32 %v7839, %v8127
    %v8129 = vpop.f32.mrb[0].mxu0
    %v8130 = vpop.f32.mrb[0].mxu0
    %v8131 = vadd.f32 %v7842, %v8130
    %v8132 = vpop.f32.mrb[0].mxu0
    %8133 = vmatprep.mubr.bf16.mxu0 %v5545
    %8134 = vmatmul.mubr.bf16.gmra.mrb[0].mxu0 %v5544
    %v8135 = vpop.f32.mrb[0].mxu0
    %v8136 = vadd.f32 %v7847, %v8135
    %v8137 = vpop.f32.mrb[0].mxu0
    %v8138 = vpop.f32.mrb[0].mxu0
    %v8139 = vadd.f32 %v7850, %v8138
    %v8140 = vpop.f32.mrb[0].mxu0
    %8141 = vmatprep.mubr.bf16.mxu0 %v5563
    %8142 = vmatmul.mubr.bf16.gmra.mrb[0].mxu0 %v5562
    %v8143 = vpop.f32.mrb[0].mxu0
    %v8144 = vadd.f32 %v7855, %v8143
    %v8145 = vpop.f32.mrb[0].mxu0
    %v8146 = vpop.f32.mrb[0].mxu0
    %v8147 = vadd.f32 %v7858, %v8146
    %v8148 = vpop.f32.mrb[0].mxu0
    %8149 = vmatprep.mubr.bf16.mxu0 %v5581
    %8150 = vmatmul.mubr.bf16.gmra.mrb[0].mxu0 %v5580
    %v8151 = vpop.f32.mrb[0].mxu0
    %v8152 = vadd.f32 %v7863, %v8151
    %v8153 = vpop.f32.mrb[0].mxu0
    %v8154 = vpop.f32.mrb[0].mxu0
    %v8155 = vadd.f32 %v7866, %v8154
    %v8156 = vpop.f32.mrb[0].mxu0
    %8157 = vmatprep.mubr.bf16.mxu0 %v5599
    %8158 = vmatmul.mubr.bf16.gmra.mrb[0].mxu0 %v5598
    %v8159 = vpop.f32.mrb[0].mxu0
    %v8160 = vadd.f32 %v7871, %v8159
    %v8161 = vpop.f32.mrb[0].mxu0
    %v8162 = vpop.f32.mrb[0].mxu0
    %v8163 = vadd.f32 %v7874, %v8162
    %v8164 = vpop.f32.mrb[0].mxu0
    %8165 = vmatprep.mubr.bf16.mxu0 %v5617
    %8166 = vmatmul.mubr.bf16.gmra.mrb[0].mxu0 %v5616
    %v8167 = vpop.f32.mrb[0].mxu0
    %v8168 = vadd.f32 %v7879, %v8167
    %v8169 = vpop.f32.mrb[0].mxu0
    %v8170 = vpop.f32.mrb[0].mxu0
    %v8171 = vadd.f32 %v7882, %v8170
    %v8172 = vpop.f32.mrb[0].mxu0
    %8173 = vmatprep.mubr.bf16.mxu0 %v5635
    %8174 = vmatmul.mubr.bf16.gmra.mrb[0].mxu0 %v5634
    %v8175 = vpop.f32.mrb[0].mxu0
    %v8176 = vadd.f32 %v7887, %v8175
    %v8177 = vpop.f32.mrb[0].mxu0
    %v8178 = vpop.f32.mrb[0].mxu0
    %v8179 = vadd.f32 %v7890, %v8178
    %v8180 = vpop.f32.mrb[0].mxu0
    %8181 = vmatprep.mubr.bf16.mxu0 %v5653
    %8182 = vmatmul.mubr.bf16.gmra.mrb[0].mxu0 %v5652
    %v8183 = vpop.f32.mrb[0].mxu0
    %v8184 = vadd.f32 %v7895, %v8183
    %v8185 = vpop.f32.mrb[0].mxu0
    %v8186 = vpop.f32.mrb[0].mxu0
    %v8187 = vadd.f32 %v7898, %v8186
    %v8188 = vpop.f32.mrb[0].mxu0
    %8189 = vmatprep.mubr.bf16.mxu0 %v5671
    %8190 = vmatmul.mubr.bf16.gmra.mrb[0].mxu0 %v5670
    %v8191 = vpop.f32.mrb[0].mxu0
    %v8192 = vadd.f32 %v7903, %v8191
    %v8193 = vpop.f32.mrb[0].mxu0
    %v8194 = vpop.f32.mrb[0].mxu0
    %v8195 = vadd.f32 %v7906, %v8194
    %v8196 = vpop.f32.mrb[0].mxu0
    %8197 = vmatprep.mubr.bf16.mxu0 %v5689
    %8198 = vmatmul.mubr.bf16.gmra.mrb[0].mxu0 %v5688
    %v8199 = vpop.f32.mrb[0].mxu0
    %v8200 = vadd.f32 %v7911, %v8199
    %v8201 = vpop.f32.mrb[0].mxu0
    %v8202 = vpop.f32.mrb[0].mxu0
    %v8203 = vadd.f32 %v7914, %v8202
    %v8204 = vpop.f32.mrb[0].mxu0
    %8205 = vmatprep.mubr.bf16.mxu0 %v5707
    %8206 = vmatmul.mubr.bf16.gmra.mrb[0].mxu0 %v5706
    %v8207 = vpop.f32.mrb[0].mxu0
    %v8208 = vadd.f32 %v7919, %v8207
    %v8209 = vpop.f32.mrb[0].mxu0
    %v8210 = vpop.f32.mrb[0].mxu0
    %v8211 = vadd.f32 %v7922, %v8210
    %v8212 = vpop.f32.mrb[0].mxu0
    %8213 = vmatprep.mubr.bf16.mxu0 %v5725
    %8214 = vmatmul.mubr.bf16.gmra.mrb[0].mxu0 %v5724
    %v8215 = vpop.f32.mrb[0].mxu0
    %v8216 = vadd.f32 %v7927, %v8215
    %v8217 = vpop.f32.mrb[0].mxu0
    %v8218 = vpop.f32.mrb[0].mxu0
    %v8219 = vadd.f32 %v7930, %v8218
    %v8220 = vpop.f32.mrb[0].mxu0
    %8221 = vmatprep.mubr.bf16.mxu0 %v5743
    %8222 = vmatmul.mubr.bf16.gmra.mrb[0].mxu0 %v5742
    %v8223 = vpop.f32.mrb[0].mxu0
    %v8224 = vadd.f32 %v7935, %v8223
    %v8225 = vpop.f32.mrb[0].mxu0
    %v8226 = vpop.f32.mrb[0].mxu0
    %v8227 = vadd.f32 %v7938, %v8226
    %v8228 = vpop.f32.mrb[0].mxu0
    %8229 = vmatprep.mubr.bf16.mxu0 %v5761
    %8230 = vmatmul.mubr.bf16.gmra.mrb[0].mxu0 %v5760
    %v8231 = vpop.f32.mrb[0].mxu0
    %v8232 = vadd.f32 %v7943, %v8231
    %v8233 = vpop.f32.mrb[0].mxu0
    %v8234 = vpop.f32.mrb[0].mxu0
    %v8235 = vadd.f32 %v7946, %v8234
    %v8236 = vpop.f32.mrb[0].mxu0
    %8237 = vmatprep.mubr.bf16.mxu0 %v5779
    %8238 = vmatmul.mubr.bf16.gmra.mrb[0].mxu0 %v5778
    %v8239 = vpop.f32.mrb[0].mxu0
    %v8240 = vadd.f32 %v7951, %v8239
    %v8241 = vpop.f32.mrb[0].mxu0
    %v8242 = vpop.f32.mrb[0].mxu0
    %v8243 = vadd.f32 %v7954, %v8242
    %v8244 = vpop.f32.mrb[0].mxu0
    %8245 = vmatprep.mubr.bf16.mxu0 %v5797
    %8246 = vmatmul.mubr.bf16.gmra.mrb[0].mxu0 %v5796
    %v8247 = vpop.f32.mrb[0].mxu0
    %v8248 = vadd.f32 %v7959, %v8247
    %v8249 = vpop.f32.mrb[0].mxu0
    %v8250 = vpop.f32.mrb[0].mxu0
    %v8251 = vadd.f32 %v7962, %v8250
    %v8252 = vpop.f32.mrb[0].mxu0
    %8253 = vmatprep.mubr.bf16.mxu0 %v5815
    %8254 = vmatmul.mubr.bf16.gmra.mrb[0].mxu0 %v5814
    %v8255 = vpop.f32.mrb[0].mxu0
    %v8256 = vadd.f32 %v7967, %v8255
    %v8257 = vpop.f32.mrb[0].mxu0
    %v8258 = vpop.f32.mrb[0].mxu0
    %v8259 = vadd.f32 %v7970, %v8258
    %v8260 = vpop.f32.mrb[0].mxu0
    %8261 = vmatprep.mubr.bf16.mxu0 %v5833
    %8262 = vmatmul.mubr.bf16.gmra.mrb[0].mxu0 %v5832
    %v8263 = vpop.f32.mrb[0].mxu0
    %v8264 = vadd.f32 %v7975, %v8263
    %v8265 = vpop.f32.mrb[0].mxu0
    %v8266 = vpop.f32.mrb[0].mxu0
    %v8267 = vadd.f32 %v7978, %v8266
    %v8268 = vpop.f32.mrb[0].mxu0
    %8269 = vmatprep.mubr.bf16.mxu0 %v5851
    %8270 = vmatmul.mubr.bf16.gmra.mrb[0].mxu0 %v5850
    %v8271 = vpop.f32.mrb[0].mxu0
    %v8272 = vadd.f32 %v7983, %v8271
    %v8273 = vpop.f32.mrb[0].mxu0
    %v8274 = vpop.f32.mrb[0].mxu0
    %v8275 = vadd.f32 %v7986, %v8274
    %v8276 = vpop.f32.mrb[0].mxu0
    %8277 = vmatprep.mubr.bf16.mxu0 %v5869
    %8278 = vmatmul.mubr.bf16.gmra.mrb[0].mxu0 %v5868
    %v8279 = vpop.f32.mrb[0].mxu0
    %v8280 = vadd.f32 %v7991, %v8279
    %v8281 = vpop.f32.mrb[0].mxu0
    %v8282 = vpop.f32.mrb[0].mxu0
    %v8283 = vadd.f32 %v7994, %v8282
    %v8284 = vpop.f32.mrb[0].mxu0
    %8285 = vmatprep.mubr.bf16.mxu0 %v5887
    %8286 = vmatmul.mubr.bf16.gmra.mrb[0].mxu0 %v5886
    %v8287 = vpop.f32.mrb[0].mxu0
    %v8288 = vadd.f32 %v7999, %v8287
    %v8289 = vpop.f32.mrb[0].mxu0
    %v8290 = vpop.f32.mrb[0].mxu0
    %v8291 = vadd.f32 %v8002, %v8290
    %v8292 = vpop.f32.mrb[0].mxu0
    %8293 = vmatprep.mubr.bf16.mxu0 %v5905
    %8294 = vmatmul.mubr.bf16.gmra.mrb[0].mxu0 %v5904
    %v8295 = vpop.f32.mrb[0].mxu0
    %v8296 = vadd.f32 %v8007, %v8295
    %v8297 = vpop.f32.mrb[0].mxu0
    %v8298 = vpop.f32.mrb[0].mxu0
    %v8299 = vadd.f32 %v8010, %v8298
    %v8300 = vpop.f32.mrb[0].mxu0
    %8301 = vmatprep.mubr.bf16.mxu0 %v5923
    %8302 = vmatmul.mubr.bf16.gmra.mrb[0].mxu0 %v5922
    %v8303 = vpop.f32.mrb[0].mxu0
    %v8304 = vadd.f32 %v8015, %v8303
    %v8305 = vpop.f32.mrb[0].mxu0
    %v8306 = vpop.f32.mrb[0].mxu0
    %v8307 = vadd.f32 %v8018, %v8306
    %v8308 = vpop.f32.mrb[0].mxu0
    %8309 = vmatprep.mubr.bf16.mxu0 %v5941
    %8310 = vmatmul.mubr.bf16.gmra.mrb[0].mxu0 %v5940
    %v8311 = vpop.f32.mrb[0].mxu0
    %v8312 = vadd.f32 %v8023, %v8311
    %v8313 = vpop.f32.mrb[0].mxu0
    %v8314 = vpop.f32.mrb[0].mxu0
    %v8315 = vadd.f32 %v8026, %v8314
    %v8316 = vpop.f32.mrb[0].mxu0
    %8317 = vmatprep.mubr.bf16.mxu0 %v5959
    %8318 = vmatmul.mubr.bf16.gmra.mrb[0].mxu0 %v5958
    %v8319 = vpop.f32.mrb[0].mxu0
    %v8320 = vadd.f32 %v8031, %v8319
    %v8321 = vpop.f32.mrb[0].mxu0
    %v8322 = vpop.f32.mrb[0].mxu0
    %v8323 = vadd.f32 %v8034, %v8322
    %v8324 = vpop.f32.mrb[0].mxu0
    %8325 = vmatprep.mubr.bf16.mxu0 %v5977
    %8326 = vmatmul.mubr.bf16.gmra.mrb[0].mxu0 %v5976
    %v8327 = vpop.f32.mrb[0].mxu0
    %v8328 = vadd.f32 %v8039, %v8327
    %v8329 = vpop.f32.mrb[0].mxu0
    %v8330 = vpop.f32.mrb[0].mxu0
    %v8331 = vadd.f32 %v8042, %v8330
    %v8332 = vpop.f32.mrb[0].mxu0
    %8333 = vmatprep.mubr.bf16.mxu0 %v5995
    %8334 = vmatmul.mubr.bf16.gmra.mrb[0].mxu0 %v5994
    %v8335 = vpop.f32.mrb[0].mxu0
    %v8336 = vadd.f32 %v8047, %v8335
    %v8337 = vpop.f32.mrb[0].mxu0
    %v8338 = vpop.f32.mrb[0].mxu0
    %v8339 = vadd.f32 %v8050, %v8338
    %v8340 = vpop.f32.mrb[0].mxu0
    %8341 = vmatprep.mubr.bf16.mxu0 %v6013
    %8342 = vmatmul.mubr.bf16.gmra.mrb[0].mxu0 %v6012
    %v8343 = vpop.f32.mrb[0].mxu0
    %v8344 = vadd.f32 %v8055, %v8343
    %v8345 = vpop.f32.mrb[0].mxu0
    %v8346 = vpop.f32.mrb[0].mxu0
    %v8347 = vadd.f32 %v8058, %v8346
    %v8348 = vpop.f32.mrb[0].mxu0
    %8349 = vmatprep.mubr.bf16.mxu0 %v6031
    %8350 = vmatmul.mubr.bf16.gmra.mrb[0].mxu0 %v6030
    %v8351 = vpop.f32.mrb[0].mxu0
    %v8352 = vadd.f32 %v8063, %v8351
    %v8353 = vpop.f32.mrb[0].mxu0
    %v8354 = vpop.f32.mrb[0].mxu0
    %v8355 = vadd.f32 %v8066, %v8354
    %v8356 = vpop.f32.mrb[0].mxu0
    %8357 = vmatprep.mubr.bf16.mxu0 %v6049
    %8358 = vmatmul.mubr.bf16.gmra.mrb[0].mxu0 %v6048
    %v8359 = vpop.f32.mrb[0].mxu0
    %v8360 = vadd.f32 %v8071, %v8359
    %v8361 = vpop.f32.mrb[0].mxu0
    %v8362 = vpop.f32.mrb[0].mxu0
    %v8363 = vadd.f32 %v8074, %v8362
    %v8364 = vpop.f32.mrb[0].mxu0
    %8365 = vdwg.mxu0
    %8366 = vmatprep.subr.bf16.mxu0 0
    %8367 = vmatpush1.bf16.msra.mxu0 %v3704
    %8368 = vmatprep.subr.bf16.mxu0 0
    %8369 = vmatpush1.bf16.msra.mxu0 %v3705
    %8370 = vmatprep.subr.bf16.mxu0 0
    %8371 = vmatpush1.bf16.msra.mxu0 %v3706
    %8372 = vmatprep.subr.bf16.mxu0 0
    %8373 = vmatpush1.bf16.msra.mxu0 %v3707
    %8374 = vmatprep.subr.bf16.mxu0 0
    %8375 = vmatpush1.bf16.msra.mxu0 %v3708
    %8376 = vmatprep.subr.bf16.mxu0 0
    %8377 = vmatpush1.bf16.msra.mxu0 %v3709
    %8378 = vmatprep.subr.bf16.mxu0 0
    %8379 = vmatpush1.bf16.msra.mxu0 %v3710
    %8380 = vmatprep.subr.bf16.mxu0 0
    %8381 = vmatpush1.bf16.msra.mxu0 %v3711
    %8382 = vmatprep.subr.bf16.mxu0 0
    %8383 = vmatpush1.bf16.msra.mxu0 %v3712
    %8384 = vmatprep.subr.bf16.mxu0 0
    %8385 = vmatpush1.bf16.msra.mxu0 %v3713
    %8386 = vmatprep.subr.bf16.mxu0 0
    %8387 = vmatpush1.bf16.msra.mxu0 %v3714
    %8388 = vmatprep.subr.bf16.mxu0 0
    %8389 = vmatpush1.bf16.msra.mxu0 %v3715
    %8390 = vmatprep.subr.bf16.mxu0 0
    %8391 = vmatpush1.bf16.msra.mxu0 %v3716
    %8392 = vmatprep.subr.bf16.mxu0 0
    %8393 = vmatpush1.bf16.msra.mxu0 %v3717
    %8394 = vmatprep.subr.bf16.mxu0 0
    %8395 = vmatpush1.bf16.msra.mxu0 %v3718
    %8396 = vmatprep.subr.bf16.mxu0 0
    %8397 = vmatpush1.bf16.msra.mxu0 %v3719
    %8398 = vmatprep.mubr.bf16.mxu0 %v5493
    %8399 = vmatmul.mubr.bf16.gmra.mrb[0].mxu0 %v5492
    %v8400 = vpop.f32.mrb[0].mxu0
    %v8401 = vadd.f32 %v8112, %v8400
    %v8402 = vpop.f32.mrb[0].mxu0
    %v8403 = vpop.f32.mrb[0].mxu0
    %v8404 = vadd.f32 %v8115, %v8403
    %v8405 = vpop.f32.mrb[0].mxu0
    %8406 = vmatprep.mubr.bf16.mxu0 %v5511
    %8407 = vmatmul.mubr.bf16.gmra.mrb[0].mxu0 %v5510
    %v8408 = vpop.f32.mrb[0].mxu0
    %v8409 = vadd.f32 %v8120, %v8408
    %v8410 = vpop.f32.mrb[0].mxu0
    %v8411 = vpop.f32.mrb[0].mxu0
    %v8412 = vadd.f32 %v8123, %v8411
    %v8413 = vpop.f32.mrb[0].mxu0
    %8414 = vmatprep.mubr.bf16.mxu0 %v5529
    %8415 = vmatmul.mubr.bf16.gmra.mrb[0].mxu0 %v5528
    %v8416 = vpop.f32.mrb[0].mxu0
    %v8417 = vadd.f32 %v8128, %v8416
    %v8418 = vpop.f32.mrb[0].mxu0
    %v8419 = vpop.f32.mrb[0].mxu0
    %v8420 = vadd.f32 %v8131, %v8419
    %v8421 = vpop.f32.mrb[0].mxu0
    %8422 = vmatprep.mubr.bf16.mxu0 %v5547
    %8423 = vmatmul.mubr.bf16.gmra.mrb[0].mxu0 %v5546
    %v8424 = vpop.f32.mrb[0].mxu0
    %v8425 = vadd.f32 %v8136, %v8424
    %v8426 = vpop.f32.mrb[0].mxu0
    %v8427 = vpop.f32.mrb[0].mxu0
    %v8428 = vadd.f32 %v8139, %v8427
    %v8429 = vpop.f32.mrb[0].mxu0
    %8430 = vmatprep.mubr.bf16.mxu0 %v5565
    %8431 = vmatmul.mubr.bf16.gmra.mrb[0].mxu0 %v5564
    %v8432 = vpop.f32.mrb[0].mxu0
    %v8433 = vadd.f32 %v8144, %v8432
    %v8434 = vpop.f32.mrb[0].mxu0
    %v8435 = vpop.f32.mrb[0].mxu0
    %v8436 = vadd.f32 %v8147, %v8435
    %v8437 = vpop.f32.mrb[0].mxu0
    %8438 = vmatprep.mubr.bf16.mxu0 %v5583
    %8439 = vmatmul.mubr.bf16.gmra.mrb[0].mxu0 %v5582
    %v8440 = vpop.f32.mrb[0].mxu0
    %v8441 = vadd.f32 %v8152, %v8440
    %v8442 = vpop.f32.mrb[0].mxu0
    %v8443 = vpop.f32.mrb[0].mxu0
    %v8444 = vadd.f32 %v8155, %v8443
    %v8445 = vpop.f32.mrb[0].mxu0
    %8446 = vmatprep.mubr.bf16.mxu0 %v5601
    %8447 = vmatmul.mubr.bf16.gmra.mrb[0].mxu0 %v5600
    %v8448 = vpop.f32.mrb[0].mxu0
    %v8449 = vadd.f32 %v8160, %v8448
    %v8450 = vpop.f32.mrb[0].mxu0
    %v8451 = vpop.f32.mrb[0].mxu0
    %v8452 = vadd.f32 %v8163, %v8451
    %v8453 = vpop.f32.mrb[0].mxu0
    %8454 = vmatprep.mubr.bf16.mxu0 %v5619
    %8455 = vmatmul.mubr.bf16.gmra.mrb[0].mxu0 %v5618
    %v8456 = vpop.f32.mrb[0].mxu0
    %v8457 = vadd.f32 %v8168, %v8456
    %v8458 = vpop.f32.mrb[0].mxu0
    %v8459 = vpop.f32.mrb[0].mxu0
    %v8460 = vadd.f32 %v8171, %v8459
    %v8461 = vpop.f32.mrb[0].mxu0
    %8462 = vmatprep.mubr.bf16.mxu0 %v5637
    %8463 = vmatmul.mubr.bf16.gmra.mrb[0].mxu0 %v5636
    %v8464 = vpop.f32.mrb[0].mxu0
    %v8465 = vadd.f32 %v8176, %v8464
    %v8466 = vpop.f32.mrb[0].mxu0
    %v8467 = vpop.f32.mrb[0].mxu0
    %v8468 = vadd.f32 %v8179, %v8467
    %v8469 = vpop.f32.mrb[0].mxu0
    %8470 = vmatprep.mubr.bf16.mxu0 %v5655
    %8471 = vmatmul.mubr.bf16.gmra.mrb[0].mxu0 %v5654
    %v8472 = vpop.f32.mrb[0].mxu0
    %v8473 = vadd.f32 %v8184, %v8472
    %v8474 = vpop.f32.mrb[0].mxu0
    %v8475 = vpop.f32.mrb[0].mxu0
    %v8476 = vadd.f32 %v8187, %v8475
    %v8477 = vpop.f32.mrb[0].mxu0
    %8478 = vmatprep.mubr.bf16.mxu0 %v5673
    %8479 = vmatmul.mubr.bf16.gmra.mrb[0].mxu0 %v5672
    %v8480 = vpop.f32.mrb[0].mxu0
    %v8481 = vadd.f32 %v8192, %v8480
    %v8482 = vpop.f32.mrb[0].mxu0
    %v8483 = vpop.f32.mrb[0].mxu0
    %v8484 = vadd.f32 %v8195, %v8483
    %v8485 = vpop.f32.mrb[0].mxu0
    %8486 = vmatprep.mubr.bf16.mxu0 %v5691
    %8487 = vmatmul.mubr.bf16.gmra.mrb[0].mxu0 %v5690
    %v8488 = vpop.f32.mrb[0].mxu0
    %v8489 = vadd.f32 %v8200, %v8488
    %v8490 = vpop.f32.mrb[0].mxu0
    %v8491 = vpop.f32.mrb[0].mxu0
    %v8492 = vadd.f32 %v8203, %v8491
    %v8493 = vpop.f32.mrb[0].mxu0
    %8494 = vmatprep.mubr.bf16.mxu0 %v5709
    %8495 = vmatmul.mubr.bf16.gmra.mrb[0].mxu0 %v5708
    %v8496 = vpop.f32.mrb[0].mxu0
    %v8497 = vadd.f32 %v8208, %v8496
    %v8498 = vpop.f32.mrb[0].mxu0
    %v8499 = vpop.f32.mrb[0].mxu0
    %v8500 = vadd.f32 %v8211, %v8499
    %v8501 = vpop.f32.mrb[0].mxu0
    %8502 = vmatprep.mubr.bf16.mxu0 %v5727
    %8503 = vmatmul.mubr.bf16.gmra.mrb[0].mxu0 %v5726
    %v8504 = vpop.f32.mrb[0].mxu0
    %v8505 = vadd.f32 %v8216, %v8504
    %v8506 = vpop.f32.mrb[0].mxu0
    %v8507 = vpop.f32.mrb[0].mxu0
    %v8508 = vadd.f32 %v8219, %v8507
    %v8509 = vpop.f32.mrb[0].mxu0
    %8510 = vmatprep.mubr.bf16.mxu0 %v5745
    %8511 = vmatmul.mubr.bf16.gmra.mrb[0].mxu0 %v5744
    %v8512 = vpop.f32.mrb[0].mxu0
    %v8513 = vadd.f32 %v8224, %v8512
    %v8514 = vpop.f32.mrb[0].mxu0
    %v8515 = vpop.f32.mrb[0].mxu0
    %v8516 = vadd.f32 %v8227, %v8515
    %v8517 = vpop.f32.mrb[0].mxu0
    %8518 = vmatprep.mubr.bf16.mxu0 %v5763
    %8519 = vmatmul.mubr.bf16.gmra.mrb[0].mxu0 %v5762
    %v8520 = vpop.f32.mrb[0].mxu0
    %v8521 = vadd.f32 %v8232, %v8520
    %v8522 = vpop.f32.mrb[0].mxu0
    %v8523 = vpop.f32.mrb[0].mxu0
    %v8524 = vadd.f32 %v8235, %v8523
    %v8525 = vpop.f32.mrb[0].mxu0
    %8526 = vmatprep.mubr.bf16.mxu0 %v5781
    %8527 = vmatmul.mubr.bf16.gmra.mrb[0].mxu0 %v5780
    %v8528 = vpop.f32.mrb[0].mxu0
    %v8529 = vadd.f32 %v8240, %v8528
    %v8530 = vpop.f32.mrb[0].mxu0
    %v8531 = vpop.f32.mrb[0].mxu0
    %v8532 = vadd.f32 %v8243, %v8531
    %v8533 = vpop.f32.mrb[0].mxu0
    %8534 = vmatprep.mubr.bf16.mxu0 %v5799
    %8535 = vmatmul.mubr.bf16.gmra.mrb[0].mxu0 %v5798
    %v8536 = vpop.f32.mrb[0].mxu0
    %v8537 = vadd.f32 %v8248, %v8536
    %v8538 = vpop.f32.mrb[0].mxu0
    %v8539 = vpop.f32.mrb[0].mxu0
    %v8540 = vadd.f32 %v8251, %v8539
    %v8541 = vpop.f32.mrb[0].mxu0
    %8542 = vmatprep.mubr.bf16.mxu0 %v5817
    %8543 = vmatmul.mubr.bf16.gmra.mrb[0].mxu0 %v5816
    %v8544 = vpop.f32.mrb[0].mxu0
    %v8545 = vadd.f32 %v8256, %v8544
    %v8546 = vpop.f32.mrb[0].mxu0
    %v8547 = vpop.f32.mrb[0].mxu0
    %v8548 = vadd.f32 %v8259, %v8547
    %v8549 = vpop.f32.mrb[0].mxu0
    %8550 = vmatprep.mubr.bf16.mxu0 %v5835
    %8551 = vmatmul.mubr.bf16.gmra.mrb[0].mxu0 %v5834
    %v8552 = vpop.f32.mrb[0].mxu0
    %v8553 = vadd.f32 %v8264, %v8552
    %v8554 = vpop.f32.mrb[0].mxu0
    %v8555 = vpop.f32.mrb[0].mxu0
    %v8556 = vadd.f32 %v8267, %v8555
    %v8557 = vpop.f32.mrb[0].mxu0
    %8558 = vmatprep.mubr.bf16.mxu0 %v5853
    %8559 = vmatmul.mubr.bf16.gmra.mrb[0].mxu0 %v5852
    %v8560 = vpop.f32.mrb[0].mxu0
    %v8561 = vadd.f32 %v8272, %v8560
    %v8562 = vpop.f32.mrb[0].mxu0
    %v8563 = vpop.f32.mrb[0].mxu0
    %v8564 = vadd.f32 %v8275, %v8563
    %v8565 = vpop.f32.mrb[0].mxu0
    %8566 = vmatprep.mubr.bf16.mxu0 %v5871
    %8567 = vmatmul.mubr.bf16.gmra.mrb[0].mxu0 %v5870
    %v8568 = vpop.f32.mrb[0].mxu0
    %v8569 = vadd.f32 %v8280, %v8568
    %v8570 = vpop.f32.mrb[0].mxu0
    %v8571 = vpop.f32.mrb[0].mxu0
    %v8572 = vadd.f32 %v8283, %v8571
    %v8573 = vpop.f32.mrb[0].mxu0
    %8574 = vmatprep.mubr.bf16.mxu0 %v5889
    %8575 = vmatmul.mubr.bf16.gmra.mrb[0].mxu0 %v5888
    %v8576 = vpop.f32.mrb[0].mxu0
    %v8577 = vadd.f32 %v8288, %v8576
    %v8578 = vpop.f32.mrb[0].mxu0
    %v8579 = vpop.f32.mrb[0].mxu0
    %v8580 = vadd.f32 %v8291, %v8579
    %v8581 = vpop.f32.mrb[0].mxu0
    %8582 = vmatprep.mubr.bf16.mxu0 %v5907
    %8583 = vmatmul.mubr.bf16.gmra.mrb[0].mxu0 %v5906
    %v8584 = vpop.f32.mrb[0].mxu0
    %v8585 = vadd.f32 %v8296, %v8584
    %v8586 = vpop.f32.mrb[0].mxu0
    %v8587 = vpop.f32.mrb[0].mxu0
    %v8588 = vadd.f32 %v8299, %v8587
    %v8589 = vpop.f32.mrb[0].mxu0
    %8590 = vmatprep.mubr.bf16.mxu0 %v5925
    %8591 = vmatmul.mubr.bf16.gmra.mrb[0].mxu0 %v5924
    %v8592 = vpop.f32.mrb[0].mxu0
    %v8593 = vadd.f32 %v8304, %v8592
    %v8594 = vpop.f32.mrb[0].mxu0
    %v8595 = vpop.f32.mrb[0].mxu0
    %v8596 = vadd.f32 %v8307, %v8595
    %v8597 = vpop.f32.mrb[0].mxu0
    %8598 = vmatprep.mubr.bf16.mxu0 %v5943
    %8599 = vmatmul.mubr.bf16.gmra.mrb[0].mxu0 %v5942
    %v8600 = vpop.f32.mrb[0].mxu0
    %v8601 = vadd.f32 %v8312, %v8600
    %v8602 = vpop.f32.mrb[0].mxu0
    %v8603 = vpop.f32.mrb[0].mxu0
    %v8604 = vadd.f32 %v8315, %v8603
    %v8605 = vpop.f32.mrb[0].mxu0
    %8606 = vmatprep.mubr.bf16.mxu0 %v5961
    %8607 = vmatmul.mubr.bf16.gmra.mrb[0].mxu0 %v5960
    %v8608 = vpop.f32.mrb[0].mxu0
    %v8609 = vadd.f32 %v8320, %v8608
    %v8610 = vpop.f32.mrb[0].mxu0
    %v8611 = vpop.f32.mrb[0].mxu0
    %v8612 = vadd.f32 %v8323, %v8611
    %v8613 = vpop.f32.mrb[0].mxu0
    %8614 = vmatprep.mubr.bf16.mxu0 %v5979
    %8615 = vmatmul.mubr.bf16.gmra.mrb[0].mxu0 %v5978
    %v8616 = vpop.f32.mrb[0].mxu0
    %v8617 = vadd.f32 %v8328, %v8616
    %v8618 = vpop.f32.mrb[0].mxu0
    %v8619 = vpop.f32.mrb[0].mxu0
    %v8620 = vadd.f32 %v8331, %v8619
    %v8621 = vpop.f32.mrb[0].mxu0
    %8622 = vmatprep.mubr.bf16.mxu0 %v5997
    %8623 = vmatmul.mubr.bf16.gmra.mrb[0].mxu0 %v5996
    %v8624 = vpop.f32.mrb[0].mxu0
    %v8625 = vadd.f32 %v8336, %v8624
    %v8626 = vpop.f32.mrb[0].mxu0
    %v8627 = vpop.f32.mrb[0].mxu0
    %v8628 = vadd.f32 %v8339, %v8627
    %v8629 = vpop.f32.mrb[0].mxu0
    %8630 = vmatprep.mubr.bf16.mxu0 %v6015
    %8631 = vmatmul.mubr.bf16.gmra.mrb[0].mxu0 %v6014
    %v8632 = vpop.f32.mrb[0].mxu0
    %v8633 = vadd.f32 %v8344, %v8632
    %v8634 = vpop.f32.mrb[0].mxu0
    %v8635 = vpop.f32.mrb[0].mxu0
    %v8636 = vadd.f32 %v8347, %v8635
    %v8637 = vpop.f32.mrb[0].mxu0
    %8638 = vmatprep.mubr.bf16.mxu0 %v6033
    %8639 = vmatmul.mubr.bf16.gmra.mrb[0].mxu0 %v6032
    %v8640 = vpop.f32.mrb[0].mxu0
    %v8641 = vadd.f32 %v8352, %v8640
    %v8642 = vpop.f32.mrb[0].mxu0
    %v8643 = vpop.f32.mrb[0].mxu0
    %v8644 = vadd.f32 %v8355, %v8643
    %v8645 = vpop.f32.mrb[0].mxu0
    %8646 = vmatprep.mubr.bf16.mxu0 %v6051
    %8647 = vmatmul.mubr.bf16.gmra.mrb[0].mxu0 %v6050
    %v8648 = vpop.f32.mrb[0].mxu0
    %v8649 = vadd.f32 %v8360, %v8648
    %v8650 = vpop.f32.mrb[0].mxu0
    %v8651 = vpop.f32.mrb[0].mxu0
    %v8652 = vadd.f32 %v8363, %v8651
    %v8653 = vpop.f32.mrb[0].mxu0
    %8654 = vdwg.mxu0
    %8655 = vmatprep.subr.bf16.mxu0 0
    %8656 = vmatpush1.bf16.msra.mxu0 %v3720
    %8657 = vmatprep.subr.bf16.mxu0 0
    %8658 = vmatpush1.bf16.msra.mxu0 %v3721
    %8659 = vmatprep.subr.bf16.mxu0 0
    %8660 = vmatpush1.bf16.msra.mxu0 %v3722
    %8661 = vmatprep.subr.bf16.mxu0 0
    %8662 = vmatpush1.bf16.msra.mxu0 %v3723
    %8663 = vmatprep.subr.bf16.mxu0 0
    %8664 = vmatpush1.bf16.msra.mxu0 %v3724
    %8665 = vmatprep.subr.bf16.mxu0 0
    %8666 = vmatpush1.bf16.msra.mxu0 %v3725
    %8667 = vmatprep.subr.bf16.mxu0 0
    %8668 = vmatpush1.bf16.msra.mxu0 %v3726
    %8669 = vmatprep.subr.bf16.mxu0 0
    %8670 = vmatpush1.bf16.msra.mxu0 %v3727
    %8671 = vmatprep.subr.bf16.mxu0 0
    %8672 = vmatpush1.bf16.msra.mxu0 %v3728
    %8673 = vmatprep.subr.bf16.mxu0 0
    %8674 = vmatpush1.bf16.msra.mxu0 %v3729
    %8675 = vmatprep.subr.bf16.mxu0 0
    %8676 = vmatpush1.bf16.msra.mxu0 %v3730
    %8677 = vmatprep.subr.bf16.mxu0 0
    %8678 = vmatpush1.bf16.msra.mxu0 %v3731
    %8679 = vmatprep.subr.bf16.mxu0 0
    %8680 = vmatpush1.bf16.msra.mxu0 %v3732
    %8681 = vmatprep.subr.bf16.mxu0 0
    %8682 = vmatpush1.bf16.msra.mxu0 %v3733
    %8683 = vmatprep.subr.bf16.mxu0 0
    %8684 = vmatpush1.bf16.msra.mxu0 %v3734
    %8685 = vmatprep.subr.bf16.mxu0 0
    %8686 = vmatpush1.bf16.msra.mxu0 %v3735
    %8687 = vmatprep.mubr.bf16.mxu0 %v5495
    %8688 = vmatmul.mubr.bf16.gmra.mrb[0].mxu0 %v5494
    %v8689 = vpop.f32.mrb[0].mxu0
    %v8690 = vadd.f32 %v8401, %v8689
    %v8691 = vpop.f32.mrb[0].mxu0
    %v8692 = vpop.f32.mrb[0].mxu0
    %v8693 = vadd.f32 %v8404, %v8692
    %v8694 = vpop.f32.mrb[0].mxu0
    %8695 = vmatprep.mubr.bf16.mxu0 %v5513
    %8696 = vmatmul.mubr.bf16.gmra.mrb[0].mxu0 %v5512
    %v8697 = vpop.f32.mrb[0].mxu0
    %v8698 = vadd.f32 %v8409, %v8697
    %v8699 = vpop.f32.mrb[0].mxu0
    %v8700 = vpop.f32.mrb[0].mxu0
    %v8701 = vadd.f32 %v8412, %v8700
    %v8702 = vpop.f32.mrb[0].mxu0
    %8703 = vmatprep.mubr.bf16.mxu0 %v5531
    %8704 = vmatmul.mubr.bf16.gmra.mrb[0].mxu0 %v5530
    %v8705 = vpop.f32.mrb[0].mxu0
    %v8706 = vadd.f32 %v8417, %v8705
    %v8707 = vpop.f32.mrb[0].mxu0
    %v8708 = vpop.f32.mrb[0].mxu0
    %v8709 = vadd.f32 %v8420, %v8708
    %v8710 = vpop.f32.mrb[0].mxu0
    %8711 = vmatprep.mubr.bf16.mxu0 %v5549
    %8712 = vmatmul.mubr.bf16.gmra.mrb[0].mxu0 %v5548
    %v8713 = vpop.f32.mrb[0].mxu0
    %v8714 = vadd.f32 %v8425, %v8713
    %v8715 = vpop.f32.mrb[0].mxu0
    %v8716 = vpop.f32.mrb[0].mxu0
    %v8717 = vadd.f32 %v8428, %v8716
    %v8718 = vpop.f32.mrb[0].mxu0
    %8719 = vmatprep.mubr.bf16.mxu0 %v5567
    %8720 = vmatmul.mubr.bf16.gmra.mrb[0].mxu0 %v5566
    %v8721 = vpop.f32.mrb[0].mxu0
    %v8722 = vadd.f32 %v8433, %v8721
    %v8723 = vpop.f32.mrb[0].mxu0
    %v8724 = vpop.f32.mrb[0].mxu0
    %v8725 = vadd.f32 %v8436, %v8724
    %v8726 = vpop.f32.mrb[0].mxu0
    %8727 = vmatprep.mubr.bf16.mxu0 %v5585
    %8728 = vmatmul.mubr.bf16.gmra.mrb[0].mxu0 %v5584
    %v8729 = vpop.f32.mrb[0].mxu0
    %v8730 = vadd.f32 %v8441, %v8729
    %v8731 = vpop.f32.mrb[0].mxu0
    %v8732 = vpop.f32.mrb[0].mxu0
    %v8733 = vadd.f32 %v8444, %v8732
    %v8734 = vpop.f32.mrb[0].mxu0
    %8735 = vmatprep.mubr.bf16.mxu0 %v5603
    %8736 = vmatmul.mubr.bf16.gmra.mrb[0].mxu0 %v5602
    %v8737 = vpop.f32.mrb[0].mxu0
    %v8738 = vadd.f32 %v8449, %v8737
    %v8739 = vpop.f32.mrb[0].mxu0
    %v8740 = vpop.f32.mrb[0].mxu0
    %v8741 = vadd.f32 %v8452, %v8740
    %v8742 = vpop.f32.mrb[0].mxu0
    %8743 = vmatprep.mubr.bf16.mxu0 %v5621
    %8744 = vmatmul.mubr.bf16.gmra.mrb[0].mxu0 %v5620
    %v8745 = vpop.f32.mrb[0].mxu0
    %v8746 = vadd.f32 %v8457, %v8745
    %v8747 = vpop.f32.mrb[0].mxu0
    %v8748 = vpop.f32.mrb[0].mxu0
    %v8749 = vadd.f32 %v8460, %v8748
    %v8750 = vpop.f32.mrb[0].mxu0
    %8751 = vmatprep.mubr.bf16.mxu0 %v5639
    %8752 = vmatmul.mubr.bf16.gmra.mrb[0].mxu0 %v5638
    %v8753 = vpop.f32.mrb[0].mxu0
    %v8754 = vadd.f32 %v8465, %v8753
    %v8755 = vpop.f32.mrb[0].mxu0
    %v8756 = vpop.f32.mrb[0].mxu0
    %v8757 = vadd.f32 %v8468, %v8756
    %v8758 = vpop.f32.mrb[0].mxu0
    %8759 = vmatprep.mubr.bf16.mxu0 %v5657
    %8760 = vmatmul.mubr.bf16.gmra.mrb[0].mxu0 %v5656
    %v8761 = vpop.f32.mrb[0].mxu0
    %v8762 = vadd.f32 %v8473, %v8761
    %v8763 = vpop.f32.mrb[0].mxu0
    %v8764 = vpop.f32.mrb[0].mxu0
    %v8765 = vadd.f32 %v8476, %v8764
    %v8766 = vpop.f32.mrb[0].mxu0
    %8767 = vmatprep.mubr.bf16.mxu0 %v5675
    %8768 = vmatmul.mubr.bf16.gmra.mrb[0].mxu0 %v5674
    %v8769 = vpop.f32.mrb[0].mxu0
    %v8770 = vadd.f32 %v8481, %v8769
    %v8771 = vpop.f32.mrb[0].mxu0
    %v8772 = vpop.f32.mrb[0].mxu0
    %v8773 = vadd.f32 %v8484, %v8772
    %v8774 = vpop.f32.mrb[0].mxu0
    %8775 = vmatprep.mubr.bf16.mxu0 %v5693
    %8776 = vmatmul.mubr.bf16.gmra.mrb[0].mxu0 %v5692
    %v8777 = vpop.f32.mrb[0].mxu0
    %v8778 = vadd.f32 %v8489, %v8777
    %v8779 = vpop.f32.mrb[0].mxu0
    %v8780 = vpop.f32.mrb[0].mxu0
    %v8781 = vadd.f32 %v8492, %v8780
    %v8782 = vpop.f32.mrb[0].mxu0
    %8783 = vmatprep.mubr.bf16.mxu0 %v5711
    %8784 = vmatmul.mubr.bf16.gmra.mrb[0].mxu0 %v5710
    %v8785 = vpop.f32.mrb[0].mxu0
    %v8786 = vadd.f32 %v8497, %v8785
    %v8787 = vpop.f32.mrb[0].mxu0
    %v8788 = vpop.f32.mrb[0].mxu0
    %v8789 = vadd.f32 %v8500, %v8788
    %v8790 = vpop.f32.mrb[0].mxu0
    %8791 = vmatprep.mubr.bf16.mxu0 %v5729
    %8792 = vmatmul.mubr.bf16.gmra.mrb[0].mxu0 %v5728
    %v8793 = vpop.f32.mrb[0].mxu0
    %v8794 = vadd.f32 %v8505, %v8793
    %v8795 = vpop.f32.mrb[0].mxu0
    %v8796 = vpop.f32.mrb[0].mxu0
    %v8797 = vadd.f32 %v8508, %v8796
    %v8798 = vpop.f32.mrb[0].mxu0
    %8799 = vmatprep.mubr.bf16.mxu0 %v5747
    %8800 = vmatmul.mubr.bf16.gmra.mrb[0].mxu0 %v5746
    %v8801 = vpop.f32.mrb[0].mxu0
    %v8802 = vadd.f32 %v8513, %v8801
    %v8803 = vpop.f32.mrb[0].mxu0
    %v8804 = vpop.f32.mrb[0].mxu0
    %v8805 = vadd.f32 %v8516, %v8804
    %v8806 = vpop.f32.mrb[0].mxu0
    %8807 = vmatprep.mubr.bf16.mxu0 %v5765
    %8808 = vmatmul.mubr.bf16.gmra.mrb[0].mxu0 %v5764
    %v8809 = vpop.f32.mrb[0].mxu0
    %v8810 = vadd.f32 %v8521, %v8809
    %v8811 = vpop.f32.mrb[0].mxu0
    %v8812 = vpop.f32.mrb[0].mxu0
    %v8813 = vadd.f32 %v8524, %v8812
    %v8814 = vpop.f32.mrb[0].mxu0
    %8815 = vmatprep.mubr.bf16.mxu0 %v5783
    %8816 = vmatmul.mubr.bf16.gmra.mrb[0].mxu0 %v5782
    %v8817 = vpop.f32.mrb[0].mxu0
    %v8818 = vadd.f32 %v8529, %v8817
    %v8819 = vpop.f32.mrb[0].mxu0
    %v8820 = vpop.f32.mrb[0].mxu0
    %v8821 = vadd.f32 %v8532, %v8820
    %v8822 = vpop.f32.mrb[0].mxu0
    %8823 = vmatprep.mubr.bf16.mxu0 %v5801
    %8824 = vmatmul.mubr.bf16.gmra.mrb[0].mxu0 %v5800
    %v8825 = vpop.f32.mrb[0].mxu0
    %v8826 = vadd.f32 %v8537, %v8825
    %v8827 = vpop.f32.mrb[0].mxu0
    %v8828 = vpop.f32.mrb[0].mxu0
    %v8829 = vadd.f32 %v8540, %v8828
    %v8830 = vpop.f32.mrb[0].mxu0
    %8831 = vmatprep.mubr.bf16.mxu0 %v5819
    %8832 = vmatmul.mubr.bf16.gmra.mrb[0].mxu0 %v5818
    %v8833 = vpop.f32.mrb[0].mxu0
    %v8834 = vadd.f32 %v8545, %v8833
    %v8835 = vpop.f32.mrb[0].mxu0
    %v8836 = vpop.f32.mrb[0].mxu0
    %v8837 = vadd.f32 %v8548, %v8836
    %v8838 = vpop.f32.mrb[0].mxu0
    %8839 = vmatprep.mubr.bf16.mxu0 %v5837
    %8840 = vmatmul.mubr.bf16.gmra.mrb[0].mxu0 %v5836
    %v8841 = vpop.f32.mrb[0].mxu0
    %v8842 = vadd.f32 %v8553, %v8841
    %v8843 = vpop.f32.mrb[0].mxu0
    %v8844 = vpop.f32.mrb[0].mxu0
    %v8845 = vadd.f32 %v8556, %v8844
    %v8846 = vpop.f32.mrb[0].mxu0
    %8847 = vmatprep.mubr.bf16.mxu0 %v5855
    %8848 = vmatmul.mubr.bf16.gmra.mrb[0].mxu0 %v5854
    %v8849 = vpop.f32.mrb[0].mxu0
    %v8850 = vadd.f32 %v8561, %v8849
    %v8851 = vpop.f32.mrb[0].mxu0
    %v8852 = vpop.f32.mrb[0].mxu0
    %v8853 = vadd.f32 %v8564, %v8852
    %v8854 = vpop.f32.mrb[0].mxu0
    %8855 = vmatprep.mubr.bf16.mxu0 %v5873
    %8856 = vmatmul.mubr.bf16.gmra.mrb[0].mxu0 %v5872
    %v8857 = vpop.f32.mrb[0].mxu0
    %v8858 = vadd.f32 %v8569, %v8857
    %v8859 = vpop.f32.mrb[0].mxu0
    %v8860 = vpop.f32.mrb[0].mxu0
    %v8861 = vadd.f32 %v8572, %v8860
    %v8862 = vpop.f32.mrb[0].mxu0
    %8863 = vmatprep.mubr.bf16.mxu0 %v5891
    %8864 = vmatmul.mubr.bf16.gmra.mrb[0].mxu0 %v5890
    %v8865 = vpop.f32.mrb[0].mxu0
    %v8866 = vadd.f32 %v8577, %v8865
    %v8867 = vpop.f32.mrb[0].mxu0
    %v8868 = vpop.f32.mrb[0].mxu0
    %v8869 = vadd.f32 %v8580, %v8868
    %v8870 = vpop.f32.mrb[0].mxu0
    %8871 = vmatprep.mubr.bf16.mxu0 %v5909
    %8872 = vmatmul.mubr.bf16.gmra.mrb[0].mxu0 %v5908
    %v8873 = vpop.f32.mrb[0].mxu0
    %v8874 = vadd.f32 %v8585, %v8873
    %v8875 = vpop.f32.mrb[0].mxu0
    %v8876 = vpop.f32.mrb[0].mxu0
    %v8877 = vadd.f32 %v8588, %v8876
    %v8878 = vpop.f32.mrb[0].mxu0
    %8879 = vmatprep.mubr.bf16.mxu0 %v5927
    %8880 = vmatmul.mubr.bf16.gmra.mrb[0].mxu0 %v5926
    %v8881 = vpop.f32.mrb[0].mxu0
    %v8882 = vadd.f32 %v8593, %v8881
    %v8883 = vpop.f32.mrb[0].mxu0
    %v8884 = vpop.f32.mrb[0].mxu0
    %v8885 = vadd.f32 %v8596, %v8884
    %v8886 = vpop.f32.mrb[0].mxu0
    %8887 = vmatprep.mubr.bf16.mxu0 %v5945
    %8888 = vmatmul.mubr.bf16.gmra.mrb[0].mxu0 %v5944
    %v8889 = vpop.f32.mrb[0].mxu0
    %v8890 = vadd.f32 %v8601, %v8889
    %v8891 = vpop.f32.mrb[0].mxu0
    %v8892 = vpop.f32.mrb[0].mxu0
    %v8893 = vadd.f32 %v8604, %v8892
    %v8894 = vpop.f32.mrb[0].mxu0
    %8895 = vmatprep.mubr.bf16.mxu0 %v5963
    %8896 = vmatmul.mubr.bf16.gmra.mrb[0].mxu0 %v5962
    %v8897 = vpop.f32.mrb[0].mxu0
    %v8898 = vadd.f32 %v8609, %v8897
    %v8899 = vpop.f32.mrb[0].mxu0
    %v8900 = vpop.f32.mrb[0].mxu0
    %v8901 = vadd.f32 %v8612, %v8900
    %v8902 = vpop.f32.mrb[0].mxu0
    %8903 = vmatprep.mubr.bf16.mxu0 %v5981
    %8904 = vmatmul.mubr.bf16.gmra.mrb[0].mxu0 %v5980
    %v8905 = vpop.f32.mrb[0].mxu0
    %v8906 = vadd.f32 %v8617, %v8905
    %v8907 = vpop.f32.mrb[0].mxu0
    %v8908 = vpop.f32.mrb[0].mxu0
    %v8909 = vadd.f32 %v8620, %v8908
    %v8910 = vpop.f32.mrb[0].mxu0
    %8911 = vmatprep.mubr.bf16.mxu0 %v5999
    %8912 = vmatmul.mubr.bf16.gmra.mrb[0].mxu0 %v5998
    %v8913 = vpop.f32.mrb[0].mxu0
    %v8914 = vadd.f32 %v8625, %v8913
    %v8915 = vpop.f32.mrb[0].mxu0
    %v8916 = vpop.f32.mrb[0].mxu0
    %v8917 = vadd.f32 %v8628, %v8916
    %v8918 = vpop.f32.mrb[0].mxu0
    %8919 = vmatprep.mubr.bf16.mxu0 %v6017
    %8920 = vmatmul.mubr.bf16.gmra.mrb[0].mxu0 %v6016
    %v8921 = vpop.f32.mrb[0].mxu0
    %v8922 = vadd.f32 %v8633, %v8921
    %v8923 = vpop.f32.mrb[0].mxu0
    %v8924 = vpop.f32.mrb[0].mxu0
    %v8925 = vadd.f32 %v8636, %v8924
    %v8926 = vpop.f32.mrb[0].mxu0
    %8927 = vmatprep.mubr.bf16.mxu0 %v6035
    %8928 = vmatmul.mubr.bf16.gmra.mrb[0].mxu0 %v6034
    %v8929 = vpop.f32.mrb[0].mxu0
    %v8930 = vadd.f32 %v8641, %v8929
    %v8931 = vpop.f32.mrb[0].mxu0
    %v8932 = vpop.f32.mrb[0].mxu0
    %v8933 = vadd.f32 %v8644, %v8932
    %v8934 = vpop.f32.mrb[0].mxu0
    %8935 = vmatprep.mubr.bf16.mxu0 %v6053
    %8936 = vmatmul.mubr.bf16.gmra.mrb[0].mxu0 %v6052
    %v8937 = vpop.f32.mrb[0].mxu0
    %v8938 = vadd.f32 %v8649, %v8937
    %v8939 = vpop.f32.mrb[0].mxu0
    %v8940 = vpop.f32.mrb[0].mxu0
    %v8941 = vadd.f32 %v8652, %v8940
    %v8942 = vpop.f32.mrb[0].mxu0
    %8943 = vdwg.mxu0
    %8944 = vmatprep.subr.bf16.mxu0 0
    %8945 = vmatpush1.bf16.msra.mxu0 %v3736
    %8946 = vmatprep.subr.bf16.mxu0 0
    %8947 = vmatpush1.bf16.msra.mxu0 %v3737
    %8948 = vmatprep.subr.bf16.mxu0 0
    %8949 = vmatpush1.bf16.msra.mxu0 %v3738
    %8950 = vmatprep.subr.bf16.mxu0 0
    %8951 = vmatpush1.bf16.msra.mxu0 %v3739
    %8952 = vmatprep.subr.bf16.mxu0 0
    %8953 = vmatpush1.bf16.msra.mxu0 %v3740
    %8954 = vmatprep.subr.bf16.mxu0 0
    %8955 = vmatpush1.bf16.msra.mxu0 %v3741
    %8956 = vmatprep.subr.bf16.mxu0 0
    %8957 = vmatpush1.bf16.msra.mxu0 %v3742
    %8958 = vmatprep.subr.bf16.mxu0 0
    %8959 = vmatpush1.bf16.msra.mxu0 %v3743
    %8960 = vmatprep.subr.bf16.mxu0 0
    %8961 = vmatpush1.bf16.msra.mxu0 %v3744
    %8962 = vmatprep.subr.bf16.mxu0 0
    %8963 = vmatpush1.bf16.msra.mxu0 %v3745
    %8964 = vmatprep.subr.bf16.mxu0 0
    %8965 = vmatpush1.bf16.msra.mxu0 %v3746
    %8966 = vmatprep.subr.bf16.mxu0 0
    %8967 = vmatpush1.bf16.msra.mxu0 %v3747
    %8968 = vmatprep.subr.bf16.mxu0 0
    %8969 = vmatpush1.bf16.msra.mxu0 %v3748
    %8970 = vmatprep.subr.bf16.mxu0 0
    %8971 = vmatpush1.bf16.msra.mxu0 %v3749
    %8972 = vmatprep.subr.bf16.mxu0 0
    %8973 = vmatpush1.bf16.msra.mxu0 %v3750
    %8974 = vmatprep.subr.bf16.mxu0 0
    %8975 = vmatpush1.bf16.msra.mxu0 %v3751
    %8976 = vmatprep.mubr.bf16.mxu0 %v5497
    %8977 = vmatmul.mubr.bf16.gmra.mrb[0].mxu0 %v5496
    %v8978 = vpop.f32.mrb[0].mxu0
    %v8979 = vadd.f32 %v8690, %v8978
    %v8980 = vpop.f32.mrb[0].mxu0
    %v8981 = vpop.f32.mrb[0].mxu0
    %v8982 = vadd.f32 %v8693, %v8981
    %v8983 = vpop.f32.mrb[0].mxu0
    %8984 = vmatprep.mubr.bf16.mxu0 %v5515
    %8985 = vmatmul.mubr.bf16.gmra.mrb[0].mxu0 %v5514
    %v8986 = vpop.f32.mrb[0].mxu0
    %v8987 = vadd.f32 %v8698, %v8986
    %v8988 = vpop.f32.mrb[0].mxu0
    %v8989 = vpop.f32.mrb[0].mxu0
    %v8990 = vadd.f32 %v8701, %v8989
    %v8991 = vpop.f32.mrb[0].mxu0
    %8992 = vmatprep.mubr.bf16.mxu0 %v5533
    %8993 = vmatmul.mubr.bf16.gmra.mrb[0].mxu0 %v5532
    %v8994 = vpop.f32.mrb[0].mxu0
    %v8995 = vadd.f32 %v8706, %v8994
    %v8996 = vpop.f32.mrb[0].mxu0
    %v8997 = vpop.f32.mrb[0].mxu0
    %v8998 = vadd.f32 %v8709, %v8997
    %v8999 = vpop.f32.mrb[0].mxu0
    %9000 = vmatprep.mubr.bf16.mxu0 %v5551
    %9001 = vmatmul.mubr.bf16.gmra.mrb[0].mxu0 %v5550
    %v9002 = vpop.f32.mrb[0].mxu0
    %v9003 = vadd.f32 %v8714, %v9002
    %v9004 = vpop.f32.mrb[0].mxu0
    %v9005 = vpop.f32.mrb[0].mxu0
    %v9006 = vadd.f32 %v8717, %v9005
    %v9007 = vpop.f32.mrb[0].mxu0
    %9008 = vmatprep.mubr.bf16.mxu0 %v5569
    %9009 = vmatmul.mubr.bf16.gmra.mrb[0].mxu0 %v5568
    %v9010 = vpop.f32.mrb[0].mxu0
    %v9011 = vadd.f32 %v8722, %v9010
    %v9012 = vpop.f32.mrb[0].mxu0
    %v9013 = vpop.f32.mrb[0].mxu0
    %v9014 = vadd.f32 %v8725, %v9013
    %v9015 = vpop.f32.mrb[0].mxu0
    %9016 = vmatprep.mubr.bf16.mxu0 %v5587
    %9017 = vmatmul.mubr.bf16.gmra.mrb[0].mxu0 %v5586
    %v9018 = vpop.f32.mrb[0].mxu0
    %v9019 = vadd.f32 %v8730, %v9018
    %v9020 = vpop.f32.mrb[0].mxu0
    %v9021 = vpop.f32.mrb[0].mxu0
    %v9022 = vadd.f32 %v8733, %v9021
    %v9023 = vpop.f32.mrb[0].mxu0
    %9024 = vmatprep.mubr.bf16.mxu0 %v5605
    %9025 = vmatmul.mubr.bf16.gmra.mrb[0].mxu0 %v5604
    %v9026 = vpop.f32.mrb[0].mxu0
    %v9027 = vadd.f32 %v8738, %v9026
    %v9028 = vpop.f32.mrb[0].mxu0
    %v9029 = vpop.f32.mrb[0].mxu0
    %v9030 = vadd.f32 %v8741, %v9029
    %v9031 = vpop.f32.mrb[0].mxu0
    %9032 = vmatprep.mubr.bf16.mxu0 %v5623
    %9033 = vmatmul.mubr.bf16.gmra.mrb[0].mxu0 %v5622
    %v9034 = vpop.f32.mrb[0].mxu0
    %v9035 = vadd.f32 %v8746, %v9034
    %v9036 = vpop.f32.mrb[0].mxu0
    %v9037 = vpop.f32.mrb[0].mxu0
    %v9038 = vadd.f32 %v8749, %v9037
    %v9039 = vpop.f32.mrb[0].mxu0
    %9040 = vmatprep.mubr.bf16.mxu0 %v5641
    %9041 = vmatmul.mubr.bf16.gmra.mrb[0].mxu0 %v5640
    %v9042 = vpop.f32.mrb[0].mxu0
    %v9043 = vadd.f32 %v8754, %v9042
    %v9044 = vpop.f32.mrb[0].mxu0
    %v9045 = vpop.f32.mrb[0].mxu0
    %v9046 = vadd.f32 %v8757, %v9045
    %v9047 = vpop.f32.mrb[0].mxu0
    %9048 = vmatprep.mubr.bf16.mxu0 %v5659
    %9049 = vmatmul.mubr.bf16.gmra.mrb[0].mxu0 %v5658
    %v9050 = vpop.f32.mrb[0].mxu0
    %v9051 = vadd.f32 %v8762, %v9050
    %v9052 = vpop.f32.mrb[0].mxu0
    %v9053 = vpop.f32.mrb[0].mxu0
    %v9054 = vadd.f32 %v8765, %v9053
    %v9055 = vpop.f32.mrb[0].mxu0
    %9056 = vmatprep.mubr.bf16.mxu0 %v5677
    %9057 = vmatmul.mubr.bf16.gmra.mrb[0].mxu0 %v5676
    %v9058 = vpop.f32.mrb[0].mxu0
    %v9059 = vadd.f32 %v8770, %v9058
    %v9060 = vpop.f32.mrb[0].mxu0
    %v9061 = vpop.f32.mrb[0].mxu0
    %v9062 = vadd.f32 %v8773, %v9061
    %v9063 = vpop.f32.mrb[0].mxu0
    %9064 = vmatprep.mubr.bf16.mxu0 %v5695
    %9065 = vmatmul.mubr.bf16.gmra.mrb[0].mxu0 %v5694
    %v9066 = vpop.f32.mrb[0].mxu0
    %v9067 = vadd.f32 %v8778, %v9066
    %v9068 = vpop.f32.mrb[0].mxu0
    %v9069 = vpop.f32.mrb[0].mxu0
    %v9070 = vadd.f32 %v8781, %v9069
    %v9071 = vpop.f32.mrb[0].mxu0
    %9072 = vmatprep.mubr.bf16.mxu0 %v5713
    %9073 = vmatmul.mubr.bf16.gmra.mrb[0].mxu0 %v5712
    %v9074 = vpop.f32.mrb[0].mxu0
    %v9075 = vadd.f32 %v8786, %v9074
    %v9076 = vpop.f32.mrb[0].mxu0
    %v9077 = vpop.f32.mrb[0].mxu0
    %v9078 = vadd.f32 %v8789, %v9077
    %v9079 = vpop.f32.mrb[0].mxu0
    %9080 = vmatprep.mubr.bf16.mxu0 %v5731
    %9081 = vmatmul.mubr.bf16.gmra.mrb[0].mxu0 %v5730
    %v9082 = vpop.f32.mrb[0].mxu0
    %v9083 = vadd.f32 %v8794, %v9082
    %v9084 = vpop.f32.mrb[0].mxu0
    %v9085 = vpop.f32.mrb[0].mxu0
    %v9086 = vadd.f32 %v8797, %v9085
    %v9087 = vpop.f32.mrb[0].mxu0
    %9088 = vmatprep.mubr.bf16.mxu0 %v5749
    %9089 = vmatmul.mubr.bf16.gmra.mrb[0].mxu0 %v5748
    %v9090 = vpop.f32.mrb[0].mxu0
    %v9091 = vadd.f32 %v8802, %v9090
    %v9092 = vpop.f32.mrb[0].mxu0
    %v9093 = vpop.f32.mrb[0].mxu0
    %v9094 = vadd.f32 %v8805, %v9093
    %v9095 = vpop.f32.mrb[0].mxu0
    %9096 = vmatprep.mubr.bf16.mxu0 %v5767
    %9097 = vmatmul.mubr.bf16.gmra.mrb[0].mxu0 %v5766
    %v9098 = vpop.f32.mrb[0].mxu0
    %v9099 = vadd.f32 %v8810, %v9098
    %v9100 = vpop.f32.mrb[0].mxu0
    %v9101 = vpop.f32.mrb[0].mxu0
    %v9102 = vadd.f32 %v8813, %v9101
    %v9103 = vpop.f32.mrb[0].mxu0
    %9104 = vmatprep.mubr.bf16.mxu0 %v5785
    %9105 = vmatmul.mubr.bf16.gmra.mrb[0].mxu0 %v5784
    %v9106 = vpop.f32.mrb[0].mxu0
    %v9107 = vadd.f32 %v8818, %v9106
    %v9108 = vpop.f32.mrb[0].mxu0
    %v9109 = vpop.f32.mrb[0].mxu0
    %v9110 = vadd.f32 %v8821, %v9109
    %v9111 = vpop.f32.mrb[0].mxu0
    %9112 = vmatprep.mubr.bf16.mxu0 %v5803
    %9113 = vmatmul.mubr.bf16.gmra.mrb[0].mxu0 %v5802
    %v9114 = vpop.f32.mrb[0].mxu0
    %v9115 = vadd.f32 %v8826, %v9114
    %v9116 = vpop.f32.mrb[0].mxu0
    %v9117 = vpop.f32.mrb[0].mxu0
    %v9118 = vadd.f32 %v8829, %v9117
    %v9119 = vpop.f32.mrb[0].mxu0
    %9120 = vmatprep.mubr.bf16.mxu0 %v5821
    %9121 = vmatmul.mubr.bf16.gmra.mrb[0].mxu0 %v5820
    %v9122 = vpop.f32.mrb[0].mxu0
    %v9123 = vadd.f32 %v8834, %v9122
    %v9124 = vpop.f32.mrb[0].mxu0
    %v9125 = vpop.f32.mrb[0].mxu0
    %v9126 = vadd.f32 %v8837, %v9125
    %v9127 = vpop.f32.mrb[0].mxu0
    %9128 = vmatprep.mubr.bf16.mxu0 %v5839
    %9129 = vmatmul.mubr.bf16.gmra.mrb[0].mxu0 %v5838
    %v9130 = vpop.f32.mrb[0].mxu0
    %v9131 = vadd.f32 %v8842, %v9130
    %v9132 = vpop.f32.mrb[0].mxu0
    %v9133 = vpop.f32.mrb[0].mxu0
    %v9134 = vadd.f32 %v8845, %v9133
    %v9135 = vpop.f32.mrb[0].mxu0
    %9136 = vmatprep.mubr.bf16.mxu0 %v5857
    %9137 = vmatmul.mubr.bf16.gmra.mrb[0].mxu0 %v5856
    %v9138 = vpop.f32.mrb[0].mxu0
    %v9139 = vadd.f32 %v8850, %v9138
    %v9140 = vpop.f32.mrb[0].mxu0
    %v9141 = vpop.f32.mrb[0].mxu0
    %v9142 = vadd.f32 %v8853, %v9141
    %v9143 = vpop.f32.mrb[0].mxu0
    %9144 = vmatprep.mubr.bf16.mxu0 %v5875
    %9145 = vmatmul.mubr.bf16.gmra.mrb[0].mxu0 %v5874
    %v9146 = vpop.f32.mrb[0].mxu0
    %v9147 = vadd.f32 %v8858, %v9146
    %v9148 = vpop.f32.mrb[0].mxu0
    %v9149 = vpop.f32.mrb[0].mxu0
    %v9150 = vadd.f32 %v8861, %v9149
    %v9151 = vpop.f32.mrb[0].mxu0
    %9152 = vmatprep.mubr.bf16.mxu0 %v5893
    %9153 = vmatmul.mubr.bf16.gmra.mrb[0].mxu0 %v5892
    %v9154 = vpop.f32.mrb[0].mxu0
    %v9155 = vadd.f32 %v8866, %v9154
    %v9156 = vpop.f32.mrb[0].mxu0
    %v9157 = vpop.f32.mrb[0].mxu0
    %v9158 = vadd.f32 %v8869, %v9157
    %v9159 = vpop.f32.mrb[0].mxu0
    %9160 = vmatprep.mubr.bf16.mxu0 %v5911
    %9161 = vmatmul.mubr.bf16.gmra.mrb[0].mxu0 %v5910
    %v9162 = vpop.f32.mrb[0].mxu0
    %v9163 = vadd.f32 %v8874, %v9162
    %v9164 = vpop.f32.mrb[0].mxu0
    %v9165 = vpop.f32.mrb[0].mxu0
    %v9166 = vadd.f32 %v8877, %v9165
    %v9167 = vpop.f32.mrb[0].mxu0
    %9168 = vmatprep.mubr.bf16.mxu0 %v5929
    %9169 = vmatmul.mubr.bf16.gmra.mrb[0].mxu0 %v5928
    %v9170 = vpop.f32.mrb[0].mxu0
    %v9171 = vadd.f32 %v8882, %v9170
    %v9172 = vpop.f32.mrb[0].mxu0
    %v9173 = vpop.f32.mrb[0].mxu0
    %v9174 = vadd.f32 %v8885, %v9173
    %v9175 = vpop.f32.mrb[0].mxu0
    %9176 = vmatprep.mubr.bf16.mxu0 %v5947
    %9177 = vmatmul.mubr.bf16.gmra.mrb[0].mxu0 %v5946
    %v9178 = vpop.f32.mrb[0].mxu0
    %v9179 = vadd.f32 %v8890, %v9178
    %v9180 = vpop.f32.mrb[0].mxu0
    %v9181 = vpop.f32.mrb[0].mxu0
    %v9182 = vadd.f32 %v8893, %v9181
    %v9183 = vpop.f32.mrb[0].mxu0
    %9184 = vmatprep.mubr.bf16.mxu0 %v5965
    %9185 = vmatmul.mubr.bf16.gmra.mrb[0].mxu0 %v5964
    %v9186 = vpop.f32.mrb[0].mxu0
    %v9187 = vadd.f32 %v8898, %v9186
    %v9188 = vpop.f32.mrb[0].mxu0
    %v9189 = vpop.f32.mrb[0].mxu0
    %v9190 = vadd.f32 %v8901, %v9189
    %v9191 = vpop.f32.mrb[0].mxu0
    %9192 = vmatprep.mubr.bf16.mxu0 %v5983
    %9193 = vmatmul.mubr.bf16.gmra.mrb[0].mxu0 %v5982
    %v9194 = vpop.f32.mrb[0].mxu0
    %v9195 = vadd.f32 %v8906, %v9194
    %v9196 = vpop.f32.mrb[0].mxu0
    %v9197 = vpop.f32.mrb[0].mxu0
    %v9198 = vadd.f32 %v8909, %v9197
    %v9199 = vpop.f32.mrb[0].mxu0
    %9200 = vmatprep.mubr.bf16.mxu0 %v6001
    %9201 = vmatmul.mubr.bf16.gmra.mrb[0].mxu0 %v6000
    %v9202 = vpop.f32.mrb[0].mxu0
    %v9203 = vadd.f32 %v8914, %v9202
    %v9204 = vpop.f32.mrb[0].mxu0
    %v9205 = vpop.f32.mrb[0].mxu0
    %v9206 = vadd.f32 %v8917, %v9205
    %v9207 = vpop.f32.mrb[0].mxu0
    %9208 = vmatprep.mubr.bf16.mxu0 %v6019
    %9209 = vmatmul.mubr.bf16.gmra.mrb[0].mxu0 %v6018
    %v9210 = vpop.f32.mrb[0].mxu0
    %v9211 = vadd.f32 %v8922, %v9210
    %v9212 = vpop.f32.mrb[0].mxu0
    %v9213 = vpop.f32.mrb[0].mxu0
    %v9214 = vadd.f32 %v8925, %v9213
    %v9215 = vpop.f32.mrb[0].mxu0
    %9216 = vmatprep.mubr.bf16.mxu0 %v6037
    %9217 = vmatmul.mubr.bf16.gmra.mrb[0].mxu0 %v6036
    %v9218 = vpop.f32.mrb[0].mxu0
    %v9219 = vadd.f32 %v8930, %v9218
    %v9220 = vpop.f32.mrb[0].mxu0
    %v9221 = vpop.f32.mrb[0].mxu0
    %v9222 = vadd.f32 %v8933, %v9221
    %v9223 = vpop.f32.mrb[0].mxu0
    %9224 = vmatprep.mubr.bf16.mxu0 %v6055
    %9225 = vmatmul.mubr.bf16.gmra.mrb[0].mxu0 %v6054
    %v9226 = vpop.f32.mrb[0].mxu0
    %v9227 = vadd.f32 %v8938, %v9226
    %v9228 = vpop.f32.mrb[0].mxu0
    %v9229 = vpop.f32.mrb[0].mxu0
    %v9230 = vadd.f32 %v8941, %v9229
    %v9231 = vpop.f32.mrb[0].mxu0
    %9232 = vdwg.mxu0
    %9233 = vst [vmem:[%s3] sm:$0xff] %v8979
    %9234 = vst [vmem:[%s3 + $0x8] sm:$0xff] %v8982
    %9235 = vst [vmem:[%s3 + $0x10] sm:$0xff] %v8987
    %9236 = vst [vmem:[%s3 + $0x18] sm:$0xff] %v8990
    %9237 = vst [vmem:[%s3 + $0x20] sm:$0xff] %v8995
    %9238 = vst [vmem:[%s3 + $0x28] sm:$0xff] %v8998
    %9239 = vst [vmem:[%s3 + $0x30] sm:$0xff] %v9003
    %9240 = vst [vmem:[%s3 + $0x38] sm:$0xff] %v9006
    %9241 = vst [vmem:[%s3 + $0x40] sm:$0xff] %v9011
    %9242 = vst [vmem:[%s3 + $0x48] sm:$0xff] %v9014
    %9243 = vst [vmem:[%s3 + $0x50] sm:$0xff] %v9019
    %9244 = vst [vmem:[%s3 + $0x58] sm:$0xff] %v9022
    %9245 = vst [vmem:[%s3 + $0x60] sm:$0xff] %v9027
    %9246 = vst [vmem:[%s3 + $0x68] sm:$0xff] %v9030
    %9247 = vst [vmem:[%s3 + $0x70] sm:$0xff] %v9035
    %9248 = vst [vmem:[%s3 + $0x78] sm:$0xff] %v9038
    %9249 = vst [vmem:[%s3 + $0x80] sm:$0xff] %v9043
    %9250 = vst [vmem:[%s3 + $0x88] sm:$0xff] %v9046
    %9251 = vst [vmem:[%s3 + $0x90] sm:$0xff] %v9051
    %9252 = vst [vmem:[%s3 + $0x98] sm:$0xff] %v9054
    %9253 = vst [vmem:[%s3 + $0xa0] sm:$0xff] %v9059
    %9254 = vst [vmem:[%s3 + $0xa8] sm:$0xff] %v9062
    %9255 = vst [vmem:[%s3 + $0xb0] sm:$0xff] %v9067
    %9256 = vst [vmem:[%s3 + $0xb8] sm:$0xff] %v9070
    %9257 = vst [vmem:[%s3 + $0xc0] sm:$0xff] %v9075
    %9258 = vst [vmem:[%s3 + $0xc8] sm:$0xff] %v9078
    %9259 = vst [vmem:[%s3 + $0xd0] sm:$0xff] %v9083
    %9260 = vst [vmem:[%s3 + $0xd8] sm:$0xff] %v9086
    %9261 = vst [vmem:[%s3 + $0xe0] sm:$0xff] %v9091
    %9262 = vst [vmem:[%s3 + $0xe8] sm:$0xff] %v9094
    %9263 = vst [vmem:[%s3 + $0xf0] sm:$0xff] %v9099
    %9264 = vst [vmem:[%s3 + $0xf8] sm:$0xff] %v9102
    %9265 = vst [vmem:[%s3 + $0x100] sm:$0xff] %v9107
    %9266 = vst [vmem:[%s3 + $0x108] sm:$0xff] %v9110
    %9267 = vst [vmem:[%s3 + $0x110] sm:$0xff] %v9115
    %9268 = vst [vmem:[%s3 + $0x118] sm:$0xff] %v9118
    %9269 = vst [vmem:[%s3 + $0x120] sm:$0xff] %v9123
    %9270 = vst [vmem:[%s3 + $0x128] sm:$0xff] %v9126
    %9271 = vst [vmem:[%s3 + $0x130] sm:$0xff] %v9131
    %9272 = vst [vmem:[%s3 + $0x138] sm:$0xff] %v9134
    %9273 = vst [vmem:[%s3 + $0x140] sm:$0xff] %v9139
    %9274 = vst [vmem:[%s3 + $0x148] sm:$0xff] %v9142
    %9275 = vst [vmem:[%s3 + $0x150] sm:$0xff] %v9147
    %9276 = vst [vmem:[%s3 + $0x158] sm:$0xff] %v9150
    %9277 = vst [vmem:[%s3 + $0x160] sm:$0xff] %v9155
    %9278 = vst [vmem:[%s3 + $0x168] sm:$0xff] %v9158
    %9279 = vst [vmem:[%s3 + $0x170] sm:$0xff] %v9163
    %9280 = vst [vmem:[%s3 + $0x178] sm:$0xff] %v9166
    %9281 = vst [vmem:[%s3 + $0x180] sm:$0xff] %v9171
    %9282 = vst [vmem:[%s3 + $0x188] sm:$0xff] %v9174
    %9283 = vst [vmem:[%s3 + $0x190] sm:$0xff] %v9179
    %9284 = vst [vmem:[%s3 + $0x198] sm:$0xff] %v9182
    %9285 = vst [vmem:[%s3 + $0x1a0] sm:$0xff] %v9187
    %9286 = vst [vmem:[%s3 + $0x1a8] sm:$0xff] %v9190
    %9287 = vst [vmem:[%s3 + $0x1b0] sm:$0xff] %v9195
    %9288 = vst [vmem:[%s3 + $0x1b8] sm:$0xff] %v9198
    %9289 = vst [vmem:[%s3 + $0x1c0] sm:$0xff] %v9203
    %9290 = vst [vmem:[%s3 + $0x1c8] sm:$0xff] %v9206
    %9291 = vst [vmem:[%s3 + $0x1d0] sm:$0xff] %v9211
    %9292 = vst [vmem:[%s3 + $0x1d8] sm:$0xff] %v9214
    %9293 = vst [vmem:[%s3 + $0x1e0] sm:$0xff] %v9219
    %9294 = vst [vmem:[%s3 + $0x1e8] sm:$0xff] %v9222
    %9295 = vst [vmem:[%s3 + $0x1f0] sm:$0xff] %v9227
    %9296 = vst [vmem:[%s3 + $0x1f8] sm:$0xff] %v9230
    // Predicated region
    $region22: #{kernel_manual_5_forward.1} parent=1 // pred_check
      _
    $region23: #{kernel_manual_5_forward.1} parent=1 // pred_check_branch
      %9298 = sbr.rel (0) target = $region25
    $region24: #{kernel_manual_5_forward.1} parent=1 // pred_region
      _
    $region25: #{kernel_manual_5_forward.1} parent=1 // pred_fallthru
      _
    // Predicated region
    $region26: #{kernel_manual_5_forward.1} parent=1 // pred_check
      _
    $region27: #{kernel_manual_5_forward.1} parent=1 // pred_check_branch
      %9300 = sbr.rel (0) target = $region29
    $region28: #{kernel_manual_5_forward.1} parent=1 // pred_region
      _
    $region29: #{kernel_manual_5_forward.1} parent=1 // pred_fallthru
      _
    %9301 = vsyncpa [#allocation5], 1
    %9302 = vsyncpa [#allocation7], 1

</llo_original>
